<compile_context>
chip_gen: v5e
topology: v5e:2x2
jax: 0.10.0
libtpu: 0.0.40
codegen_flags: <defaults>
</compile_context>

<pallas_src>
import numpy as np
import jax
import jax.numpy as jnp
from jax.experimental import pallas as pl
from jax.experimental.pallas import tpu as pltpu

N, H, W = 2, 4, 4              # small spatial size; input channels fixed by the module
C_IN, C1, C2 = 1024, 256, 128
SCALE = 32
H_OUT, W_OUT = H * SCALE, W * SCALE
EPS = 1e-5
K_TAPS = 3                     # dy-taps per grid step -> layer-1 K chunk = 3 * C_IN = 3072
N_CHUNKS = 3


def relation_kernel(xw_ref, w1_ref, b1_ref, g1_ref, be1_ref,
                    w2_ref, b2_ref, g2_ref, be2_ref,
                    w3a_ref, b3_ref, ablk_ref, out_ref, acc_ref):
    k = pl.program_id(0)
    nk = pl.num_programs(0)

    @pl.when(k == 0)
    def _():
        acc_ref[...] = jnp.zeros_like(acc_ref)

    # ---- layer-1 partial: taps (dy=k, dx=0..2) as one long-K im2col matmul ----------
    # xw_ref block: (1, N*H, W+2, C_IN) bf16 — the dy=k row-window of the padded input.
    xw = xw_ref[0]                                               # (N*H, W+2, C_IN)
    taps = [xw[:, dx:dx + W, :].reshape(N * H * W, C_IN) for dx in range(3)]
    p1k = jnp.concatenate(taps, axis=1)                          # (32, 3*C_IN) bf16
    acc_ref[...] += jnp.dot(p1k, w1_ref[...],
                            preferred_element_type=jnp.float32)  # f32 accumulate

    # ---- epilogue on the last K chunk ------------------------------------------------
    @pl.when(k == nk - 1)
    def _():
        # BatchNorm2d (training-mode batch stats, two-pass) + ReLU
        acc1 = acc_ref[...] + b1_ref[...]                        # (32, C1) f32
        m1 = jnp.mean(acc1, axis=0, keepdims=True)
        v1 = jnp.mean(jnp.square(acc1 - m1), axis=0, keepdims=True)
        h1 = (acc1 - m1) * (g1_ref[...] * jax.lax.rsqrt(v1 + EPS)) + be1_ref[...]
        h1 = jnp.maximum(h1, 0.0).astype(jnp.bfloat16).reshape(N, H, W, C1)

        # zero-pad layer-1 output spatially as a value (no scratch round-trip)
        zrow = jnp.zeros((N, 1, W, C1), jnp.bfloat16)
        zcol = jnp.zeros((N, H + 2, 1, C1), jnp.bfloat16)
        h1p = jnp.concatenate([zrow, h1, zrow], axis=1)          # (N, H+2, W,   C1)
        h1p = jnp.concatenate([zcol, h1p, zcol], axis=2)         # (N, H+2, W+2, C1)

        # layer-2: 3x3 conv (pad=1) as one long-K im2col matmul
        taps2 = []
        for dy in range(3):
            for dx in range(3):
                taps2.append(h1p[:, dy:dy + H, dx:dx + W, :].reshape(N * H * W, C1))
        p2 = jnp.concatenate(taps2, axis=1)                      # (32, 9*C1) bf16
        acc2 = jnp.dot(p2, w2_ref[...],
                       preferred_element_type=jnp.float32) + b2_ref[...]
        m2 = jnp.mean(acc2, axis=0, keepdims=True)
        v2 = jnp.mean(jnp.square(acc2 - m2), axis=0, keepdims=True)
        h2 = (acc2 - m2) * (g2_ref[...] * jax.lax.rsqrt(v2 + EPS)) + be2_ref[...]
        h2 = jnp.maximum(h2, 0.0)                                # (32, C2) f32

        # fc1 (1x1 conv -> 1 channel) folded into the W-axis bilinear matrix:
        #   t[n*H+h, wout] = sum_{w,c} h2[n,h,w,c] * w3[c] * AT[w,wout] + b3
        h2b = h2.astype(jnp.bfloat16).reshape(N * H, W * C2)     # (8, 512) bf16
        t = jnp.dot(h2b, w3a_ref[...],
                    preferred_element_type=jnp.float32) + b3_ref[0, 0]   # (8, W_OUT)

        # H-axis bilinear upsample for both images as a single block-diagonal matmul,
        # sigmoid fused into the store.
        o = jnp.dot(ablk_ref[...], t.astype(jnp.bfloat16),
                    preferred_element_type=jnp.float32)          # (N*H_OUT, W_OUT)
        out_ref[...] = jax.nn.sigmoid(o).reshape(N, H_OUT, W_OUT)


def bilinear_matrix(in_size, out_size):
    """Interpolation matrix matching PyTorch bilinear upsample, align_corners=False."""
    scale = in_size / out_size
    dst = np.arange(out_size)
    src = np.maximum((dst + 0.5) * scale - 0.5, 0.0)
    i0 = np.minimum(np.floor(src).astype(np.int64), in_size - 1)
    i1 = np.minimum(i0 + 1, in_size - 1)
    lam = (src - i0).astype(np.float32)
    A = np.zeros((out_size, in_size), dtype=np.float32)
    A[dst, i0] += 1.0 - lam
    A[dst, i1] += lam
    return A


def init_params(key):
    ks = jax.random.split(key, 10)

    def conv_w_fused(k, cin, cout):
        # built directly in the fused im2col layout (9*cin, cout), tap-major (dy,dx) on K
        std = 1.0 / np.sqrt(cin * 9)
        return (jax.random.normal(k, (9 * cin, cout), jnp.float32) * std).astype(jnp.bfloat16)

    A_h = bilinear_matrix(H, H_OUT)                 # (H_OUT, H)
    AT_w = bilinear_matrix(W, W_OUT).T              # (W, W_OUT)

    p = {}
    p["w1"] = conv_w_fused(ks[0], C_IN, C1)
    p["b1"] = jax.random.normal(ks[1], (1, C1), jnp.float32) * 0.05
    p["g1"] = 1.0 + 0.1 * jax.random.normal(ks[2], (1, C1), jnp.float32)
    p["be1"] = 0.1 * jax.random.normal(ks[3], (1, C1), jnp.float32)
    p["w2"] = conv_w_fused(ks[4], C1, C2)
    p["b2"] = jax.random.normal(ks[5], (1, C2), jnp.float32) * 0.05
    p["g2"] = 1.0 + 0.1 * jax.random.normal(ks[6], (1, C2), jnp.float32)
    p["be2"] = 0.1 * jax.random.normal(ks[7], (1, C2), jnp.float32)

    w3 = jax.random.normal(ks[8], (C2,), jnp.float32) * (1.0 / np.sqrt(C2))
    p["b3"] = jax.random.normal(ks[9], (1, 1), jnp.float32) * 0.05

    # fc1 weight folded into the W-axis upsample matrix: W3A[w*C2+c, wout] = w3[c]*AT[w,wout].
    # Bilinear weights sum to 1 per output column, so the fc1 bias just adds as a scalar.
    at = jnp.asarray(AT_w)                                        # (W, W_OUT)
    p["w3a"] = (at[:, None, :] * w3[None, :, None]).reshape(W * C2, W_OUT).astype(jnp.bfloat16)

    # block-diagonal H-axis upsample matrix covering all N images in one matmul
    p["ablk"] = jnp.asarray(np.kron(np.eye(N, dtype=np.float32), A_h)).astype(jnp.bfloat16)
    return p


def _const_spec(shape):
    nd = len(shape)
    return pl.BlockSpec(shape, lambda k, _nd=nd: (0,) * _nd)


@jax.jit
def relation_network_forward(x_nchw, p):
    # NCHW -> NHWC bf16, zero-pad spatially, and pre-stack the 3 dy-windows so each grid
    # step receives exactly its im2col rows via plain block indexing (all XLA glue fuses).
    x = jnp.transpose(x_nchw, (0, 2, 3, 1)).astype(jnp.bfloat16)          # (N, H, W, C)
    x_pad = jnp.pad(x, ((0, 0), (1, 1), (1, 1), (0, 0)))                  # (N, H+2, W+2, C)
    x_win = jnp.stack(
        [x_pad[:, dy:dy + H, :, :].reshape(N * H, W + 2, C_IN) for dy in range(3)],
        axis=0)                                                           # (3, N*H, W+2, C)

    out = pl.pallas_call(
        relation_kernel,
        out_shape=jax.ShapeDtypeStruct((N, H_OUT, W_OUT), jnp.float32),
        grid=(N_CHUNKS,),
        in_specs=[
            pl.BlockSpec((1, N * H, W + 2, C_IN), lambda k: (k, 0, 0, 0)),   # x dy-window
            pl.BlockSpec((K_TAPS * C_IN, C1), lambda k: (k, 0)),             # w1 K-chunk (pipelined)
            _const_spec((1, C1)), _const_spec((1, C1)), _const_spec((1, C1)),  # b1, g1, be1
            _const_spec((9 * C1, C2)),                                       # w2
            _const_spec((1, C2)), _const_spec((1, C2)), _const_spec((1, C2)),  # b2, g2, be2
            _const_spec((W * C2, W_OUT)),                                    # fc1 ⊗ W-upsample
            pl.BlockSpec(memory_space=pltpu.MemorySpace.SMEM),               # b3 scalar
            _const_spec((N * H_OUT, N * H)),                                 # block-diag H-upsample
        ],
        out_specs=pl.BlockSpec((N, H_OUT, W_OUT), lambda k: (0, 0, 0)),
        scratch_shapes=[pltpu.VMEM((N * H * W, C1), jnp.float32)],           # layer-1 accumulator
        compiler_params=pltpu.CompilerParams(
            dimension_semantics=("arbitrary",),
            vmem_limit_bytes=16 * 1024 * 1024),
        cost_estimate=pl.CostEstimate(flops=172_000_000,
                                      transcendentals=33_500,
                                      bytes_accessed=5_900_000),
    )(x_win, p["w1"], p["b1"], p["g1"], p["be1"],
      p["w2"], p["b2"], p["g2"], p["be2"],
      p["w3a"], p["b3"], p["ablk"])

    # back to PyTorch-style NCHW output (N, 1, H*32, W*32)
    return out.reshape(N, 1, H_OUT, W_OUT)


if __name__ == "__main__":
    key = jax.random.PRNGKey(0)
    k_x, k_p = jax.random.split(key)
    x = jax.random.normal(k_x, (N, C_IN, H, W), jnp.float32)
    params = init_params(k_p)

    out = relation_network_forward(x, params)
    out = jax.block_until_ready(out)

    assert out.shape == (N, 1, H_OUT, W_OUT)
    assert bool(jnp.all(jnp.isfinite(out)))
    assert bool(jnp.all((out >= 0.0) & (out <= 1.0)))  # sigmoid range
    print("KERNEL_OK")
</pallas_src>

<mosaic_0001>
module attributes {stable_mosaic.version = 11 : i64} {
  func.func @relation_kernel(%arg0: i32, %arg1: memref<1x8x6x1024xbf16, #tpu.memory_space<vmem>>, %arg2: memref<3072x256xbf16, #tpu.memory_space<vmem>>, %arg3: memref<1x256xf32, #tpu.memory_space<vmem>>, %arg4: memref<1x256xf32, #tpu.memory_space<vmem>>, %arg5: memref<1x256xf32, #tpu.memory_space<vmem>>, %arg6: memref<2304x128xbf16, #tpu.memory_space<vmem>>, %arg7: memref<1x128xf32, #tpu.memory_space<vmem>>, %arg8: memref<1x128xf32, #tpu.memory_space<vmem>>, %arg9: memref<1x128xf32, #tpu.memory_space<vmem>>, %arg10: memref<512x128xbf16, #tpu.memory_space<vmem>>, %arg11: memref<1x1xf32, #tpu.memory_space<smem>>, %arg12: memref<256x8xbf16, #tpu.memory_space<vmem>>, %arg13: memref<2x128x128xf32, #tpu.memory_space<vmem>>, %arg14: memref<32x256xf32, #tpu.memory_space<vmem>>) attributes {dimension_semantics = [#tpu.dimension_semantics<arbitrary>], iteration_bounds = array<i64: 3>, scalar_prefetch = 0 : i64, scratch_operands = 1 : i64, tpu.core_type = #tpu.core_type<tc>, window_params = [{transform_indices = @transform_0, window_bounds = array<i64: 1, 8, 6, 1024>}, {transform_indices = @transform_1, window_bounds = array<i64: 3072, 256>}, {pipeline_mode = #tpu.pipeline_mode<synchronous>, transform_indices = @transform_2, window_bounds = array<i64: 1, 256>}, {pipeline_mode = #tpu.pipeline_mode<synchronous>, transform_indices = @transform_3, window_bounds = array<i64: 1, 256>}, {pipeline_mode = #tpu.pipeline_mode<synchronous>, transform_indices = @transform_4, window_bounds = array<i64: 1, 256>}, {pipeline_mode = #tpu.pipeline_mode<synchronous>, transform_indices = @transform_5, window_bounds = array<i64: 2304, 128>}, {pipeline_mode = #tpu.pipeline_mode<synchronous>, transform_indices = @transform_6, window_bounds = array<i64: 1, 128>}, {pipeline_mode = #tpu.pipeline_mode<synchronous>, transform_indices = @transform_7, window_bounds = array<i64: 1, 128>}, {pipeline_mode = #tpu.pipeline_mode<synchronous>, transform_indices = @transform_8, window_bounds = array<i64: 1, 128>}, {pipeline_mode = #tpu.pipeline_mode<synchronous>, transform_indices = @transform_9, window_bounds = array<i64: 512, 128>}, {transform_indices = @transform_10, window_bounds = array<i64: 1, 1>}, {pipeline_mode = #tpu.pipeline_mode<synchronous>, transform_indices = @transform_11, window_bounds = array<i64: 256, 8>}, {pipeline_mode = #tpu.pipeline_mode<synchronous>, transform_indices = @transform_12, window_bounds = array<i64: 2, 128, 128>}]} {
    %c0_i32 = arith.constant 0 : i32
    %0 = arith.cmpi eq, %arg0, %c0_i32 : i32
    %1 = arith.extui %0 : i1 to i32
    %c0_i32_0 = arith.constant 0 : i32
    %2 = arith.cmpi ne, %1, %c0_i32_0 : i32
    scf.if %2 {
      %cst_11 = arith.constant 0.000000e+00 : f32
      %20 = vector.broadcast %cst_11 : f32 to vector<32x256xf32>
      %c0_12 = arith.constant 0 : index
      %c0_13 = arith.constant 0 : index
      %21 = vector.load %arg14[%c0_12, %c0_13] : memref<32x256xf32, #tpu.memory_space<vmem>>, vector<32x256xf32>
      tpu.vector_store %arg14[%c0_12, %c0_13], %20 {strides = array<i32>} : memref<32x256xf32, #tpu.memory_space<vmem>>, vector<32x256xf32>,
    } else {
    }
    %c0 = arith.constant 0 : index
    %c0_1 = arith.constant 0 : index
    %c0_2 = arith.constant 0 : index
    %c0_3 = arith.constant 0 : index
    %3 = vector.load %arg1[%c0, %c0_1, %c0_2, %c0_3] : memref<1x8x6x1024xbf16, #tpu.memory_space<vmem>>, vector<1x8x6x1024xbf16>
    %4 = vector.shape_cast %3 : vector<1x8x6x1024xbf16> to vector<8x6x1024xbf16>
    %5 = vector.extract_strided_slice %4 {offsets = [0, 0, 0], sizes = [8, 4, 1024], strides = [1, 1, 1]} : vector<8x6x1024xbf16> to vector<8x4x1024xbf16>
    %6 = vector.shape_cast %5 : vector<8x4x1024xbf16> to vector<32x1024xbf16>
    %7 = vector.extract_strided_slice %4 {offsets = [0, 1, 0], sizes = [8, 4, 1024], strides = [1, 1, 1]} : vector<8x6x1024xbf16> to vector<8x4x1024xbf16>
    %8 = vector.shape_cast %7 : vector<8x4x1024xbf16> to vector<32x1024xbf16>
    %9 = vector.extract_strided_slice %4 {offsets = [0, 2, 0], sizes = [8, 4, 1024], strides = [1, 1, 1]} : vector<8x6x1024xbf16> to vector<8x4x1024xbf16>
    %10 = vector.shape_cast %9 : vector<8x4x1024xbf16> to vector<32x1024xbf16>
    %11 = tpu.concatenate %6, %8, %10 in 1 : vector<32x1024xbf16>, vector<32x1024xbf16>, vector<32x1024xbf16> -> vector<32x3072xbf16>
    %c0_4 = arith.constant 0 : index
    %c0_5 = arith.constant 0 : index
    %12 = vector.load %arg14[%c0_4, %c0_5] : memref<32x256xf32, #tpu.memory_space<vmem>>, vector<32x256xf32>
    %c0_6 = arith.constant 0 : index
    %c0_7 = arith.constant 0 : index
    %13 = vector.load %arg2[%c0_6, %c0_7] : memref<3072x256xbf16, #tpu.memory_space<vmem>>, vector<3072x256xbf16>
    %cst = arith.constant dense<0.000000e+00> : vector<32x256xf32>
    %14 = tpu.matmul %11, %13, %cst {dimension_numbers = #tpu.dot_dimension_numbers<[1], [0], [0], [1], [0, 0, 1, 1], [], []>} : vector<32x3072xbf16>, vector<3072x256xbf16>, vector<32x256xf32> -> vector<32x256xf32>
    %15 = arith.addf %12, %14 : vector<32x256xf32>
    %c0_8 = arith.constant 0 : index
    %c0_9 = arith.constant 0 : index
    %16 = vector.load %arg14[%c0_8, %c0_9] : memref<32x256xf32, #tpu.memory_space<vmem>>, vector<32x256xf32>
    tpu.vector_store %arg14[%c0_8, %c0_9], %15 {strides = array<i32>} : memref<32x256xf32, #tpu.memory_space<vmem>>, vector<32x256xf32>,
    %c2_i32 = arith.constant 2 : i32
    %17 = arith.cmpi eq, %arg0, %c2_i32 : i32
    %18 = arith.extui %17 : i1 to i32
    %c0_i32_10 = arith.constant 0 : i32
    %19 = arith.cmpi ne, %18, %c0_i32_10 : i32
    scf.if %19 {
      %c0_11 = arith.constant 0 : index
      %c0_12 = arith.constant 0 : index
      %20 = vector.load %arg14[%c0_11, %c0_12] : memref<32x256xf32, #tpu.memory_space<vmem>>, vector<32x256xf32>
      %c0_13 = arith.constant 0 : index
      %c0_14 = arith.constant 0 : index
      %21 = vector.load %arg3[%c0_13, %c0_14] : memref<1x256xf32, #tpu.memory_space<vmem>>, vector<1x256xf32>
      %22 = vector.broadcast %21 : vector<1x256xf32> to vector<32x256xf32>
      %23 = arith.addf %20, %22 : vector<32x256xf32>
      %cst_15 = arith.constant dense<0.000000e+00> : vector<256xf32>
      %24 = vector.multi_reduction <add>, %23, %cst_15 [0] : vector<32x256xf32> to vector<256xf32>
      %25 = vector.shape_cast %24 : vector<256xf32> to vector<1x256xf32>
      %cst_16 = arith.constant 3.200000e+01 : f32
      %26 = vector.broadcast %cst_16 : f32 to vector<1x256xf32>
      %27 = arith.divf %25, %26 : vector<1x256xf32>
      %28 = vector.broadcast %27 : vector<1x256xf32> to vector<32x256xf32>
      %29 = arith.subf %23, %28 : vector<32x256xf32>
      %30 = arith.mulf %29, %29 : vector<32x256xf32>
      %cst_17 = arith.constant dense<0.000000e+00> : vector<256xf32>
      %31 = vector.multi_reduction <add>, %30, %cst_17 [0] : vector<32x256xf32> to vector<256xf32>
      %32 = vector.shape_cast %31 : vector<256xf32> to vector<1x256xf32>
      %cst_18 = arith.constant 3.200000e+01 : f32
      %33 = vector.broadcast %cst_18 : f32 to vector<1x256xf32>
      %34 = arith.divf %32, %33 : vector<1x256xf32>
      %35 = vector.broadcast %27 : vector<1x256xf32> to vector<32x256xf32>
      %36 = arith.subf %23, %35 : vector<32x256xf32>
      %c0_19 = arith.constant 0 : index
      %c0_20 = arith.constant 0 : index
      %37 = vector.load %arg4[%c0_19, %c0_20] : memref<1x256xf32, #tpu.memory_space<vmem>>, vector<1x256xf32>
      %cst_21 = arith.constant 9.99999974E-6 : f32
      %38 = vector.broadcast %cst_21 : f32 to vector<1x256xf32>
      %39 = arith.addf %34, %38 : vector<1x256xf32>
      %40 = math.rsqrt %39 : vector<1x256xf32>
      %41 = arith.mulf %37, %40 : vector<1x256xf32>
      %42 = vector.broadcast %41 : vector<1x256xf32> to vector<32x256xf32>
      %43 = arith.mulf %36, %42 : vector<32x256xf32>
      %c0_22 = arith.constant 0 : index
      %c0_23 = arith.constant 0 : index
      %44 = vector.load %arg5[%c0_22, %c0_23] : memref<1x256xf32, #tpu.memory_space<vmem>>, vector<1x256xf32>
      %45 = vector.broadcast %44 : vector<1x256xf32> to vector<32x256xf32>
      %46 = arith.addf %43, %45 : vector<32x256xf32>
      %cst_24 = arith.constant 0.000000e+00 : f32
      %47 = vector.broadcast %cst_24 : f32 to vector<32x256xf32>
      %48 = arith.maximumf %46, %47 : vector<32x256xf32>
      %49 = arith.truncf %48 : vector<32x256xf32> to vector<32x256xbf16>
      %50 = vector.shape_cast %49 : vector<32x256xbf16> to vector<2x4x4x256xbf16>
      %cst_25 = arith.constant 0.000000e+00 : bf16
      %51 = vector.broadcast %cst_25 : bf16 to vector<2x1x4x256xbf16>
      %cst_26 = arith.constant 0.000000e+00 : bf16
      %52 = vector.broadcast %cst_26 : bf16 to vector<2x6x1x256xbf16>
      %53 = tpu.concatenate %51, %50, %51 in 1 : vector<2x1x4x256xbf16>, vector<2x4x4x256xbf16>, vector<2x1x4x256xbf16> -> vector<2x6x4x256xbf16>
      %54 = tpu.concatenate %52, %53, %52 in 2 : vector<2x6x1x256xbf16>, vector<2x6x4x256xbf16>, vector<2x6x1x256xbf16> -> vector<2x6x6x256xbf16>
      %55 = vector.extract_strided_slice %54 {offsets = [0, 0, 0, 0], sizes = [2, 4, 4, 256], strides = [1, 1, 1, 1]} : vector<2x6x6x256xbf16> to vector<2x4x4x256xbf16>
      %56 = vector.shape_cast %55 : vector<2x4x4x256xbf16> to vector<32x256xbf16>
      %57 = vector.extract_strided_slice %54 {offsets = [0, 0, 1, 0], sizes = [2, 4, 4, 256], strides = [1, 1, 1, 1]} : vector<2x6x6x256xbf16> to vector<2x4x4x256xbf16>
      %58 = vector.shape_cast %57 : vector<2x4x4x256xbf16> to vector<32x256xbf16>
      %59 = vector.extract_strided_slice %54 {offsets = [0, 0, 2, 0], sizes = [2, 4, 4, 256], strides = [1, 1, 1, 1]} : vector<2x6x6x256xbf16> to vector<2x4x4x256xbf16>
      %60 = vector.shape_cast %59 : vector<2x4x4x256xbf16> to vector<32x256xbf16>
      %61 = vector.extract_strided_slice %54 {offsets = [0, 1, 0, 0], sizes = [2, 4, 4, 256], strides = [1, 1, 1, 1]} : vector<2x6x6x256xbf16> to vector<2x4x4x256xbf16>
      %62 = vector.shape_cast %61 : vector<2x4x4x256xbf16> to vector<32x256xbf16>
      %63 = vector.extract_strided_slice %54 {offsets = [0, 1, 1, 0], sizes = [2, 4, 4, 256], strides = [1, 1, 1, 1]} : vector<2x6x6x256xbf16> to vector<2x4x4x256xbf16>
      %64 = vector.shape_cast %63 : vector<2x4x4x256xbf16> to vector<32x256xbf16>
      %65 = vector.extract_strided_slice %54 {offsets = [0, 1, 2, 0], sizes = [2, 4, 4, 256], strides = [1, 1, 1, 1]} : vector<2x6x6x256xbf16> to vector<2x4x4x256xbf16>
      %66 = vector.shape_cast %65 : vector<2x4x4x256xbf16> to vector<32x256xbf16>
      %67 = vector.extract_strided_slice %54 {offsets = [0, 2, 0, 0], sizes = [2, 4, 4, 256], strides = [1, 1, 1, 1]} : vector<2x6x6x256xbf16> to vector<2x4x4x256xbf16>
      %68 = vector.shape_cast %67 : vector<2x4x4x256xbf16> to vector<32x256xbf16>
      %69 = vector.extract_strided_slice %54 {offsets = [0, 2, 1, 0], sizes = [2, 4, 4, 256], strides = [1, 1, 1, 1]} : vector<2x6x6x256xbf16> to vector<2x4x4x256xbf16>
      %70 = vector.shape_cast %69 : vector<2x4x4x256xbf16> to vector<32x256xbf16>
      %71 = vector.extract_strided_slice %54 {offsets = [0, 2, 2, 0], sizes = [2, 4, 4, 256], strides = [1, 1, 1, 1]} : vector<2x6x6x256xbf16> to vector<2x4x4x256xbf16>
      %72 = vector.shape_cast %71 : vector<2x4x4x256xbf16> to vector<32x256xbf16>
      %73 = tpu.concatenate %56, %58, %60, %62, %64, %66, %68, %70, %72 in 1 : vector<32x256xbf16>, vector<32x256xbf16>, vector<32x256xbf16>, vector<32x256xbf16>, vector<32x256xbf16>, vector<32x256xbf16>, vector<32x256xbf16>, vector<32x256xbf16>, vector<32x256xbf16> -> vector<32x2304xbf16>
      %c0_27 = arith.constant 0 : index
      %c0_28 = arith.constant 0 : index
      %74 = vector.load %arg6[%c0_27, %c0_28] : memref<2304x128xbf16, #tpu.memory_space<vmem>>, vector<2304x128xbf16>
      %cst_29 = arith.constant dense<0.000000e+00> : vector<32x128xf32>
      %75 = tpu.matmul %73, %74, %cst_29 {dimension_numbers = #tpu.dot_dimension_numbers<[1], [0], [0], [1], [0, 0, 1, 1], [], []>} : vector<32x2304xbf16>, vector<2304x128xbf16>, vector<32x128xf32> -> vector<32x128xf32>
      %c0_30 = arith.constant 0 : index
      %c0_31 = arith.constant 0 : index
      %76 = vector.load %arg7[%c0_30, %c0_31] : memref<1x128xf32, #tpu.memory_space<vmem>>, vector<1x128xf32>
      %77 = vector.broadcast %76 : vector<1x128xf32> to vector<32x128xf32>
      %78 = arith.addf %75, %77 : vector<32x128xf32>
      %cst_32 = arith.constant dense<0.000000e+00> : vector<128xf32>
      %79 = vector.multi_reduction <add>, %78, %cst_32 [0] : vector<32x128xf32> to vector<128xf32>
      %80 = vector.shape_cast %79 : vector<128xf32> to vector<1x128xf32>
      %cst_33 = arith.constant 3.200000e+01 : f32
      %81 = vector.broadcast %cst_33 : f32 to vector<1x128xf32>
      %82 = arith.divf %80, %81 : vector<1x128xf32>
      %83 = vector.broadcast %82 : vector<1x128xf32> to vector<32x128xf32>
      %84 = arith.subf %78, %83 : vector<32x128xf32>
      %85 = arith.mulf %84, %84 : vector<32x128xf32>
      %cst_34 = arith.constant dense<0.000000e+00> : vector<128xf32>
      %86 = vector.multi_reduction <add>, %85, %cst_34 [0] : vector<32x128xf32> to vector<128xf32>
      %87 = vector.shape_cast %86 : vector<128xf32> to vector<1x128xf32>
      %cst_35 = arith.constant 3.200000e+01 : f32
      %88 = vector.broadcast %cst_35 : f32 to vector<1x128xf32>
      %89 = arith.divf %87, %88 : vector<1x128xf32>
      %90 = vector.broadcast %82 : vector<1x128xf32> to vector<32x128xf32>
      %91 = arith.subf %78, %90 : vector<32x128xf32>
      %c0_36 = arith.constant 0 : index
      %c0_37 = arith.constant 0 : index
      %92 = vector.load %arg8[%c0_36, %c0_37] : memref<1x128xf32, #tpu.memory_space<vmem>>, vector<1x128xf32>
      %cst_38 = arith.constant 9.99999974E-6 : f32
      %93 = vector.broadcast %cst_38 : f32 to vector<1x128xf32>
      %94 = arith.addf %89, %93 : vector<1x128xf32>
      %95 = math.rsqrt %94 : vector<1x128xf32>
      %96 = arith.mulf %92, %95 : vector<1x128xf32>
      %97 = vector.broadcast %96 : vector<1x128xf32> to vector<32x128xf32>
      %98 = arith.mulf %91, %97 : vector<32x128xf32>
      %c0_39 = arith.constant 0 : index
      %c0_40 = arith.constant 0 : index
      %99 = vector.load %arg9[%c0_39, %c0_40] : memref<1x128xf32, #tpu.memory_space<vmem>>, vector<1x128xf32>
      %100 = vector.broadcast %99 : vector<1x128xf32> to vector<32x128xf32>
      %101 = arith.addf %98, %100 : vector<32x128xf32>
      %cst_41 = arith.constant 0.000000e+00 : f32
      %102 = vector.broadcast %cst_41 : f32 to vector<32x128xf32>
      %103 = arith.maximumf %101, %102 : vector<32x128xf32>
      %104 = arith.truncf %103 : vector<32x128xf32> to vector<32x128xbf16>
      %105 = vector.shape_cast %104 : vector<32x128xbf16> to vector<8x512xbf16>
      %c0_42 = arith.constant 0 : index
      %c0_43 = arith.constant 0 : index
      %106 = vector.load %arg10[%c0_42, %c0_43] : memref<512x128xbf16, #tpu.memory_space<vmem>>, vector<512x128xbf16>
      %cst_44 = arith.constant dense<0.000000e+00> : vector<8x128xf32>
      %107 = tpu.matmul %105, %106, %cst_44 {dimension_numbers = #tpu.dot_dimension_numbers<[1], [0], [0], [1], [0, 0, 1, 1], [], []>} : vector<8x512xbf16>, vector<512x128xbf16>, vector<8x128xf32> -> vector<8x128xf32>
      %c0_45 = arith.constant 0 : index
      %c0_46 = arith.constant 0 : index
      %108 = memref.load %arg11[%c0_45, %c0_46] : memref<1x1xf32, #tpu.memory_space<smem>>
      %109 = vector.broadcast %108 : f32 to vector<8x128xf32>
      %110 = arith.addf %107, %109 : vector<8x128xf32>
      %c0_47 = arith.constant 0 : index
      %c0_48 = arith.constant 0 : index
      %111 = vector.load %arg12[%c0_47, %c0_48] : memref<256x8xbf16, #tpu.memory_space<vmem>>, vector<256x8xbf16>
      %112 = arith.truncf %110 : vector<8x128xf32> to vector<8x128xbf16>
      %cst_49 = arith.constant dense<0.000000e+00> : vector<256x128xf32>
      %113 = tpu.matmul %111, %112, %cst_49 {dimension_numbers = #tpu.dot_dimension_numbers<[1], [0], [0], [1], [0, 0, 1, 1], [], []>} : vector<256x8xbf16>, vector<8x128xbf16>, vector<256x128xf32> -> vector<256x128xf32>
      %114 = arith.negf %113 : vector<256x128xf32>
      %115 = math.exp %114 : vector<256x128xf32>
      %cst_50 = arith.constant 1.000000e+00 : f32
      %116 = vector.broadcast %cst_50 : f32 to vector<256x128xf32>
      %117 = arith.addf %116, %115 : vector<256x128xf32>
      %118 = arith.divf %116, %117 : vector<256x128xf32>
      %119 = vector.shape_cast %118 : vector<256x128xf32> to vector<2x128x128xf32>
      %c0_51 = arith.constant 0 : index
      %c0_52 = arith.constant 0 : index
      %c0_53 = arith.constant 0 : index
      %120 = vector.load %arg13[%c0_51, %c0_52, %c0_53] : memref<2x128x128xf32, #tpu.memory_space<vmem>>, vector<2x128x128xf32>
      tpu.vector_store %arg13[%c0_51, %c0_52, %c0_53], %119 {strides = array<i32>} : memref<2x128x128xf32, #tpu.memory_space<vmem>>, vector<2x128x128xf32>,
    } else {
    }
    return
  }
  func.func @transform_0(%arg0: i32) -> (i32, i32, i32, i32) {
    %c0_i32 = arith.constant 0 : i32
    %c0_i32_0 = arith.constant 0 : i32
    %c0_i32_1 = arith.constant 0 : i32
    %c0_i32_2 = arith.constant 0 : i32
    return %arg0, %c0_i32, %c0_i32_0, %c0_i32_1 : i32, i32, i32, i32
  }
  func.func @transform_1(%arg0: i32) -> (i32, i32) {
    %c0_i32 = arith.constant 0 : i32
    %c0_i32_0 = arith.constant 0 : i32
    return %arg0, %c0_i32 : i32, i32
  }
  func.func @transform_2(%arg0: i32) -> (i32, i32) {
    %c0_i32 = arith.constant 0 : i32
    %c0_i32_0 = arith.constant 0 : i32
    %c0_i32_1 = arith.constant 0 : i32
    return %c0_i32, %c0_i32_0 : i32, i32
  }
  func.func @transform_3(%arg0: i32) -> (i32, i32) {
    %c0_i32 = arith.constant 0 : i32
    %c0_i32_0 = arith.constant 0 : i32
    %c0_i32_1 = arith.constant 0 : i32
    return %c0_i32, %c0_i32_0 : i32, i32
  }
  func.func @transform_4(%arg0: i32) -> (i32, i32) {
    %c0_i32 = arith.constant 0 : i32
    %c0_i32_0 = arith.constant 0 : i32
    %c0_i32_1 = arith.constant 0 : i32
    return %c0_i32, %c0_i32_0 : i32, i32
  }
  func.func @transform_5(%arg0: i32) -> (i32, i32) {
    %c0_i32 = arith.constant 0 : i32
    %c0_i32_0 = arith.constant 0 : i32
    %c0_i32_1 = arith.constant 0 : i32
    return %c0_i32, %c0_i32_0 : i32, i32
  }
  func.func @transform_6(%arg0: i32) -> (i32, i32) {
    %c0_i32 = arith.constant 0 : i32
    %c0_i32_0 = arith.constant 0 : i32
    %c0_i32_1 = arith.constant 0 : i32
    return %c0_i32, %c0_i32_0 : i32, i32
  }
  func.func @transform_7(%arg0: i32) -> (i32, i32) {
    %c0_i32 = arith.constant 0 : i32
    %c0_i32_0 = arith.constant 0 : i32
    %c0_i32_1 = arith.constant 0 : i32
    return %c0_i32, %c0_i32_0 : i32, i32
  }
  func.func @transform_8(%arg0: i32) -> (i32, i32) {
    %c0_i32 = arith.constant 0 : i32
    %c0_i32_0 = arith.constant 0 : i32
    %c0_i32_1 = arith.constant 0 : i32
    return %c0_i32, %c0_i32_0 : i32, i32
  }
  func.func @transform_9(%arg0: i32) -> (i32, i32) {
    %c0_i32 = arith.constant 0 : i32
    %c0_i32_0 = arith.constant 0 : i32
    %c0_i32_1 = arith.constant 0 : i32
    return %c0_i32, %c0_i32_0 : i32, i32
  }
  func.func @transform_10(%arg0: i32) -> (i32, i32) {
    %c0_i32 = arith.constant 0 : i32
    %c0_i32_0 = arith.constant 0 : i32
    %c0_i32_1 = arith.constant 0 : i32
    return %c0_i32, %c0_i32_0 : i32, i32
  }
  func.func @transform_11(%arg0: i32) -> (i32, i32) {
    %c0_i32 = arith.constant 0 : i32
    %c0_i32_0 = arith.constant 0 : i32
    %c0_i32_1 = arith.constant 0 : i32
    return %c0_i32, %c0_i32_0 : i32, i32
  }
  func.func @transform_12(%arg0: i32) -> (i32, i32, i32) {
    %c0_i32 = arith.constant 0 : i32
    %c0_i32_0 = arith.constant 0 : i32
    %c0_i32_1 = arith.constant 0 : i32
    %c0_i32_2 = arith.constant 0 : i32
    return %c0_i32, %c0_i32_0, %c0_i32_1 : i32, i32, i32
  }
}

</mosaic_0001>

<llo_original>
// kernel: relation_network_forward.1
$region0: #{relation_network_forward.1}
  #allocation0 [shape = 'u32[]', space=smem, size = 0x4, offset = 0x4, fixed_abs, tag = 'smem constant byte address 0x4 - core index']
  #allocation1 [shape = 'u32[72,128]{1,0:T(1,128)}', space=vmem, size = 0x9000, scoped, tag = 'internal scratch']
  #allocation2 [shape = 'f32[32,256]{1,0:T(8,128)}', space=vmem, size = 0x8000, scoped, tag = 'scratch operand']
  #allocation3 [shape = 'f32[1,1]{1,0:T(1,128)S(6)}', space=smem, size = 0x200, scoped, tag = 'scoped memory for relation_network_forward.1']
  %s0 = inlined_call_operand.vmem [shape: bf16[3,8,6,1024], index: 0, kind: input, shape index: {}]
  %s1 = inlined_call_operand.hbm [shape: bf16[9216,256], index: 1, kind: input, shape index: {}]
  %s2 = inlined_call_operand.hbm [shape: f32[1,256], index: 2, kind: input, shape index: {}]
  %s3 = inlined_call_operand.hbm [shape: f32[1,256], index: 3, kind: input, shape index: {}]
  %s4 = inlined_call_operand.hbm [shape: f32[1,256], index: 4, kind: input, shape index: {}]
  %s5 = inlined_call_operand.hbm [shape: bf16[2304,128], index: 5, kind: input, shape index: {}]
  %s6 = inlined_call_operand.hbm [shape: f32[1,128], index: 6, kind: input, shape index: {}]
  %s7 = inlined_call_operand.hbm [shape: f32[1,128], index: 7, kind: input, shape index: {}]
  %s8 = inlined_call_operand.hbm [shape: f32[1,128], index: 8, kind: input, shape index: {}]
  %s9 = inlined_call_operand.hbm [shape: bf16[512,128], index: 9, kind: input, shape index: {}]
  %s10 = inlined_call_operand.<no memory space> [shape: f32[1,1], index: 10, kind: input, shape index: {}]
  %s11 = inlined_call_operand.vmem [shape: bf16[256,8], index: 11, kind: input, shape index: {}]
  %s12 = inlined_call_operand.hbm [shape: f32[2,128,128], index: 12, kind: output, shape index: {}]
  %s13 = sld [smem:[#allocation0]]
  $region125: #{relation_network_forward.1} parent=0
    _
  %s15 = ssub.s32 1, %s13
  %s16 = scalar_select 0, %s15, %s13
  %17 = sst [smem:[#allocation3]] %s10
  $region1: #{relation_network_forward.1} parent=0
    #allocation4 [shape = 'u8[3145728]{0}', space=vmem, size = 0x300000, scoped, tag = 'input window, operand 1']
    #allocation5 [shape = 's32[2]{0}', space=sflag, size = 0x8, scoped, tag = 'scoped memory for relation_network_forward.1']
    #allocation6 [shape = 's32[2]{0}', space=sflag, size = 0x8, scoped, tag = 'scoped memory for relation_network_forward.1']
    #allocation7 [shape = 'u8[1024]{0}', space=vmem, size = 0x400, scoped, tag = 'input window, operand 2, single buffered']
    #allocation8 [shape = 's32[1]{0}', space=sflag, size = 0x4, scoped, tag = 'scoped memory for relation_network_forward.1']
    #allocation9 [shape = 'u8[1024]{0}', space=vmem, size = 0x400, scoped, tag = 'input window, operand 3, single buffered']
    #allocation10 [shape = 'u8[1024]{0}', space=vmem, size = 0x400, scoped, tag = 'input window, operand 4, single buffered']
    #allocation11 [shape = 's32[1]{0}', space=sflag, size = 0x4, scoped, tag = 'scoped memory for relation_network_forward.1']
    #allocation12 [shape = 'u8[589824]{0}', space=vmem, size = 0x90000, scoped, tag = 'input window, operand 5, single buffered']
    #allocation13 [shape = 'u8[512]{0}', space=vmem, size = 0x400, scoped, tag = 'input window, operand 6, single buffered']
    #allocation14 [shape = 's32[1]{0}', space=sflag, size = 0x4, scoped, tag = 'scoped memory for relation_network_forward.1']
    #allocation15 [shape = 'u8[512]{0}', space=vmem, size = 0x400, scoped, tag = 'input window, operand 7, single buffered']
    #allocation16 [shape = 'u8[512]{0}', space=vmem, size = 0x400, scoped, tag = 'input window, operand 8, single buffered']
    #allocation17 [shape = 's32[1]{0}', space=sflag, size = 0x4, scoped, tag = 'scoped memory for relation_network_forward.1']
    #allocation18 [shape = 'u8[131072]{0}', space=vmem, size = 0x20000, scoped, tag = 'input window, operand 9, single buffered']
    #allocation19 [shape = 'u8[131072]{0}', space=vmem, size = 0x20000, scoped, tag = 'output window, operand 0, single buffered']
    %18 = vsyncpa [#allocation5], 0
    %s19 = scalar_lea.sflag [#allocation5], 1
    %20 = vsyncpa %s19, 0
    %21 = vsyncpa [#allocation8], 0
    %22 = vsyncpa [#allocation11], 0
    %23 = vsyncpa [#allocation14], 0
    %24 = vsyncpa [#allocation17], 0
    %25 = vsyncpa [#allocation6], 0
    loop: start=0, step=1, limit=5
    $region2: #{relation_network_forward.1} parent=1 // loop_pre_header
      _
    $region3: #{relation_network_forward.1} parent=1 // loop_header
      %s27 = sphi 0, %s31
      %p28 = scmp.ge.s32.totalorder %s27, 5
      %s37 = sphi 0, %s39
      %s40 = sphi 0, %s37
      %s41 = sphi 0, %s40
      %s57 = sphi 0, %s41
      %s63 = sphi 0, %s65
      %s66 = sphi 0, %s63
      %s67 = sphi 0, %s66
      %s83 = sphi 0, %s67
      %s87 = sphi 0, %s87
      %s89 = sphi 0, %s87
      %s90 = sphi 0, %s89
      %s104 = sphi 0, %s90
      %s108 = sphi 0, %s108
      %s110 = sphi 0, %s108
      %s111 = sphi 0, %s110
      %s125 = sphi 0, %s111
      %s129 = sphi 0, %s129
      %s131 = sphi 0, %s129
      %s132 = sphi 0, %s131
      %s146 = sphi 0, %s132
      %s150 = sphi 0, %s150
      %s152 = sphi 0, %s150
      %s153 = sphi 0, %s152
      %s167 = sphi 0, %s153
      %s171 = sphi 0, %s171
      %s173 = sphi 0, %s171
      %s174 = sphi 0, %s173
      %s188 = sphi 0, %s174
      %s192 = sphi 0, %s192
      %s194 = sphi 0, %s192
      %s195 = sphi 0, %s194
      %s209 = sphi 0, %s195
      %s213 = sphi 0, %s213
      %s215 = sphi 0, %s213
      %s216 = sphi 0, %s215
      %s230 = sphi 0, %s216
      %s234 = sphi 0, %s234
      %s236 = sphi 0, %s234
      %s237 = sphi 0, %s236
      %s251 = sphi 0, %s237
      %s255 = sphi 0, %s255
      %s257 = sphi 0, %s255
      %s258 = sphi 0, %s257
      %s272 = sphi 0, %s258
      %s276 = sphi 0, %s276
      %s278 = sphi 0, %s276
      %s279 = sphi 0, %s278
      %s293 = sphi 0, %s279
      %s297 = sphi 0, %s297
      %s299 = sphi 0, %s297
      %s300 = sphi 0, %s299
      %s314 = sphi 0, %s300
    $region4: #{relation_network_forward.1} parent=1 // loop_header_branch
      %30 = sbr.rel (%p28) target = $region8
    $region5: #{relation_network_forward.1} parent=1 // loop_body
      %s32 = ssub.s32 %s27, 1
      %s33 = ssub.s32 %s27, 2
      %s34 = sadd.s32 %s27, 1
      %s35 = ssub.s32 %s27, %s34
      %p36 = scmp.eq.s32.totalorder %s35, 0
      %s38 = sadd.s32 %s37, 1
      %s39 = scalar_select %p36, %s37, %s38
      %p42 = pneg %p36
      %p43 = scmp.eq.s32.totalorder %s27, 2
      %p44 = por %p42, %p43
      %p45 = scmp.ne.s32.totalorder %s37, %s40
      %p46 = scmp.eq.s32.totalorder %s27, 0
      %p47 = por %p45, %p46
      %p48 = scmp.ne.s32.totalorder %s37, %s40
      %p49 = scmp.eq.s32.totalorder %s32, 2
      %p50 = por %p48, %p49
      %p51 = scmp.ne.s32.totalorder %s40, %s41
      %p52 = scmp.eq.s32.totalorder %s32, 0
      %p53 = por %p51, %p52
      %p54 = scmp.ne.s32.totalorder %s40, %s41
      %p55 = scmp.eq.s32.totalorder %s33, 2
      %p56 = por %p54, %p55
      %p58 = scmp.ne.s32.totalorder %s41, %s57
      %p59 = scmp.eq.s32.totalorder %s33, 0
      %p60 = por %p58, %p59
      %s61 = ssub.s32 %s27, %s34
      %p62 = scmp.eq.s32.totalorder %s61, 0
      %s64 = sadd.s32 %s63, 1
      %s65 = scalar_select %p62, %s63, %s64
      %p68 = pneg %p62
      %p69 = scmp.eq.s32.totalorder %s27, 2
      %p70 = por %p68, %p69
      %p71 = scmp.ne.s32.totalorder %s63, %s66
      %p72 = scmp.eq.s32.totalorder %s27, 0
      %p73 = por %p71, %p72
      %p74 = scmp.ne.s32.totalorder %s63, %s66
      %p75 = scmp.eq.s32.totalorder %s32, 2
      %p76 = por %p74, %p75
      %p77 = scmp.ne.s32.totalorder %s66, %s67
      %p78 = scmp.eq.s32.totalorder %s32, 0
      %p79 = por %p77, %p78
      %p80 = scmp.ne.s32.totalorder %s66, %s67
      %p81 = scmp.eq.s32.totalorder %s33, 2
      %p82 = por %p80, %p81
      %p84 = scmp.ne.s32.totalorder %s67, %s83
      %p85 = scmp.eq.s32.totalorder %s33, 0
      %p86 = por %p84, %p85
      %s88 = sadd.s32 %s87, 1
      %p91 = scmp.eq.s32.totalorder %s27, 2
      %p92 = scmp.ne.s32.totalorder %s87, %s89
      %p93 = scmp.eq.s32.totalorder %s27, 0
      %p94 = por %p92, %p93
      %p95 = scmp.ne.s32.totalorder %s87, %s89
      %p96 = scmp.eq.s32.totalorder %s32, 2
      %p97 = por %p95, %p96
      %p98 = scmp.ne.s32.totalorder %s89, %s90
      %p99 = scmp.eq.s32.totalorder %s32, 0
      %p100 = por %p98, %p99
      %p101 = scmp.ne.s32.totalorder %s89, %s90
      %p102 = scmp.eq.s32.totalorder %s33, 2
      %p103 = por %p101, %p102
      %p105 = scmp.ne.s32.totalorder %s90, %s104
      %p106 = scmp.eq.s32.totalorder %s33, 0
      %p107 = por %p105, %p106
      %s109 = sadd.s32 %s108, 1
      %p112 = scmp.eq.s32.totalorder %s27, 2
      %p113 = scmp.ne.s32.totalorder %s108, %s110
      %p114 = scmp.eq.s32.totalorder %s27, 0
      %p115 = por %p113, %p114
      %p116 = scmp.ne.s32.totalorder %s108, %s110
      %p117 = scmp.eq.s32.totalorder %s32, 2
      %p118 = por %p116, %p117
      %p119 = scmp.ne.s32.totalorder %s110, %s111
      %p120 = scmp.eq.s32.totalorder %s32, 0
      %p121 = por %p119, %p120
      %p122 = scmp.ne.s32.totalorder %s110, %s111
      %p123 = scmp.eq.s32.totalorder %s33, 2
      %p124 = por %p122, %p123
      %p126 = scmp.ne.s32.totalorder %s111, %s125
      %p127 = scmp.eq.s32.totalorder %s33, 0
      %p128 = por %p126, %p127
      %s130 = sadd.s32 %s129, 1
      %p133 = scmp.eq.s32.totalorder %s27, 2
      %p134 = scmp.ne.s32.totalorder %s129, %s131
      %p135 = scmp.eq.s32.totalorder %s27, 0
      %p136 = por %p134, %p135
      %p137 = scmp.ne.s32.totalorder %s129, %s131
      %p138 = scmp.eq.s32.totalorder %s32, 2
      %p139 = por %p137, %p138
      %p140 = scmp.ne.s32.totalorder %s131, %s132
      %p141 = scmp.eq.s32.totalorder %s32, 0
      %p142 = por %p140, %p141
      %p143 = scmp.ne.s32.totalorder %s131, %s132
      %p144 = scmp.eq.s32.totalorder %s33, 2
      %p145 = por %p143, %p144
      %p147 = scmp.ne.s32.totalorder %s132, %s146
      %p148 = scmp.eq.s32.totalorder %s33, 0
      %p149 = por %p147, %p148
      %s151 = sadd.s32 %s150, 1
      %p154 = scmp.eq.s32.totalorder %s27, 2
      %p155 = scmp.ne.s32.totalorder %s150, %s152
      %p156 = scmp.eq.s32.totalorder %s27, 0
      %p157 = por %p155, %p156
      %p158 = scmp.ne.s32.totalorder %s150, %s152
      %p159 = scmp.eq.s32.totalorder %s32, 2
      %p160 = por %p158, %p159
      %p161 = scmp.ne.s32.totalorder %s152, %s153
      %p162 = scmp.eq.s32.totalorder %s32, 0
      %p163 = por %p161, %p162
      %p164 = scmp.ne.s32.totalorder %s152, %s153
      %p165 = scmp.eq.s32.totalorder %s33, 2
      %p166 = por %p164, %p165
      %p168 = scmp.ne.s32.totalorder %s153, %s167
      %p169 = scmp.eq.s32.totalorder %s33, 0
      %p170 = por %p168, %p169
      %s172 = sadd.s32 %s171, 1
      %p175 = scmp.eq.s32.totalorder %s27, 2
      %p176 = scmp.ne.s32.totalorder %s171, %s173
      %p177 = scmp.eq.s32.totalorder %s27, 0
      %p178 = por %p176, %p177
      %p179 = scmp.ne.s32.totalorder %s171, %s173
      %p180 = scmp.eq.s32.totalorder %s32, 2
      %p181 = por %p179, %p180
      %p182 = scmp.ne.s32.totalorder %s173, %s174
      %p183 = scmp.eq.s32.totalorder %s32, 0
      %p184 = por %p182, %p183
      %p185 = scmp.ne.s32.totalorder %s173, %s174
      %p186 = scmp.eq.s32.totalorder %s33, 2
      %p187 = por %p185, %p186
      %p189 = scmp.ne.s32.totalorder %s174, %s188
      %p190 = scmp.eq.s32.totalorder %s33, 0
      %p191 = por %p189, %p190
      %s193 = sadd.s32 %s192, 1
      %p196 = scmp.eq.s32.totalorder %s27, 2
      %p197 = scmp.ne.s32.totalorder %s192, %s194
      %p198 = scmp.eq.s32.totalorder %s27, 0
      %p199 = por %p197, %p198
      %p200 = scmp.ne.s32.totalorder %s192, %s194
      %p201 = scmp.eq.s32.totalorder %s32, 2
      %p202 = por %p200, %p201
      %p203 = scmp.ne.s32.totalorder %s194, %s195
      %p204 = scmp.eq.s32.totalorder %s32, 0
      %p205 = por %p203, %p204
      %p206 = scmp.ne.s32.totalorder %s194, %s195
      %p207 = scmp.eq.s32.totalorder %s33, 2
      %p208 = por %p206, %p207
      %p210 = scmp.ne.s32.totalorder %s195, %s209
      %p211 = scmp.eq.s32.totalorder %s33, 0
      %p212 = por %p210, %p211
      %s214 = sadd.s32 %s213, 1
      %p217 = scmp.eq.s32.totalorder %s27, 2
      %p218 = scmp.ne.s32.totalorder %s213, %s215
      %p219 = scmp.eq.s32.totalorder %s27, 0
      %p220 = por %p218, %p219
      %p221 = scmp.ne.s32.totalorder %s213, %s215
      %p222 = scmp.eq.s32.totalorder %s32, 2
      %p223 = por %p221, %p222
      %p224 = scmp.ne.s32.totalorder %s215, %s216
      %p225 = scmp.eq.s32.totalorder %s32, 0
      %p226 = por %p224, %p225
      %p227 = scmp.ne.s32.totalorder %s215, %s216
      %p228 = scmp.eq.s32.totalorder %s33, 2
      %p229 = por %p227, %p228
      %p231 = scmp.ne.s32.totalorder %s216, %s230
      %p232 = scmp.eq.s32.totalorder %s33, 0
      %p233 = por %p231, %p232
      %s235 = sadd.s32 %s234, 1
      %p238 = scmp.eq.s32.totalorder %s27, 2
      %p239 = scmp.ne.s32.totalorder %s234, %s236
      %p240 = scmp.eq.s32.totalorder %s27, 0
      %p241 = por %p239, %p240
      %p242 = scmp.ne.s32.totalorder %s234, %s236
      %p243 = scmp.eq.s32.totalorder %s32, 2
      %p244 = por %p242, %p243
      %p245 = scmp.ne.s32.totalorder %s236, %s237
      %p246 = scmp.eq.s32.totalorder %s32, 0
      %p247 = por %p245, %p246
      %p248 = scmp.ne.s32.totalorder %s236, %s237
      %p249 = scmp.eq.s32.totalorder %s33, 2
      %p250 = por %p248, %p249
      %p252 = scmp.ne.s32.totalorder %s237, %s251
      %p253 = scmp.eq.s32.totalorder %s33, 0
      %p254 = por %p252, %p253
      %s256 = sadd.s32 %s255, 1
      %p259 = scmp.eq.s32.totalorder %s27, 2
      %p260 = scmp.ne.s32.totalorder %s255, %s257
      %p261 = scmp.eq.s32.totalorder %s27, 0
      %p262 = por %p260, %p261
      %p263 = scmp.ne.s32.totalorder %s255, %s257
      %p264 = scmp.eq.s32.totalorder %s32, 2
      %p265 = por %p263, %p264
      %p266 = scmp.ne.s32.totalorder %s257, %s258
      %p267 = scmp.eq.s32.totalorder %s32, 0
      %p268 = por %p266, %p267
      %p269 = scmp.ne.s32.totalorder %s257, %s258
      %p270 = scmp.eq.s32.totalorder %s33, 2
      %p271 = por %p269, %p270
      %p273 = scmp.ne.s32.totalorder %s258, %s272
      %p274 = scmp.eq.s32.totalorder %s33, 0
      %p275 = por %p273, %p274
      %s277 = sadd.s32 %s276, 1
      %p280 = scmp.eq.s32.totalorder %s27, 2
      %p281 = scmp.ne.s32.totalorder %s276, %s278
      %p282 = scmp.eq.s32.totalorder %s27, 0
      %p283 = por %p281, %p282
      %p284 = scmp.ne.s32.totalorder %s276, %s278
      %p285 = scmp.eq.s32.totalorder %s32, 2
      %p286 = por %p284, %p285
      %p287 = scmp.ne.s32.totalorder %s278, %s279
      %p288 = scmp.eq.s32.totalorder %s32, 0
      %p289 = por %p287, %p288
      %p290 = scmp.ne.s32.totalorder %s278, %s279
      %p291 = scmp.eq.s32.totalorder %s33, 2
      %p292 = por %p290, %p291
      %p294 = scmp.ne.s32.totalorder %s279, %s293
      %p295 = scmp.eq.s32.totalorder %s33, 0
      %p296 = por %p294, %p295
      %s298 = sadd.s32 %s297, 1
      %p301 = scmp.eq.s32.totalorder %s27, 2
      %p302 = scmp.ne.s32.totalorder %s297, %s299
      %p303 = scmp.eq.s32.totalorder %s27, 0
      %p304 = por %p302, %p303
      %p305 = scmp.ne.s32.totalorder %s297, %s299
      %p306 = scmp.eq.s32.totalorder %s32, 2
      %p307 = por %p305, %p306
      %p308 = scmp.ne.s32.totalorder %s299, %s300
      %p309 = scmp.eq.s32.totalorder %s32, 0
      %p310 = por %p308, %p309
      %p311 = scmp.ne.s32.totalorder %s299, %s300
      %p312 = scmp.eq.s32.totalorder %s33, 2
      %p313 = por %p311, %p312
      %p315 = scmp.ne.s32.totalorder %s300, %s314
      %p316 = scmp.eq.s32.totalorder %s33, 0
      %p317 = por %p315, %p316
      %p318 = scmp.le.s32.totalorder 1, %s27
      %p319 = scmp.lt.s32.totalorder %s27, 4
      %p320 = pnand %p318, %p319
      %p321 = pneg %p320
      // Predicated region
      $region9: #{relation_network_forward.1} parent=5 // pred_check
        _
      $region10: #{relation_network_forward.1} parent=5 // pred_check_branch
        %323 = sbr.rel (%p320) target = $region12
      $region11: #{relation_network_forward.1} parent=5 // pred_region
        %s324 = ssub.s32 %s27, 1
        // Predicated region
        $region13: #{relation_network_forward.1} parent=11 // pred_check
          %p325 = pneg %p100
        $region14: #{relation_network_forward.1} parent=11 // pred_check_branch
          %327 = sbr.rel (%p325) target = $region16
        $region15: #{relation_network_forward.1} parent=11 // pred_region
          %329 = vsyncadd [#allocation8], 0
          %s331 = sshll.u32 %s2, 4
          %s332 = int_to_ptr.hbm [resolvable:$true] %s331
          %s333 = sshll.u32 [#allocation7], 4
          %s334 = int_to_ptr.vmem [resolvable:$true] %s333
          %336 = dma.hbm_to_vmem [thread:$0]  %s332, 32, %s334, [#allocation8]
        $region16: #{relation_network_forward.1} parent=11 // pred_fallthru
          _
        // Predicated region
        $region17: #{relation_network_forward.1} parent=11 // pred_check
          %p337 = pneg %p121
        $region18: #{relation_network_forward.1} parent=11 // pred_check_branch
          %339 = sbr.rel (%p337) target = $region20
        $region19: #{relation_network_forward.1} parent=11 // pred_region
          %341 = vsyncadd [#allocation8], 0
          %s343 = sshll.u32 %s3, 4
          %s344 = int_to_ptr.hbm [resolvable:$true] %s343
          %s345 = sshll.u32 [#allocation9], 4
          %s346 = int_to_ptr.vmem [resolvable:$true] %s345
          %348 = dma.hbm_to_vmem [thread:$0]  %s344, 32, %s346, [#allocation8]
        $region20: #{relation_network_forward.1} parent=11 // pred_fallthru
          _
        // Predicated region
        $region21: #{relation_network_forward.1} parent=11 // pred_check
          %p349 = pneg %p142
        $region22: #{relation_network_forward.1} parent=11 // pred_check_branch
          %351 = sbr.rel (%p349) target = $region24
        $region23: #{relation_network_forward.1} parent=11 // pred_region
          %353 = vsyncadd [#allocation11], 0
          %s355 = sshll.u32 %s4, 4
          %s356 = int_to_ptr.hbm [resolvable:$true] %s355
          %s357 = sshll.u32 [#allocation10], 4
          %s358 = int_to_ptr.vmem [resolvable:$true] %s357
          %360 = dma.hbm_to_vmem [thread:$0]  %s356, 32, %s358, [#allocation11]
        $region24: #{relation_network_forward.1} parent=11 // pred_fallthru
          _
        // Predicated region
        $region25: #{relation_network_forward.1} parent=11 // pred_check
          %p361 = pneg %p163
        $region26: #{relation_network_forward.1} parent=11 // pred_check_branch
          %363 = sbr.rel (%p361) target = $region28
        $region27: #{relation_network_forward.1} parent=11 // pred_region
          %365 = vsyncadd [#allocation11], 0
          %s366 = sshll.u32 %s5, 4
          %s367 = int_to_ptr.hbm [resolvable:$true] %s366
          %s368 = sshll.u32 [#allocation12], 4
          %s369 = int_to_ptr.vmem [resolvable:$true] %s368
          %374 = dma.hbm_to_vmem [thread:$0]  %s367, 18432, %s369, [#allocation11], 64, 64, 4
        $region28: #{relation_network_forward.1} parent=11 // pred_fallthru
          _
        // Predicated region
        $region29: #{relation_network_forward.1} parent=11 // pred_check
          %p375 = pneg %p184
        $region30: #{relation_network_forward.1} parent=11 // pred_check_branch
          %377 = sbr.rel (%p375) target = $region32
        $region31: #{relation_network_forward.1} parent=11 // pred_region
          %379 = vsyncadd [#allocation14], 0
          %s381 = sshll.u32 %s6, 4
          %s382 = int_to_ptr.hbm [resolvable:$true] %s381
          %s383 = sshll.u32 [#allocation13], 4
          %s384 = int_to_ptr.vmem [resolvable:$true] %s383
          %386 = dma.hbm_to_vmem [thread:$0]  %s382, 16, %s384, [#allocation14]
        $region32: #{relation_network_forward.1} parent=11 // pred_fallthru
          _
        // Predicated region
        $region33: #{relation_network_forward.1} parent=11 // pred_check
          %p387 = pneg %p205
        $region34: #{relation_network_forward.1} parent=11 // pred_check_branch
          %389 = sbr.rel (%p387) target = $region36
        $region35: #{relation_network_forward.1} parent=11 // pred_region
          %391 = vsyncadd [#allocation14], 0
          %s393 = sshll.u32 %s7, 4
          %s394 = int_to_ptr.hbm [resolvable:$true] %s393
          %s395 = sshll.u32 [#allocation15], 4
          %s396 = int_to_ptr.vmem [resolvable:$true] %s395
          %398 = dma.hbm_to_vmem [thread:$0]  %s394, 16, %s396, [#allocation14]
        $region36: #{relation_network_forward.1} parent=11 // pred_fallthru
          _
        // Predicated region
        $region37: #{relation_network_forward.1} parent=11 // pred_check
          %p399 = pneg %p226
        $region38: #{relation_network_forward.1} parent=11 // pred_check_branch
          %401 = sbr.rel (%p399) target = $region40
        $region39: #{relation_network_forward.1} parent=11 // pred_region
          %403 = vsyncadd [#allocation17], 0
          %s405 = sshll.u32 %s8, 4
          %s406 = int_to_ptr.hbm [resolvable:$true] %s405
          %s407 = sshll.u32 [#allocation16], 4
          %s408 = int_to_ptr.vmem [resolvable:$true] %s407
          %410 = dma.hbm_to_vmem [thread:$0]  %s406, 16, %s408, [#allocation17]
        $region40: #{relation_network_forward.1} parent=11 // pred_fallthru
          _
        // Predicated region
        $region41: #{relation_network_forward.1} parent=11 // pred_check
          %p411 = pneg %p247
        $region42: #{relation_network_forward.1} parent=11 // pred_check_branch
          %413 = sbr.rel (%p411) target = $region44
        $region43: #{relation_network_forward.1} parent=11 // pred_region
          %415 = vsyncadd [#allocation17], 0
          %s416 = sshll.u32 %s9, 4
          %s417 = int_to_ptr.hbm [resolvable:$true] %s416
          %s418 = sshll.u32 [#allocation18], 4
          %s419 = int_to_ptr.vmem [resolvable:$true] %s418
          %424 = dma.hbm_to_vmem [thread:$0]  %s417, 4096, %s419, [#allocation17], 64, 64, 4
        $region44: #{relation_network_forward.1} parent=11 // pred_fallthru
          _
        // Predicated region
        $region45: #{relation_network_forward.1} parent=11 // pred_check
          %p425 = pneg %p268
        $region46: #{relation_network_forward.1} parent=11 // pred_check_branch
          %427 = sbr.rel (%p425) target = $region48
        $region47: #{relation_network_forward.1} parent=11 // pred_region
          _
        $region48: #{relation_network_forward.1} parent=11 // pred_fallthru
          _
        // Predicated region
        $region49: #{relation_network_forward.1} parent=11 // pred_check
          %p428 = pneg %p289
        $region50: #{relation_network_forward.1} parent=11 // pred_check_branch
          %430 = sbr.rel (%p428) target = $region52
        $region51: #{relation_network_forward.1} parent=11 // pred_region
          _
        $region52: #{relation_network_forward.1} parent=11 // pred_fallthru
          _
      $region12: #{relation_network_forward.1} parent=5 // pred_fallthru
        _
      %p431 = scmp.lt.s32.totalorder %s27, 3
      // Predicated region
      $region53: #{relation_network_forward.1} parent=5 // pred_check
        %p432 = pneg %p431
      $region54: #{relation_network_forward.1} parent=5 // pred_check_branch
        %434 = sbr.rel (%p432) target = $region56
      $region55: #{relation_network_forward.1} parent=5 // pred_region
        // Predicated region
        $region57: #{relation_network_forward.1} parent=55 // pred_check
          %p435 = pneg %p47
        $region58: #{relation_network_forward.1} parent=55 // pred_check_branch
          %437 = sbr.rel (%p435) target = $region60
        $region59: #{relation_network_forward.1} parent=55 // pred_region
          %p438 = scmp.lt.s32.totalorder %s27, 2
          %s439 = scalar_select %p438, %s27, 2
          %s440 = smul.addr %s439, 64
          %s441 = smul.addr %s440, 4
          %s442 = scalar_lea.vmem %s0, %s441
        $region60: #{relation_network_forward.1} parent=55 // pred_fallthru
          _
        // Predicated region
        $region61: #{relation_network_forward.1} parent=55 // pred_check
          %p443 = pneg %p73
        $region62: #{relation_network_forward.1} parent=55 // pred_check_branch
          %445 = sbr.rel (%p443) target = $region64
        $region63: #{relation_network_forward.1} parent=55 // pred_region
          %s446 = sand.u32 %s63, 1
          %s447 = scalar_lea.sflag [#allocation5], %s446
          %s448 = sand.u32 %s63, 1
          %s449 = smul.addr %s448, 3072
          %s450 = scalar_lea.vmem [#allocation4], %s449
          %s451 = smul.u32 384, %s27
          %453 = vsyncadd %s447, 0
          %s454 = smul.addr %s451, 2
          %s455 = smul.addr %s454, 4
          %s456 = scalar_lea.hbm %s1, %s455
          %s457 = sshll.u32 %s456, 4
          %s458 = int_to_ptr.hbm [resolvable:$true] %s457
          %s459 = sshll.u32 %s450, 4
          %s460 = int_to_ptr.vmem [resolvable:$true] %s459
          %465 = dma.hbm_to_vmem [thread:$0]  %s458, 49152, %s460, %s447, 128, 128, 8
        $region64: #{relation_network_forward.1} parent=55 // pred_fallthru
          _
      $region56: #{relation_network_forward.1} parent=5 // pred_fallthru
        _
      %p466 = scmp.le.s32.totalorder 1, %s27
      %p467 = scmp.lt.s32.totalorder %s27, 4
      %p468 = pnand %p466, %p467
      %p469 = pneg %p468
      // Predicated region
      $region65: #{relation_network_forward.1} parent=5 // pred_check
        _
      $region66: #{relation_network_forward.1} parent=5 // pred_check_branch
        %471 = sbr.rel (%p468) target = $region68
      $region67: #{relation_network_forward.1} parent=5 // pred_region
        %s472 = ssub.s32 %s27, 1
        %s473 = sand.u32 %s66, 1
        %s474 = scalar_lea.sflag [#allocation5], %s473
        %s475 = sand.u32 %s66, 1
        %s476 = smul.addr %s475, 3072
        %s477 = scalar_lea.vmem [#allocation4], %s476
        // Predicated region
        $region69: #{relation_network_forward.1} parent=67 // pred_check
          %p478 = pneg %p79
        $region70: #{relation_network_forward.1} parent=67 // pred_check_branch
          %480 = sbr.rel (%p478) target = $region72
        $region71: #{relation_network_forward.1} parent=67 // pred_region
          %482 = dma.done %s474, 49152
        $region72: #{relation_network_forward.1} parent=67 // pred_fallthru
          _
        // Predicated region
        $region73: #{relation_network_forward.1} parent=67 // pred_check
          %p483 = pneg %p100
        $region74: #{relation_network_forward.1} parent=67 // pred_check_branch
          %485 = sbr.rel (%p483) target = $region76
        $region75: #{relation_network_forward.1} parent=67 // pred_region
          %487 = dma.done [#allocation8], 32
        $region76: #{relation_network_forward.1} parent=67 // pred_fallthru
          _
        // Predicated region
        $region77: #{relation_network_forward.1} parent=67 // pred_check
          %p488 = pneg %p121
        $region78: #{relation_network_forward.1} parent=67 // pred_check_branch
          %490 = sbr.rel (%p488) target = $region80
        $region79: #{relation_network_forward.1} parent=67 // pred_region
          %492 = dma.done [#allocation8], 32
        $region80: #{relation_network_forward.1} parent=67 // pred_fallthru
          _
        // Predicated region
        $region81: #{relation_network_forward.1} parent=67 // pred_check
          %p493 = pneg %p142
        $region82: #{relation_network_forward.1} parent=67 // pred_check_branch
          %495 = sbr.rel (%p493) target = $region84
        $region83: #{relation_network_forward.1} parent=67 // pred_region
          %497 = dma.done [#allocation11], 32
        $region84: #{relation_network_forward.1} parent=67 // pred_fallthru
          _
        // Predicated region
        $region85: #{relation_network_forward.1} parent=67 // pred_check
          %p498 = pneg %p163
        $region86: #{relation_network_forward.1} parent=67 // pred_check_branch
          %500 = sbr.rel (%p498) target = $region88
        $region87: #{relation_network_forward.1} parent=67 // pred_region
          %502 = dma.done [#allocation11], 18432
        $region88: #{relation_network_forward.1} parent=67 // pred_fallthru
          _
        // Predicated region
        $region89: #{relation_network_forward.1} parent=67 // pred_check
          %p503 = pneg %p184
        $region90: #{relation_network_forward.1} parent=67 // pred_check_branch
          %505 = sbr.rel (%p503) target = $region92
        $region91: #{relation_network_forward.1} parent=67 // pred_region
          %507 = dma.done [#allocation14], 16
        $region92: #{relation_network_forward.1} parent=67 // pred_fallthru
          _
        // Predicated region
        $region93: #{relation_network_forward.1} parent=67 // pred_check
          %p508 = pneg %p205
        $region94: #{relation_network_forward.1} parent=67 // pred_check_branch
          %510 = sbr.rel (%p508) target = $region96
        $region95: #{relation_network_forward.1} parent=67 // pred_region
          %512 = dma.done [#allocation14], 16
        $region96: #{relation_network_forward.1} parent=67 // pred_fallthru
          _
        // Predicated region
        $region97: #{relation_network_forward.1} parent=67 // pred_check
          %p513 = pneg %p226
        $region98: #{relation_network_forward.1} parent=67 // pred_check_branch
          %515 = sbr.rel (%p513) target = $region100
        $region99: #{relation_network_forward.1} parent=67 // pred_region
          %517 = dma.done [#allocation17], 16
        $region100: #{relation_network_forward.1} parent=67 // pred_fallthru
          _
        // Predicated region
        $region101: #{relation_network_forward.1} parent=67 // pred_check
          %p518 = pneg %p247
        $region102: #{relation_network_forward.1} parent=67 // pred_check_branch
          %520 = sbr.rel (%p518) target = $region104
        $region103: #{relation_network_forward.1} parent=67 // pred_region
          %522 = dma.done [#allocation17], 4096
        $region104: #{relation_network_forward.1} parent=67 // pred_fallthru
          _
        %p523 = scmp.lt.s32.totalorder %s32, 2
        %s524 = scalar_select %p523, %s32, 2
        %s525 = smul.addr %s524, 64
        %s526 = smul.addr %s525, 4
        %s527 = scalar_lea.vmem %s0, %s526
        %p528 = pneg %p53
        %p529 = pneg %p50
        %s530 = sand.u32 %s66, 1
        %s531 = scalar_lea.sflag [#allocation5], %s530
        %s532 = sand.u32 %s66, 1
        %s533 = smul.addr %s532, 3072
        %s534 = scalar_lea.vmem [#allocation4], %s533
        %p535 = pneg %p79
        %p536 = pneg %p76
        %p537 = pneg %p100
        %p538 = pneg %p97
        %p539 = pneg %p121
        %p540 = pneg %p118
        %p541 = pneg %p142
        %p542 = pneg %p139
        %p543 = pneg %p163
        %p544 = pneg %p160
        %p545 = pneg %p184
        %p546 = pneg %p181
        %p547 = pneg %p205
        %p548 = pneg %p202
        %p549 = pneg %p226
        %p550 = pneg %p223
        %p551 = pneg %p247
        %p552 = pneg %p244
        %p553 = pneg %p268
        %p554 = pneg %p265
        %p555 = pneg %p289
        %p556 = pneg %p286
        %p557 = pneg %p310
        %p558 = pneg %p307
        %p559 = scmp.lt.s32.totalorder %s32, 2
        %s560 = scalar_select %p559, %s32, 2
        %s561 = smul.addr %s560, 64
        %s562 = smul.addr %s561, 4
        %s563 = scalar_lea.vmem %s0, %s562
        %s564 = smul.u32 384, %s32
        %p566 = scmp.eq.s32.totalorder %s32, 0
        // Predicated region
        $region105: #{relation_network_forward.1} parent=67 // pred_check
          %p567 = pneg %p566
        $region106: #{relation_network_forward.1} parent=67 // pred_check_branch
          %569 = sbr.rel (%p567) target = $region108
        $region107: #{relation_network_forward.1} parent=67 // pred_region
          %570 = vst [vmem:[#allocation2] sm:$0xff] 0.0
          %571 = vst [vmem:[#allocation2 + $0x8] sm:$0xff] 0.0
          %572 = vst [vmem:[#allocation2 + $0x10] sm:$0xff] 0.0
          %573 = vst [vmem:[#allocation2 + $0x18] sm:$0xff] 0.0
          %574 = vst [vmem:[#allocation2 + $0x20] sm:$0xff] 0.0
          %575 = vst [vmem:[#allocation2 + $0x28] sm:$0xff] 0.0
          %576 = vst [vmem:[#allocation2 + $0x30] sm:$0xff] 0.0
          %577 = vst [vmem:[#allocation2 + $0x38] sm:$0xff] 0.0
        $region108: #{relation_network_forward.1} parent=67 // pred_fallthru
          _
        %v578 = vld [vmem:[%s563] sm:$0x77]
        %v579 = vld [vmem:[%s563 + $0x8] sm:$0x77]
        %v580 = vld [vmem:[%s563 + $0x10] sm:$0x77]
        %v581 = vld [vmem:[%s563 + $0x18] sm:$0x77]
        %v582 = vld [vmem:[%s563 + $0x20] sm:$0x77]
        %v583 = vld [vmem:[%s563 + $0x28] sm:$0x77]
        %v584 = vld [vmem:[%s563 + $0x30] sm:$0x77]
        %v585 = vld [vmem:[%s563 + $0x38] sm:$0x77]
        %v586 = vld [vmem:[%s563 + $0x40] sm:$0x77]
        %v587 = vld [vmem:[%s563 + $0x48] sm:$0x77]
        %v588 = vld [vmem:[%s563 + $0x50] sm:$0x77]
        %v589 = vld [vmem:[%s563 + $0x58] sm:$0x77]
        %v590 = vld [vmem:[%s563 + $0x60] sm:$0x77]
        %v591 = vld [vmem:[%s563 + $0x68] sm:$0x77]
        %v592 = vld [vmem:[%s563 + $0x70] sm:$0x77]
        %v593 = vld [vmem:[%s563 + $0x78] sm:$0x77]
        %v594 = vld [vmem:[%s563 + $0x80] sm:$0x77]
        %v595 = vld [vmem:[%s563 + $0x88] sm:$0x77]
        %v596 = vld [vmem:[%s563 + $0x90] sm:$0x77]
        %v597 = vld [vmem:[%s563 + $0x98] sm:$0x77]
        %v598 = vld [vmem:[%s563 + $0xa0] sm:$0x77]
        %v599 = vld [vmem:[%s563 + $0xa8] sm:$0x77]
        %v600 = vld [vmem:[%s563 + $0xb0] sm:$0x77]
        %v601 = vld [vmem:[%s563 + $0xb8] sm:$0x77]
        %v602 = vld [vmem:[%s563 + $0xc0] sm:$0x77]
        %v603 = vld [vmem:[%s563 + $0xc8] sm:$0x77]
        %v604 = vld [vmem:[%s563 + $0xd0] sm:$0x77]
        %v605 = vld [vmem:[%s563 + $0xd8] sm:$0x77]
        %v606 = vld [vmem:[%s563 + $0xe0] sm:$0x77]
        %v607 = vld [vmem:[%s563 + $0xe8] sm:$0x77]
        %v608 = vld [vmem:[%s563 + $0xf0] sm:$0x77]
        %v609 = vld [vmem:[%s563 + $0xf8] sm:$0x77]
        %v642 = vrot.slane %v578, 2
        %v643 = vrot.slane %v579, 4
        %v644 = vrot.slane %v579, 6
        %v645 = vrot.slane %v580, 2
        %v646 = vrot.slane %v581, 4
        %v647 = vrot.slane %v581, 6
        %v648 = vrot.slane %v582, 2
        %v649 = vrot.slane %v583, 4
        %v650 = vrot.slane %v583, 6
        %v651 = vrot.slane %v584, 2
        %v652 = vrot.slane %v585, 4
        %v653 = vrot.slane %v585, 6
        %v654 = vrot.slane %v586, 2
        %v655 = vrot.slane %v587, 4
        %v656 = vrot.slane %v587, 6
        %v657 = vrot.slane %v588, 2
        %v658 = vrot.slane %v589, 4
        %v659 = vrot.slane %v589, 6
        %v660 = vrot.slane %v590, 2
        %v661 = vrot.slane %v591, 4
        %v662 = vrot.slane %v591, 6
        %v663 = vrot.slane %v592, 2
        %v664 = vrot.slane %v593, 4
        %v665 = vrot.slane %v593, 6
        %v666 = vrot.slane %v594, 2
        %v667 = vrot.slane %v595, 4
        %v668 = vrot.slane %v595, 6
        %v669 = vrot.slane %v596, 2
        %v670 = vrot.slane %v597, 4
        %v671 = vrot.slane %v597, 6
        %v672 = vrot.slane %v598, 2
        %v673 = vrot.slane %v599, 4
        %v674 = vrot.slane %v599, 6
        %v675 = vrot.slane %v600, 2
        %v676 = vrot.slane %v601, 4
        %v677 = vrot.slane %v601, 6
        %v678 = vrot.slane %v602, 2
        %v679 = vrot.slane %v603, 4
        %v680 = vrot.slane %v603, 6
        %v681 = vrot.slane %v604, 2
        %v682 = vrot.slane %v605, 4
        %v683 = vrot.slane %v605, 6
        %v684 = vrot.slane %v606, 2
        %v685 = vrot.slane %v607, 4
        %v686 = vrot.slane %v607, 6
        %v687 = vrot.slane %v608, 2
        %v688 = vrot.slane %v609, 4
        %v689 = vrot.slane %v609, 6
        %vm690 = vcmask 1041408
        %v693 = vsel %vm690, %v578, %v642
        %vm694 = vcmask 1045508
        %v697 = vsel %vm694, %v643, %v644
        %vm698 = vcmask 1043456
        %v699 = vsel %vm698, %v693, %v697
        %v702 = vsel %vm690, %v580, %v645
        %v705 = vsel %vm694, %v646, %v647
        %v706 = vsel %vm698, %v702, %v705
        %v709 = vsel %vm690, %v582, %v648
        %v712 = vsel %vm694, %v649, %v650
        %v713 = vsel %vm698, %v709, %v712
        %v716 = vsel %vm690, %v584, %v651
        %v719 = vsel %vm694, %v652, %v653
        %v720 = vsel %vm698, %v716, %v719
        %v723 = vsel %vm690, %v586, %v654
        %v726 = vsel %vm694, %v655, %v656
        %v727 = vsel %vm698, %v723, %v726
        %v730 = vsel %vm690, %v588, %v657
        %v733 = vsel %vm694, %v658, %v659
        %v734 = vsel %vm698, %v730, %v733
        %v737 = vsel %vm690, %v590, %v660
        %v740 = vsel %vm694, %v661, %v662
        %v741 = vsel %vm698, %v737, %v740
        %v744 = vsel %vm690, %v592, %v663
        %v747 = vsel %vm694, %v664, %v665
        %v748 = vsel %vm698, %v744, %v747
        %v751 = vsel %vm690, %v594, %v666
        %v754 = vsel %vm694, %v667, %v668
        %v755 = vsel %vm698, %v751, %v754
        %v758 = vsel %vm690, %v596, %v669
        %v761 = vsel %vm694, %v670, %v671
        %v762 = vsel %vm698, %v758, %v761
        %v765 = vsel %vm690, %v598, %v672
        %v768 = vsel %vm694, %v673, %v674
        %v769 = vsel %vm698, %v765, %v768
        %v772 = vsel %vm690, %v600, %v675
        %v775 = vsel %vm694, %v676, %v677
        %v776 = vsel %vm698, %v772, %v775
        %v779 = vsel %vm690, %v602, %v678
        %v782 = vsel %vm694, %v679, %v680
        %v783 = vsel %vm698, %v779, %v782
        %v786 = vsel %vm690, %v604, %v681
        %v789 = vsel %vm694, %v682, %v683
        %v790 = vsel %vm698, %v786, %v789
        %v793 = vsel %vm690, %v606, %v684
        %v796 = vsel %vm694, %v685, %v686
        %v797 = vsel %vm698, %v793, %v796
        %v800 = vsel %vm690, %v608, %v687
        %v803 = vsel %vm694, %v688, %v689
        %v804 = vsel %vm698, %v800, %v803
        %vm805 = vcmask 1043458
        %v806 = vsel %vm805, %v578, %v642
        %vm807 = vcmask 1045504
        %v808 = vsel %vm807, %v644, %v643
        %vm809 = vcmask 1045506
        %v810 = vsel %vm809, %v806, %v808
        %v812 = vrot.slane %v810, 2
        %v813 = vsel %vm805, %v580, %v645
        %v814 = vsel %vm807, %v647, %v646
        %v815 = vsel %vm809, %v813, %v814
        %v817 = vrot.slane %v815, 2
        %v818 = vsel %vm805, %v582, %v648
        %v819 = vsel %vm807, %v650, %v649
        %v820 = vsel %vm809, %v818, %v819
        %v822 = vrot.slane %v820, 2
        %v823 = vsel %vm805, %v584, %v651
        %v824 = vsel %vm807, %v653, %v652
        %v825 = vsel %vm809, %v823, %v824
        %v827 = vrot.slane %v825, 2
        %v828 = vsel %vm805, %v586, %v654
        %v829 = vsel %vm807, %v656, %v655
        %v830 = vsel %vm809, %v828, %v829
        %v832 = vrot.slane %v830, 2
        %v833 = vsel %vm805, %v588, %v657
        %v834 = vsel %vm807, %v659, %v658
        %v835 = vsel %vm809, %v833, %v834
        %v837 = vrot.slane %v835, 2
        %v838 = vsel %vm805, %v590, %v660
        %v839 = vsel %vm807, %v662, %v661
        %v840 = vsel %vm809, %v838, %v839
        %v842 = vrot.slane %v840, 2
        %v843 = vsel %vm805, %v592, %v663
        %v844 = vsel %vm807, %v665, %v664
        %v845 = vsel %vm809, %v843, %v844
        %v847 = vrot.slane %v845, 2
        %v848 = vsel %vm805, %v594, %v666
        %v849 = vsel %vm807, %v668, %v667
        %v850 = vsel %vm809, %v848, %v849
        %v852 = vrot.slane %v850, 2
        %v853 = vsel %vm805, %v596, %v669
        %v854 = vsel %vm807, %v671, %v670
        %v855 = vsel %vm809, %v853, %v854
        %v857 = vrot.slane %v855, 2
        %v858 = vsel %vm805, %v598, %v672
        %v859 = vsel %vm807, %v674, %v673
        %v860 = vsel %vm809, %v858, %v859
        %v862 = vrot.slane %v860, 2
        %v863 = vsel %vm805, %v600, %v675
        %v864 = vsel %vm807, %v677, %v676
        %v865 = vsel %vm809, %v863, %v864
        %v867 = vrot.slane %v865, 2
        %v868 = vsel %vm805, %v602, %v678
        %v869 = vsel %vm807, %v680, %v679
        %v870 = vsel %vm809, %v868, %v869
        %v872 = vrot.slane %v870, 2
        %v873 = vsel %vm805, %v604, %v681
        %v874 = vsel %vm807, %v683, %v682
        %v875 = vsel %vm809, %v873, %v874
        %v877 = vrot.slane %v875, 2
        %v878 = vsel %vm805, %v606, %v684
        %v879 = vsel %vm807, %v686, %v685
        %v880 = vsel %vm809, %v878, %v879
        %v882 = vrot.slane %v880, 2
        %v883 = vsel %vm805, %v608, %v687
        %v884 = vsel %vm807, %v689, %v688
        %v885 = vsel %vm809, %v883, %v884
        %v887 = vrot.slane %v885, 2
        %vm888 = vsmask.f32 1280
        %vm889 = vsmask.f32 3336
        %vm890 = vmor %vm888, %vm889
        %vm891 = vsmask.f32 5392
        %vm892 = vmor %vm890, %vm891
        %vm893 = vsmask.f32 7448
        %vm894 = vmor %vm892, %vm893
        %v895 = vshrl.u32 %v699, 16
        %v897 = vrot.slane %v895, 6
        %v898 = vshll.u32 %v699, 16
        %v900 = vrot.slane %v898, 7
        %v901 = vor.u32 %v897, %v900
        %v902 = vrot.slane %v901, 2
        %v904 = vshll.u32 %v812, 16
        %v906 = vrot.slane %v904, 7
        %v907 = vsel %vm894, %v902, %v906
        %v908 = vshrl.u32 %v706, 16
        %v910 = vrot.slane %v908, 6
        %v911 = vshll.u32 %v706, 16
        %v913 = vrot.slane %v911, 7
        %v914 = vor.u32 %v910, %v913
        %v915 = vrot.slane %v914, 2
        %v917 = vshll.u32 %v817, 16
        %v919 = vrot.slane %v917, 7
        %v920 = vsel %vm894, %v915, %v919
        %v921 = vshrl.u32 %v713, 16
        %v923 = vrot.slane %v921, 6
        %v924 = vshll.u32 %v713, 16
        %v926 = vrot.slane %v924, 7
        %v927 = vor.u32 %v923, %v926
        %v928 = vrot.slane %v927, 2
        %v930 = vshll.u32 %v822, 16
        %v932 = vrot.slane %v930, 7
        %v933 = vsel %vm894, %v928, %v932
        %v934 = vshrl.u32 %v720, 16
        %v936 = vrot.slane %v934, 6
        %v937 = vshll.u32 %v720, 16
        %v939 = vrot.slane %v937, 7
        %v940 = vor.u32 %v936, %v939
        %v941 = vrot.slane %v940, 2
        %v943 = vshll.u32 %v827, 16
        %v945 = vrot.slane %v943, 7
        %v946 = vsel %vm894, %v941, %v945
        %v947 = vshrl.u32 %v727, 16
        %v949 = vrot.slane %v947, 6
        %v950 = vshll.u32 %v727, 16
        %v952 = vrot.slane %v950, 7
        %v953 = vor.u32 %v949, %v952
        %v954 = vrot.slane %v953, 2
        %v956 = vshll.u32 %v832, 16
        %v958 = vrot.slane %v956, 7
        %v959 = vsel %vm894, %v954, %v958
        %v960 = vshrl.u32 %v734, 16
        %v962 = vrot.slane %v960, 6
        %v963 = vshll.u32 %v734, 16
        %v965 = vrot.slane %v963, 7
        %v966 = vor.u32 %v962, %v965
        %v967 = vrot.slane %v966, 2
        %v969 = vshll.u32 %v837, 16
        %v971 = vrot.slane %v969, 7
        %v972 = vsel %vm894, %v967, %v971
        %v973 = vshrl.u32 %v741, 16
        %v975 = vrot.slane %v973, 6
        %v976 = vshll.u32 %v741, 16
        %v978 = vrot.slane %v976, 7
        %v979 = vor.u32 %v975, %v978
        %v980 = vrot.slane %v979, 2
        %v982 = vshll.u32 %v842, 16
        %v984 = vrot.slane %v982, 7
        %v985 = vsel %vm894, %v980, %v984
        %v986 = vshrl.u32 %v748, 16
        %v988 = vrot.slane %v986, 6
        %v989 = vshll.u32 %v748, 16
        %v991 = vrot.slane %v989, 7
        %v992 = vor.u32 %v988, %v991
        %v993 = vrot.slane %v992, 2
        %v995 = vshll.u32 %v847, 16
        %v997 = vrot.slane %v995, 7
        %v998 = vsel %vm894, %v993, %v997
        %v999 = vshrl.u32 %v755, 16
        %v1001 = vrot.slane %v999, 6
        %v1002 = vshll.u32 %v755, 16
        %v1004 = vrot.slane %v1002, 7
        %v1005 = vor.u32 %v1001, %v1004
        %v1006 = vrot.slane %v1005, 2
        %v1008 = vshll.u32 %v852, 16
        %v1010 = vrot.slane %v1008, 7
        %v1011 = vsel %vm894, %v1006, %v1010
        %v1012 = vshrl.u32 %v762, 16
        %v1014 = vrot.slane %v1012, 6
        %v1015 = vshll.u32 %v762, 16
        %v1017 = vrot.slane %v1015, 7
        %v1018 = vor.u32 %v1014, %v1017
        %v1019 = vrot.slane %v1018, 2
        %v1021 = vshll.u32 %v857, 16
        %v1023 = vrot.slane %v1021, 7
        %v1024 = vsel %vm894, %v1019, %v1023
        %v1025 = vshrl.u32 %v769, 16
        %v1027 = vrot.slane %v1025, 6
        %v1028 = vshll.u32 %v769, 16
        %v1030 = vrot.slane %v1028, 7
        %v1031 = vor.u32 %v1027, %v1030
        %v1032 = vrot.slane %v1031, 2
        %v1034 = vshll.u32 %v862, 16
        %v1036 = vrot.slane %v1034, 7
        %v1037 = vsel %vm894, %v1032, %v1036
        %v1038 = vshrl.u32 %v776, 16
        %v1040 = vrot.slane %v1038, 6
        %v1041 = vshll.u32 %v776, 16
        %v1043 = vrot.slane %v1041, 7
        %v1044 = vor.u32 %v1040, %v1043
        %v1045 = vrot.slane %v1044, 2
        %v1047 = vshll.u32 %v867, 16
        %v1049 = vrot.slane %v1047, 7
        %v1050 = vsel %vm894, %v1045, %v1049
        %v1051 = vshrl.u32 %v783, 16
        %v1053 = vrot.slane %v1051, 6
        %v1054 = vshll.u32 %v783, 16
        %v1056 = vrot.slane %v1054, 7
        %v1057 = vor.u32 %v1053, %v1056
        %v1058 = vrot.slane %v1057, 2
        %v1060 = vshll.u32 %v872, 16
        %v1062 = vrot.slane %v1060, 7
        %v1063 = vsel %vm894, %v1058, %v1062
        %v1064 = vshrl.u32 %v790, 16
        %v1066 = vrot.slane %v1064, 6
        %v1067 = vshll.u32 %v790, 16
        %v1069 = vrot.slane %v1067, 7
        %v1070 = vor.u32 %v1066, %v1069
        %v1071 = vrot.slane %v1070, 2
        %v1073 = vshll.u32 %v877, 16
        %v1075 = vrot.slane %v1073, 7
        %v1076 = vsel %vm894, %v1071, %v1075
        %v1077 = vshrl.u32 %v797, 16
        %v1079 = vrot.slane %v1077, 6
        %v1080 = vshll.u32 %v797, 16
        %v1082 = vrot.slane %v1080, 7
        %v1083 = vor.u32 %v1079, %v1082
        %v1084 = vrot.slane %v1083, 2
        %v1086 = vshll.u32 %v882, 16
        %v1088 = vrot.slane %v1086, 7
        %v1089 = vsel %vm894, %v1084, %v1088
        %v1090 = vshrl.u32 %v804, 16
        %v1092 = vrot.slane %v1090, 6
        %v1093 = vshll.u32 %v804, 16
        %v1095 = vrot.slane %v1093, 7
        %v1096 = vor.u32 %v1092, %v1095
        %v1097 = vrot.slane %v1096, 2
        %v1099 = vshll.u32 %v887, 16
        %v1101 = vrot.slane %v1099, 7
        %v1102 = vsel %vm894, %v1097, %v1101
        %vm1119 = vcmask 1040384
        %vm1120 = vcmask 1042434
        %vm1121 = vmor %vm1119, %vm1120
        %vm1122 = vcmask 1044484
        %vm1123 = vmor %vm1121, %vm1122
        %vm1124 = vcmask 1046534
        %vm1125 = vmor %vm1123, %vm1124
        %v1126 = vrot.slane %v699, 7
        %v1127 = vrot.slane %v1126, 2
        %v1128 = vrot.slane %v812, 7
        %v1129 = vsel %vm1125, %v1127, %v1128
        %v1130 = vrot.slane %v706, 7
        %v1131 = vrot.slane %v1130, 2
        %v1132 = vrot.slane %v817, 7
        %v1133 = vsel %vm1125, %v1131, %v1132
        %v1134 = vrot.slane %v713, 7
        %v1135 = vrot.slane %v1134, 2
        %v1136 = vrot.slane %v822, 7
        %v1137 = vsel %vm1125, %v1135, %v1136
        %v1138 = vrot.slane %v720, 7
        %v1139 = vrot.slane %v1138, 2
        %v1140 = vrot.slane %v827, 7
        %v1141 = vsel %vm1125, %v1139, %v1140
        %v1142 = vrot.slane %v727, 7
        %v1143 = vrot.slane %v1142, 2
        %v1144 = vrot.slane %v832, 7
        %v1145 = vsel %vm1125, %v1143, %v1144
        %v1146 = vrot.slane %v734, 7
        %v1147 = vrot.slane %v1146, 2
        %v1148 = vrot.slane %v837, 7
        %v1149 = vsel %vm1125, %v1147, %v1148
        %v1150 = vrot.slane %v741, 7
        %v1151 = vrot.slane %v1150, 2
        %v1152 = vrot.slane %v842, 7
        %v1153 = vsel %vm1125, %v1151, %v1152
        %v1154 = vrot.slane %v748, 7
        %v1155 = vrot.slane %v1154, 2
        %v1156 = vrot.slane %v847, 7
        %v1157 = vsel %vm1125, %v1155, %v1156
        %v1158 = vrot.slane %v755, 7
        %v1159 = vrot.slane %v1158, 2
        %v1160 = vrot.slane %v852, 7
        %v1161 = vsel %vm1125, %v1159, %v1160
        %v1162 = vrot.slane %v762, 7
        %v1163 = vrot.slane %v1162, 2
        %v1164 = vrot.slane %v857, 7
        %v1165 = vsel %vm1125, %v1163, %v1164
        %v1166 = vrot.slane %v769, 7
        %v1167 = vrot.slane %v1166, 2
        %v1168 = vrot.slane %v862, 7
        %v1169 = vsel %vm1125, %v1167, %v1168
        %v1170 = vrot.slane %v776, 7
        %v1171 = vrot.slane %v1170, 2
        %v1172 = vrot.slane %v867, 7
        %v1173 = vsel %vm1125, %v1171, %v1172
        %v1174 = vrot.slane %v783, 7
        %v1175 = vrot.slane %v1174, 2
        %v1176 = vrot.slane %v872, 7
        %v1177 = vsel %vm1125, %v1175, %v1176
        %v1178 = vrot.slane %v790, 7
        %v1179 = vrot.slane %v1178, 2
        %v1180 = vrot.slane %v877, 7
        %v1181 = vsel %vm1125, %v1179, %v1180
        %v1182 = vrot.slane %v797, 7
        %v1183 = vrot.slane %v1182, 2
        %v1184 = vrot.slane %v882, 7
        %v1185 = vsel %vm1125, %v1183, %v1184
        %v1186 = vrot.slane %v804, 7
        %v1187 = vrot.slane %v1186, 2
        %v1188 = vrot.slane %v887, 7
        %v1189 = vsel %vm1125, %v1187, %v1188
        %1190 = vst [vmem:[#allocation1] ss:$4 sm:$0xff] %v699
        %s1191 = scalar_lea.vmem [#allocation1], 1
        %1192 = vst [vmem:[%s1191] ss:$4 sm:$0xff] %v713
        %s1193 = scalar_lea.vmem [#allocation1], 2
        %1194 = vst [vmem:[%s1193] ss:$4 sm:$0xff] %v727
        %s1195 = scalar_lea.vmem [#allocation1], 3
        %1196 = vst [vmem:[%s1195] ss:$4 sm:$0xff] %v741
        %s1197 = scalar_lea.vmem [#allocation1], 32
        %1198 = vst [vmem:[%s1197] ss:$4 sm:$0xff] %v706
        %s1199 = scalar_lea.vmem [#allocation1], 33
        %1200 = vst [vmem:[%s1199] ss:$4 sm:$0xff] %v720
        %s1201 = scalar_lea.vmem [#allocation1], 34
        %1202 = vst [vmem:[%s1201] ss:$4 sm:$0xff] %v734
        %s1203 = scalar_lea.vmem [#allocation1], 35
        %1204 = vst [vmem:[%s1203] ss:$4 sm:$0xff] %v748
        %v1205 = vld.sshfl [vmem:[#allocation1] sm:$0xff pattern:$0x73625140]
        %v1206 = vld.sshfl [vmem:[#allocation1 + $0x8] sm:$0xff pattern:$0x73625140]
        %v1207 = vld.sshfl [vmem:[#allocation1 + $0x10] sm:$0xff pattern:$0x73625140]
        %v1208 = vld.sshfl [vmem:[#allocation1 + $0x18] sm:$0xff pattern:$0x73625140]
        %v1209 = vld.sshfl [vmem:[#allocation1 + $0x20] sm:$0xff pattern:$0x73625140]
        %v1210 = vld.sshfl [vmem:[#allocation1 + $0x28] sm:$0xff pattern:$0x73625140]
        %v1211 = vld.sshfl [vmem:[#allocation1 + $0x30] sm:$0xff pattern:$0x73625140]
        %v1212 = vld.sshfl [vmem:[#allocation1 + $0x38] sm:$0xff pattern:$0x73625140]
        %1213 = vst [vmem:[#allocation1] ss:$4 sm:$0xff] %v755
        %1214 = vst [vmem:[%s1191] ss:$4 sm:$0xff] %v769
        %1215 = vst [vmem:[%s1193] ss:$4 sm:$0xff] %v783
        %1216 = vst [vmem:[%s1195] ss:$4 sm:$0xff] %v797
        %1217 = vst [vmem:[%s1197] ss:$4 sm:$0xff] %v762
        %1218 = vst [vmem:[%s1199] ss:$4 sm:$0xff] %v776
        %1219 = vst [vmem:[%s1201] ss:$4 sm:$0xff] %v790
        %1220 = vst [vmem:[%s1203] ss:$4 sm:$0xff] %v804
        %v1221 = vld.sshfl [vmem:[#allocation1] sm:$0xff pattern:$0x73625140]
        %v1222 = vld.sshfl [vmem:[#allocation1 + $0x8] sm:$0xff pattern:$0x73625140]
        %v1223 = vld.sshfl [vmem:[#allocation1 + $0x10] sm:$0xff pattern:$0x73625140]
        %v1224 = vld.sshfl [vmem:[#allocation1 + $0x18] sm:$0xff pattern:$0x73625140]
        %v1225 = vld.sshfl [vmem:[#allocation1 + $0x20] sm:$0xff pattern:$0x73625140]
        %v1226 = vld.sshfl [vmem:[#allocation1 + $0x28] sm:$0xff pattern:$0x73625140]
        %v1227 = vld.sshfl [vmem:[#allocation1 + $0x30] sm:$0xff pattern:$0x73625140]
        %v1228 = vld.sshfl [vmem:[#allocation1 + $0x38] sm:$0xff pattern:$0x73625140]
        %1246 = vst [vmem:[#allocation1] ss:$4 sm:$0xff] %v907
        %s1248 = scalar_lea.vmem [#allocation1], 1
        %1249 = vst [vmem:[%s1248] ss:$4 sm:$0xff] %v933
        %s1251 = scalar_lea.vmem [#allocation1], 2
        %1252 = vst [vmem:[%s1251] ss:$4 sm:$0xff] %v959
        %s1254 = scalar_lea.vmem [#allocation1], 3
        %1255 = vst [vmem:[%s1254] ss:$4 sm:$0xff] %v985
        %s1257 = scalar_lea.vmem [#allocation1], 32
        %1258 = vst [vmem:[%s1257] ss:$4 sm:$0xff] %v920
        %s1260 = scalar_lea.vmem [#allocation1], 33
        %1261 = vst [vmem:[%s1260] ss:$4 sm:$0xff] %v946
        %s1263 = scalar_lea.vmem [#allocation1], 34
        %1264 = vst [vmem:[%s1263] ss:$4 sm:$0xff] %v972
        %s1266 = scalar_lea.vmem [#allocation1], 35
        %1267 = vst [vmem:[%s1266] ss:$4 sm:$0xff] %v998
        %v1268 = vld.sshfl [vmem:[#allocation1] sm:$0xff pattern:$0x73625140]
        %v1269 = vld.sshfl [vmem:[#allocation1 + $0x8] sm:$0xff pattern:$0x73625140]
        %v1270 = vld.sshfl [vmem:[#allocation1 + $0x10] sm:$0xff pattern:$0x73625140]
        %v1271 = vld.sshfl [vmem:[#allocation1 + $0x18] sm:$0xff pattern:$0x73625140]
        %v1272 = vld.sshfl [vmem:[#allocation1 + $0x20] sm:$0xff pattern:$0x73625140]
        %v1273 = vld.sshfl [vmem:[#allocation1 + $0x28] sm:$0xff pattern:$0x73625140]
        %v1274 = vld.sshfl [vmem:[#allocation1 + $0x30] sm:$0xff pattern:$0x73625140]
        %v1275 = vld.sshfl [vmem:[#allocation1 + $0x38] sm:$0xff pattern:$0x73625140]
        %1277 = vst [vmem:[#allocation1] ss:$4 sm:$0xff] %v1011
        %1279 = vst [vmem:[%s1248] ss:$4 sm:$0xff] %v1037
        %1281 = vst [vmem:[%s1251] ss:$4 sm:$0xff] %v1063
        %1283 = vst [vmem:[%s1254] ss:$4 sm:$0xff] %v1089
        %1285 = vst [vmem:[%s1257] ss:$4 sm:$0xff] %v1024
        %1287 = vst [vmem:[%s1260] ss:$4 sm:$0xff] %v1050
        %1289 = vst [vmem:[%s1263] ss:$4 sm:$0xff] %v1076
        %1291 = vst [vmem:[%s1266] ss:$4 sm:$0xff] %v1102
        %v1292 = vld.sshfl [vmem:[#allocation1] sm:$0xff pattern:$0x73625140]
        %v1293 = vld.sshfl [vmem:[#allocation1 + $0x8] sm:$0xff pattern:$0x73625140]
        %v1294 = vld.sshfl [vmem:[#allocation1 + $0x10] sm:$0xff pattern:$0x73625140]
        %v1295 = vld.sshfl [vmem:[#allocation1 + $0x18] sm:$0xff pattern:$0x73625140]
        %v1296 = vld.sshfl [vmem:[#allocation1 + $0x20] sm:$0xff pattern:$0x73625140]
        %v1297 = vld.sshfl [vmem:[#allocation1 + $0x28] sm:$0xff pattern:$0x73625140]
        %v1298 = vld.sshfl [vmem:[#allocation1 + $0x30] sm:$0xff pattern:$0x73625140]
        %v1299 = vld.sshfl [vmem:[#allocation1 + $0x38] sm:$0xff pattern:$0x73625140]
        %1317 = vst [vmem:[#allocation1] ss:$4 sm:$0xff] %v1129
        %s1319 = scalar_lea.vmem [#allocation1], 1
        %1320 = vst [vmem:[%s1319] ss:$4 sm:$0xff] %v1137
        %s1322 = scalar_lea.vmem [#allocation1], 2
        %1323 = vst [vmem:[%s1322] ss:$4 sm:$0xff] %v1145
        %s1325 = scalar_lea.vmem [#allocation1], 3
        %1326 = vst [vmem:[%s1325] ss:$4 sm:$0xff] %v1153
        %s1328 = scalar_lea.vmem [#allocation1], 32
        %1329 = vst [vmem:[%s1328] ss:$4 sm:$0xff] %v1133
        %s1331 = scalar_lea.vmem [#allocation1], 33
        %1332 = vst [vmem:[%s1331] ss:$4 sm:$0xff] %v1141
        %s1334 = scalar_lea.vmem [#allocation1], 34
        %1335 = vst [vmem:[%s1334] ss:$4 sm:$0xff] %v1149
        %s1337 = scalar_lea.vmem [#allocation1], 35
        %1338 = vst [vmem:[%s1337] ss:$4 sm:$0xff] %v1157
        %v1339 = vld.sshfl [vmem:[#allocation1] sm:$0xff pattern:$0x73625140]
        %v1340 = vld.sshfl [vmem:[#allocation1 + $0x8] sm:$0xff pattern:$0x73625140]
        %v1341 = vld.sshfl [vmem:[#allocation1 + $0x10] sm:$0xff pattern:$0x73625140]
        %v1342 = vld.sshfl [vmem:[#allocation1 + $0x18] sm:$0xff pattern:$0x73625140]
        %v1343 = vld.sshfl [vmem:[#allocation1 + $0x20] sm:$0xff pattern:$0x73625140]
        %v1344 = vld.sshfl [vmem:[#allocation1 + $0x28] sm:$0xff pattern:$0x73625140]
        %v1345 = vld.sshfl [vmem:[#allocation1 + $0x30] sm:$0xff pattern:$0x73625140]
        %v1346 = vld.sshfl [vmem:[#allocation1 + $0x38] sm:$0xff pattern:$0x73625140]
        %1348 = vst [vmem:[#allocation1] ss:$4 sm:$0xff] %v1161
        %1350 = vst [vmem:[%s1319] ss:$4 sm:$0xff] %v1169
        %1352 = vst [vmem:[%s1322] ss:$4 sm:$0xff] %v1177
        %1354 = vst [vmem:[%s1325] ss:$4 sm:$0xff] %v1185
        %1356 = vst [vmem:[%s1328] ss:$4 sm:$0xff] %v1165
        %1358 = vst [vmem:[%s1331] ss:$4 sm:$0xff] %v1173
        %1360 = vst [vmem:[%s1334] ss:$4 sm:$0xff] %v1181
        %1362 = vst [vmem:[%s1337] ss:$4 sm:$0xff] %v1189
        %v1363 = vld.sshfl [vmem:[#allocation1] sm:$0xff pattern:$0x73625140]
        %v1364 = vld.sshfl [vmem:[#allocation1 + $0x8] sm:$0xff pattern:$0x73625140]
        %v1365 = vld.sshfl [vmem:[#allocation1 + $0x10] sm:$0xff pattern:$0x73625140]
        %v1366 = vld.sshfl [vmem:[#allocation1 + $0x18] sm:$0xff pattern:$0x73625140]
        %v1367 = vld.sshfl [vmem:[#allocation1 + $0x20] sm:$0xff pattern:$0x73625140]
        %v1368 = vld.sshfl [vmem:[#allocation1 + $0x28] sm:$0xff pattern:$0x73625140]
        %v1369 = vld.sshfl [vmem:[#allocation1 + $0x30] sm:$0xff pattern:$0x73625140]
        %v1370 = vld.sshfl [vmem:[#allocation1 + $0x38] sm:$0xff pattern:$0x73625140]
        %v1387 = vld [vmem:[#allocation2] sm:$0xff]
        %v1388 = vld [vmem:[#allocation2 + $0x8] sm:$0xff]
        %v1389 = vld [vmem:[#allocation2 + $0x10] sm:$0xff]
        %v1390 = vld [vmem:[#allocation2 + $0x18] sm:$0xff]
        %v1391 = vld [vmem:[#allocation2 + $0x20] sm:$0xff]
        %v1392 = vld [vmem:[#allocation2 + $0x28] sm:$0xff]
        %v1393 = vld [vmem:[#allocation2 + $0x30] sm:$0xff]
        %v1394 = vld [vmem:[#allocation2 + $0x38] sm:$0xff]
        %v1395 = vld [vmem:[%s477] sm:$0xff]
        %v1396 = vld [vmem:[%s477 + $0x8] sm:$0xff]
        %v1397 = vld [vmem:[%s477 + $0x10] sm:$0xff]
        %v1398 = vld [vmem:[%s477 + $0x18] sm:$0xff]
        %v1399 = vld [vmem:[%s477 + $0x20] sm:$0xff]
        %v1400 = vld [vmem:[%s477 + $0x28] sm:$0xff]
        %v1401 = vld [vmem:[%s477 + $0x30] sm:$0xff]
        %v1402 = vld [vmem:[%s477 + $0x38] sm:$0xff]
        %v1403 = vld [vmem:[%s477 + $0x40] sm:$0xff]
        %v1404 = vld [vmem:[%s477 + $0x48] sm:$0xff]
        %v1405 = vld [vmem:[%s477 + $0x50] sm:$0xff]
        %v1406 = vld [vmem:[%s477 + $0x58] sm:$0xff]
        %v1407 = vld [vmem:[%s477 + $0x60] sm:$0xff]
        %v1408 = vld [vmem:[%s477 + $0x68] sm:$0xff]
        %v1409 = vld [vmem:[%s477 + $0x70] sm:$0xff]
        %v1410 = vld [vmem:[%s477 + $0x78] sm:$0xff]
        %v1411 = vld [vmem:[%s477 + $0x80] sm:$0xff]
        %v1412 = vld [vmem:[%s477 + $0x88] sm:$0xff]
        %v1413 = vld [vmem:[%s477 + $0x90] sm:$0xff]
        %v1414 = vld [vmem:[%s477 + $0x98] sm:$0xff]
        %v1415 = vld [vmem:[%s477 + $0xa0] sm:$0xff]
        %v1416 = vld [vmem:[%s477 + $0xa8] sm:$0xff]
        %v1417 = vld [vmem:[%s477 + $0xb0] sm:$0xff]
        %v1418 = vld [vmem:[%s477 + $0xb8] sm:$0xff]
        %v1419 = vld [vmem:[%s477 + $0xc0] sm:$0xff]
        %v1420 = vld [vmem:[%s477 + $0xc8] sm:$0xff]
        %v1421 = vld [vmem:[%s477 + $0xd0] sm:$0xff]
        %v1422 = vld [vmem:[%s477 + $0xd8] sm:$0xff]
        %v1423 = vld [vmem:[%s477 + $0xe0] sm:$0xff]
        %v1424 = vld [vmem:[%s477 + $0xe8] sm:$0xff]
        %v1425 = vld [vmem:[%s477 + $0xf0] sm:$0xff]
        %v1426 = vld [vmem:[%s477 + $0xf8] sm:$0xff]
        %v1427 = vld [vmem:[%s477 + $0x100] sm:$0xff]
        %v1428 = vld [vmem:[%s477 + $0x108] sm:$0xff]
        %v1429 = vld [vmem:[%s477 + $0x110] sm:$0xff]
        %v1430 = vld [vmem:[%s477 + $0x118] sm:$0xff]
        %v1431 = vld [vmem:[%s477 + $0x120] sm:$0xff]
        %v1432 = vld [vmem:[%s477 + $0x128] sm:$0xff]
        %v1433 = vld [vmem:[%s477 + $0x130] sm:$0xff]
        %v1434 = vld [vmem:[%s477 + $0x138] sm:$0xff]
        %v1435 = vld [vmem:[%s477 + $0x140] sm:$0xff]
        %v1436 = vld [vmem:[%s477 + $0x148] sm:$0xff]
        %v1437 = vld [vmem:[%s477 + $0x150] sm:$0xff]
        %v1438 = vld [vmem:[%s477 + $0x158] sm:$0xff]
        %v1439 = vld [vmem:[%s477 + $0x160] sm:$0xff]
        %v1440 = vld [vmem:[%s477 + $0x168] sm:$0xff]
        %v1441 = vld [vmem:[%s477 + $0x170] sm:$0xff]
        %v1442 = vld [vmem:[%s477 + $0x178] sm:$0xff]
        %v1443 = vld [vmem:[%s477 + $0x180] sm:$0xff]
        %v1444 = vld [vmem:[%s477 + $0x188] sm:$0xff]
        %v1445 = vld [vmem:[%s477 + $0x190] sm:$0xff]
        %v1446 = vld [vmem:[%s477 + $0x198] sm:$0xff]
        %v1447 = vld [vmem:[%s477 + $0x1a0] sm:$0xff]
        %v1448 = vld [vmem:[%s477 + $0x1a8] sm:$0xff]
        %v1449 = vld [vmem:[%s477 + $0x1b0] sm:$0xff]
        %v1450 = vld [vmem:[%s477 + $0x1b8] sm:$0xff]
        %v1451 = vld [vmem:[%s477 + $0x1c0] sm:$0xff]
        %v1452 = vld [vmem:[%s477 + $0x1c8] sm:$0xff]
        %v1453 = vld [vmem:[%s477 + $0x1d0] sm:$0xff]
        %v1454 = vld [vmem:[%s477 + $0x1d8] sm:$0xff]
        %v1455 = vld [vmem:[%s477 + $0x1e0] sm:$0xff]
        %v1456 = vld [vmem:[%s477 + $0x1e8] sm:$0xff]
        %v1457 = vld [vmem:[%s477 + $0x1f0] sm:$0xff]
        %v1458 = vld [vmem:[%s477 + $0x1f8] sm:$0xff]
        %v1459 = vld [vmem:[%s477 + $0x200] sm:$0xff]
        %v1460 = vld [vmem:[%s477 + $0x208] sm:$0xff]
        %v1461 = vld [vmem:[%s477 + $0x210] sm:$0xff]
        %v1462 = vld [vmem:[%s477 + $0x218] sm:$0xff]
        %v1463 = vld [vmem:[%s477 + $0x220] sm:$0xff]
        %v1464 = vld [vmem:[%s477 + $0x228] sm:$0xff]
        %v1465 = vld [vmem:[%s477 + $0x230] sm:$0xff]
        %v1466 = vld [vmem:[%s477 + $0x238] sm:$0xff]
        %v1467 = vld [vmem:[%s477 + $0x240] sm:$0xff]
        %v1468 = vld [vmem:[%s477 + $0x248] sm:$0xff]
        %v1469 = vld [vmem:[%s477 + $0x250] sm:$0xff]
        %v1470 = vld [vmem:[%s477 + $0x258] sm:$0xff]
        %v1471 = vld [vmem:[%s477 + $0x260] sm:$0xff]
        %v1472 = vld [vmem:[%s477 + $0x268] sm:$0xff]
        %v1473 = vld [vmem:[%s477 + $0x270] sm:$0xff]
        %v1474 = vld [vmem:[%s477 + $0x278] sm:$0xff]
        %v1475 = vld [vmem:[%s477 + $0x280] sm:$0xff]
        %v1476 = vld [vmem:[%s477 + $0x288] sm:$0xff]
        %v1477 = vld [vmem:[%s477 + $0x290] sm:$0xff]
        %v1478 = vld [vmem:[%s477 + $0x298] sm:$0xff]
        %v1479 = vld [vmem:[%s477 + $0x2a0] sm:$0xff]
        %v1480 = vld [vmem:[%s477 + $0x2a8] sm:$0xff]
        %v1481 = vld [vmem:[%s477 + $0x2b0] sm:$0xff]
        %v1482 = vld [vmem:[%s477 + $0x2b8] sm:$0xff]
        %v1483 = vld [vmem:[%s477 + $0x2c0] sm:$0xff]
        %v1484 = vld [vmem:[%s477 + $0x2c8] sm:$0xff]
        %v1485 = vld [vmem:[%s477 + $0x2d0] sm:$0xff]
        %v1486 = vld [vmem:[%s477 + $0x2d8] sm:$0xff]
        %v1487 = vld [vmem:[%s477 + $0x2e0] sm:$0xff]
        %v1488 = vld [vmem:[%s477 + $0x2e8] sm:$0xff]
        %v1489 = vld [vmem:[%s477 + $0x2f0] sm:$0xff]
        %v1490 = vld [vmem:[%s477 + $0x2f8] sm:$0xff]
        %v1491 = vld [vmem:[%s477 + $0x300] sm:$0xff]
        %v1492 = vld [vmem:[%s477 + $0x308] sm:$0xff]
        %v1493 = vld [vmem:[%s477 + $0x310] sm:$0xff]
        %v1494 = vld [vmem:[%s477 + $0x318] sm:$0xff]
        %v1495 = vld [vmem:[%s477 + $0x320] sm:$0xff]
        %v1496 = vld [vmem:[%s477 + $0x328] sm:$0xff]
        %v1497 = vld [vmem:[%s477 + $0x330] sm:$0xff]
        %v1498 = vld [vmem:[%s477 + $0x338] sm:$0xff]
        %v1499 = vld [vmem:[%s477 + $0x340] sm:$0xff]
        %v1500 = vld [vmem:[%s477 + $0x348] sm:$0xff]
        %v1501 = vld [vmem:[%s477 + $0x350] sm:$0xff]
        %v1502 = vld [vmem:[%s477 + $0x358] sm:$0xff]
        %v1503 = vld [vmem:[%s477 + $0x360] sm:$0xff]
        %v1504 = vld [vmem:[%s477 + $0x368] sm:$0xff]
        %v1505 = vld [vmem:[%s477 + $0x370] sm:$0xff]
        %v1506 = vld [vmem:[%s477 + $0x378] sm:$0xff]
        %v1507 = vld [vmem:[%s477 + $0x380] sm:$0xff]
        %v1508 = vld [vmem:[%s477 + $0x388] sm:$0xff]
        %v1509 = vld [vmem:[%s477 + $0x390] sm:$0xff]
        %v1510 = vld [vmem:[%s477 + $0x398] sm:$0xff]
        %v1511 = vld [vmem:[%s477 + $0x3a0] sm:$0xff]
        %v1512 = vld [vmem:[%s477 + $0x3a8] sm:$0xff]
        %v1513 = vld [vmem:[%s477 + $0x3b0] sm:$0xff]
        %v1514 = vld [vmem:[%s477 + $0x3b8] sm:$0xff]
        %v1515 = vld [vmem:[%s477 + $0x3c0] sm:$0xff]
        %v1516 = vld [vmem:[%s477 + $0x3c8] sm:$0xff]
        %v1517 = vld [vmem:[%s477 + $0x3d0] sm:$0xff]
        %v1518 = vld [vmem:[%s477 + $0x3d8] sm:$0xff]
        %v1519 = vld [vmem:[%s477 + $0x3e0] sm:$0xff]
        %v1520 = vld [vmem:[%s477 + $0x3e8] sm:$0xff]
        %v1521 = vld [vmem:[%s477 + $0x3f0] sm:$0xff]
        %v1522 = vld [vmem:[%s477 + $0x3f8] sm:$0xff]
        %v1523 = vld [vmem:[%s477 + $0x400] sm:$0xff]
        %v1524 = vld [vmem:[%s477 + $0x408] sm:$0xff]
        %v1525 = vld [vmem:[%s477 + $0x410] sm:$0xff]
        %v1526 = vld [vmem:[%s477 + $0x418] sm:$0xff]
        %v1527 = vld [vmem:[%s477 + $0x420] sm:$0xff]
        %v1528 = vld [vmem:[%s477 + $0x428] sm:$0xff]
        %v1529 = vld [vmem:[%s477 + $0x430] sm:$0xff]
        %v1530 = vld [vmem:[%s477 + $0x438] sm:$0xff]
        %v1531 = vld [vmem:[%s477 + $0x440] sm:$0xff]
        %v1532 = vld [vmem:[%s477 + $0x448] sm:$0xff]
        %v1533 = vld [vmem:[%s477 + $0x450] sm:$0xff]
        %v1534 = vld [vmem:[%s477 + $0x458] sm:$0xff]
        %v1535 = vld [vmem:[%s477 + $0x460] sm:$0xff]
        %v1536 = vld [vmem:[%s477 + $0x468] sm:$0xff]
        %v1537 = vld [vmem:[%s477 + $0x470] sm:$0xff]
        %v1538 = vld [vmem:[%s477 + $0x478] sm:$0xff]
        %v1539 = vld [vmem:[%s477 + $0x480] sm:$0xff]
        %v1540 = vld [vmem:[%s477 + $0x488] sm:$0xff]
        %v1541 = vld [vmem:[%s477 + $0x490] sm:$0xff]
        %v1542 = vld [vmem:[%s477 + $0x498] sm:$0xff]
        %v1543 = vld [vmem:[%s477 + $0x4a0] sm:$0xff]
        %v1544 = vld [vmem:[%s477 + $0x4a8] sm:$0xff]
        %v1545 = vld [vmem:[%s477 + $0x4b0] sm:$0xff]
        %v1546 = vld [vmem:[%s477 + $0x4b8] sm:$0xff]
        %v1547 = vld [vmem:[%s477 + $0x4c0] sm:$0xff]
        %v1548 = vld [vmem:[%s477 + $0x4c8] sm:$0xff]
        %v1549 = vld [vmem:[%s477 + $0x4d0] sm:$0xff]
        %v1550 = vld [vmem:[%s477 + $0x4d8] sm:$0xff]
        %v1551 = vld [vmem:[%s477 + $0x4e0] sm:$0xff]
        %v1552 = vld [vmem:[%s477 + $0x4e8] sm:$0xff]
        %v1553 = vld [vmem:[%s477 + $0x4f0] sm:$0xff]
        %v1554 = vld [vmem:[%s477 + $0x4f8] sm:$0xff]
        %v1555 = vld [vmem:[%s477 + $0x500] sm:$0xff]
        %v1556 = vld [vmem:[%s477 + $0x508] sm:$0xff]
        %v1557 = vld [vmem:[%s477 + $0x510] sm:$0xff]
        %v1558 = vld [vmem:[%s477 + $0x518] sm:$0xff]
        %v1559 = vld [vmem:[%s477 + $0x520] sm:$0xff]
        %v1560 = vld [vmem:[%s477 + $0x528] sm:$0xff]
        %v1561 = vld [vmem:[%s477 + $0x530] sm:$0xff]
        %v1562 = vld [vmem:[%s477 + $0x538] sm:$0xff]
        %v1563 = vld [vmem:[%s477 + $0x540] sm:$0xff]
        %v1564 = vld [vmem:[%s477 + $0x548] sm:$0xff]
        %v1565 = vld [vmem:[%s477 + $0x550] sm:$0xff]
        %v1566 = vld [vmem:[%s477 + $0x558] sm:$0xff]
        %v1567 = vld [vmem:[%s477 + $0x560] sm:$0xff]
        %v1568 = vld [vmem:[%s477 + $0x568] sm:$0xff]
        %v1569 = vld [vmem:[%s477 + $0x570] sm:$0xff]
        %v1570 = vld [vmem:[%s477 + $0x578] sm:$0xff]
        %v1571 = vld [vmem:[%s477 + $0x580] sm:$0xff]
        %v1572 = vld [vmem:[%s477 + $0x588] sm:$0xff]
        %v1573 = vld [vmem:[%s477 + $0x590] sm:$0xff]
        %v1574 = vld [vmem:[%s477 + $0x598] sm:$0xff]
        %v1575 = vld [vmem:[%s477 + $0x5a0] sm:$0xff]
        %v1576 = vld [vmem:[%s477 + $0x5a8] sm:$0xff]
        %v1577 = vld [vmem:[%s477 + $0x5b0] sm:$0xff]
        %v1578 = vld [vmem:[%s477 + $0x5b8] sm:$0xff]
        %v1579 = vld [vmem:[%s477 + $0x5c0] sm:$0xff]
        %v1580 = vld [vmem:[%s477 + $0x5c8] sm:$0xff]
        %v1581 = vld [vmem:[%s477 + $0x5d0] sm:$0xff]
        %v1582 = vld [vmem:[%s477 + $0x5d8] sm:$0xff]
        %v1583 = vld [vmem:[%s477 + $0x5e0] sm:$0xff]
        %v1584 = vld [vmem:[%s477 + $0x5e8] sm:$0xff]
        %v1585 = vld [vmem:[%s477 + $0x5f0] sm:$0xff]
        %v1586 = vld [vmem:[%s477 + $0x5f8] sm:$0xff]
        %v1587 = vld [vmem:[%s477 + $0x600] sm:$0xff]
        %v1588 = vld [vmem:[%s477 + $0x608] sm:$0xff]
        %v1589 = vld [vmem:[%s477 + $0x610] sm:$0xff]
        %v1590 = vld [vmem:[%s477 + $0x618] sm:$0xff]
        %v1591 = vld [vmem:[%s477 + $0x620] sm:$0xff]
        %v1592 = vld [vmem:[%s477 + $0x628] sm:$0xff]
        %v1593 = vld [vmem:[%s477 + $0x630] sm:$0xff]
        %v1594 = vld [vmem:[%s477 + $0x638] sm:$0xff]
        %v1595 = vld [vmem:[%s477 + $0x640] sm:$0xff]
        %v1596 = vld [vmem:[%s477 + $0x648] sm:$0xff]
        %v1597 = vld [vmem:[%s477 + $0x650] sm:$0xff]
        %v1598 = vld [vmem:[%s477 + $0x658] sm:$0xff]
        %v1599 = vld [vmem:[%s477 + $0x660] sm:$0xff]
        %v1600 = vld [vmem:[%s477 + $0x668] sm:$0xff]
        %v1601 = vld [vmem:[%s477 + $0x670] sm:$0xff]
        %v1602 = vld [vmem:[%s477 + $0x678] sm:$0xff]
        %v1603 = vld [vmem:[%s477 + $0x680] sm:$0xff]
        %v1604 = vld [vmem:[%s477 + $0x688] sm:$0xff]
        %v1605 = vld [vmem:[%s477 + $0x690] sm:$0xff]
        %v1606 = vld [vmem:[%s477 + $0x698] sm:$0xff]
        %v1607 = vld [vmem:[%s477 + $0x6a0] sm:$0xff]
        %v1608 = vld [vmem:[%s477 + $0x6a8] sm:$0xff]
        %v1609 = vld [vmem:[%s477 + $0x6b0] sm:$0xff]
        %v1610 = vld [vmem:[%s477 + $0x6b8] sm:$0xff]
        %v1611 = vld [vmem:[%s477 + $0x6c0] sm:$0xff]
        %v1612 = vld [vmem:[%s477 + $0x6c8] sm:$0xff]
        %v1613 = vld [vmem:[%s477 + $0x6d0] sm:$0xff]
        %v1614 = vld [vmem:[%s477 + $0x6d8] sm:$0xff]
        %v1615 = vld [vmem:[%s477 + $0x6e0] sm:$0xff]
        %v1616 = vld [vmem:[%s477 + $0x6e8] sm:$0xff]
        %v1617 = vld [vmem:[%s477 + $0x6f0] sm:$0xff]
        %v1618 = vld [vmem:[%s477 + $0x6f8] sm:$0xff]
        %v1619 = vld [vmem:[%s477 + $0x700] sm:$0xff]
        %v1620 = vld [vmem:[%s477 + $0x708] sm:$0xff]
        %v1621 = vld [vmem:[%s477 + $0x710] sm:$0xff]
        %v1622 = vld [vmem:[%s477 + $0x718] sm:$0xff]
        %v1623 = vld [vmem:[%s477 + $0x720] sm:$0xff]
        %v1624 = vld [vmem:[%s477 + $0x728] sm:$0xff]
        %v1625 = vld [vmem:[%s477 + $0x730] sm:$0xff]
        %v1626 = vld [vmem:[%s477 + $0x738] sm:$0xff]
        %v1627 = vld [vmem:[%s477 + $0x740] sm:$0xff]
        %v1628 = vld [vmem:[%s477 + $0x748] sm:$0xff]
        %v1629 = vld [vmem:[%s477 + $0x750] sm:$0xff]
        %v1630 = vld [vmem:[%s477 + $0x758] sm:$0xff]
        %v1631 = vld [vmem:[%s477 + $0x760] sm:$0xff]
        %v1632 = vld [vmem:[%s477 + $0x768] sm:$0xff]
        %v1633 = vld [vmem:[%s477 + $0x770] sm:$0xff]
        %v1634 = vld [vmem:[%s477 + $0x778] sm:$0xff]
        %v1635 = vld [vmem:[%s477 + $0x780] sm:$0xff]
        %v1636 = vld [vmem:[%s477 + $0x788] sm:$0xff]
        %v1637 = vld [vmem:[%s477 + $0x790] sm:$0xff]
        %v1638 = vld [vmem:[%s477 + $0x798] sm:$0xff]
        %v1639 = vld [vmem:[%s477 + $0x7a0] sm:$0xff]
        %v1640 = vld [vmem:[%s477 + $0x7a8] sm:$0xff]
        %v1641 = vld [vmem:[%s477 + $0x7b0] sm:$0xff]
        %v1642 = vld [vmem:[%s477 + $0x7b8] sm:$0xff]
        %v1643 = vld [vmem:[%s477 + $0x7c0] sm:$0xff]
        %v1644 = vld [vmem:[%s477 + $0x7c8] sm:$0xff]
        %v1645 = vld [vmem:[%s477 + $0x7d0] sm:$0xff]
        %v1646 = vld [vmem:[%s477 + $0x7d8] sm:$0xff]
        %v1647 = vld [vmem:[%s477 + $0x7e0] sm:$0xff]
        %v1648 = vld [vmem:[%s477 + $0x7e8] sm:$0xff]
        %v1649 = vld [vmem:[%s477 + $0x7f0] sm:$0xff]
        %v1650 = vld [vmem:[%s477 + $0x7f8] sm:$0xff]
        %v1651 = vld [vmem:[%s477 + $0x800] sm:$0xff]
        %v1652 = vld [vmem:[%s477 + $0x808] sm:$0xff]
        %v1653 = vld [vmem:[%s477 + $0x810] sm:$0xff]
        %v1654 = vld [vmem:[%s477 + $0x818] sm:$0xff]
        %v1655 = vld [vmem:[%s477 + $0x820] sm:$0xff]
        %v1656 = vld [vmem:[%s477 + $0x828] sm:$0xff]
        %v1657 = vld [vmem:[%s477 + $0x830] sm:$0xff]
        %v1658 = vld [vmem:[%s477 + $0x838] sm:$0xff]
        %v1659 = vld [vmem:[%s477 + $0x840] sm:$0xff]
        %v1660 = vld [vmem:[%s477 + $0x848] sm:$0xff]
        %v1661 = vld [vmem:[%s477 + $0x850] sm:$0xff]
        %v1662 = vld [vmem:[%s477 + $0x858] sm:$0xff]
        %v1663 = vld [vmem:[%s477 + $0x860] sm:$0xff]
        %v1664 = vld [vmem:[%s477 + $0x868] sm:$0xff]
        %v1665 = vld [vmem:[%s477 + $0x870] sm:$0xff]
        %v1666 = vld [vmem:[%s477 + $0x878] sm:$0xff]
        %v1667 = vld [vmem:[%s477 + $0x880] sm:$0xff]
        %v1668 = vld [vmem:[%s477 + $0x888] sm:$0xff]
        %v1669 = vld [vmem:[%s477 + $0x890] sm:$0xff]
        %v1670 = vld [vmem:[%s477 + $0x898] sm:$0xff]
        %v1671 = vld [vmem:[%s477 + $0x8a0] sm:$0xff]
        %v1672 = vld [vmem:[%s477 + $0x8a8] sm:$0xff]
        %v1673 = vld [vmem:[%s477 + $0x8b0] sm:$0xff]
        %v1674 = vld [vmem:[%s477 + $0x8b8] sm:$0xff]
        %v1675 = vld [vmem:[%s477 + $0x8c0] sm:$0xff]
        %v1676 = vld [vmem:[%s477 + $0x8c8] sm:$0xff]
        %v1677 = vld [vmem:[%s477 + $0x8d0] sm:$0xff]
        %v1678 = vld [vmem:[%s477 + $0x8d8] sm:$0xff]
        %v1679 = vld [vmem:[%s477 + $0x8e0] sm:$0xff]
        %v1680 = vld [vmem:[%s477 + $0x8e8] sm:$0xff]
        %v1681 = vld [vmem:[%s477 + $0x8f0] sm:$0xff]
        %v1682 = vld [vmem:[%s477 + $0x8f8] sm:$0xff]
        %v1683 = vld [vmem:[%s477 + $0x900] sm:$0xff]
        %v1684 = vld [vmem:[%s477 + $0x908] sm:$0xff]
        %v1685 = vld [vmem:[%s477 + $0x910] sm:$0xff]
        %v1686 = vld [vmem:[%s477 + $0x918] sm:$0xff]
        %v1687 = vld [vmem:[%s477 + $0x920] sm:$0xff]
        %v1688 = vld [vmem:[%s477 + $0x928] sm:$0xff]
        %v1689 = vld [vmem:[%s477 + $0x930] sm:$0xff]
        %v1690 = vld [vmem:[%s477 + $0x938] sm:$0xff]
        %v1691 = vld [vmem:[%s477 + $0x940] sm:$0xff]
        %v1692 = vld [vmem:[%s477 + $0x948] sm:$0xff]
        %v1693 = vld [vmem:[%s477 + $0x950] sm:$0xff]
        %v1694 = vld [vmem:[%s477 + $0x958] sm:$0xff]
        %v1695 = vld [vmem:[%s477 + $0x960] sm:$0xff]
        %v1696 = vld [vmem:[%s477 + $0x968] sm:$0xff]
        %v1697 = vld [vmem:[%s477 + $0x970] sm:$0xff]
        %v1698 = vld [vmem:[%s477 + $0x978] sm:$0xff]
        %v1699 = vld [vmem:[%s477 + $0x980] sm:$0xff]
        %v1700 = vld [vmem:[%s477 + $0x988] sm:$0xff]
        %v1701 = vld [vmem:[%s477 + $0x990] sm:$0xff]
        %v1702 = vld [vmem:[%s477 + $0x998] sm:$0xff]
        %v1703 = vld [vmem:[%s477 + $0x9a0] sm:$0xff]
        %v1704 = vld [vmem:[%s477 + $0x9a8] sm:$0xff]
        %v1705 = vld [vmem:[%s477 + $0x9b0] sm:$0xff]
        %v1706 = vld [vmem:[%s477 + $0x9b8] sm:$0xff]
        %v1707 = vld [vmem:[%s477 + $0x9c0] sm:$0xff]
        %v1708 = vld [vmem:[%s477 + $0x9c8] sm:$0xff]
        %v1709 = vld [vmem:[%s477 + $0x9d0] sm:$0xff]
        %v1710 = vld [vmem:[%s477 + $0x9d8] sm:$0xff]
        %v1711 = vld [vmem:[%s477 + $0x9e0] sm:$0xff]
        %v1712 = vld [vmem:[%s477 + $0x9e8] sm:$0xff]
        %v1713 = vld [vmem:[%s477 + $0x9f0] sm:$0xff]
        %v1714 = vld [vmem:[%s477 + $0x9f8] sm:$0xff]
        %v1715 = vld [vmem:[%s477 + $0xa00] sm:$0xff]
        %v1716 = vld [vmem:[%s477 + $0xa08] sm:$0xff]
        %v1717 = vld [vmem:[%s477 + $0xa10] sm:$0xff]
        %v1718 = vld [vmem:[%s477 + $0xa18] sm:$0xff]
        %v1719 = vld [vmem:[%s477 + $0xa20] sm:$0xff]
        %v1720 = vld [vmem:[%s477 + $0xa28] sm:$0xff]
        %v1721 = vld [vmem:[%s477 + $0xa30] sm:$0xff]
        %v1722 = vld [vmem:[%s477 + $0xa38] sm:$0xff]
        %v1723 = vld [vmem:[%s477 + $0xa40] sm:$0xff]
        %v1724 = vld [vmem:[%s477 + $0xa48] sm:$0xff]
        %v1725 = vld [vmem:[%s477 + $0xa50] sm:$0xff]
        %v1726 = vld [vmem:[%s477 + $0xa58] sm:$0xff]
        %v1727 = vld [vmem:[%s477 + $0xa60] sm:$0xff]
        %v1728 = vld [vmem:[%s477 + $0xa68] sm:$0xff]
        %v1729 = vld [vmem:[%s477 + $0xa70] sm:$0xff]
        %v1730 = vld [vmem:[%s477 + $0xa78] sm:$0xff]
        %v1731 = vld [vmem:[%s477 + $0xa80] sm:$0xff]
        %v1732 = vld [vmem:[%s477 + $0xa88] sm:$0xff]
        %v1733 = vld [vmem:[%s477 + $0xa90] sm:$0xff]
        %v1734 = vld [vmem:[%s477 + $0xa98] sm:$0xff]
        %v1735 = vld [vmem:[%s477 + $0xaa0] sm:$0xff]
        %v1736 = vld [vmem:[%s477 + $0xaa8] sm:$0xff]
        %v1737 = vld [vmem:[%s477 + $0xab0] sm:$0xff]
        %v1738 = vld [vmem:[%s477 + $0xab8] sm:$0xff]
        %v1739 = vld [vmem:[%s477 + $0xac0] sm:$0xff]
        %v1740 = vld [vmem:[%s477 + $0xac8] sm:$0xff]
        %v1741 = vld [vmem:[%s477 + $0xad0] sm:$0xff]
        %v1742 = vld [vmem:[%s477 + $0xad8] sm:$0xff]
        %v1743 = vld [vmem:[%s477 + $0xae0] sm:$0xff]
        %v1744 = vld [vmem:[%s477 + $0xae8] sm:$0xff]
        %v1745 = vld [vmem:[%s477 + $0xaf0] sm:$0xff]
        %v1746 = vld [vmem:[%s477 + $0xaf8] sm:$0xff]
        %v1747 = vld [vmem:[%s477 + $0xb00] sm:$0xff]
        %v1748 = vld [vmem:[%s477 + $0xb08] sm:$0xff]
        %v1749 = vld [vmem:[%s477 + $0xb10] sm:$0xff]
        %v1750 = vld [vmem:[%s477 + $0xb18] sm:$0xff]
        %v1751 = vld [vmem:[%s477 + $0xb20] sm:$0xff]
        %v1752 = vld [vmem:[%s477 + $0xb28] sm:$0xff]
        %v1753 = vld [vmem:[%s477 + $0xb30] sm:$0xff]
        %v1754 = vld [vmem:[%s477 + $0xb38] sm:$0xff]
        %v1755 = vld [vmem:[%s477 + $0xb40] sm:$0xff]
        %v1756 = vld [vmem:[%s477 + $0xb48] sm:$0xff]
        %v1757 = vld [vmem:[%s477 + $0xb50] sm:$0xff]
        %v1758 = vld [vmem:[%s477 + $0xb58] sm:$0xff]
        %v1759 = vld [vmem:[%s477 + $0xb60] sm:$0xff]
        %v1760 = vld [vmem:[%s477 + $0xb68] sm:$0xff]
        %v1761 = vld [vmem:[%s477 + $0xb70] sm:$0xff]
        %v1762 = vld [vmem:[%s477 + $0xb78] sm:$0xff]
        %v1763 = vld [vmem:[%s477 + $0xb80] sm:$0xff]
        %v1764 = vld [vmem:[%s477 + $0xb88] sm:$0xff]
        %v1765 = vld [vmem:[%s477 + $0xb90] sm:$0xff]
        %v1766 = vld [vmem:[%s477 + $0xb98] sm:$0xff]
        %v1767 = vld [vmem:[%s477 + $0xba0] sm:$0xff]
        %v1768 = vld [vmem:[%s477 + $0xba8] sm:$0xff]
        %v1769 = vld [vmem:[%s477 + $0xbb0] sm:$0xff]
        %v1770 = vld [vmem:[%s477 + $0xbb8] sm:$0xff]
        %v1771 = vld [vmem:[%s477 + $0xbc0] sm:$0xff]
        %v1772 = vld [vmem:[%s477 + $0xbc8] sm:$0xff]
        %v1773 = vld [vmem:[%s477 + $0xbd0] sm:$0xff]
        %v1774 = vld [vmem:[%s477 + $0xbd8] sm:$0xff]
        %v1775 = vld [vmem:[%s477 + $0xbe0] sm:$0xff]
        %v1776 = vld [vmem:[%s477 + $0xbe8] sm:$0xff]
        %v1777 = vld [vmem:[%s477 + $0xbf0] sm:$0xff]
        %v1778 = vld [vmem:[%s477 + $0xbf8] sm:$0xff]
        %v2163 = vunpack.c.l.b16 %v1395
        %v2164 = vunpack.c.h.b16 %v1395
        %v2165 = vunpack.c.l.b16 %v1396
        %v2166 = vunpack.c.h.b16 %v1396
        %v2167 = vunpack.c.l.b16 %v1397
        %v2168 = vunpack.c.h.b16 %v1397
        %v2169 = vunpack.c.l.b16 %v1398
        %v2170 = vunpack.c.h.b16 %v1398
        %v2171 = vunpack.c.l.b16 %v1399
        %v2172 = vunpack.c.h.b16 %v1399
        %v2173 = vunpack.c.l.b16 %v1400
        %v2174 = vunpack.c.h.b16 %v1400
        %v2175 = vunpack.c.l.b16 %v1401
        %v2176 = vunpack.c.h.b16 %v1401
        %v2177 = vunpack.c.l.b16 %v1402
        %v2178 = vunpack.c.h.b16 %v1402
        %v2179 = vunpack.c.l.b16 %v1403
        %v2180 = vunpack.c.h.b16 %v1403
        %v2181 = vunpack.c.l.b16 %v1404
        %v2182 = vunpack.c.h.b16 %v1404
        %v2183 = vunpack.c.l.b16 %v1405
        %v2184 = vunpack.c.h.b16 %v1405
        %v2185 = vunpack.c.l.b16 %v1406
        %v2186 = vunpack.c.h.b16 %v1406
        %v2187 = vunpack.c.l.b16 %v1407
        %v2188 = vunpack.c.h.b16 %v1407
        %v2189 = vunpack.c.l.b16 %v1408
        %v2190 = vunpack.c.h.b16 %v1408
        %v2191 = vunpack.c.l.b16 %v1409
        %v2192 = vunpack.c.h.b16 %v1409
        %v2193 = vunpack.c.l.b16 %v1410
        %v2194 = vunpack.c.h.b16 %v1410
        %v2195 = vunpack.c.l.b16 %v1411
        %v2196 = vunpack.c.h.b16 %v1411
        %v2197 = vunpack.c.l.b16 %v1412
        %v2198 = vunpack.c.h.b16 %v1412
        %v2199 = vunpack.c.l.b16 %v1413
        %v2200 = vunpack.c.h.b16 %v1413
        %v2201 = vunpack.c.l.b16 %v1414
        %v2202 = vunpack.c.h.b16 %v1414
        %v2203 = vunpack.c.l.b16 %v1415
        %v2204 = vunpack.c.h.b16 %v1415
        %v2205 = vunpack.c.l.b16 %v1416
        %v2206 = vunpack.c.h.b16 %v1416
        %v2207 = vunpack.c.l.b16 %v1417
        %v2208 = vunpack.c.h.b16 %v1417
        %v2209 = vunpack.c.l.b16 %v1418
        %v2210 = vunpack.c.h.b16 %v1418
        %v2211 = vunpack.c.l.b16 %v1419
        %v2212 = vunpack.c.h.b16 %v1419
        %v2213 = vunpack.c.l.b16 %v1420
        %v2214 = vunpack.c.h.b16 %v1420
        %v2215 = vunpack.c.l.b16 %v1421
        %v2216 = vunpack.c.h.b16 %v1421
        %v2217 = vunpack.c.l.b16 %v1422
        %v2218 = vunpack.c.h.b16 %v1422
        %v2219 = vunpack.c.l.b16 %v1423
        %v2220 = vunpack.c.h.b16 %v1423
        %v2221 = vunpack.c.l.b16 %v1424
        %v2222 = vunpack.c.h.b16 %v1424
        %v2223 = vunpack.c.l.b16 %v1425
        %v2224 = vunpack.c.h.b16 %v1425
        %v2225 = vunpack.c.l.b16 %v1426
        %v2226 = vunpack.c.h.b16 %v1426
        %v2227 = vunpack.c.l.b16 %v1427
        %v2228 = vunpack.c.h.b16 %v1427
        %v2229 = vunpack.c.l.b16 %v1428
        %v2230 = vunpack.c.h.b16 %v1428
        %v2231 = vunpack.c.l.b16 %v1429
        %v2232 = vunpack.c.h.b16 %v1429
        %v2233 = vunpack.c.l.b16 %v1430
        %v2234 = vunpack.c.h.b16 %v1430
        %v2235 = vunpack.c.l.b16 %v1431
        %v2236 = vunpack.c.h.b16 %v1431
        %v2237 = vunpack.c.l.b16 %v1432
        %v2238 = vunpack.c.h.b16 %v1432
        %v2239 = vunpack.c.l.b16 %v1433
        %v2240 = vunpack.c.h.b16 %v1433
        %v2241 = vunpack.c.l.b16 %v1434
        %v2242 = vunpack.c.h.b16 %v1434
        %v2243 = vunpack.c.l.b16 %v1435
        %v2244 = vunpack.c.h.b16 %v1435
        %v2245 = vunpack.c.l.b16 %v1436
        %v2246 = vunpack.c.h.b16 %v1436
        %v2247 = vunpack.c.l.b16 %v1437
        %v2248 = vunpack.c.h.b16 %v1437
        %v2249 = vunpack.c.l.b16 %v1438
        %v2250 = vunpack.c.h.b16 %v1438
        %v2251 = vunpack.c.l.b16 %v1439
        %v2252 = vunpack.c.h.b16 %v1439
        %v2253 = vunpack.c.l.b16 %v1440
        %v2254 = vunpack.c.h.b16 %v1440
        %v2255 = vunpack.c.l.b16 %v1441
        %v2256 = vunpack.c.h.b16 %v1441
        %v2257 = vunpack.c.l.b16 %v1442
        %v2258 = vunpack.c.h.b16 %v1442
        %v2259 = vunpack.c.l.b16 %v1443
        %v2260 = vunpack.c.h.b16 %v1443
        %v2261 = vunpack.c.l.b16 %v1444
        %v2262 = vunpack.c.h.b16 %v1444
        %v2263 = vunpack.c.l.b16 %v1445
        %v2264 = vunpack.c.h.b16 %v1445
        %v2265 = vunpack.c.l.b16 %v1446
        %v2266 = vunpack.c.h.b16 %v1446
        %v2267 = vunpack.c.l.b16 %v1447
        %v2268 = vunpack.c.h.b16 %v1447
        %v2269 = vunpack.c.l.b16 %v1448
        %v2270 = vunpack.c.h.b16 %v1448
        %v2271 = vunpack.c.l.b16 %v1449
        %v2272 = vunpack.c.h.b16 %v1449
        %v2273 = vunpack.c.l.b16 %v1450
        %v2274 = vunpack.c.h.b16 %v1450
        %v2275 = vunpack.c.l.b16 %v1451
        %v2276 = vunpack.c.h.b16 %v1451
        %v2277 = vunpack.c.l.b16 %v1452
        %v2278 = vunpack.c.h.b16 %v1452
        %v2279 = vunpack.c.l.b16 %v1453
        %v2280 = vunpack.c.h.b16 %v1453
        %v2281 = vunpack.c.l.b16 %v1454
        %v2282 = vunpack.c.h.b16 %v1454
        %v2283 = vunpack.c.l.b16 %v1455
        %v2284 = vunpack.c.h.b16 %v1455
        %v2285 = vunpack.c.l.b16 %v1456
        %v2286 = vunpack.c.h.b16 %v1456
        %v2287 = vunpack.c.l.b16 %v1457
        %v2288 = vunpack.c.h.b16 %v1457
        %v2289 = vunpack.c.l.b16 %v1458
        %v2290 = vunpack.c.h.b16 %v1458
        %v2291 = vunpack.c.l.b16 %v1459
        %v2292 = vunpack.c.h.b16 %v1459
        %v2293 = vunpack.c.l.b16 %v1460
        %v2294 = vunpack.c.h.b16 %v1460
        %v2295 = vunpack.c.l.b16 %v1461
        %v2296 = vunpack.c.h.b16 %v1461
        %v2297 = vunpack.c.l.b16 %v1462
        %v2298 = vunpack.c.h.b16 %v1462
        %v2299 = vunpack.c.l.b16 %v1463
        %v2300 = vunpack.c.h.b16 %v1463
        %v2301 = vunpack.c.l.b16 %v1464
        %v2302 = vunpack.c.h.b16 %v1464
        %v2303 = vunpack.c.l.b16 %v1465
        %v2304 = vunpack.c.h.b16 %v1465
        %v2305 = vunpack.c.l.b16 %v1466
        %v2306 = vunpack.c.h.b16 %v1466
        %v2307 = vunpack.c.l.b16 %v1467
        %v2308 = vunpack.c.h.b16 %v1467
        %v2309 = vunpack.c.l.b16 %v1468
        %v2310 = vunpack.c.h.b16 %v1468
        %v2311 = vunpack.c.l.b16 %v1469
        %v2312 = vunpack.c.h.b16 %v1469
        %v2313 = vunpack.c.l.b16 %v1470
        %v2314 = vunpack.c.h.b16 %v1470
        %v2315 = vunpack.c.l.b16 %v1471
        %v2316 = vunpack.c.h.b16 %v1471
        %v2317 = vunpack.c.l.b16 %v1472
        %v2318 = vunpack.c.h.b16 %v1472
        %v2319 = vunpack.c.l.b16 %v1473
        %v2320 = vunpack.c.h.b16 %v1473
        %v2321 = vunpack.c.l.b16 %v1474
        %v2322 = vunpack.c.h.b16 %v1474
        %v2323 = vunpack.c.l.b16 %v1475
        %v2324 = vunpack.c.h.b16 %v1475
        %v2325 = vunpack.c.l.b16 %v1476
        %v2326 = vunpack.c.h.b16 %v1476
        %v2327 = vunpack.c.l.b16 %v1477
        %v2328 = vunpack.c.h.b16 %v1477
        %v2329 = vunpack.c.l.b16 %v1478
        %v2330 = vunpack.c.h.b16 %v1478
        %v2331 = vunpack.c.l.b16 %v1479
        %v2332 = vunpack.c.h.b16 %v1479
        %v2333 = vunpack.c.l.b16 %v1480
        %v2334 = vunpack.c.h.b16 %v1480
        %v2335 = vunpack.c.l.b16 %v1481
        %v2336 = vunpack.c.h.b16 %v1481
        %v2337 = vunpack.c.l.b16 %v1482
        %v2338 = vunpack.c.h.b16 %v1482
        %v2339 = vunpack.c.l.b16 %v1483
        %v2340 = vunpack.c.h.b16 %v1483
        %v2341 = vunpack.c.l.b16 %v1484
        %v2342 = vunpack.c.h.b16 %v1484
        %v2343 = vunpack.c.l.b16 %v1485
        %v2344 = vunpack.c.h.b16 %v1485
        %v2345 = vunpack.c.l.b16 %v1486
        %v2346 = vunpack.c.h.b16 %v1486
        %v2347 = vunpack.c.l.b16 %v1487
        %v2348 = vunpack.c.h.b16 %v1487
        %v2349 = vunpack.c.l.b16 %v1488
        %v2350 = vunpack.c.h.b16 %v1488
        %v2351 = vunpack.c.l.b16 %v1489
        %v2352 = vunpack.c.h.b16 %v1489
        %v2353 = vunpack.c.l.b16 %v1490
        %v2354 = vunpack.c.h.b16 %v1490
        %v2355 = vunpack.c.l.b16 %v1491
        %v2356 = vunpack.c.h.b16 %v1491
        %v2357 = vunpack.c.l.b16 %v1492
        %v2358 = vunpack.c.h.b16 %v1492
        %v2359 = vunpack.c.l.b16 %v1493
        %v2360 = vunpack.c.h.b16 %v1493
        %v2361 = vunpack.c.l.b16 %v1494
        %v2362 = vunpack.c.h.b16 %v1494
        %v2363 = vunpack.c.l.b16 %v1495
        %v2364 = vunpack.c.h.b16 %v1495
        %v2365 = vunpack.c.l.b16 %v1496
        %v2366 = vunpack.c.h.b16 %v1496
        %v2367 = vunpack.c.l.b16 %v1497
        %v2368 = vunpack.c.h.b16 %v1497
        %v2369 = vunpack.c.l.b16 %v1498
        %v2370 = vunpack.c.h.b16 %v1498
        %v2371 = vunpack.c.l.b16 %v1499
        %v2372 = vunpack.c.h.b16 %v1499
        %v2373 = vunpack.c.l.b16 %v1500
        %v2374 = vunpack.c.h.b16 %v1500
        %v2375 = vunpack.c.l.b16 %v1501
        %v2376 = vunpack.c.h.b16 %v1501
        %v2377 = vunpack.c.l.b16 %v1502
        %v2378 = vunpack.c.h.b16 %v1502
        %v2379 = vunpack.c.l.b16 %v1503
        %v2380 = vunpack.c.h.b16 %v1503
        %v2381 = vunpack.c.l.b16 %v1504
        %v2382 = vunpack.c.h.b16 %v1504
        %v2383 = vunpack.c.l.b16 %v1505
        %v2384 = vunpack.c.h.b16 %v1505
        %v2385 = vunpack.c.l.b16 %v1506
        %v2386 = vunpack.c.h.b16 %v1506
        %v2387 = vunpack.c.l.b16 %v1507
        %v2388 = vunpack.c.h.b16 %v1507
        %v2389 = vunpack.c.l.b16 %v1508
        %v2390 = vunpack.c.h.b16 %v1508
        %v2391 = vunpack.c.l.b16 %v1509
        %v2392 = vunpack.c.h.b16 %v1509
        %v2393 = vunpack.c.l.b16 %v1510
        %v2394 = vunpack.c.h.b16 %v1510
        %v2395 = vunpack.c.l.b16 %v1511
        %v2396 = vunpack.c.h.b16 %v1511
        %v2397 = vunpack.c.l.b16 %v1512
        %v2398 = vunpack.c.h.b16 %v1512
        %v2399 = vunpack.c.l.b16 %v1513
        %v2400 = vunpack.c.h.b16 %v1513
        %v2401 = vunpack.c.l.b16 %v1514
        %v2402 = vunpack.c.h.b16 %v1514
        %v2403 = vunpack.c.l.b16 %v1515
        %v2404 = vunpack.c.h.b16 %v1515
        %v2405 = vunpack.c.l.b16 %v1516
        %v2406 = vunpack.c.h.b16 %v1516
        %v2407 = vunpack.c.l.b16 %v1517
        %v2408 = vunpack.c.h.b16 %v1517
        %v2409 = vunpack.c.l.b16 %v1518
        %v2410 = vunpack.c.h.b16 %v1518
        %v2411 = vunpack.c.l.b16 %v1519
        %v2412 = vunpack.c.h.b16 %v1519
        %v2413 = vunpack.c.l.b16 %v1520
        %v2414 = vunpack.c.h.b16 %v1520
        %v2415 = vunpack.c.l.b16 %v1521
        %v2416 = vunpack.c.h.b16 %v1521
        %v2417 = vunpack.c.l.b16 %v1522
        %v2418 = vunpack.c.h.b16 %v1522
        %v2419 = vunpack.c.l.b16 %v1523
        %v2420 = vunpack.c.h.b16 %v1523
        %v2421 = vunpack.c.l.b16 %v1524
        %v2422 = vunpack.c.h.b16 %v1524
        %v2423 = vunpack.c.l.b16 %v1525
        %v2424 = vunpack.c.h.b16 %v1525
        %v2425 = vunpack.c.l.b16 %v1526
        %v2426 = vunpack.c.h.b16 %v1526
        %v2427 = vunpack.c.l.b16 %v1527
        %v2428 = vunpack.c.h.b16 %v1527
        %v2429 = vunpack.c.l.b16 %v1528
        %v2430 = vunpack.c.h.b16 %v1528
        %v2431 = vunpack.c.l.b16 %v1529
        %v2432 = vunpack.c.h.b16 %v1529
        %v2433 = vunpack.c.l.b16 %v1530
        %v2434 = vunpack.c.h.b16 %v1530
        %v2435 = vunpack.c.l.b16 %v1531
        %v2436 = vunpack.c.h.b16 %v1531
        %v2437 = vunpack.c.l.b16 %v1532
        %v2438 = vunpack.c.h.b16 %v1532
        %v2439 = vunpack.c.l.b16 %v1533
        %v2440 = vunpack.c.h.b16 %v1533
        %v2441 = vunpack.c.l.b16 %v1534
        %v2442 = vunpack.c.h.b16 %v1534
        %v2443 = vunpack.c.l.b16 %v1535
        %v2444 = vunpack.c.h.b16 %v1535
        %v2445 = vunpack.c.l.b16 %v1536
        %v2446 = vunpack.c.h.b16 %v1536
        %v2447 = vunpack.c.l.b16 %v1537
        %v2448 = vunpack.c.h.b16 %v1537
        %v2449 = vunpack.c.l.b16 %v1538
        %v2450 = vunpack.c.h.b16 %v1538
        %v2451 = vunpack.c.l.b16 %v1539
        %v2452 = vunpack.c.h.b16 %v1539
        %v2453 = vunpack.c.l.b16 %v1540
        %v2454 = vunpack.c.h.b16 %v1540
        %v2455 = vunpack.c.l.b16 %v1541
        %v2456 = vunpack.c.h.b16 %v1541
        %v2457 = vunpack.c.l.b16 %v1542
        %v2458 = vunpack.c.h.b16 %v1542
        %v2459 = vunpack.c.l.b16 %v1543
        %v2460 = vunpack.c.h.b16 %v1543
        %v2461 = vunpack.c.l.b16 %v1544
        %v2462 = vunpack.c.h.b16 %v1544
        %v2463 = vunpack.c.l.b16 %v1545
        %v2464 = vunpack.c.h.b16 %v1545
        %v2465 = vunpack.c.l.b16 %v1546
        %v2466 = vunpack.c.h.b16 %v1546
        %v2467 = vunpack.c.l.b16 %v1547
        %v2468 = vunpack.c.h.b16 %v1547
        %v2469 = vunpack.c.l.b16 %v1548
        %v2470 = vunpack.c.h.b16 %v1548
        %v2471 = vunpack.c.l.b16 %v1549
        %v2472 = vunpack.c.h.b16 %v1549
        %v2473 = vunpack.c.l.b16 %v1550
        %v2474 = vunpack.c.h.b16 %v1550
        %v2475 = vunpack.c.l.b16 %v1551
        %v2476 = vunpack.c.h.b16 %v1551
        %v2477 = vunpack.c.l.b16 %v1552
        %v2478 = vunpack.c.h.b16 %v1552
        %v2479 = vunpack.c.l.b16 %v1553
        %v2480 = vunpack.c.h.b16 %v1553
        %v2481 = vunpack.c.l.b16 %v1554
        %v2482 = vunpack.c.h.b16 %v1554
        %v2483 = vunpack.c.l.b16 %v1555
        %v2484 = vunpack.c.h.b16 %v1555
        %v2485 = vunpack.c.l.b16 %v1556
        %v2486 = vunpack.c.h.b16 %v1556
        %v2487 = vunpack.c.l.b16 %v1557
        %v2488 = vunpack.c.h.b16 %v1557
        %v2489 = vunpack.c.l.b16 %v1558
        %v2490 = vunpack.c.h.b16 %v1558
        %v2491 = vunpack.c.l.b16 %v1559
        %v2492 = vunpack.c.h.b16 %v1559
        %v2493 = vunpack.c.l.b16 %v1560
        %v2494 = vunpack.c.h.b16 %v1560
        %v2495 = vunpack.c.l.b16 %v1561
        %v2496 = vunpack.c.h.b16 %v1561
        %v2497 = vunpack.c.l.b16 %v1562
        %v2498 = vunpack.c.h.b16 %v1562
        %v2499 = vunpack.c.l.b16 %v1563
        %v2500 = vunpack.c.h.b16 %v1563
        %v2501 = vunpack.c.l.b16 %v1564
        %v2502 = vunpack.c.h.b16 %v1564
        %v2503 = vunpack.c.l.b16 %v1565
        %v2504 = vunpack.c.h.b16 %v1565
        %v2505 = vunpack.c.l.b16 %v1566
        %v2506 = vunpack.c.h.b16 %v1566
        %v2507 = vunpack.c.l.b16 %v1567
        %v2508 = vunpack.c.h.b16 %v1567
        %v2509 = vunpack.c.l.b16 %v1568
        %v2510 = vunpack.c.h.b16 %v1568
        %v2511 = vunpack.c.l.b16 %v1569
        %v2512 = vunpack.c.h.b16 %v1569
        %v2513 = vunpack.c.l.b16 %v1570
        %v2514 = vunpack.c.h.b16 %v1570
        %v2515 = vunpack.c.l.b16 %v1571
        %v2516 = vunpack.c.h.b16 %v1571
        %v2517 = vunpack.c.l.b16 %v1572
        %v2518 = vunpack.c.h.b16 %v1572
        %v2519 = vunpack.c.l.b16 %v1573
        %v2520 = vunpack.c.h.b16 %v1573
        %v2521 = vunpack.c.l.b16 %v1574
        %v2522 = vunpack.c.h.b16 %v1574
        %v2523 = vunpack.c.l.b16 %v1575
        %v2524 = vunpack.c.h.b16 %v1575
        %v2525 = vunpack.c.l.b16 %v1576
        %v2526 = vunpack.c.h.b16 %v1576
        %v2527 = vunpack.c.l.b16 %v1577
        %v2528 = vunpack.c.h.b16 %v1577
        %v2529 = vunpack.c.l.b16 %v1578
        %v2530 = vunpack.c.h.b16 %v1578
        %v2531 = vunpack.c.l.b16 %v1579
        %v2532 = vunpack.c.h.b16 %v1579
        %v2533 = vunpack.c.l.b16 %v1580
        %v2534 = vunpack.c.h.b16 %v1580
        %v2535 = vunpack.c.l.b16 %v1581
        %v2536 = vunpack.c.h.b16 %v1581
        %v2537 = vunpack.c.l.b16 %v1582
        %v2538 = vunpack.c.h.b16 %v1582
        %v2539 = vunpack.c.l.b16 %v1583
        %v2540 = vunpack.c.h.b16 %v1583
        %v2541 = vunpack.c.l.b16 %v1584
        %v2542 = vunpack.c.h.b16 %v1584
        %v2543 = vunpack.c.l.b16 %v1585
        %v2544 = vunpack.c.h.b16 %v1585
        %v2545 = vunpack.c.l.b16 %v1586
        %v2546 = vunpack.c.h.b16 %v1586
        %v2547 = vunpack.c.l.b16 %v1587
        %v2548 = vunpack.c.h.b16 %v1587
        %v2549 = vunpack.c.l.b16 %v1588
        %v2550 = vunpack.c.h.b16 %v1588
        %v2551 = vunpack.c.l.b16 %v1589
        %v2552 = vunpack.c.h.b16 %v1589
        %v2553 = vunpack.c.l.b16 %v1590
        %v2554 = vunpack.c.h.b16 %v1590
        %v2555 = vunpack.c.l.b16 %v1591
        %v2556 = vunpack.c.h.b16 %v1591
        %v2557 = vunpack.c.l.b16 %v1592
        %v2558 = vunpack.c.h.b16 %v1592
        %v2559 = vunpack.c.l.b16 %v1593
        %v2560 = vunpack.c.h.b16 %v1593
        %v2561 = vunpack.c.l.b16 %v1594
        %v2562 = vunpack.c.h.b16 %v1594
        %v2563 = vunpack.c.l.b16 %v1595
        %v2564 = vunpack.c.h.b16 %v1595
        %v2565 = vunpack.c.l.b16 %v1596
        %v2566 = vunpack.c.h.b16 %v1596
        %v2567 = vunpack.c.l.b16 %v1597
        %v2568 = vunpack.c.h.b16 %v1597
        %v2569 = vunpack.c.l.b16 %v1598
        %v2570 = vunpack.c.h.b16 %v1598
        %v2571 = vunpack.c.l.b16 %v1599
        %v2572 = vunpack.c.h.b16 %v1599
        %v2573 = vunpack.c.l.b16 %v1600
        %v2574 = vunpack.c.h.b16 %v1600
        %v2575 = vunpack.c.l.b16 %v1601
        %v2576 = vunpack.c.h.b16 %v1601
        %v2577 = vunpack.c.l.b16 %v1602
        %v2578 = vunpack.c.h.b16 %v1602
        %v2579 = vunpack.c.l.b16 %v1603
        %v2580 = vunpack.c.h.b16 %v1603
        %v2581 = vunpack.c.l.b16 %v1604
        %v2582 = vunpack.c.h.b16 %v1604
        %v2583 = vunpack.c.l.b16 %v1605
        %v2584 = vunpack.c.h.b16 %v1605
        %v2585 = vunpack.c.l.b16 %v1606
        %v2586 = vunpack.c.h.b16 %v1606
        %v2587 = vunpack.c.l.b16 %v1607
        %v2588 = vunpack.c.h.b16 %v1607
        %v2589 = vunpack.c.l.b16 %v1608
        %v2590 = vunpack.c.h.b16 %v1608
        %v2591 = vunpack.c.l.b16 %v1609
        %v2592 = vunpack.c.h.b16 %v1609
        %v2593 = vunpack.c.l.b16 %v1610
        %v2594 = vunpack.c.h.b16 %v1610
        %v2595 = vunpack.c.l.b16 %v1611
        %v2596 = vunpack.c.h.b16 %v1611
        %v2597 = vunpack.c.l.b16 %v1612
        %v2598 = vunpack.c.h.b16 %v1612
        %v2599 = vunpack.c.l.b16 %v1613
        %v2600 = vunpack.c.h.b16 %v1613
        %v2601 = vunpack.c.l.b16 %v1614
        %v2602 = vunpack.c.h.b16 %v1614
        %v2603 = vunpack.c.l.b16 %v1615
        %v2604 = vunpack.c.h.b16 %v1615
        %v2605 = vunpack.c.l.b16 %v1616
        %v2606 = vunpack.c.h.b16 %v1616
        %v2607 = vunpack.c.l.b16 %v1617
        %v2608 = vunpack.c.h.b16 %v1617
        %v2609 = vunpack.c.l.b16 %v1618
        %v2610 = vunpack.c.h.b16 %v1618
        %v2611 = vunpack.c.l.b16 %v1619
        %v2612 = vunpack.c.h.b16 %v1619
        %v2613 = vunpack.c.l.b16 %v1620
        %v2614 = vunpack.c.h.b16 %v1620
        %v2615 = vunpack.c.l.b16 %v1621
        %v2616 = vunpack.c.h.b16 %v1621
        %v2617 = vunpack.c.l.b16 %v1622
        %v2618 = vunpack.c.h.b16 %v1622
        %v2619 = vunpack.c.l.b16 %v1623
        %v2620 = vunpack.c.h.b16 %v1623
        %v2621 = vunpack.c.l.b16 %v1624
        %v2622 = vunpack.c.h.b16 %v1624
        %v2623 = vunpack.c.l.b16 %v1625
        %v2624 = vunpack.c.h.b16 %v1625
        %v2625 = vunpack.c.l.b16 %v1626
        %v2626 = vunpack.c.h.b16 %v1626
        %v2627 = vunpack.c.l.b16 %v1627
        %v2628 = vunpack.c.h.b16 %v1627
        %v2629 = vunpack.c.l.b16 %v1628
        %v2630 = vunpack.c.h.b16 %v1628
        %v2631 = vunpack.c.l.b16 %v1629
        %v2632 = vunpack.c.h.b16 %v1629
        %v2633 = vunpack.c.l.b16 %v1630
        %v2634 = vunpack.c.h.b16 %v1630
        %v2635 = vunpack.c.l.b16 %v1631
        %v2636 = vunpack.c.h.b16 %v1631
        %v2637 = vunpack.c.l.b16 %v1632
        %v2638 = vunpack.c.h.b16 %v1632
        %v2639 = vunpack.c.l.b16 %v1633
        %v2640 = vunpack.c.h.b16 %v1633
        %v2641 = vunpack.c.l.b16 %v1634
        %v2642 = vunpack.c.h.b16 %v1634
        %v2643 = vunpack.c.l.b16 %v1635
        %v2644 = vunpack.c.h.b16 %v1635
        %v2645 = vunpack.c.l.b16 %v1636
        %v2646 = vunpack.c.h.b16 %v1636
        %v2647 = vunpack.c.l.b16 %v1637
        %v2648 = vunpack.c.h.b16 %v1637
        %v2649 = vunpack.c.l.b16 %v1638
        %v2650 = vunpack.c.h.b16 %v1638
        %v2651 = vunpack.c.l.b16 %v1639
        %v2652 = vunpack.c.h.b16 %v1639
        %v2653 = vunpack.c.l.b16 %v1640
        %v2654 = vunpack.c.h.b16 %v1640
        %v2655 = vunpack.c.l.b16 %v1641
        %v2656 = vunpack.c.h.b16 %v1641
        %v2657 = vunpack.c.l.b16 %v1642
        %v2658 = vunpack.c.h.b16 %v1642
        %v2659 = vunpack.c.l.b16 %v1643
        %v2660 = vunpack.c.h.b16 %v1643
        %v2661 = vunpack.c.l.b16 %v1644
        %v2662 = vunpack.c.h.b16 %v1644
        %v2663 = vunpack.c.l.b16 %v1645
        %v2664 = vunpack.c.h.b16 %v1645
        %v2665 = vunpack.c.l.b16 %v1646
        %v2666 = vunpack.c.h.b16 %v1646
        %v2667 = vunpack.c.l.b16 %v1647
        %v2668 = vunpack.c.h.b16 %v1647
        %v2669 = vunpack.c.l.b16 %v1648
        %v2670 = vunpack.c.h.b16 %v1648
        %v2671 = vunpack.c.l.b16 %v1649
        %v2672 = vunpack.c.h.b16 %v1649
        %v2673 = vunpack.c.l.b16 %v1650
        %v2674 = vunpack.c.h.b16 %v1650
        %v2675 = vunpack.c.l.b16 %v1651
        %v2676 = vunpack.c.h.b16 %v1651
        %v2677 = vunpack.c.l.b16 %v1652
        %v2678 = vunpack.c.h.b16 %v1652
        %v2679 = vunpack.c.l.b16 %v1653
        %v2680 = vunpack.c.h.b16 %v1653
        %v2681 = vunpack.c.l.b16 %v1654
        %v2682 = vunpack.c.h.b16 %v1654
        %v2683 = vunpack.c.l.b16 %v1655
        %v2684 = vunpack.c.h.b16 %v1655
        %v2685 = vunpack.c.l.b16 %v1656
        %v2686 = vunpack.c.h.b16 %v1656
        %v2687 = vunpack.c.l.b16 %v1657
        %v2688 = vunpack.c.h.b16 %v1657
        %v2689 = vunpack.c.l.b16 %v1658
        %v2690 = vunpack.c.h.b16 %v1658
        %v2691 = vunpack.c.l.b16 %v1659
        %v2692 = vunpack.c.h.b16 %v1659
        %v2693 = vunpack.c.l.b16 %v1660
        %v2694 = vunpack.c.h.b16 %v1660
        %v2695 = vunpack.c.l.b16 %v1661
        %v2696 = vunpack.c.h.b16 %v1661
        %v2697 = vunpack.c.l.b16 %v1662
        %v2698 = vunpack.c.h.b16 %v1662
        %v2699 = vunpack.c.l.b16 %v1663
        %v2700 = vunpack.c.h.b16 %v1663
        %v2701 = vunpack.c.l.b16 %v1664
        %v2702 = vunpack.c.h.b16 %v1664
        %v2703 = vunpack.c.l.b16 %v1665
        %v2704 = vunpack.c.h.b16 %v1665
        %v2705 = vunpack.c.l.b16 %v1666
        %v2706 = vunpack.c.h.b16 %v1666
        %v2707 = vunpack.c.l.b16 %v1667
        %v2708 = vunpack.c.h.b16 %v1667
        %v2709 = vunpack.c.l.b16 %v1668
        %v2710 = vunpack.c.h.b16 %v1668
        %v2711 = vunpack.c.l.b16 %v1669
        %v2712 = vunpack.c.h.b16 %v1669
        %v2713 = vunpack.c.l.b16 %v1670
        %v2714 = vunpack.c.h.b16 %v1670
        %v2715 = vunpack.c.l.b16 %v1671
        %v2716 = vunpack.c.h.b16 %v1671
        %v2717 = vunpack.c.l.b16 %v1672
        %v2718 = vunpack.c.h.b16 %v1672
        %v2719 = vunpack.c.l.b16 %v1673
        %v2720 = vunpack.c.h.b16 %v1673
        %v2721 = vunpack.c.l.b16 %v1674
        %v2722 = vunpack.c.h.b16 %v1674
        %v2723 = vunpack.c.l.b16 %v1675
        %v2724 = vunpack.c.h.b16 %v1675
        %v2725 = vunpack.c.l.b16 %v1676
        %v2726 = vunpack.c.h.b16 %v1676
        %v2727 = vunpack.c.l.b16 %v1677
        %v2728 = vunpack.c.h.b16 %v1677
        %v2729 = vunpack.c.l.b16 %v1678
        %v2730 = vunpack.c.h.b16 %v1678
        %v2731 = vunpack.c.l.b16 %v1679
        %v2732 = vunpack.c.h.b16 %v1679
        %v2733 = vunpack.c.l.b16 %v1680
        %v2734 = vunpack.c.h.b16 %v1680
        %v2735 = vunpack.c.l.b16 %v1681
        %v2736 = vunpack.c.h.b16 %v1681
        %v2737 = vunpack.c.l.b16 %v1682
        %v2738 = vunpack.c.h.b16 %v1682
        %v2739 = vunpack.c.l.b16 %v1683
        %v2740 = vunpack.c.h.b16 %v1683
        %v2741 = vunpack.c.l.b16 %v1684
        %v2742 = vunpack.c.h.b16 %v1684
        %v2743 = vunpack.c.l.b16 %v1685
        %v2744 = vunpack.c.h.b16 %v1685
        %v2745 = vunpack.c.l.b16 %v1686
        %v2746 = vunpack.c.h.b16 %v1686
        %v2747 = vunpack.c.l.b16 %v1687
        %v2748 = vunpack.c.h.b16 %v1687
        %v2749 = vunpack.c.l.b16 %v1688
        %v2750 = vunpack.c.h.b16 %v1688
        %v2751 = vunpack.c.l.b16 %v1689
        %v2752 = vunpack.c.h.b16 %v1689
        %v2753 = vunpack.c.l.b16 %v1690
        %v2754 = vunpack.c.h.b16 %v1690
        %v2755 = vunpack.c.l.b16 %v1691
        %v2756 = vunpack.c.h.b16 %v1691
        %v2757 = vunpack.c.l.b16 %v1692
        %v2758 = vunpack.c.h.b16 %v1692
        %v2759 = vunpack.c.l.b16 %v1693
        %v2760 = vunpack.c.h.b16 %v1693
        %v2761 = vunpack.c.l.b16 %v1694
        %v2762 = vunpack.c.h.b16 %v1694
        %v2763 = vunpack.c.l.b16 %v1695
        %v2764 = vunpack.c.h.b16 %v1695
        %v2765 = vunpack.c.l.b16 %v1696
        %v2766 = vunpack.c.h.b16 %v1696
        %v2767 = vunpack.c.l.b16 %v1697
        %v2768 = vunpack.c.h.b16 %v1697
        %v2769 = vunpack.c.l.b16 %v1698
        %v2770 = vunpack.c.h.b16 %v1698
        %v2771 = vunpack.c.l.b16 %v1699
        %v2772 = vunpack.c.h.b16 %v1699
        %v2773 = vunpack.c.l.b16 %v1700
        %v2774 = vunpack.c.h.b16 %v1700
        %v2775 = vunpack.c.l.b16 %v1701
        %v2776 = vunpack.c.h.b16 %v1701
        %v2777 = vunpack.c.l.b16 %v1702
        %v2778 = vunpack.c.h.b16 %v1702
        %v2779 = vunpack.c.l.b16 %v1703
        %v2780 = vunpack.c.h.b16 %v1703
        %v2781 = vunpack.c.l.b16 %v1704
        %v2782 = vunpack.c.h.b16 %v1704
        %v2783 = vunpack.c.l.b16 %v1705
        %v2784 = vunpack.c.h.b16 %v1705
        %v2785 = vunpack.c.l.b16 %v1706
        %v2786 = vunpack.c.h.b16 %v1706
        %v2787 = vunpack.c.l.b16 %v1707
        %v2788 = vunpack.c.h.b16 %v1707
        %v2789 = vunpack.c.l.b16 %v1708
        %v2790 = vunpack.c.h.b16 %v1708
        %v2791 = vunpack.c.l.b16 %v1709
        %v2792 = vunpack.c.h.b16 %v1709
        %v2793 = vunpack.c.l.b16 %v1710
        %v2794 = vunpack.c.h.b16 %v1710
        %v2795 = vunpack.c.l.b16 %v1711
        %v2796 = vunpack.c.h.b16 %v1711
        %v2797 = vunpack.c.l.b16 %v1712
        %v2798 = vunpack.c.h.b16 %v1712
        %v2799 = vunpack.c.l.b16 %v1713
        %v2800 = vunpack.c.h.b16 %v1713
        %v2801 = vunpack.c.l.b16 %v1714
        %v2802 = vunpack.c.h.b16 %v1714
        %v2803 = vunpack.c.l.b16 %v1715
        %v2804 = vunpack.c.h.b16 %v1715
        %v2805 = vunpack.c.l.b16 %v1716
        %v2806 = vunpack.c.h.b16 %v1716
        %v2807 = vunpack.c.l.b16 %v1717
        %v2808 = vunpack.c.h.b16 %v1717
        %v2809 = vunpack.c.l.b16 %v1718
        %v2810 = vunpack.c.h.b16 %v1718
        %v2811 = vunpack.c.l.b16 %v1719
        %v2812 = vunpack.c.h.b16 %v1719
        %v2813 = vunpack.c.l.b16 %v1720
        %v2814 = vunpack.c.h.b16 %v1720
        %v2815 = vunpack.c.l.b16 %v1721
        %v2816 = vunpack.c.h.b16 %v1721
        %v2817 = vunpack.c.l.b16 %v1722
        %v2818 = vunpack.c.h.b16 %v1722
        %v2819 = vunpack.c.l.b16 %v1723
        %v2820 = vunpack.c.h.b16 %v1723
        %v2821 = vunpack.c.l.b16 %v1724
        %v2822 = vunpack.c.h.b16 %v1724
        %v2823 = vunpack.c.l.b16 %v1725
        %v2824 = vunpack.c.h.b16 %v1725
        %v2825 = vunpack.c.l.b16 %v1726
        %v2826 = vunpack.c.h.b16 %v1726
        %v2827 = vunpack.c.l.b16 %v1727
        %v2828 = vunpack.c.h.b16 %v1727
        %v2829 = vunpack.c.l.b16 %v1728
        %v2830 = vunpack.c.h.b16 %v1728
        %v2831 = vunpack.c.l.b16 %v1729
        %v2832 = vunpack.c.h.b16 %v1729
        %v2833 = vunpack.c.l.b16 %v1730
        %v2834 = vunpack.c.h.b16 %v1730
        %v2835 = vunpack.c.l.b16 %v1731
        %v2836 = vunpack.c.h.b16 %v1731
        %v2837 = vunpack.c.l.b16 %v1732
        %v2838 = vunpack.c.h.b16 %v1732
        %v2839 = vunpack.c.l.b16 %v1733
        %v2840 = vunpack.c.h.b16 %v1733
        %v2841 = vunpack.c.l.b16 %v1734
        %v2842 = vunpack.c.h.b16 %v1734
        %v2843 = vunpack.c.l.b16 %v1735
        %v2844 = vunpack.c.h.b16 %v1735
        %v2845 = vunpack.c.l.b16 %v1736
        %v2846 = vunpack.c.h.b16 %v1736
        %v2847 = vunpack.c.l.b16 %v1737
        %v2848 = vunpack.c.h.b16 %v1737
        %v2849 = vunpack.c.l.b16 %v1738
        %v2850 = vunpack.c.h.b16 %v1738
        %v2851 = vunpack.c.l.b16 %v1739
        %v2852 = vunpack.c.h.b16 %v1739
        %v2853 = vunpack.c.l.b16 %v1740
        %v2854 = vunpack.c.h.b16 %v1740
        %v2855 = vunpack.c.l.b16 %v1741
        %v2856 = vunpack.c.h.b16 %v1741
        %v2857 = vunpack.c.l.b16 %v1742
        %v2858 = vunpack.c.h.b16 %v1742
        %v2859 = vunpack.c.l.b16 %v1743
        %v2860 = vunpack.c.h.b16 %v1743
        %v2861 = vunpack.c.l.b16 %v1744
        %v2862 = vunpack.c.h.b16 %v1744
        %v2863 = vunpack.c.l.b16 %v1745
        %v2864 = vunpack.c.h.b16 %v1745
        %v2865 = vunpack.c.l.b16 %v1746
        %v2866 = vunpack.c.h.b16 %v1746
        %v2867 = vunpack.c.l.b16 %v1747
        %v2868 = vunpack.c.h.b16 %v1747
        %v2869 = vunpack.c.l.b16 %v1748
        %v2870 = vunpack.c.h.b16 %v1748
        %v2871 = vunpack.c.l.b16 %v1749
        %v2872 = vunpack.c.h.b16 %v1749
        %v2873 = vunpack.c.l.b16 %v1750
        %v2874 = vunpack.c.h.b16 %v1750
        %v2875 = vunpack.c.l.b16 %v1751
        %v2876 = vunpack.c.h.b16 %v1751
        %v2877 = vunpack.c.l.b16 %v1752
        %v2878 = vunpack.c.h.b16 %v1752
        %v2879 = vunpack.c.l.b16 %v1753
        %v2880 = vunpack.c.h.b16 %v1753
        %v2881 = vunpack.c.l.b16 %v1754
        %v2882 = vunpack.c.h.b16 %v1754
        %v2883 = vunpack.c.l.b16 %v1755
        %v2884 = vunpack.c.h.b16 %v1755
        %v2885 = vunpack.c.l.b16 %v1756
        %v2886 = vunpack.c.h.b16 %v1756
        %v2887 = vunpack.c.l.b16 %v1757
        %v2888 = vunpack.c.h.b16 %v1757
        %v2889 = vunpack.c.l.b16 %v1758
        %v2890 = vunpack.c.h.b16 %v1758
        %v2891 = vunpack.c.l.b16 %v1759
        %v2892 = vunpack.c.h.b16 %v1759
        %v2893 = vunpack.c.l.b16 %v1760
        %v2894 = vunpack.c.h.b16 %v1760
        %v2895 = vunpack.c.l.b16 %v1761
        %v2896 = vunpack.c.h.b16 %v1761
        %v2897 = vunpack.c.l.b16 %v1762
        %v2898 = vunpack.c.h.b16 %v1762
        %v2899 = vunpack.c.l.b16 %v1763
        %v2900 = vunpack.c.h.b16 %v1763
        %v2901 = vunpack.c.l.b16 %v1764
        %v2902 = vunpack.c.h.b16 %v1764
        %v2903 = vunpack.c.l.b16 %v1765
        %v2904 = vunpack.c.h.b16 %v1765
        %v2905 = vunpack.c.l.b16 %v1766
        %v2906 = vunpack.c.h.b16 %v1766
        %v2907 = vunpack.c.l.b16 %v1767
        %v2908 = vunpack.c.h.b16 %v1767
        %v2909 = vunpack.c.l.b16 %v1768
        %v2910 = vunpack.c.h.b16 %v1768
        %v2911 = vunpack.c.l.b16 %v1769
        %v2912 = vunpack.c.h.b16 %v1769
        %v2913 = vunpack.c.l.b16 %v1770
        %v2914 = vunpack.c.h.b16 %v1770
        %v2915 = vunpack.c.l.b16 %v1771
        %v2916 = vunpack.c.h.b16 %v1771
        %v2917 = vunpack.c.l.b16 %v1772
        %v2918 = vunpack.c.h.b16 %v1772
        %v2919 = vunpack.c.l.b16 %v1773
        %v2920 = vunpack.c.h.b16 %v1773
        %v2921 = vunpack.c.l.b16 %v1774
        %v2922 = vunpack.c.h.b16 %v1774
        %v2923 = vunpack.c.l.b16 %v1775
        %v2924 = vunpack.c.h.b16 %v1775
        %v2925 = vunpack.c.l.b16 %v1776
        %v2926 = vunpack.c.h.b16 %v1776
        %v2927 = vunpack.c.l.b16 %v1777
        %v2928 = vunpack.c.h.b16 %v1777
        %v2929 = vunpack.c.l.b16 %v1778
        %v2930 = vunpack.c.h.b16 %v1778
        %v2931 = vpack.c.b16 %v2165, %v2163
        %v2932 = vpack.c.b16 %v2166, %v2164
        %v2933 = vpack.c.b16 %v2169, %v2167
        %v2934 = vpack.c.b16 %v2170, %v2168
        %v2935 = vpack.c.b16 %v2173, %v2171
        %v2936 = vpack.c.b16 %v2174, %v2172
        %v2937 = vpack.c.b16 %v2177, %v2175
        %v2938 = vpack.c.b16 %v2178, %v2176
        %v2939 = vpack.c.b16 %v2181, %v2179
        %v2940 = vpack.c.b16 %v2182, %v2180
        %v2941 = vpack.c.b16 %v2185, %v2183
        %v2942 = vpack.c.b16 %v2186, %v2184
        %v2943 = vpack.c.b16 %v2189, %v2187
        %v2944 = vpack.c.b16 %v2190, %v2188
        %v2945 = vpack.c.b16 %v2193, %v2191
        %v2946 = vpack.c.b16 %v2194, %v2192
        %v2947 = vpack.c.b16 %v2197, %v2195
        %v2948 = vpack.c.b16 %v2198, %v2196
        %v2949 = vpack.c.b16 %v2201, %v2199
        %v2950 = vpack.c.b16 %v2202, %v2200
        %v2951 = vpack.c.b16 %v2205, %v2203
        %v2952 = vpack.c.b16 %v2206, %v2204
        %v2953 = vpack.c.b16 %v2209, %v2207
        %v2954 = vpack.c.b16 %v2210, %v2208
        %v2955 = vpack.c.b16 %v2213, %v2211
        %v2956 = vpack.c.b16 %v2214, %v2212
        %v2957 = vpack.c.b16 %v2217, %v2215
        %v2958 = vpack.c.b16 %v2218, %v2216
        %v2959 = vpack.c.b16 %v2221, %v2219
        %v2960 = vpack.c.b16 %v2222, %v2220
        %v2961 = vpack.c.b16 %v2225, %v2223
        %v2962 = vpack.c.b16 %v2226, %v2224
        %v2963 = vpack.c.b16 %v2229, %v2227
        %v2964 = vpack.c.b16 %v2230, %v2228
        %v2965 = vpack.c.b16 %v2233, %v2231
        %v2966 = vpack.c.b16 %v2234, %v2232
        %v2967 = vpack.c.b16 %v2237, %v2235
        %v2968 = vpack.c.b16 %v2238, %v2236
        %v2969 = vpack.c.b16 %v2241, %v2239
        %v2970 = vpack.c.b16 %v2242, %v2240
        %v2971 = vpack.c.b16 %v2245, %v2243
        %v2972 = vpack.c.b16 %v2246, %v2244
        %v2973 = vpack.c.b16 %v2249, %v2247
        %v2974 = vpack.c.b16 %v2250, %v2248
        %v2975 = vpack.c.b16 %v2253, %v2251
        %v2976 = vpack.c.b16 %v2254, %v2252
        %v2977 = vpack.c.b16 %v2257, %v2255
        %v2978 = vpack.c.b16 %v2258, %v2256
        %v2979 = vpack.c.b16 %v2261, %v2259
        %v2980 = vpack.c.b16 %v2262, %v2260
        %v2981 = vpack.c.b16 %v2265, %v2263
        %v2982 = vpack.c.b16 %v2266, %v2264
        %v2983 = vpack.c.b16 %v2269, %v2267
        %v2984 = vpack.c.b16 %v2270, %v2268
        %v2985 = vpack.c.b16 %v2273, %v2271
        %v2986 = vpack.c.b16 %v2274, %v2272
        %v2987 = vpack.c.b16 %v2277, %v2275
        %v2988 = vpack.c.b16 %v2278, %v2276
        %v2989 = vpack.c.b16 %v2281, %v2279
        %v2990 = vpack.c.b16 %v2282, %v2280
        %v2991 = vpack.c.b16 %v2285, %v2283
        %v2992 = vpack.c.b16 %v2286, %v2284
        %v2993 = vpack.c.b16 %v2289, %v2287
        %v2994 = vpack.c.b16 %v2290, %v2288
        %v2995 = vpack.c.b16 %v2293, %v2291
        %v2996 = vpack.c.b16 %v2294, %v2292
        %v2997 = vpack.c.b16 %v2297, %v2295
        %v2998 = vpack.c.b16 %v2298, %v2296
        %v2999 = vpack.c.b16 %v2301, %v2299
        %v3000 = vpack.c.b16 %v2302, %v2300
        %v3001 = vpack.c.b16 %v2305, %v2303
        %v3002 = vpack.c.b16 %v2306, %v2304
        %v3003 = vpack.c.b16 %v2309, %v2307
        %v3004 = vpack.c.b16 %v2310, %v2308
        %v3005 = vpack.c.b16 %v2313, %v2311
        %v3006 = vpack.c.b16 %v2314, %v2312
        %v3007 = vpack.c.b16 %v2317, %v2315
        %v3008 = vpack.c.b16 %v2318, %v2316
        %v3009 = vpack.c.b16 %v2321, %v2319
        %v3010 = vpack.c.b16 %v2322, %v2320
        %v3011 = vpack.c.b16 %v2325, %v2323
        %v3012 = vpack.c.b16 %v2326, %v2324
        %v3013 = vpack.c.b16 %v2329, %v2327
        %v3014 = vpack.c.b16 %v2330, %v2328
        %v3015 = vpack.c.b16 %v2333, %v2331
        %v3016 = vpack.c.b16 %v2334, %v2332
        %v3017 = vpack.c.b16 %v2337, %v2335
        %v3018 = vpack.c.b16 %v2338, %v2336
        %v3019 = vpack.c.b16 %v2341, %v2339
        %v3020 = vpack.c.b16 %v2342, %v2340
        %v3021 = vpack.c.b16 %v2345, %v2343
        %v3022 = vpack.c.b16 %v2346, %v2344
        %v3023 = vpack.c.b16 %v2349, %v2347
        %v3024 = vpack.c.b16 %v2350, %v2348
        %v3025 = vpack.c.b16 %v2353, %v2351
        %v3026 = vpack.c.b16 %v2354, %v2352
        %v3027 = vpack.c.b16 %v2357, %v2355
        %v3028 = vpack.c.b16 %v2358, %v2356
        %v3029 = vpack.c.b16 %v2361, %v2359
        %v3030 = vpack.c.b16 %v2362, %v2360
        %v3031 = vpack.c.b16 %v2365, %v2363
        %v3032 = vpack.c.b16 %v2366, %v2364
        %v3033 = vpack.c.b16 %v2369, %v2367
        %v3034 = vpack.c.b16 %v2370, %v2368
        %v3035 = vpack.c.b16 %v2373, %v2371
        %v3036 = vpack.c.b16 %v2374, %v2372
        %v3037 = vpack.c.b16 %v2377, %v2375
        %v3038 = vpack.c.b16 %v2378, %v2376
        %v3039 = vpack.c.b16 %v2381, %v2379
        %v3040 = vpack.c.b16 %v2382, %v2380
        %v3041 = vpack.c.b16 %v2385, %v2383
        %v3042 = vpack.c.b16 %v2386, %v2384
        %v3043 = vpack.c.b16 %v2389, %v2387
        %v3044 = vpack.c.b16 %v2390, %v2388
        %v3045 = vpack.c.b16 %v2393, %v2391
        %v3046 = vpack.c.b16 %v2394, %v2392
        %v3047 = vpack.c.b16 %v2397, %v2395
        %v3048 = vpack.c.b16 %v2398, %v2396
        %v3049 = vpack.c.b16 %v2401, %v2399
        %v3050 = vpack.c.b16 %v2402, %v2400
        %v3051 = vpack.c.b16 %v2405, %v2403
        %v3052 = vpack.c.b16 %v2406, %v2404
        %v3053 = vpack.c.b16 %v2409, %v2407
        %v3054 = vpack.c.b16 %v2410, %v2408
        %v3055 = vpack.c.b16 %v2413, %v2411
        %v3056 = vpack.c.b16 %v2414, %v2412
        %v3057 = vpack.c.b16 %v2417, %v2415
        %v3058 = vpack.c.b16 %v2418, %v2416
        %v3059 = vpack.c.b16 %v2421, %v2419
        %v3060 = vpack.c.b16 %v2422, %v2420
        %v3061 = vpack.c.b16 %v2425, %v2423
        %v3062 = vpack.c.b16 %v2426, %v2424
        %v3063 = vpack.c.b16 %v2429, %v2427
        %v3064 = vpack.c.b16 %v2430, %v2428
        %v3065 = vpack.c.b16 %v2433, %v2431
        %v3066 = vpack.c.b16 %v2434, %v2432
        %v3067 = vpack.c.b16 %v2437, %v2435
        %v3068 = vpack.c.b16 %v2438, %v2436
        %v3069 = vpack.c.b16 %v2441, %v2439
        %v3070 = vpack.c.b16 %v2442, %v2440
        %v3071 = vpack.c.b16 %v2445, %v2443
        %v3072 = vpack.c.b16 %v2446, %v2444
        %v3073 = vpack.c.b16 %v2449, %v2447
        %v3074 = vpack.c.b16 %v2450, %v2448
        %v3075 = vpack.c.b16 %v2453, %v2451
        %v3076 = vpack.c.b16 %v2454, %v2452
        %v3077 = vpack.c.b16 %v2457, %v2455
        %v3078 = vpack.c.b16 %v2458, %v2456
        %v3079 = vpack.c.b16 %v2461, %v2459
        %v3080 = vpack.c.b16 %v2462, %v2460
        %v3081 = vpack.c.b16 %v2465, %v2463
        %v3082 = vpack.c.b16 %v2466, %v2464
        %v3083 = vpack.c.b16 %v2469, %v2467
        %v3084 = vpack.c.b16 %v2470, %v2468
        %v3085 = vpack.c.b16 %v2473, %v2471
        %v3086 = vpack.c.b16 %v2474, %v2472
        %v3087 = vpack.c.b16 %v2477, %v2475
        %v3088 = vpack.c.b16 %v2478, %v2476
        %v3089 = vpack.c.b16 %v2481, %v2479
        %v3090 = vpack.c.b16 %v2482, %v2480
        %v3091 = vpack.c.b16 %v2485, %v2483
        %v3092 = vpack.c.b16 %v2486, %v2484
        %v3093 = vpack.c.b16 %v2489, %v2487
        %v3094 = vpack.c.b16 %v2490, %v2488
        %v3095 = vpack.c.b16 %v2493, %v2491
        %v3096 = vpack.c.b16 %v2494, %v2492
        %v3097 = vpack.c.b16 %v2497, %v2495
        %v3098 = vpack.c.b16 %v2498, %v2496
        %v3099 = vpack.c.b16 %v2501, %v2499
        %v3100 = vpack.c.b16 %v2502, %v2500
        %v3101 = vpack.c.b16 %v2505, %v2503
        %v3102 = vpack.c.b16 %v2506, %v2504
        %v3103 = vpack.c.b16 %v2509, %v2507
        %v3104 = vpack.c.b16 %v2510, %v2508
        %v3105 = vpack.c.b16 %v2513, %v2511
        %v3106 = vpack.c.b16 %v2514, %v2512
        %v3107 = vpack.c.b16 %v2517, %v2515
        %v3108 = vpack.c.b16 %v2518, %v2516
        %v3109 = vpack.c.b16 %v2521, %v2519
        %v3110 = vpack.c.b16 %v2522, %v2520
        %v3111 = vpack.c.b16 %v2525, %v2523
        %v3112 = vpack.c.b16 %v2526, %v2524
        %v3113 = vpack.c.b16 %v2529, %v2527
        %v3114 = vpack.c.b16 %v2530, %v2528
        %v3115 = vpack.c.b16 %v2533, %v2531
        %v3116 = vpack.c.b16 %v2534, %v2532
        %v3117 = vpack.c.b16 %v2537, %v2535
        %v3118 = vpack.c.b16 %v2538, %v2536
        %v3119 = vpack.c.b16 %v2541, %v2539
        %v3120 = vpack.c.b16 %v2542, %v2540
        %v3121 = vpack.c.b16 %v2545, %v2543
        %v3122 = vpack.c.b16 %v2546, %v2544
        %v3123 = vpack.c.b16 %v2549, %v2547
        %v3124 = vpack.c.b16 %v2550, %v2548
        %v3125 = vpack.c.b16 %v2553, %v2551
        %v3126 = vpack.c.b16 %v2554, %v2552
        %v3127 = vpack.c.b16 %v2557, %v2555
        %v3128 = vpack.c.b16 %v2558, %v2556
        %v3129 = vpack.c.b16 %v2561, %v2559
        %v3130 = vpack.c.b16 %v2562, %v2560
        %v3131 = vpack.c.b16 %v2565, %v2563
        %v3132 = vpack.c.b16 %v2566, %v2564
        %v3133 = vpack.c.b16 %v2569, %v2567
        %v3134 = vpack.c.b16 %v2570, %v2568
        %v3135 = vpack.c.b16 %v2573, %v2571
        %v3136 = vpack.c.b16 %v2574, %v2572
        %v3137 = vpack.c.b16 %v2577, %v2575
        %v3138 = vpack.c.b16 %v2578, %v2576
        %v3139 = vpack.c.b16 %v2581, %v2579
        %v3140 = vpack.c.b16 %v2582, %v2580
        %v3141 = vpack.c.b16 %v2585, %v2583
        %v3142 = vpack.c.b16 %v2586, %v2584
        %v3143 = vpack.c.b16 %v2589, %v2587
        %v3144 = vpack.c.b16 %v2590, %v2588
        %v3145 = vpack.c.b16 %v2593, %v2591
        %v3146 = vpack.c.b16 %v2594, %v2592
        %v3147 = vpack.c.b16 %v2597, %v2595
        %v3148 = vpack.c.b16 %v2598, %v2596
        %v3149 = vpack.c.b16 %v2601, %v2599
        %v3150 = vpack.c.b16 %v2602, %v2600
        %v3151 = vpack.c.b16 %v2605, %v2603
        %v3152 = vpack.c.b16 %v2606, %v2604
        %v3153 = vpack.c.b16 %v2609, %v2607
        %v3154 = vpack.c.b16 %v2610, %v2608
        %v3155 = vpack.c.b16 %v2613, %v2611
        %v3156 = vpack.c.b16 %v2614, %v2612
        %v3157 = vpack.c.b16 %v2617, %v2615
        %v3158 = vpack.c.b16 %v2618, %v2616
        %v3159 = vpack.c.b16 %v2621, %v2619
        %v3160 = vpack.c.b16 %v2622, %v2620
        %v3161 = vpack.c.b16 %v2625, %v2623
        %v3162 = vpack.c.b16 %v2626, %v2624
        %v3163 = vpack.c.b16 %v2629, %v2627
        %v3164 = vpack.c.b16 %v2630, %v2628
        %v3165 = vpack.c.b16 %v2633, %v2631
        %v3166 = vpack.c.b16 %v2634, %v2632
        %v3167 = vpack.c.b16 %v2637, %v2635
        %v3168 = vpack.c.b16 %v2638, %v2636
        %v3169 = vpack.c.b16 %v2641, %v2639
        %v3170 = vpack.c.b16 %v2642, %v2640
        %v3171 = vpack.c.b16 %v2645, %v2643
        %v3172 = vpack.c.b16 %v2646, %v2644
        %v3173 = vpack.c.b16 %v2649, %v2647
        %v3174 = vpack.c.b16 %v2650, %v2648
        %v3175 = vpack.c.b16 %v2653, %v2651
        %v3176 = vpack.c.b16 %v2654, %v2652
        %v3177 = vpack.c.b16 %v2657, %v2655
        %v3178 = vpack.c.b16 %v2658, %v2656
        %v3179 = vpack.c.b16 %v2661, %v2659
        %v3180 = vpack.c.b16 %v2662, %v2660
        %v3181 = vpack.c.b16 %v2665, %v2663
        %v3182 = vpack.c.b16 %v2666, %v2664
        %v3183 = vpack.c.b16 %v2669, %v2667
        %v3184 = vpack.c.b16 %v2670, %v2668
        %v3185 = vpack.c.b16 %v2673, %v2671
        %v3186 = vpack.c.b16 %v2674, %v2672
        %v3187 = vpack.c.b16 %v2677, %v2675
        %v3188 = vpack.c.b16 %v2678, %v2676
        %v3189 = vpack.c.b16 %v2681, %v2679
        %v3190 = vpack.c.b16 %v2682, %v2680
        %v3191 = vpack.c.b16 %v2685, %v2683
        %v3192 = vpack.c.b16 %v2686, %v2684
        %v3193 = vpack.c.b16 %v2689, %v2687
        %v3194 = vpack.c.b16 %v2690, %v2688
        %v3195 = vpack.c.b16 %v2693, %v2691
        %v3196 = vpack.c.b16 %v2694, %v2692
        %v3197 = vpack.c.b16 %v2697, %v2695
        %v3198 = vpack.c.b16 %v2698, %v2696
        %v3199 = vpack.c.b16 %v2701, %v2699
        %v3200 = vpack.c.b16 %v2702, %v2700
        %v3201 = vpack.c.b16 %v2705, %v2703
        %v3202 = vpack.c.b16 %v2706, %v2704
        %v3203 = vpack.c.b16 %v2709, %v2707
        %v3204 = vpack.c.b16 %v2710, %v2708
        %v3205 = vpack.c.b16 %v2713, %v2711
        %v3206 = vpack.c.b16 %v2714, %v2712
        %v3207 = vpack.c.b16 %v2717, %v2715
        %v3208 = vpack.c.b16 %v2718, %v2716
        %v3209 = vpack.c.b16 %v2721, %v2719
        %v3210 = vpack.c.b16 %v2722, %v2720
        %v3211 = vpack.c.b16 %v2725, %v2723
        %v3212 = vpack.c.b16 %v2726, %v2724
        %v3213 = vpack.c.b16 %v2729, %v2727
        %v3214 = vpack.c.b16 %v2730, %v2728
        %v3215 = vpack.c.b16 %v2733, %v2731
        %v3216 = vpack.c.b16 %v2734, %v2732
        %v3217 = vpack.c.b16 %v2737, %v2735
        %v3218 = vpack.c.b16 %v2738, %v2736
        %v3219 = vpack.c.b16 %v2741, %v2739
        %v3220 = vpack.c.b16 %v2742, %v2740
        %v3221 = vpack.c.b16 %v2745, %v2743
        %v3222 = vpack.c.b16 %v2746, %v2744
        %v3223 = vpack.c.b16 %v2749, %v2747
        %v3224 = vpack.c.b16 %v2750, %v2748
        %v3225 = vpack.c.b16 %v2753, %v2751
        %v3226 = vpack.c.b16 %v2754, %v2752
        %v3227 = vpack.c.b16 %v2757, %v2755
        %v3228 = vpack.c.b16 %v2758, %v2756
        %v3229 = vpack.c.b16 %v2761, %v2759
        %v3230 = vpack.c.b16 %v2762, %v2760
        %v3231 = vpack.c.b16 %v2765, %v2763
        %v3232 = vpack.c.b16 %v2766, %v2764
        %v3233 = vpack.c.b16 %v2769, %v2767
        %v3234 = vpack.c.b16 %v2770, %v2768
        %v3235 = vpack.c.b16 %v2773, %v2771
        %v3236 = vpack.c.b16 %v2774, %v2772
        %v3237 = vpack.c.b16 %v2777, %v2775
        %v3238 = vpack.c.b16 %v2778, %v2776
        %v3239 = vpack.c.b16 %v2781, %v2779
        %v3240 = vpack.c.b16 %v2782, %v2780
        %v3241 = vpack.c.b16 %v2785, %v2783
        %v3242 = vpack.c.b16 %v2786, %v2784
        %v3243 = vpack.c.b16 %v2789, %v2787
        %v3244 = vpack.c.b16 %v2790, %v2788
        %v3245 = vpack.c.b16 %v2793, %v2791
        %v3246 = vpack.c.b16 %v2794, %v2792
        %v3247 = vpack.c.b16 %v2797, %v2795
        %v3248 = vpack.c.b16 %v2798, %v2796
        %v3249 = vpack.c.b16 %v2801, %v2799
        %v3250 = vpack.c.b16 %v2802, %v2800
        %v3251 = vpack.c.b16 %v2805, %v2803
        %v3252 = vpack.c.b16 %v2806, %v2804
        %v3253 = vpack.c.b16 %v2809, %v2807
        %v3254 = vpack.c.b16 %v2810, %v2808
        %v3255 = vpack.c.b16 %v2813, %v2811
        %v3256 = vpack.c.b16 %v2814, %v2812
        %v3257 = vpack.c.b16 %v2817, %v2815
        %v3258 = vpack.c.b16 %v2818, %v2816
        %v3259 = vpack.c.b16 %v2821, %v2819
        %v3260 = vpack.c.b16 %v2822, %v2820
        %v3261 = vpack.c.b16 %v2825, %v2823
        %v3262 = vpack.c.b16 %v2826, %v2824
        %v3263 = vpack.c.b16 %v2829, %v2827
        %v3264 = vpack.c.b16 %v2830, %v2828
        %v3265 = vpack.c.b16 %v2833, %v2831
        %v3266 = vpack.c.b16 %v2834, %v2832
        %v3267 = vpack.c.b16 %v2837, %v2835
        %v3268 = vpack.c.b16 %v2838, %v2836
        %v3269 = vpack.c.b16 %v2841, %v2839
        %v3270 = vpack.c.b16 %v2842, %v2840
        %v3271 = vpack.c.b16 %v2845, %v2843
        %v3272 = vpack.c.b16 %v2846, %v2844
        %v3273 = vpack.c.b16 %v2849, %v2847
        %v3274 = vpack.c.b16 %v2850, %v2848
        %v3275 = vpack.c.b16 %v2853, %v2851
        %v3276 = vpack.c.b16 %v2854, %v2852
        %v3277 = vpack.c.b16 %v2857, %v2855
        %v3278 = vpack.c.b16 %v2858, %v2856
        %v3279 = vpack.c.b16 %v2861, %v2859
        %v3280 = vpack.c.b16 %v2862, %v2860
        %v3281 = vpack.c.b16 %v2865, %v2863
        %v3282 = vpack.c.b16 %v2866, %v2864
        %v3283 = vpack.c.b16 %v2869, %v2867
        %v3284 = vpack.c.b16 %v2870, %v2868
        %v3285 = vpack.c.b16 %v2873, %v2871
        %v3286 = vpack.c.b16 %v2874, %v2872
        %v3287 = vpack.c.b16 %v2877, %v2875
        %v3288 = vpack.c.b16 %v2878, %v2876
        %v3289 = vpack.c.b16 %v2881, %v2879
        %v3290 = vpack.c.b16 %v2882, %v2880
        %v3291 = vpack.c.b16 %v2885, %v2883
        %v3292 = vpack.c.b16 %v2886, %v2884
        %v3293 = vpack.c.b16 %v2889, %v2887
        %v3294 = vpack.c.b16 %v2890, %v2888
        %v3295 = vpack.c.b16 %v2893, %v2891
        %v3296 = vpack.c.b16 %v2894, %v2892
        %v3297 = vpack.c.b16 %v2897, %v2895
        %v3298 = vpack.c.b16 %v2898, %v2896
        %v3299 = vpack.c.b16 %v2901, %v2899
        %v3300 = vpack.c.b16 %v2902, %v2900
        %v3301 = vpack.c.b16 %v2905, %v2903
        %v3302 = vpack.c.b16 %v2906, %v2904
        %v3303 = vpack.c.b16 %v2909, %v2907
        %v3304 = vpack.c.b16 %v2910, %v2908
        %v3305 = vpack.c.b16 %v2913, %v2911
        %v3306 = vpack.c.b16 %v2914, %v2912
        %v3307 = vpack.c.b16 %v2917, %v2915
        %v3308 = vpack.c.b16 %v2918, %v2916
        %v3309 = vpack.c.b16 %v2921, %v2919
        %v3310 = vpack.c.b16 %v2922, %v2920
        %v3311 = vpack.c.b16 %v2925, %v2923
        %v3312 = vpack.c.b16 %v2926, %v2924
        %v3313 = vpack.c.b16 %v2929, %v2927
        %v3314 = vpack.c.b16 %v2930, %v2928
        %3699 = vmatpush.bf16.msra.mxu0 %v2945
        %3700 = vmatpush.bf16.msra.mxu0 %v2943
        %3701 = vmatpush.bf16.msra.mxu0 %v2941
        %3702 = vmatpush.bf16.msra.mxu0 %v2939
        %3703 = vmatpush.bf16.msra.mxu0 %v2937
        %3704 = vmatpush.bf16.msra.mxu0 %v2935
        %3705 = vmatpush.bf16.msra.mxu0 %v2933
        %3706 = vmatpush.bf16.msra.mxu0 %v2931
        %3707 = vmatmul.bf16.gmra.mxu0 %v1205
        %v3708 = vpop.f32.mrf.mxu0
        %v3709 = vadd.f32 0.0, %v3708
        %v3710 = vpop.f32.mrf.mxu0
        %v3711 = vadd.f32 0.0, %v3710
        %3712 = vmatmul.bf16.gmra.mxu0 %v1221
        %v3713 = vpop.f32.mrf.mxu0
        %v3714 = vadd.f32 0.0, %v3713
        %v3715 = vpop.f32.mrf.mxu0
        %v3716 = vadd.f32 0.0, %v3715
        %3717 = vdwg.mxu0
        %3718 = vmatpush.bf16.msra.mxu0 %v2961
        %3719 = vmatpush.bf16.msra.mxu0 %v2959
        %3720 = vmatpush.bf16.msra.mxu0 %v2957
        %3721 = vmatpush.bf16.msra.mxu0 %v2955
        %3722 = vmatpush.bf16.msra.mxu0 %v2953
        %3723 = vmatpush.bf16.msra.mxu0 %v2951
        %3724 = vmatpush.bf16.msra.mxu0 %v2949
        %3725 = vmatpush.bf16.msra.mxu0 %v2947
        %3726 = vmatmul.bf16.gmra.mxu0 %v1206
        %v3727 = vpop.f32.mrf.mxu0
        %v3728 = vadd.f32 %v3709, %v3727
        %v3729 = vpop.f32.mrf.mxu0
        %v3730 = vadd.f32 %v3711, %v3729
        %3731 = vmatmul.bf16.gmra.mxu0 %v1222
        %v3732 = vpop.f32.mrf.mxu0
        %v3733 = vadd.f32 %v3714, %v3732
        %v3734 = vpop.f32.mrf.mxu0
        %v3735 = vadd.f32 %v3716, %v3734
        %3736 = vdwg.mxu0
        %3737 = vmatpush.bf16.msra.mxu0 %v2977
        %3738 = vmatpush.bf16.msra.mxu0 %v2975
        %3739 = vmatpush.bf16.msra.mxu0 %v2973
        %3740 = vmatpush.bf16.msra.mxu0 %v2971
        %3741 = vmatpush.bf16.msra.mxu0 %v2969
        %3742 = vmatpush.bf16.msra.mxu0 %v2967
        %3743 = vmatpush.bf16.msra.mxu0 %v2965
        %3744 = vmatpush.bf16.msra.mxu0 %v2963
        %3745 = vmatmul.bf16.gmra.mxu0 %v1207
        %v3746 = vpop.f32.mrf.mxu0
        %v3747 = vadd.f32 %v3728, %v3746
        %v3748 = vpop.f32.mrf.mxu0
        %v3749 = vadd.f32 %v3730, %v3748
        %3750 = vmatmul.bf16.gmra.mxu0 %v1223
        %v3751 = vpop.f32.mrf.mxu0
        %v3752 = vadd.f32 %v3733, %v3751
        %v3753 = vpop.f32.mrf.mxu0
        %v3754 = vadd.f32 %v3735, %v3753
        %3755 = vdwg.mxu0
        %3756 = vmatpush.bf16.msra.mxu0 %v2993
        %3757 = vmatpush.bf16.msra.mxu0 %v2991
        %3758 = vmatpush.bf16.msra.mxu0 %v2989
        %3759 = vmatpush.bf16.msra.mxu0 %v2987
        %3760 = vmatpush.bf16.msra.mxu0 %v2985
        %3761 = vmatpush.bf16.msra.mxu0 %v2983
        %3762 = vmatpush.bf16.msra.mxu0 %v2981
        %3763 = vmatpush.bf16.msra.mxu0 %v2979
        %3764 = vmatmul.bf16.gmra.mxu0 %v1208
        %v3765 = vpop.f32.mrf.mxu0
        %v3766 = vadd.f32 %v3747, %v3765
        %v3767 = vpop.f32.mrf.mxu0
        %v3768 = vadd.f32 %v3749, %v3767
        %3769 = vmatmul.bf16.gmra.mxu0 %v1224
        %v3770 = vpop.f32.mrf.mxu0
        %v3771 = vadd.f32 %v3752, %v3770
        %v3772 = vpop.f32.mrf.mxu0
        %v3773 = vadd.f32 %v3754, %v3772
        %3774 = vdwg.mxu0
        %3775 = vmatpush.bf16.msra.mxu0 %v3009
        %3776 = vmatpush.bf16.msra.mxu0 %v3007
        %3777 = vmatpush.bf16.msra.mxu0 %v3005
        %3778 = vmatpush.bf16.msra.mxu0 %v3003
        %3779 = vmatpush.bf16.msra.mxu0 %v3001
        %3780 = vmatpush.bf16.msra.mxu0 %v2999
        %3781 = vmatpush.bf16.msra.mxu0 %v2997
        %3782 = vmatpush.bf16.msra.mxu0 %v2995
        %3783 = vmatmul.bf16.gmra.mxu0 %v1209
        %v3784 = vpop.f32.mrf.mxu0
        %v3785 = vadd.f32 %v3766, %v3784
        %v3786 = vpop.f32.mrf.mxu0
        %v3787 = vadd.f32 %v3768, %v3786
        %3788 = vmatmul.bf16.gmra.mxu0 %v1225
        %v3789 = vpop.f32.mrf.mxu0
        %v3790 = vadd.f32 %v3771, %v3789
        %v3791 = vpop.f32.mrf.mxu0
        %v3792 = vadd.f32 %v3773, %v3791
        %3793 = vdwg.mxu0
        %3794 = vmatpush.bf16.msra.mxu0 %v3025
        %3795 = vmatpush.bf16.msra.mxu0 %v3023
        %3796 = vmatpush.bf16.msra.mxu0 %v3021
        %3797 = vmatpush.bf16.msra.mxu0 %v3019
        %3798 = vmatpush.bf16.msra.mxu0 %v3017
        %3799 = vmatpush.bf16.msra.mxu0 %v3015
        %3800 = vmatpush.bf16.msra.mxu0 %v3013
        %3801 = vmatpush.bf16.msra.mxu0 %v3011
        %3802 = vmatmul.bf16.gmra.mxu0 %v1210
        %v3803 = vpop.f32.mrf.mxu0
        %v3804 = vadd.f32 %v3785, %v3803
        %v3805 = vpop.f32.mrf.mxu0
        %v3806 = vadd.f32 %v3787, %v3805
        %3807 = vmatmul.bf16.gmra.mxu0 %v1226
        %v3808 = vpop.f32.mrf.mxu0
        %v3809 = vadd.f32 %v3790, %v3808
        %v3810 = vpop.f32.mrf.mxu0
        %v3811 = vadd.f32 %v3792, %v3810
        %3812 = vdwg.mxu0
        %3813 = vmatpush.bf16.msra.mxu0 %v3041
        %3814 = vmatpush.bf16.msra.mxu0 %v3039
        %3815 = vmatpush.bf16.msra.mxu0 %v3037
        %3816 = vmatpush.bf16.msra.mxu0 %v3035
        %3817 = vmatpush.bf16.msra.mxu0 %v3033
        %3818 = vmatpush.bf16.msra.mxu0 %v3031
        %3819 = vmatpush.bf16.msra.mxu0 %v3029
        %3820 = vmatpush.bf16.msra.mxu0 %v3027
        %3821 = vmatmul.bf16.gmra.mxu0 %v1211
        %v3822 = vpop.f32.mrf.mxu0
        %v3823 = vadd.f32 %v3804, %v3822
        %v3824 = vpop.f32.mrf.mxu0
        %v3825 = vadd.f32 %v3806, %v3824
        %3826 = vmatmul.bf16.gmra.mxu0 %v1227
        %v3827 = vpop.f32.mrf.mxu0
        %v3828 = vadd.f32 %v3809, %v3827
        %v3829 = vpop.f32.mrf.mxu0
        %v3830 = vadd.f32 %v3811, %v3829
        %3831 = vdwg.mxu0
        %3832 = vmatpush.bf16.msra.mxu0 %v3057
        %3833 = vmatpush.bf16.msra.mxu0 %v3055
        %3834 = vmatpush.bf16.msra.mxu0 %v3053
        %3835 = vmatpush.bf16.msra.mxu0 %v3051
        %3836 = vmatpush.bf16.msra.mxu0 %v3049
        %3837 = vmatpush.bf16.msra.mxu0 %v3047
        %3838 = vmatpush.bf16.msra.mxu0 %v3045
        %3839 = vmatpush.bf16.msra.mxu0 %v3043
        %3840 = vmatmul.bf16.gmra.mxu0 %v1212
        %v3841 = vpop.f32.mrf.mxu0
        %v3842 = vadd.f32 %v3823, %v3841
        %v3843 = vpop.f32.mrf.mxu0
        %v3844 = vadd.f32 %v3825, %v3843
        %3845 = vmatmul.bf16.gmra.mxu0 %v1228
        %v3846 = vpop.f32.mrf.mxu0
        %v3847 = vadd.f32 %v3828, %v3846
        %v3848 = vpop.f32.mrf.mxu0
        %v3849 = vadd.f32 %v3830, %v3848
        %3850 = vdwg.mxu0
        %3851 = vmatpush.bf16.msra.mxu0 %v3073
        %3852 = vmatpush.bf16.msra.mxu0 %v3071
        %3853 = vmatpush.bf16.msra.mxu0 %v3069
        %3854 = vmatpush.bf16.msra.mxu0 %v3067
        %3855 = vmatpush.bf16.msra.mxu0 %v3065
        %3856 = vmatpush.bf16.msra.mxu0 %v3063
        %3857 = vmatpush.bf16.msra.mxu0 %v3061
        %3858 = vmatpush.bf16.msra.mxu0 %v3059
        %3859 = vmatmul.bf16.gmra.mxu0 %v1268
        %v3860 = vpop.f32.mrf.mxu0
        %v3861 = vadd.f32 %v3842, %v3860
        %v3862 = vpop.f32.mrf.mxu0
        %v3863 = vadd.f32 %v3844, %v3862
        %3864 = vmatmul.bf16.gmra.mxu0 %v1292
        %v3865 = vpop.f32.mrf.mxu0
        %v3866 = vadd.f32 %v3847, %v3865
        %v3867 = vpop.f32.mrf.mxu0
        %v3868 = vadd.f32 %v3849, %v3867
        %3869 = vdwg.mxu0
        %3870 = vmatpush.bf16.msra.mxu0 %v3089
        %3871 = vmatpush.bf16.msra.mxu0 %v3087
        %3872 = vmatpush.bf16.msra.mxu0 %v3085
        %3873 = vmatpush.bf16.msra.mxu0 %v3083
        %3874 = vmatpush.bf16.msra.mxu0 %v3081
        %3875 = vmatpush.bf16.msra.mxu0 %v3079
        %3876 = vmatpush.bf16.msra.mxu0 %v3077
        %3877 = vmatpush.bf16.msra.mxu0 %v3075
        %3878 = vmatmul.bf16.gmra.mxu0 %v1269
        %v3879 = vpop.f32.mrf.mxu0
        %v3880 = vadd.f32 %v3861, %v3879
        %v3881 = vpop.f32.mrf.mxu0
        %v3882 = vadd.f32 %v3863, %v3881
        %3883 = vmatmul.bf16.gmra.mxu0 %v1293
        %v3884 = vpop.f32.mrf.mxu0
        %v3885 = vadd.f32 %v3866, %v3884
        %v3886 = vpop.f32.mrf.mxu0
        %v3887 = vadd.f32 %v3868, %v3886
        %3888 = vdwg.mxu0
        %3889 = vmatpush.bf16.msra.mxu0 %v3105
        %3890 = vmatpush.bf16.msra.mxu0 %v3103
        %3891 = vmatpush.bf16.msra.mxu0 %v3101
        %3892 = vmatpush.bf16.msra.mxu0 %v3099
        %3893 = vmatpush.bf16.msra.mxu0 %v3097
        %3894 = vmatpush.bf16.msra.mxu0 %v3095
        %3895 = vmatpush.bf16.msra.mxu0 %v3093
        %3896 = vmatpush.bf16.msra.mxu0 %v3091
        %3897 = vmatmul.bf16.gmra.mxu0 %v1270
        %v3898 = vpop.f32.mrf.mxu0
        %v3899 = vadd.f32 %v3880, %v3898
        %v3900 = vpop.f32.mrf.mxu0
        %v3901 = vadd.f32 %v3882, %v3900
        %3902 = vmatmul.bf16.gmra.mxu0 %v1294
        %v3903 = vpop.f32.mrf.mxu0
        %v3904 = vadd.f32 %v3885, %v3903
        %v3905 = vpop.f32.mrf.mxu0
        %v3906 = vadd.f32 %v3887, %v3905
        %3907 = vdwg.mxu0
        %3908 = vmatpush.bf16.msra.mxu0 %v3121
        %3909 = vmatpush.bf16.msra.mxu0 %v3119
        %3910 = vmatpush.bf16.msra.mxu0 %v3117
        %3911 = vmatpush.bf16.msra.mxu0 %v3115
        %3912 = vmatpush.bf16.msra.mxu0 %v3113
        %3913 = vmatpush.bf16.msra.mxu0 %v3111
        %3914 = vmatpush.bf16.msra.mxu0 %v3109
        %3915 = vmatpush.bf16.msra.mxu0 %v3107
        %3916 = vmatmul.bf16.gmra.mxu0 %v1271
        %v3917 = vpop.f32.mrf.mxu0
        %v3918 = vadd.f32 %v3899, %v3917
        %v3919 = vpop.f32.mrf.mxu0
        %v3920 = vadd.f32 %v3901, %v3919
        %3921 = vmatmul.bf16.gmra.mxu0 %v1295
        %v3922 = vpop.f32.mrf.mxu0
        %v3923 = vadd.f32 %v3904, %v3922
        %v3924 = vpop.f32.mrf.mxu0
        %v3925 = vadd.f32 %v3906, %v3924
        %3926 = vdwg.mxu0
        %3927 = vmatpush.bf16.msra.mxu0 %v3137
        %3928 = vmatpush.bf16.msra.mxu0 %v3135
        %3929 = vmatpush.bf16.msra.mxu0 %v3133
        %3930 = vmatpush.bf16.msra.mxu0 %v3131
        %3931 = vmatpush.bf16.msra.mxu0 %v3129
        %3932 = vmatpush.bf16.msra.mxu0 %v3127
        %3933 = vmatpush.bf16.msra.mxu0 %v3125
        %3934 = vmatpush.bf16.msra.mxu0 %v3123
        %3935 = vmatmul.bf16.gmra.mxu0 %v1272
        %v3936 = vpop.f32.mrf.mxu0
        %v3937 = vadd.f32 %v3918, %v3936
        %v3938 = vpop.f32.mrf.mxu0
        %v3939 = vadd.f32 %v3920, %v3938
        %3940 = vmatmul.bf16.gmra.mxu0 %v1296
        %v3941 = vpop.f32.mrf.mxu0
        %v3942 = vadd.f32 %v3923, %v3941
        %v3943 = vpop.f32.mrf.mxu0
        %v3944 = vadd.f32 %v3925, %v3943
        %3945 = vdwg.mxu0
        %3946 = vmatpush.bf16.msra.mxu0 %v3153
        %3947 = vmatpush.bf16.msra.mxu0 %v3151
        %3948 = vmatpush.bf16.msra.mxu0 %v3149
        %3949 = vmatpush.bf16.msra.mxu0 %v3147
        %3950 = vmatpush.bf16.msra.mxu0 %v3145
        %3951 = vmatpush.bf16.msra.mxu0 %v3143
        %3952 = vmatpush.bf16.msra.mxu0 %v3141
        %3953 = vmatpush.bf16.msra.mxu0 %v3139
        %3954 = vmatmul.bf16.gmra.mxu0 %v1273
        %v3955 = vpop.f32.mrf.mxu0
        %v3956 = vadd.f32 %v3937, %v3955
        %v3957 = vpop.f32.mrf.mxu0
        %v3958 = vadd.f32 %v3939, %v3957
        %3959 = vmatmul.bf16.gmra.mxu0 %v1297
        %v3960 = vpop.f32.mrf.mxu0
        %v3961 = vadd.f32 %v3942, %v3960
        %v3962 = vpop.f32.mrf.mxu0
        %v3963 = vadd.f32 %v3944, %v3962
        %3964 = vdwg.mxu0
        %3965 = vmatpush.bf16.msra.mxu0 %v3169
        %3966 = vmatpush.bf16.msra.mxu0 %v3167
        %3967 = vmatpush.bf16.msra.mxu0 %v3165
        %3968 = vmatpush.bf16.msra.mxu0 %v3163
        %3969 = vmatpush.bf16.msra.mxu0 %v3161
        %3970 = vmatpush.bf16.msra.mxu0 %v3159
        %3971 = vmatpush.bf16.msra.mxu0 %v3157
        %3972 = vmatpush.bf16.msra.mxu0 %v3155
        %3973 = vmatmul.bf16.gmra.mxu0 %v1274
        %v3974 = vpop.f32.mrf.mxu0
        %v3975 = vadd.f32 %v3956, %v3974
        %v3976 = vpop.f32.mrf.mxu0
        %v3977 = vadd.f32 %v3958, %v3976
        %3978 = vmatmul.bf16.gmra.mxu0 %v1298
        %v3979 = vpop.f32.mrf.mxu0
        %v3980 = vadd.f32 %v3961, %v3979
        %v3981 = vpop.f32.mrf.mxu0
        %v3982 = vadd.f32 %v3963, %v3981
        %3983 = vdwg.mxu0
        %3984 = vmatpush.bf16.msra.mxu0 %v3185
        %3985 = vmatpush.bf16.msra.mxu0 %v3183
        %3986 = vmatpush.bf16.msra.mxu0 %v3181
        %3987 = vmatpush.bf16.msra.mxu0 %v3179
        %3988 = vmatpush.bf16.msra.mxu0 %v3177
        %3989 = vmatpush.bf16.msra.mxu0 %v3175
        %3990 = vmatpush.bf16.msra.mxu0 %v3173
        %3991 = vmatpush.bf16.msra.mxu0 %v3171
        %3992 = vmatmul.bf16.gmra.mxu0 %v1275
        %v3993 = vpop.f32.mrf.mxu0
        %v3994 = vadd.f32 %v3975, %v3993
        %v3995 = vpop.f32.mrf.mxu0
        %v3996 = vadd.f32 %v3977, %v3995
        %3997 = vmatmul.bf16.gmra.mxu0 %v1299
        %v3998 = vpop.f32.mrf.mxu0
        %v3999 = vadd.f32 %v3980, %v3998
        %v4000 = vpop.f32.mrf.mxu0
        %v4001 = vadd.f32 %v3982, %v4000
        %4002 = vdwg.mxu0
        %4003 = vmatpush.bf16.msra.mxu0 %v3201
        %4004 = vmatpush.bf16.msra.mxu0 %v3199
        %4005 = vmatpush.bf16.msra.mxu0 %v3197
        %4006 = vmatpush.bf16.msra.mxu0 %v3195
        %4007 = vmatpush.bf16.msra.mxu0 %v3193
        %4008 = vmatpush.bf16.msra.mxu0 %v3191
        %4009 = vmatpush.bf16.msra.mxu0 %v3189
        %4010 = vmatpush.bf16.msra.mxu0 %v3187
        %4011 = vmatmul.bf16.gmra.mxu0 %v1339
        %v4012 = vpop.f32.mrf.mxu0
        %v4013 = vadd.f32 %v3994, %v4012
        %v4014 = vpop.f32.mrf.mxu0
        %v4015 = vadd.f32 %v3996, %v4014
        %4016 = vmatmul.bf16.gmra.mxu0 %v1363
        %v4017 = vpop.f32.mrf.mxu0
        %v4018 = vadd.f32 %v3999, %v4017
        %v4019 = vpop.f32.mrf.mxu0
        %v4020 = vadd.f32 %v4001, %v4019
        %4021 = vdwg.mxu0
        %4022 = vmatpush.bf16.msra.mxu0 %v3217
        %4023 = vmatpush.bf16.msra.mxu0 %v3215
        %4024 = vmatpush.bf16.msra.mxu0 %v3213
        %4025 = vmatpush.bf16.msra.mxu0 %v3211
        %4026 = vmatpush.bf16.msra.mxu0 %v3209
        %4027 = vmatpush.bf16.msra.mxu0 %v3207
        %4028 = vmatpush.bf16.msra.mxu0 %v3205
        %4029 = vmatpush.bf16.msra.mxu0 %v3203
        %4030 = vmatmul.bf16.gmra.mxu0 %v1340
        %v4031 = vpop.f32.mrf.mxu0
        %v4032 = vadd.f32 %v4013, %v4031
        %v4033 = vpop.f32.mrf.mxu0
        %v4034 = vadd.f32 %v4015, %v4033
        %4035 = vmatmul.bf16.gmra.mxu0 %v1364
        %v4036 = vpop.f32.mrf.mxu0
        %v4037 = vadd.f32 %v4018, %v4036
        %v4038 = vpop.f32.mrf.mxu0
        %v4039 = vadd.f32 %v4020, %v4038
        %4040 = vdwg.mxu0
        %4041 = vmatpush.bf16.msra.mxu0 %v3233
        %4042 = vmatpush.bf16.msra.mxu0 %v3231
        %4043 = vmatpush.bf16.msra.mxu0 %v3229
        %4044 = vmatpush.bf16.msra.mxu0 %v3227
        %4045 = vmatpush.bf16.msra.mxu0 %v3225
        %4046 = vmatpush.bf16.msra.mxu0 %v3223
        %4047 = vmatpush.bf16.msra.mxu0 %v3221
        %4048 = vmatpush.bf16.msra.mxu0 %v3219
        %4049 = vmatmul.bf16.gmra.mxu0 %v1341
        %v4050 = vpop.f32.mrf.mxu0
        %v4051 = vadd.f32 %v4032, %v4050
        %v4052 = vpop.f32.mrf.mxu0
        %v4053 = vadd.f32 %v4034, %v4052
        %4054 = vmatmul.bf16.gmra.mxu0 %v1365
        %v4055 = vpop.f32.mrf.mxu0
        %v4056 = vadd.f32 %v4037, %v4055
        %v4057 = vpop.f32.mrf.mxu0
        %v4058 = vadd.f32 %v4039, %v4057
        %4059 = vdwg.mxu0
        %4060 = vmatpush.bf16.msra.mxu0 %v3249
        %4061 = vmatpush.bf16.msra.mxu0 %v3247
        %4062 = vmatpush.bf16.msra.mxu0 %v3245
        %4063 = vmatpush.bf16.msra.mxu0 %v3243
        %4064 = vmatpush.bf16.msra.mxu0 %v3241
        %4065 = vmatpush.bf16.msra.mxu0 %v3239
        %4066 = vmatpush.bf16.msra.mxu0 %v3237
        %4067 = vmatpush.bf16.msra.mxu0 %v3235
        %4068 = vmatmul.bf16.gmra.mxu0 %v1342
        %v4069 = vpop.f32.mrf.mxu0
        %v4070 = vadd.f32 %v4051, %v4069
        %v4071 = vpop.f32.mrf.mxu0
        %v4072 = vadd.f32 %v4053, %v4071
        %4073 = vmatmul.bf16.gmra.mxu0 %v1366
        %v4074 = vpop.f32.mrf.mxu0
        %v4075 = vadd.f32 %v4056, %v4074
        %v4076 = vpop.f32.mrf.mxu0
        %v4077 = vadd.f32 %v4058, %v4076
        %4078 = vdwg.mxu0
        %4079 = vmatpush.bf16.msra.mxu0 %v3265
        %4080 = vmatpush.bf16.msra.mxu0 %v3263
        %4081 = vmatpush.bf16.msra.mxu0 %v3261
        %4082 = vmatpush.bf16.msra.mxu0 %v3259
        %4083 = vmatpush.bf16.msra.mxu0 %v3257
        %4084 = vmatpush.bf16.msra.mxu0 %v3255
        %4085 = vmatpush.bf16.msra.mxu0 %v3253
        %4086 = vmatpush.bf16.msra.mxu0 %v3251
        %4087 = vmatmul.bf16.gmra.mxu0 %v1343
        %v4088 = vpop.f32.mrf.mxu0
        %v4089 = vadd.f32 %v4070, %v4088
        %v4090 = vpop.f32.mrf.mxu0
        %v4091 = vadd.f32 %v4072, %v4090
        %4092 = vmatmul.bf16.gmra.mxu0 %v1367
        %v4093 = vpop.f32.mrf.mxu0
        %v4094 = vadd.f32 %v4075, %v4093
        %v4095 = vpop.f32.mrf.mxu0
        %v4096 = vadd.f32 %v4077, %v4095
        %4097 = vdwg.mxu0
        %4098 = vmatpush.bf16.msra.mxu0 %v3281
        %4099 = vmatpush.bf16.msra.mxu0 %v3279
        %4100 = vmatpush.bf16.msra.mxu0 %v3277
        %4101 = vmatpush.bf16.msra.mxu0 %v3275
        %4102 = vmatpush.bf16.msra.mxu0 %v3273
        %4103 = vmatpush.bf16.msra.mxu0 %v3271
        %4104 = vmatpush.bf16.msra.mxu0 %v3269
        %4105 = vmatpush.bf16.msra.mxu0 %v3267
        %4106 = vmatmul.bf16.gmra.mxu0 %v1344
        %v4107 = vpop.f32.mrf.mxu0
        %v4108 = vadd.f32 %v4089, %v4107
        %v4109 = vpop.f32.mrf.mxu0
        %v4110 = vadd.f32 %v4091, %v4109
        %4111 = vmatmul.bf16.gmra.mxu0 %v1368
        %v4112 = vpop.f32.mrf.mxu0
        %v4113 = vadd.f32 %v4094, %v4112
        %v4114 = vpop.f32.mrf.mxu0
        %v4115 = vadd.f32 %v4096, %v4114
        %4116 = vdwg.mxu0
        %4117 = vmatpush.bf16.msra.mxu0 %v3297
        %4118 = vmatpush.bf16.msra.mxu0 %v3295
        %4119 = vmatpush.bf16.msra.mxu0 %v3293
        %4120 = vmatpush.bf16.msra.mxu0 %v3291
        %4121 = vmatpush.bf16.msra.mxu0 %v3289
        %4122 = vmatpush.bf16.msra.mxu0 %v3287
        %4123 = vmatpush.bf16.msra.mxu0 %v3285
        %4124 = vmatpush.bf16.msra.mxu0 %v3283
        %4125 = vmatmul.bf16.gmra.mxu0 %v1345
        %v4126 = vpop.f32.mrf.mxu0
        %v4127 = vadd.f32 %v4108, %v4126
        %v4128 = vpop.f32.mrf.mxu0
        %v4129 = vadd.f32 %v4110, %v4128
        %4130 = vmatmul.bf16.gmra.mxu0 %v1369
        %v4131 = vpop.f32.mrf.mxu0
        %v4132 = vadd.f32 %v4113, %v4131
        %v4133 = vpop.f32.mrf.mxu0
        %v4134 = vadd.f32 %v4115, %v4133
        %4135 = vdwg.mxu0
        %4136 = vmatpush.bf16.msra.mxu0 %v3313
        %4137 = vmatpush.bf16.msra.mxu0 %v3311
        %4138 = vmatpush.bf16.msra.mxu0 %v3309
        %4139 = vmatpush.bf16.msra.mxu0 %v3307
        %4140 = vmatpush.bf16.msra.mxu0 %v3305
        %4141 = vmatpush.bf16.msra.mxu0 %v3303
        %4142 = vmatpush.bf16.msra.mxu0 %v3301
        %4143 = vmatpush.bf16.msra.mxu0 %v3299
        %4144 = vmatmul.bf16.gmra.mxu0 %v1346
        %v4145 = vpop.f32.mrf.mxu0
        %v4146 = vadd.f32 %v4127, %v4145
        %v4147 = vpop.f32.mrf.mxu0
        %v4148 = vadd.f32 %v4129, %v4147
        %4149 = vmatmul.bf16.gmra.mxu0 %v1370
        %v4150 = vpop.f32.mrf.mxu0
        %v4151 = vadd.f32 %v4132, %v4150
        %v4152 = vpop.f32.mrf.mxu0
        %v4153 = vadd.f32 %v4134, %v4152
        %4154 = vdwg.mxu0
        %4155 = vmatpush.bf16.msra.mxu0 %v2946
        %4156 = vmatpush.bf16.msra.mxu0 %v2944
        %4157 = vmatpush.bf16.msra.mxu0 %v2942
        %4158 = vmatpush.bf16.msra.mxu0 %v2940
        %4159 = vmatpush.bf16.msra.mxu0 %v2938
        %4160 = vmatpush.bf16.msra.mxu0 %v2936
        %4161 = vmatpush.bf16.msra.mxu0 %v2934
        %4162 = vmatpush.bf16.msra.mxu0 %v2932
        %4163 = vmatmul.bf16.gmra.mxu0 %v1205
        %v4164 = vpop.f32.mrf.mxu0
        %v4165 = vadd.f32 0.0, %v4164
        %v4166 = vpop.f32.mrf.mxu0
        %v4167 = vadd.f32 0.0, %v4166
        %4168 = vmatmul.bf16.gmra.mxu0 %v1221
        %v4169 = vpop.f32.mrf.mxu0
        %v4170 = vadd.f32 0.0, %v4169
        %v4171 = vpop.f32.mrf.mxu0
        %v4172 = vadd.f32 0.0, %v4171
        %4173 = vdwg.mxu0
        %4174 = vmatpush.bf16.msra.mxu0 %v2962
        %4175 = vmatpush.bf16.msra.mxu0 %v2960
        %4176 = vmatpush.bf16.msra.mxu0 %v2958
        %4177 = vmatpush.bf16.msra.mxu0 %v2956
        %4178 = vmatpush.bf16.msra.mxu0 %v2954
        %4179 = vmatpush.bf16.msra.mxu0 %v2952
        %4180 = vmatpush.bf16.msra.mxu0 %v2950
        %4181 = vmatpush.bf16.msra.mxu0 %v2948
        %4182 = vmatmul.bf16.gmra.mxu0 %v1206
        %v4183 = vpop.f32.mrf.mxu0
        %v4184 = vadd.f32 %v4165, %v4183
        %v4185 = vpop.f32.mrf.mxu0
        %v4186 = vadd.f32 %v4167, %v4185
        %4187 = vmatmul.bf16.gmra.mxu0 %v1222
        %v4188 = vpop.f32.mrf.mxu0
        %v4189 = vadd.f32 %v4170, %v4188
        %v4190 = vpop.f32.mrf.mxu0
        %v4191 = vadd.f32 %v4172, %v4190
        %4192 = vdwg.mxu0
        %4193 = vmatpush.bf16.msra.mxu0 %v2978
        %4194 = vmatpush.bf16.msra.mxu0 %v2976
        %4195 = vmatpush.bf16.msra.mxu0 %v2974
        %4196 = vmatpush.bf16.msra.mxu0 %v2972
        %4197 = vmatpush.bf16.msra.mxu0 %v2970
        %4198 = vmatpush.bf16.msra.mxu0 %v2968
        %4199 = vmatpush.bf16.msra.mxu0 %v2966
        %4200 = vmatpush.bf16.msra.mxu0 %v2964
        %4201 = vmatmul.bf16.gmra.mxu0 %v1207
        %v4202 = vpop.f32.mrf.mxu0
        %v4203 = vadd.f32 %v4184, %v4202
        %v4204 = vpop.f32.mrf.mxu0
        %v4205 = vadd.f32 %v4186, %v4204
        %4206 = vmatmul.bf16.gmra.mxu0 %v1223
        %v4207 = vpop.f32.mrf.mxu0
        %v4208 = vadd.f32 %v4189, %v4207
        %v4209 = vpop.f32.mrf.mxu0
        %v4210 = vadd.f32 %v4191, %v4209
        %4211 = vdwg.mxu0
        %4212 = vmatpush.bf16.msra.mxu0 %v2994
        %4213 = vmatpush.bf16.msra.mxu0 %v2992
        %4214 = vmatpush.bf16.msra.mxu0 %v2990
        %4215 = vmatpush.bf16.msra.mxu0 %v2988
        %4216 = vmatpush.bf16.msra.mxu0 %v2986
        %4217 = vmatpush.bf16.msra.mxu0 %v2984
        %4218 = vmatpush.bf16.msra.mxu0 %v2982
        %4219 = vmatpush.bf16.msra.mxu0 %v2980
        %4220 = vmatmul.bf16.gmra.mxu0 %v1208
        %v4221 = vpop.f32.mrf.mxu0
        %v4222 = vadd.f32 %v4203, %v4221
        %v4223 = vpop.f32.mrf.mxu0
        %v4224 = vadd.f32 %v4205, %v4223
        %4225 = vmatmul.bf16.gmra.mxu0 %v1224
        %v4226 = vpop.f32.mrf.mxu0
        %v4227 = vadd.f32 %v4208, %v4226
        %v4228 = vpop.f32.mrf.mxu0
        %v4229 = vadd.f32 %v4210, %v4228
        %4230 = vdwg.mxu0
        %4231 = vmatpush.bf16.msra.mxu0 %v3010
        %4232 = vmatpush.bf16.msra.mxu0 %v3008
        %4233 = vmatpush.bf16.msra.mxu0 %v3006
        %4234 = vmatpush.bf16.msra.mxu0 %v3004
        %4235 = vmatpush.bf16.msra.mxu0 %v3002
        %4236 = vmatpush.bf16.msra.mxu0 %v3000
        %4237 = vmatpush.bf16.msra.mxu0 %v2998
        %4238 = vmatpush.bf16.msra.mxu0 %v2996
        %4239 = vmatmul.bf16.gmra.mxu0 %v1209
        %v4240 = vpop.f32.mrf.mxu0
        %v4241 = vadd.f32 %v4222, %v4240
        %v4242 = vpop.f32.mrf.mxu0
        %v4243 = vadd.f32 %v4224, %v4242
        %4244 = vmatmul.bf16.gmra.mxu0 %v1225
        %v4245 = vpop.f32.mrf.mxu0
        %v4246 = vadd.f32 %v4227, %v4245
        %v4247 = vpop.f32.mrf.mxu0
        %v4248 = vadd.f32 %v4229, %v4247
        %4249 = vdwg.mxu0
        %4250 = vmatpush.bf16.msra.mxu0 %v3026
        %4251 = vmatpush.bf16.msra.mxu0 %v3024
        %4252 = vmatpush.bf16.msra.mxu0 %v3022
        %4253 = vmatpush.bf16.msra.mxu0 %v3020
        %4254 = vmatpush.bf16.msra.mxu0 %v3018
        %4255 = vmatpush.bf16.msra.mxu0 %v3016
        %4256 = vmatpush.bf16.msra.mxu0 %v3014
        %4257 = vmatpush.bf16.msra.mxu0 %v3012
        %4258 = vmatmul.bf16.gmra.mxu0 %v1210
        %v4259 = vpop.f32.mrf.mxu0
        %v4260 = vadd.f32 %v4241, %v4259
        %v4261 = vpop.f32.mrf.mxu0
        %v4262 = vadd.f32 %v4243, %v4261
        %4263 = vmatmul.bf16.gmra.mxu0 %v1226
        %v4264 = vpop.f32.mrf.mxu0
        %v4265 = vadd.f32 %v4246, %v4264
        %v4266 = vpop.f32.mrf.mxu0
        %v4267 = vadd.f32 %v4248, %v4266
        %4268 = vdwg.mxu0
        %4269 = vmatpush.bf16.msra.mxu0 %v3042
        %4270 = vmatpush.bf16.msra.mxu0 %v3040
        %4271 = vmatpush.bf16.msra.mxu0 %v3038
        %4272 = vmatpush.bf16.msra.mxu0 %v3036
        %4273 = vmatpush.bf16.msra.mxu0 %v3034
        %4274 = vmatpush.bf16.msra.mxu0 %v3032
        %4275 = vmatpush.bf16.msra.mxu0 %v3030
        %4276 = vmatpush.bf16.msra.mxu0 %v3028
        %4277 = vmatmul.bf16.gmra.mxu0 %v1211
        %v4278 = vpop.f32.mrf.mxu0
        %v4279 = vadd.f32 %v4260, %v4278
        %v4280 = vpop.f32.mrf.mxu0
        %v4281 = vadd.f32 %v4262, %v4280
        %4282 = vmatmul.bf16.gmra.mxu0 %v1227
        %v4283 = vpop.f32.mrf.mxu0
        %v4284 = vadd.f32 %v4265, %v4283
        %v4285 = vpop.f32.mrf.mxu0
        %v4286 = vadd.f32 %v4267, %v4285
        %4287 = vdwg.mxu0
        %4288 = vmatpush.bf16.msra.mxu0 %v3058
        %4289 = vmatpush.bf16.msra.mxu0 %v3056
        %4290 = vmatpush.bf16.msra.mxu0 %v3054
        %4291 = vmatpush.bf16.msra.mxu0 %v3052
        %4292 = vmatpush.bf16.msra.mxu0 %v3050
        %4293 = vmatpush.bf16.msra.mxu0 %v3048
        %4294 = vmatpush.bf16.msra.mxu0 %v3046
        %4295 = vmatpush.bf16.msra.mxu0 %v3044
        %4296 = vmatmul.bf16.gmra.mxu0 %v1212
        %v4297 = vpop.f32.mrf.mxu0
        %v4298 = vadd.f32 %v4279, %v4297
        %v4299 = vpop.f32.mrf.mxu0
        %v4300 = vadd.f32 %v4281, %v4299
        %4301 = vmatmul.bf16.gmra.mxu0 %v1228
        %v4302 = vpop.f32.mrf.mxu0
        %v4303 = vadd.f32 %v4284, %v4302
        %v4304 = vpop.f32.mrf.mxu0
        %v4305 = vadd.f32 %v4286, %v4304
        %4306 = vdwg.mxu0
        %4307 = vmatpush.bf16.msra.mxu0 %v3074
        %4308 = vmatpush.bf16.msra.mxu0 %v3072
        %4309 = vmatpush.bf16.msra.mxu0 %v3070
        %4310 = vmatpush.bf16.msra.mxu0 %v3068
        %4311 = vmatpush.bf16.msra.mxu0 %v3066
        %4312 = vmatpush.bf16.msra.mxu0 %v3064
        %4313 = vmatpush.bf16.msra.mxu0 %v3062
        %4314 = vmatpush.bf16.msra.mxu0 %v3060
        %4315 = vmatmul.bf16.gmra.mxu0 %v1268
        %v4316 = vpop.f32.mrf.mxu0
        %v4317 = vadd.f32 %v4298, %v4316
        %v4318 = vpop.f32.mrf.mxu0
        %v4319 = vadd.f32 %v4300, %v4318
        %4320 = vmatmul.bf16.gmra.mxu0 %v1292
        %v4321 = vpop.f32.mrf.mxu0
        %v4322 = vadd.f32 %v4303, %v4321
        %v4323 = vpop.f32.mrf.mxu0
        %v4324 = vadd.f32 %v4305, %v4323
        %4325 = vdwg.mxu0
        %4326 = vmatpush.bf16.msra.mxu0 %v3090
        %4327 = vmatpush.bf16.msra.mxu0 %v3088
        %4328 = vmatpush.bf16.msra.mxu0 %v3086
        %4329 = vmatpush.bf16.msra.mxu0 %v3084
        %4330 = vmatpush.bf16.msra.mxu0 %v3082
        %4331 = vmatpush.bf16.msra.mxu0 %v3080
        %4332 = vmatpush.bf16.msra.mxu0 %v3078
        %4333 = vmatpush.bf16.msra.mxu0 %v3076
        %4334 = vmatmul.bf16.gmra.mxu0 %v1269
        %v4335 = vpop.f32.mrf.mxu0
        %v4336 = vadd.f32 %v4317, %v4335
        %v4337 = vpop.f32.mrf.mxu0
        %v4338 = vadd.f32 %v4319, %v4337
        %4339 = vmatmul.bf16.gmra.mxu0 %v1293
        %v4340 = vpop.f32.mrf.mxu0
        %v4341 = vadd.f32 %v4322, %v4340
        %v4342 = vpop.f32.mrf.mxu0
        %v4343 = vadd.f32 %v4324, %v4342
        %4344 = vdwg.mxu0
        %4345 = vmatpush.bf16.msra.mxu0 %v3106
        %4346 = vmatpush.bf16.msra.mxu0 %v3104
        %4347 = vmatpush.bf16.msra.mxu0 %v3102
        %4348 = vmatpush.bf16.msra.mxu0 %v3100
        %4349 = vmatpush.bf16.msra.mxu0 %v3098
        %4350 = vmatpush.bf16.msra.mxu0 %v3096
        %4351 = vmatpush.bf16.msra.mxu0 %v3094
        %4352 = vmatpush.bf16.msra.mxu0 %v3092
        %4353 = vmatmul.bf16.gmra.mxu0 %v1270
        %v4354 = vpop.f32.mrf.mxu0
        %v4355 = vadd.f32 %v4336, %v4354
        %v4356 = vpop.f32.mrf.mxu0
        %v4357 = vadd.f32 %v4338, %v4356
        %4358 = vmatmul.bf16.gmra.mxu0 %v1294
        %v4359 = vpop.f32.mrf.mxu0
        %v4360 = vadd.f32 %v4341, %v4359
        %v4361 = vpop.f32.mrf.mxu0
        %v4362 = vadd.f32 %v4343, %v4361
        %4363 = vdwg.mxu0
        %4364 = vmatpush.bf16.msra.mxu0 %v3122
        %4365 = vmatpush.bf16.msra.mxu0 %v3120
        %4366 = vmatpush.bf16.msra.mxu0 %v3118
        %4367 = vmatpush.bf16.msra.mxu0 %v3116
        %4368 = vmatpush.bf16.msra.mxu0 %v3114
        %4369 = vmatpush.bf16.msra.mxu0 %v3112
        %4370 = vmatpush.bf16.msra.mxu0 %v3110
        %4371 = vmatpush.bf16.msra.mxu0 %v3108
        %4372 = vmatmul.bf16.gmra.mxu0 %v1271
        %v4373 = vpop.f32.mrf.mxu0
        %v4374 = vadd.f32 %v4355, %v4373
        %v4375 = vpop.f32.mrf.mxu0
        %v4376 = vadd.f32 %v4357, %v4375
        %4377 = vmatmul.bf16.gmra.mxu0 %v1295
        %v4378 = vpop.f32.mrf.mxu0
        %v4379 = vadd.f32 %v4360, %v4378
        %v4380 = vpop.f32.mrf.mxu0
        %v4381 = vadd.f32 %v4362, %v4380
        %4382 = vdwg.mxu0
        %4383 = vmatpush.bf16.msra.mxu0 %v3138
        %4384 = vmatpush.bf16.msra.mxu0 %v3136
        %4385 = vmatpush.bf16.msra.mxu0 %v3134
        %4386 = vmatpush.bf16.msra.mxu0 %v3132
        %4387 = vmatpush.bf16.msra.mxu0 %v3130
        %4388 = vmatpush.bf16.msra.mxu0 %v3128
        %4389 = vmatpush.bf16.msra.mxu0 %v3126
        %4390 = vmatpush.bf16.msra.mxu0 %v3124
        %4391 = vmatmul.bf16.gmra.mxu0 %v1272
        %v4392 = vpop.f32.mrf.mxu0
        %v4393 = vadd.f32 %v4374, %v4392
        %v4394 = vpop.f32.mrf.mxu0
        %v4395 = vadd.f32 %v4376, %v4394
        %4396 = vmatmul.bf16.gmra.mxu0 %v1296
        %v4397 = vpop.f32.mrf.mxu0
        %v4398 = vadd.f32 %v4379, %v4397
        %v4399 = vpop.f32.mrf.mxu0
        %v4400 = vadd.f32 %v4381, %v4399
        %4401 = vdwg.mxu0
        %4402 = vmatpush.bf16.msra.mxu0 %v3154
        %4403 = vmatpush.bf16.msra.mxu0 %v3152
        %4404 = vmatpush.bf16.msra.mxu0 %v3150
        %4405 = vmatpush.bf16.msra.mxu0 %v3148
        %4406 = vmatpush.bf16.msra.mxu0 %v3146
        %4407 = vmatpush.bf16.msra.mxu0 %v3144
        %4408 = vmatpush.bf16.msra.mxu0 %v3142
        %4409 = vmatpush.bf16.msra.mxu0 %v3140
        %4410 = vmatmul.bf16.gmra.mxu0 %v1273
        %v4411 = vpop.f32.mrf.mxu0
        %v4412 = vadd.f32 %v4393, %v4411
        %v4413 = vpop.f32.mrf.mxu0
        %v4414 = vadd.f32 %v4395, %v4413
        %4415 = vmatmul.bf16.gmra.mxu0 %v1297
        %v4416 = vpop.f32.mrf.mxu0
        %v4417 = vadd.f32 %v4398, %v4416
        %v4418 = vpop.f32.mrf.mxu0
        %v4419 = vadd.f32 %v4400, %v4418
        %4420 = vdwg.mxu0
        %4421 = vmatpush.bf16.msra.mxu0 %v3170
        %4422 = vmatpush.bf16.msra.mxu0 %v3168
        %4423 = vmatpush.bf16.msra.mxu0 %v3166
        %4424 = vmatpush.bf16.msra.mxu0 %v3164
        %4425 = vmatpush.bf16.msra.mxu0 %v3162
        %4426 = vmatpush.bf16.msra.mxu0 %v3160
        %4427 = vmatpush.bf16.msra.mxu0 %v3158
        %4428 = vmatpush.bf16.msra.mxu0 %v3156
        %4429 = vmatmul.bf16.gmra.mxu0 %v1274
        %v4430 = vpop.f32.mrf.mxu0
        %v4431 = vadd.f32 %v4412, %v4430
        %v4432 = vpop.f32.mrf.mxu0
        %v4433 = vadd.f32 %v4414, %v4432
        %4434 = vmatmul.bf16.gmra.mxu0 %v1298
        %v4435 = vpop.f32.mrf.mxu0
        %v4436 = vadd.f32 %v4417, %v4435
        %v4437 = vpop.f32.mrf.mxu0
        %v4438 = vadd.f32 %v4419, %v4437
        %4439 = vdwg.mxu0
        %4440 = vmatpush.bf16.msra.mxu0 %v3186
        %4441 = vmatpush.bf16.msra.mxu0 %v3184
        %4442 = vmatpush.bf16.msra.mxu0 %v3182
        %4443 = vmatpush.bf16.msra.mxu0 %v3180
        %4444 = vmatpush.bf16.msra.mxu0 %v3178
        %4445 = vmatpush.bf16.msra.mxu0 %v3176
        %4446 = vmatpush.bf16.msra.mxu0 %v3174
        %4447 = vmatpush.bf16.msra.mxu0 %v3172
        %4448 = vmatmul.bf16.gmra.mxu0 %v1275
        %v4449 = vpop.f32.mrf.mxu0
        %v4450 = vadd.f32 %v4431, %v4449
        %v4451 = vpop.f32.mrf.mxu0
        %v4452 = vadd.f32 %v4433, %v4451
        %4453 = vmatmul.bf16.gmra.mxu0 %v1299
        %v4454 = vpop.f32.mrf.mxu0
        %v4455 = vadd.f32 %v4436, %v4454
        %v4456 = vpop.f32.mrf.mxu0
        %v4457 = vadd.f32 %v4438, %v4456
        %4458 = vdwg.mxu0
        %4459 = vmatpush.bf16.msra.mxu0 %v3202
        %4460 = vmatpush.bf16.msra.mxu0 %v3200
        %4461 = vmatpush.bf16.msra.mxu0 %v3198
        %4462 = vmatpush.bf16.msra.mxu0 %v3196
        %4463 = vmatpush.bf16.msra.mxu0 %v3194
        %4464 = vmatpush.bf16.msra.mxu0 %v3192
        %4465 = vmatpush.bf16.msra.mxu0 %v3190
        %4466 = vmatpush.bf16.msra.mxu0 %v3188
        %4467 = vmatmul.bf16.gmra.mxu0 %v1339
        %v4468 = vpop.f32.mrf.mxu0
        %v4469 = vadd.f32 %v4450, %v4468
        %v4470 = vpop.f32.mrf.mxu0
        %v4471 = vadd.f32 %v4452, %v4470
        %4472 = vmatmul.bf16.gmra.mxu0 %v1363
        %v4473 = vpop.f32.mrf.mxu0
        %v4474 = vadd.f32 %v4455, %v4473
        %v4475 = vpop.f32.mrf.mxu0
        %v4476 = vadd.f32 %v4457, %v4475
        %4477 = vdwg.mxu0
        %4478 = vmatpush.bf16.msra.mxu0 %v3218
        %4479 = vmatpush.bf16.msra.mxu0 %v3216
        %4480 = vmatpush.bf16.msra.mxu0 %v3214
        %4481 = vmatpush.bf16.msra.mxu0 %v3212
        %4482 = vmatpush.bf16.msra.mxu0 %v3210
        %4483 = vmatpush.bf16.msra.mxu0 %v3208
        %4484 = vmatpush.bf16.msra.mxu0 %v3206
        %4485 = vmatpush.bf16.msra.mxu0 %v3204
        %4486 = vmatmul.bf16.gmra.mxu0 %v1340
        %v4487 = vpop.f32.mrf.mxu0
        %v4488 = vadd.f32 %v4469, %v4487
        %v4489 = vpop.f32.mrf.mxu0
        %v4490 = vadd.f32 %v4471, %v4489
        %4491 = vmatmul.bf16.gmra.mxu0 %v1364
        %v4492 = vpop.f32.mrf.mxu0
        %v4493 = vadd.f32 %v4474, %v4492
        %v4494 = vpop.f32.mrf.mxu0
        %v4495 = vadd.f32 %v4476, %v4494
        %4496 = vdwg.mxu0
        %4497 = vmatpush.bf16.msra.mxu0 %v3234
        %4498 = vmatpush.bf16.msra.mxu0 %v3232
        %4499 = vmatpush.bf16.msra.mxu0 %v3230
        %4500 = vmatpush.bf16.msra.mxu0 %v3228
        %4501 = vmatpush.bf16.msra.mxu0 %v3226
        %4502 = vmatpush.bf16.msra.mxu0 %v3224
        %4503 = vmatpush.bf16.msra.mxu0 %v3222
        %4504 = vmatpush.bf16.msra.mxu0 %v3220
        %4505 = vmatmul.bf16.gmra.mxu0 %v1341
        %v4506 = vpop.f32.mrf.mxu0
        %v4507 = vadd.f32 %v4488, %v4506
        %v4508 = vpop.f32.mrf.mxu0
        %v4509 = vadd.f32 %v4490, %v4508
        %4510 = vmatmul.bf16.gmra.mxu0 %v1365
        %v4511 = vpop.f32.mrf.mxu0
        %v4512 = vadd.f32 %v4493, %v4511
        %v4513 = vpop.f32.mrf.mxu0
        %v4514 = vadd.f32 %v4495, %v4513
        %4515 = vdwg.mxu0
        %4516 = vmatpush.bf16.msra.mxu0 %v3250
        %4517 = vmatpush.bf16.msra.mxu0 %v3248
        %4518 = vmatpush.bf16.msra.mxu0 %v3246
        %4519 = vmatpush.bf16.msra.mxu0 %v3244
        %4520 = vmatpush.bf16.msra.mxu0 %v3242
        %4521 = vmatpush.bf16.msra.mxu0 %v3240
        %4522 = vmatpush.bf16.msra.mxu0 %v3238
        %4523 = vmatpush.bf16.msra.mxu0 %v3236
        %4524 = vmatmul.bf16.gmra.mxu0 %v1342
        %v4525 = vpop.f32.mrf.mxu0
        %v4526 = vadd.f32 %v4507, %v4525
        %v4527 = vpop.f32.mrf.mxu0
        %v4528 = vadd.f32 %v4509, %v4527
        %4529 = vmatmul.bf16.gmra.mxu0 %v1366
        %v4530 = vpop.f32.mrf.mxu0
        %v4531 = vadd.f32 %v4512, %v4530
        %v4532 = vpop.f32.mrf.mxu0
        %v4533 = vadd.f32 %v4514, %v4532
        %4534 = vdwg.mxu0
        %4535 = vmatpush.bf16.msra.mxu0 %v3266
        %4536 = vmatpush.bf16.msra.mxu0 %v3264
        %4537 = vmatpush.bf16.msra.mxu0 %v3262
        %4538 = vmatpush.bf16.msra.mxu0 %v3260
        %4539 = vmatpush.bf16.msra.mxu0 %v3258
        %4540 = vmatpush.bf16.msra.mxu0 %v3256
        %4541 = vmatpush.bf16.msra.mxu0 %v3254
        %4542 = vmatpush.bf16.msra.mxu0 %v3252
        %4543 = vmatmul.bf16.gmra.mxu0 %v1343
        %v4544 = vpop.f32.mrf.mxu0
        %v4545 = vadd.f32 %v4526, %v4544
        %v4546 = vpop.f32.mrf.mxu0
        %v4547 = vadd.f32 %v4528, %v4546
        %4548 = vmatmul.bf16.gmra.mxu0 %v1367
        %v4549 = vpop.f32.mrf.mxu0
        %v4550 = vadd.f32 %v4531, %v4549
        %v4551 = vpop.f32.mrf.mxu0
        %v4552 = vadd.f32 %v4533, %v4551
        %4553 = vdwg.mxu0
        %4554 = vmatpush.bf16.msra.mxu0 %v3282
        %4555 = vmatpush.bf16.msra.mxu0 %v3280
        %4556 = vmatpush.bf16.msra.mxu0 %v3278
        %4557 = vmatpush.bf16.msra.mxu0 %v3276
        %4558 = vmatpush.bf16.msra.mxu0 %v3274
        %4559 = vmatpush.bf16.msra.mxu0 %v3272
        %4560 = vmatpush.bf16.msra.mxu0 %v3270
        %4561 = vmatpush.bf16.msra.mxu0 %v3268
        %4562 = vmatmul.bf16.gmra.mxu0 %v1344
        %v4563 = vpop.f32.mrf.mxu0
        %v4564 = vadd.f32 %v4545, %v4563
        %v4565 = vpop.f32.mrf.mxu0
        %v4566 = vadd.f32 %v4547, %v4565
        %4567 = vmatmul.bf16.gmra.mxu0 %v1368
        %v4568 = vpop.f32.mrf.mxu0
        %v4569 = vadd.f32 %v4550, %v4568
        %v4570 = vpop.f32.mrf.mxu0
        %v4571 = vadd.f32 %v4552, %v4570
        %4572 = vdwg.mxu0
        %4573 = vmatpush.bf16.msra.mxu0 %v3298
        %4574 = vmatpush.bf16.msra.mxu0 %v3296
        %4575 = vmatpush.bf16.msra.mxu0 %v3294
        %4576 = vmatpush.bf16.msra.mxu0 %v3292
        %4577 = vmatpush.bf16.msra.mxu0 %v3290
        %4578 = vmatpush.bf16.msra.mxu0 %v3288
        %4579 = vmatpush.bf16.msra.mxu0 %v3286
        %4580 = vmatpush.bf16.msra.mxu0 %v3284
        %4581 = vmatmul.bf16.gmra.mxu0 %v1345
        %v4582 = vpop.f32.mrf.mxu0
        %v4583 = vadd.f32 %v4564, %v4582
        %v4584 = vpop.f32.mrf.mxu0
        %v4585 = vadd.f32 %v4566, %v4584
        %4586 = vmatmul.bf16.gmra.mxu0 %v1369
        %v4587 = vpop.f32.mrf.mxu0
        %v4588 = vadd.f32 %v4569, %v4587
        %v4589 = vpop.f32.mrf.mxu0
        %v4590 = vadd.f32 %v4571, %v4589
        %4591 = vdwg.mxu0
        %4592 = vmatpush.bf16.msra.mxu0 %v3314
        %4593 = vmatpush.bf16.msra.mxu0 %v3312
        %4594 = vmatpush.bf16.msra.mxu0 %v3310
        %4595 = vmatpush.bf16.msra.mxu0 %v3308
        %4596 = vmatpush.bf16.msra.mxu0 %v3306
        %4597 = vmatpush.bf16.msra.mxu0 %v3304
        %4598 = vmatpush.bf16.msra.mxu0 %v3302
        %4599 = vmatpush.bf16.msra.mxu0 %v3300
        %4600 = vmatmul.bf16.gmra.mxu0 %v1346
        %v4601 = vpop.f32.mrf.mxu0
        %v4602 = vadd.f32 %v4583, %v4601
        %v4603 = vpop.f32.mrf.mxu0
        %v4604 = vadd.f32 %v4585, %v4603
        %4605 = vmatmul.bf16.gmra.mxu0 %v1370
        %v4606 = vpop.f32.mrf.mxu0
        %v4607 = vadd.f32 %v4588, %v4606
        %v4608 = vpop.f32.mrf.mxu0
        %v4609 = vadd.f32 %v4590, %v4608
        %4610 = vdwg.mxu0
        %v4611 = vadd.f32 %v1387, %v4146
        %v4612 = vadd.f32 %v1388, %v4602
        %v4613 = vadd.f32 %v1389, %v4148
        %v4614 = vadd.f32 %v1390, %v4604
        %v4615 = vadd.f32 %v1391, %v4151
        %v4616 = vadd.f32 %v1392, %v4607
        %v4617 = vadd.f32 %v1393, %v4153
        %v4618 = vadd.f32 %v1394, %v4609
        %4619 = vst [vmem:[#allocation2] sm:$0xff] %v4611
        %4620 = vst [vmem:[#allocation2 + $0x8] sm:$0xff] %v4612
        %4621 = vst [vmem:[#allocation2 + $0x10] sm:$0xff] %v4613
        %4622 = vst [vmem:[#allocation2 + $0x18] sm:$0xff] %v4614
        %4623 = vst [vmem:[#allocation2 + $0x20] sm:$0xff] %v4615
        %4624 = vst [vmem:[#allocation2 + $0x28] sm:$0xff] %v4616
        %4625 = vst [vmem:[#allocation2 + $0x30] sm:$0xff] %v4617
        %4626 = vst [vmem:[#allocation2 + $0x38] sm:$0xff] %v4618
        %p4627 = scmp.eq.s32.totalorder %s32, 2
        // Predicated region
        $region109: #{relation_network_forward.1} parent=67 // pred_check
          %p4628 = pneg %p4627
        $region110: #{relation_network_forward.1} parent=67 // pred_check_branch
          %4630 = sbr.rel (%p4628) target = $region112
        $region111: #{relation_network_forward.1} parent=67 // pred_region
          %v4631 = vld [vmem:[#allocation2] sm:$0xff]
          %v4632 = vld [vmem:[#allocation2 + $0x8] sm:$0xff]
          %v4633 = vld [vmem:[#allocation2 + $0x10] sm:$0xff]
          %v4634 = vld [vmem:[#allocation2 + $0x18] sm:$0xff]
          %v4635 = vld [vmem:[#allocation2 + $0x20] sm:$0xff]
          %v4636 = vld [vmem:[#allocation2 + $0x28] sm:$0xff]
          %v4637 = vld [vmem:[#allocation2 + $0x30] sm:$0xff]
          %v4638 = vld [vmem:[#allocation2 + $0x38] sm:$0xff]
          %v4639 = vld [vmem:[#allocation7] sm:$0x3]
          %v4641 = vperm.slane %v4639, 0
          %v4642 = vperm.slane %v4639, 1
          %v4645 = vadd.f32 %v4631, %v4641
          %v4646 = vadd.f32 %v4632, %v4642
          %v4647 = vadd.f32 %v4633, %v4641
          %v4648 = vadd.f32 %v4634, %v4642
          %v4649 = vadd.f32 %v4635, %v4641
          %v4650 = vadd.f32 %v4636, %v4642
          %v4651 = vadd.f32 %v4637, %v4641
          %v4652 = vadd.f32 %v4638, %v4642
          %v4653 = vadd.f32 %v4645, %v4647
          %v4654 = vadd.f32 %v4653, %v4649
          %v4655 = vadd.f32 %v4654, %v4651
          %v4656 = vrot.slane %v4655, 4
          %v4657 = vadd.f32 %v4655, %v4656
          %v4658 = vrot.slane %v4657, 2
          %v4659 = vadd.f32 %v4657, %v4658
          %v4660 = vrot.slane %v4659, 1
          %v4661 = vadd.f32 %v4659, %v4660
          %v4662 = vadd.f32 %v4646, %v4648
          %v4663 = vadd.f32 %v4662, %v4650
          %v4664 = vadd.f32 %v4663, %v4652
          %v4665 = vrot.slane %v4664, 4
          %v4666 = vadd.f32 %v4664, %v4665
          %v4667 = vrot.slane %v4666, 2
          %v4668 = vadd.f32 %v4666, %v4667
          %v4669 = vrot.slane %v4668, 1
          %v4670 = vadd.f32 %v4668, %v4669
          %v4671 = vrcp.pop 32.0
          %v4672 = vmul.f32 32.0, %v4671
          %v4673 = vsub.f32 1.0, %v4672
          %v4674 = vmul.f32 %v4671, %v4673
          %v4675 = vadd.f32 %v4671, %v4674
          %vm4676 = vweird.f32 %v4671
          %v4677 = vsel %vm4676, %v4671, %v4675
          %v4678 = vmul.f32 %v4661, %v4677
          %v4679 = vmul.f32 %v4670, %v4677
          %v4680 = vsub.f32 %v4645, %v4678
          %v4681 = vsub.f32 %v4646, %v4679
          %v4682 = vsub.f32 %v4647, %v4678
          %v4683 = vsub.f32 %v4648, %v4679
          %v4684 = vsub.f32 %v4649, %v4678
          %v4685 = vsub.f32 %v4650, %v4679
          %v4686 = vsub.f32 %v4651, %v4678
          %v4687 = vsub.f32 %v4652, %v4679
          %v4688 = vmul.f32 %v4680, %v4680
          %v4689 = vmul.f32 %v4681, %v4681
          %v4690 = vmul.f32 %v4682, %v4682
          %v4691 = vmul.f32 %v4683, %v4683
          %v4692 = vmul.f32 %v4684, %v4684
          %v4693 = vmul.f32 %v4685, %v4685
          %v4694 = vmul.f32 %v4686, %v4686
          %v4695 = vmul.f32 %v4687, %v4687
          %v4696 = vadd.f32 %v4688, %v4690
          %v4697 = vadd.f32 %v4696, %v4692
          %v4698 = vadd.f32 %v4697, %v4694
          %v4699 = vrot.slane %v4698, 4
          %v4700 = vadd.f32 %v4698, %v4699
          %v4701 = vrot.slane %v4700, 2
          %v4702 = vadd.f32 %v4700, %v4701
          %v4703 = vrot.slane %v4702, 1
          %v4704 = vadd.f32 %v4702, %v4703
          %v4705 = vadd.f32 %v4689, %v4691
          %v4706 = vadd.f32 %v4705, %v4693
          %v4707 = vadd.f32 %v4706, %v4695
          %v4708 = vrot.slane %v4707, 4
          %v4709 = vadd.f32 %v4707, %v4708
          %v4710 = vrot.slane %v4709, 2
          %v4711 = vadd.f32 %v4709, %v4710
          %v4712 = vrot.slane %v4711, 1
          %v4713 = vadd.f32 %v4711, %v4712
          %v4714 = vmul.f32 %v4704, %v4677
          %v4715 = vmul.f32 %v4713, %v4677
          %v4716 = vld [vmem:[#allocation9] sm:$0x3]
          %v4717 = vadd.f32 %v4714, 1e-05
          %v4718 = vadd.f32 %v4715, 1e-05
          %v4719 = vrsqrt.pop %v4717
          %v4720 = vmul.f32 %v4719, %v4717
          %v4721 = vmul.f32 %v4720, %v4719
          %v4722 = vmul.f32 0.5, %v4721
          %v4723 = vsub.f32 1.5, %v4722
          %v4724 = vmul.f32 %v4719, %v4723
          %vm4725 = vweird.f32 %v4717
          %vm4726 = vweird.f32 %v4719
          %vm4727 = vmor %vm4725, %vm4726
          %v4728 = vsel %vm4727, %v4719, %v4724
          %v4729 = vrsqrt.pop %v4718
          %v4730 = vmul.f32 %v4729, %v4718
          %v4731 = vmul.f32 %v4730, %v4729
          %v4732 = vmul.f32 0.5, %v4731
          %v4733 = vsub.f32 1.5, %v4732
          %v4734 = vmul.f32 %v4729, %v4733
          %vm4735 = vweird.f32 %v4718
          %vm4736 = vweird.f32 %v4729
          %vm4737 = vmor %vm4735, %vm4736
          %v4738 = vsel %vm4737, %v4729, %v4734
          %v4741 = vrot.slane %v4738, 7
          %vm4742 = vcmask 1040384
          %v4743 = vsel %vm4742, %v4728, %v4741
          %v4745 = vmul.f32 %v4716, %v4743
          %v4747 = vperm.slane %v4745, 0
          %v4748 = vperm.slane %v4745, 1
          %v4751 = vmul.f32 %v4680, %v4747
          %v4752 = vmul.f32 %v4681, %v4748
          %v4753 = vmul.f32 %v4682, %v4747
          %v4754 = vmul.f32 %v4683, %v4748
          %v4755 = vmul.f32 %v4684, %v4747
          %v4756 = vmul.f32 %v4685, %v4748
          %v4757 = vmul.f32 %v4686, %v4747
          %v4758 = vmul.f32 %v4687, %v4748
          %v4759 = vld [vmem:[#allocation10] sm:$0x3]
          %v4761 = vperm.slane %v4759, 0
          %v4762 = vperm.slane %v4759, 1
          %v4765 = vadd.f32 %v4751, %v4761
          %v4766 = vadd.f32 %v4752, %v4762
          %v4767 = vadd.f32 %v4753, %v4761
          %v4768 = vadd.f32 %v4754, %v4762
          %v4769 = vadd.f32 %v4755, %v4761
          %v4770 = vadd.f32 %v4756, %v4762
          %v4771 = vadd.f32 %v4757, %v4761
          %v4772 = vadd.f32 %v4758, %v4762
          %v4773 = vmax.f32 %v4765, 0.0
          %v4774 = vmax.f32 %v4766, 0.0
          %v4775 = vmax.f32 %v4767, 0.0
          %v4776 = vmax.f32 %v4768, 0.0
          %v4777 = vmax.f32 %v4769, 0.0
          %v4778 = vmax.f32 %v4770, 0.0
          %v4779 = vmax.f32 %v4771, 0.0
          %v4780 = vmax.f32 %v4772, 0.0
          %v4781 = vpack.c.bf16 %v4774, %v4773
          %v4782 = vpack.c.bf16 %v4776, %v4775
          %v4783 = vpack.c.bf16 %v4778, %v4777
          %v4784 = vpack.c.bf16 %v4780, %v4779
          %v4789 = vrot.slane %v4781, 2
          %v4790 = vrot.slane %v4782, 2
          %v4791 = vrot.slane %v4783, 2
          %v4792 = vrot.slane %v4784, 2
          %v4795 = vsel %vm690, %v4781, %v4789
          %v4796 = vsel %vm805, %v4781, %v4789
          %v4798 = vrot.slane %v4796, 2
          %v4801 = vsel %vm690, %v4782, %v4790
          %v4802 = vsel %vm805, %v4782, %v4790
          %v4804 = vrot.slane %v4802, 2
          %v4807 = vsel %vm690, %v4783, %v4791
          %v4808 = vsel %vm805, %v4783, %v4791
          %v4810 = vrot.slane %v4808, 2
          %v4813 = vsel %vm690, %v4784, %v4792
          %v4814 = vsel %vm805, %v4784, %v4792
          %v4816 = vrot.slane %v4814, 2
          %4817 = vst [vmem:[#allocation1] ss:$4 sm:$0xff] %v4795
          %v4818 = vld.sshfl [vmem:[#allocation1] sm:$0xff pattern:$0x73625140]
          %v4819 = vld.sshfl [vmem:[#allocation1 + $0x8] sm:$0xff pattern:$0x73625140]
          %s4821 = scalar_lea.vmem [#allocation1], 32
          %4822 = vst [vmem:[%s4821] ss:$4 sm:$0xff] %v4798
          %v4823 = vld.sshfl [vmem:[#allocation1 + $0x20] sm:$0xff pattern:$0x73625140]
          %v4824 = vld.sshfl [vmem:[#allocation1 + $0x28] sm:$0xff pattern:$0x73625140]
          %4825 = vst [vmem:[#allocation1] ss:$4 sm:$0xff] %v4801
          %v4826 = vld.sshfl [vmem:[#allocation1] sm:$0xff pattern:$0x73625140]
          %v4827 = vld.sshfl [vmem:[#allocation1 + $0x8] sm:$0xff pattern:$0x73625140]
          %4829 = vst [vmem:[%s4821] ss:$4 sm:$0xff] %v4804
          %v4830 = vld.sshfl [vmem:[#allocation1 + $0x20] sm:$0xff pattern:$0x73625140]
          %v4831 = vld.sshfl [vmem:[#allocation1 + $0x28] sm:$0xff pattern:$0x73625140]
          %4832 = vst [vmem:[#allocation1] ss:$4 sm:$0xff] %v4807
          %v4833 = vld.sshfl [vmem:[#allocation1] sm:$0xff pattern:$0x73625140]
          %v4834 = vld.sshfl [vmem:[#allocation1 + $0x8] sm:$0xff pattern:$0x73625140]
          %4836 = vst [vmem:[%s4821] ss:$4 sm:$0xff] %v4810
          %v4837 = vld.sshfl [vmem:[#allocation1 + $0x20] sm:$0xff pattern:$0x73625140]
          %v4838 = vld.sshfl [vmem:[#allocation1 + $0x28] sm:$0xff pattern:$0x73625140]
          %4839 = vst [vmem:[#allocation1] ss:$4 sm:$0xff] %v4813
          %v4840 = vld.sshfl [vmem:[#allocation1] sm:$0xff pattern:$0x73625140]
          %v4841 = vld.sshfl [vmem:[#allocation1 + $0x8] sm:$0xff pattern:$0x73625140]
          %4843 = vst [vmem:[%s4821] ss:$4 sm:$0xff] %v4816
          %v4844 = vld.sshfl [vmem:[#allocation1 + $0x20] sm:$0xff pattern:$0x73625140]
          %v4845 = vld.sshfl [vmem:[#allocation1 + $0x28] sm:$0xff pattern:$0x73625140]
          %v4847 = vshrl.u32 0, 16
          %v4849 = vrot.slane %v4847, 7
          %v4850 = vshll.u32 0, 16
          %v4852 = vor.u32 %v4849, %v4850
          %v4853 = vshrl.u32 %v4818, 16
          %v4855 = vrot.slane %v4853, 7
          %v4856 = vshll.u32 %v4818, 16
          %v4858 = vor.u32 %v4855, %v4856
          %v4859 = vshrl.u32 %v4819, 16
          %v4861 = vrot.slane %v4859, 7
          %v4862 = vshll.u32 %v4819, 16
          %v4864 = vor.u32 %v4861, %v4862
          %v4865 = vshrl.u32 %v4823, 16
          %v4867 = vrot.slane %v4865, 7
          %v4868 = vshll.u32 %v4823, 16
          %v4870 = vor.u32 %v4867, %v4868
          %v4871 = vshrl.u32 %v4824, 16
          %v4873 = vrot.slane %v4871, 7
          %v4874 = vshll.u32 %v4824, 16
          %v4876 = vor.u32 %v4873, %v4874
          %v4877 = vshrl.u32 %v4826, 16
          %v4879 = vrot.slane %v4877, 7
          %v4880 = vshll.u32 %v4826, 16
          %v4882 = vor.u32 %v4879, %v4880
          %v4883 = vshrl.u32 %v4827, 16
          %v4885 = vrot.slane %v4883, 7
          %v4886 = vshll.u32 %v4827, 16
          %v4888 = vor.u32 %v4885, %v4886
          %v4889 = vshrl.u32 %v4830, 16
          %v4891 = vrot.slane %v4889, 7
          %v4892 = vshll.u32 %v4830, 16
          %v4894 = vor.u32 %v4891, %v4892
          %v4895 = vshrl.u32 %v4831, 16
          %v4897 = vrot.slane %v4895, 7
          %v4898 = vshll.u32 %v4831, 16
          %v4900 = vor.u32 %v4897, %v4898
          %v4901 = vshrl.u32 %v4833, 16
          %v4903 = vrot.slane %v4901, 7
          %v4904 = vshll.u32 %v4833, 16
          %v4906 = vor.u32 %v4903, %v4904
          %v4907 = vshrl.u32 %v4834, 16
          %v4909 = vrot.slane %v4907, 7
          %v4910 = vshll.u32 %v4834, 16
          %v4912 = vor.u32 %v4909, %v4910
          %v4913 = vshrl.u32 %v4837, 16
          %v4915 = vrot.slane %v4913, 7
          %v4916 = vshll.u32 %v4837, 16
          %v4918 = vor.u32 %v4915, %v4916
          %v4919 = vshrl.u32 %v4838, 16
          %v4921 = vrot.slane %v4919, 7
          %v4922 = vshll.u32 %v4838, 16
          %v4924 = vor.u32 %v4921, %v4922
          %v4925 = vshrl.u32 %v4840, 16
          %v4927 = vrot.slane %v4925, 7
          %v4928 = vshll.u32 %v4840, 16
          %v4930 = vor.u32 %v4927, %v4928
          %v4931 = vshrl.u32 %v4841, 16
          %v4933 = vrot.slane %v4931, 7
          %v4934 = vshll.u32 %v4841, 16
          %v4936 = vor.u32 %v4933, %v4934
          %v4937 = vshrl.u32 %v4844, 16
          %v4939 = vrot.slane %v4937, 7
          %v4940 = vshll.u32 %v4844, 16
          %v4942 = vor.u32 %v4939, %v4940
          %v4943 = vshrl.u32 %v4845, 16
          %v4945 = vrot.slane %v4943, 7
          %v4946 = vshll.u32 %v4845, 16
          %v4948 = vor.u32 %v4945, %v4946
          %vm4966 = vsmask.f32 256
          %vm4967 = vmand %vm1119, %vm4966
          %v4968 = vsel %vm4967, 0, %v4852
          %v4969 = vsel %vm4967, 0, %v4858
          %v4970 = vsel %vm4967, 0, %v4864
          %v4971 = vsel %vm4967, 0, %v4870
          %v4972 = vsel %vm4967, 0, %v4876
          %v4973 = vsel %vm4967, 0, %v4882
          %v4974 = vsel %vm4967, 0, %v4888
          %v4975 = vsel %vm4967, 0, %v4894
          %v4976 = vsel %vm4967, 0, %v4900
          %v4977 = vsel %vm4967, 0, %v4906
          %v4978 = vsel %vm4967, 0, %v4912
          %v4979 = vsel %vm4967, 0, %v4918
          %v4980 = vsel %vm4967, 0, %v4924
          %v4981 = vsel %vm4967, 0, %v4930
          %v4982 = vsel %vm4967, 0, %v4936
          %v4983 = vsel %vm4967, 0, %v4942
          %v4984 = vsel %vm4967, 0, %v4948
          %vm4985 = vcmask 1042432
          %vm4986 = vsmask.f32 2304
          %vm4987 = vmand %vm4985, %vm4986
          %v4988 = vsel %vm4987, %v4968, 0
          %v4989 = vsel %vm4987, %v4969, 0
          %v4990 = vsel %vm4987, %v4970, 0
          %v4991 = vsel %vm4987, %v4971, 0
          %v4992 = vsel %vm4987, %v4972, 0
          %v4993 = vsel %vm4987, %v4973, 0
          %v4994 = vsel %vm4987, %v4974, 0
          %v4995 = vsel %vm4987, %v4975, 0
          %v4996 = vsel %vm4987, %v4976, 0
          %v4997 = vsel %vm4987, %v4977, 0
          %v4998 = vsel %vm4987, %v4978, 0
          %v4999 = vsel %vm4987, %v4979, 0
          %v5000 = vsel %vm4987, %v4980, 0
          %v5001 = vsel %vm4987, %v4981, 0
          %v5002 = vsel %vm4987, %v4982, 0
          %v5003 = vsel %vm4987, %v4983, 0
          %v5004 = vsel %vm4987, %v4984, 0
          %v5012 = vrot.slane %v4988, 6
          %v5013 = vrot.slane %v4990, 6
          %v5014 = vrot.slane %v4992, 6
          %v5015 = vrot.slane %v4994, 6
          %v5016 = vrot.slane %v4998, 6
          %v5017 = vrot.slane %v5000, 6
          %v5018 = vrot.slane %v5002, 6
          %v5021 = vsel %vm690, %v4988, %v5012
          %v5024 = vsel %vm690, %v4989, %v5013
          %v5027 = vsel %vm690, %v4991, %v5014
          %v5030 = vsel %vm690, %v4993, %v5015
          %v5033 = vsel %vm690, %v4997, %v5016
          %v5036 = vsel %vm690, %v4999, %v5017
          %v5039 = vsel %vm690, %v5001, %v5018
          %v5040 = vsel %vm805, %v4988, %v5012
          %v5042 = vrot.slane %v5040, 2
          %v5043 = vsel %vm805, %v4989, %v5013
          %v5045 = vrot.slane %v5043, 2
          %v5046 = vsel %vm805, %v4991, %v5014
          %v5048 = vrot.slane %v5046, 2
          %v5049 = vsel %vm805, %v4993, %v5015
          %v5051 = vrot.slane %v5049, 2
          %v5052 = vsel %vm805, %v4997, %v5016
          %v5054 = vrot.slane %v5052, 2
          %v5055 = vsel %vm805, %v4999, %v5017
          %v5057 = vrot.slane %v5055, 2
          %v5058 = vsel %vm805, %v5001, %v5018
          %v5060 = vrot.slane %v5058, 2
          %v5061 = vshrl.u32 %v5021, 16
          %v5063 = vrot.slane %v5061, 6
          %v5064 = vshll.u32 %v5021, 16
          %v5066 = vrot.slane %v5064, 7
          %v5067 = vor.u32 %v5063, %v5066
          %v5068 = vrot.slane %v5067, 2
          %v5070 = vshll.u32 %v5042, 16
          %v5072 = vrot.slane %v5070, 7
          %v5073 = vsel %vm894, %v5068, %v5072
          %v5074 = vshrl.u32 %v5024, 16
          %v5076 = vrot.slane %v5074, 6
          %v5077 = vshll.u32 %v5024, 16
          %v5079 = vrot.slane %v5077, 7
          %v5080 = vor.u32 %v5076, %v5079
          %v5081 = vrot.slane %v5080, 2
          %v5083 = vshll.u32 %v5045, 16
          %v5085 = vrot.slane %v5083, 7
          %v5086 = vsel %vm894, %v5081, %v5085
          %v5087 = vshrl.u32 %v5027, 16
          %v5089 = vrot.slane %v5087, 6
          %v5090 = vshll.u32 %v5027, 16
          %v5092 = vrot.slane %v5090, 7
          %v5093 = vor.u32 %v5089, %v5092
          %v5094 = vrot.slane %v5093, 2
          %v5096 = vshll.u32 %v5048, 16
          %v5098 = vrot.slane %v5096, 7
          %v5099 = vsel %vm894, %v5094, %v5098
          %v5100 = vshrl.u32 %v5030, 16
          %v5102 = vrot.slane %v5100, 6
          %v5103 = vshll.u32 %v5030, 16
          %v5105 = vrot.slane %v5103, 7
          %v5106 = vor.u32 %v5102, %v5105
          %v5107 = vrot.slane %v5106, 2
          %v5109 = vshll.u32 %v5051, 16
          %v5111 = vrot.slane %v5109, 7
          %v5112 = vsel %vm894, %v5107, %v5111
          %v5113 = vshrl.u32 %v5033, 16
          %v5115 = vrot.slane %v5113, 6
          %v5116 = vshll.u32 %v5033, 16
          %v5118 = vrot.slane %v5116, 7
          %v5119 = vor.u32 %v5115, %v5118
          %v5120 = vrot.slane %v5119, 2
          %v5122 = vshll.u32 %v5054, 16
          %v5124 = vrot.slane %v5122, 7
          %v5125 = vsel %vm894, %v5120, %v5124
          %v5126 = vshrl.u32 %v5036, 16
          %v5128 = vrot.slane %v5126, 6
          %v5129 = vshll.u32 %v5036, 16
          %v5131 = vrot.slane %v5129, 7
          %v5132 = vor.u32 %v5128, %v5131
          %v5133 = vrot.slane %v5132, 2
          %v5135 = vshll.u32 %v5057, 16
          %v5137 = vrot.slane %v5135, 7
          %v5138 = vsel %vm894, %v5133, %v5137
          %v5139 = vshrl.u32 %v5039, 16
          %v5141 = vrot.slane %v5139, 6
          %v5142 = vshll.u32 %v5039, 16
          %v5144 = vrot.slane %v5142, 7
          %v5145 = vor.u32 %v5141, %v5144
          %v5146 = vrot.slane %v5145, 2
          %v5148 = vshll.u32 %v5060, 16
          %v5150 = vrot.slane %v5148, 7
          %v5151 = vsel %vm894, %v5146, %v5150
          %v5159 = vrot.slane %v5021, 7
          %v5160 = vrot.slane %v5159, 2
          %v5161 = vrot.slane %v5042, 7
          %v5162 = vsel %vm1125, %v5160, %v5161
          %v5163 = vrot.slane %v5024, 7
          %v5164 = vrot.slane %v5163, 2
          %v5165 = vrot.slane %v5045, 7
          %v5166 = vsel %vm1125, %v5164, %v5165
          %v5167 = vrot.slane %v5027, 7
          %v5168 = vrot.slane %v5167, 2
          %v5169 = vrot.slane %v5048, 7
          %v5170 = vsel %vm1125, %v5168, %v5169
          %v5171 = vrot.slane %v5030, 7
          %v5172 = vrot.slane %v5171, 2
          %v5173 = vrot.slane %v5051, 7
          %v5174 = vsel %vm1125, %v5172, %v5173
          %v5175 = vrot.slane %v5033, 7
          %v5176 = vrot.slane %v5175, 2
          %v5177 = vrot.slane %v5054, 7
          %v5178 = vsel %vm1125, %v5176, %v5177
          %v5179 = vrot.slane %v5036, 7
          %v5180 = vrot.slane %v5179, 2
          %v5181 = vrot.slane %v5057, 7
          %v5182 = vsel %vm1125, %v5180, %v5181
          %v5183 = vrot.slane %v5039, 7
          %v5184 = vrot.slane %v5183, 2
          %v5185 = vrot.slane %v5060, 7
          %v5186 = vsel %vm1125, %v5184, %v5185
          %v5189 = vrot.slane %v4996, 6
          %v5190 = vrot.slane %v5004, 6
          %v5193 = vsel %vm690, %v4995, %v5189
          %v5196 = vsel %vm690, %v5003, %v5190
          %v5197 = vsel %vm805, %v4995, %v5189
          %v5199 = vrot.slane %v5197, 2
          %v5200 = vsel %vm805, %v5003, %v5190
          %v5202 = vrot.slane %v5200, 2
          %v5203 = vshrl.u32 %v5193, 16
          %v5205 = vrot.slane %v5203, 6
          %v5206 = vshll.u32 %v5193, 16
          %v5208 = vrot.slane %v5206, 7
          %v5209 = vor.u32 %v5205, %v5208
          %v5210 = vrot.slane %v5209, 2
          %v5212 = vshll.u32 %v5199, 16
          %v5214 = vrot.slane %v5212, 7
          %v5215 = vsel %vm894, %v5210, %v5214
          %v5216 = vshrl.u32 %v5196, 16
          %v5218 = vrot.slane %v5216, 6
          %v5219 = vshll.u32 %v5196, 16
          %v5221 = vrot.slane %v5219, 7
          %v5222 = vor.u32 %v5218, %v5221
          %v5223 = vrot.slane %v5222, 2
          %v5225 = vshll.u32 %v5202, 16
          %v5227 = vrot.slane %v5225, 7
          %v5228 = vsel %vm894, %v5223, %v5227
          %v5231 = vrot.slane %v5193, 7
          %v5232 = vrot.slane %v5231, 2
          %v5233 = vrot.slane %v5199, 7
          %v5234 = vsel %vm1125, %v5232, %v5233
          %v5235 = vrot.slane %v5196, 7
          %v5236 = vrot.slane %v5235, 2
          %v5237 = vrot.slane %v5202, 7
          %v5238 = vsel %vm1125, %v5236, %v5237
          %5239 = vst [vmem:[#allocation1] ss:$4 sm:$0xff] %v5021
          %s5240 = scalar_lea.vmem [#allocation1], 1
          %5241 = vst [vmem:[%s5240] ss:$4 sm:$0xff] %v5024
          %s5242 = scalar_lea.vmem [#allocation1], 2
          %5243 = vst [vmem:[%s5242] ss:$4 sm:$0xff] %v5027
          %s5244 = scalar_lea.vmem [#allocation1], 3
          %5245 = vst [vmem:[%s5244] ss:$4 sm:$0xff] %v5030
          %s5246 = scalar_lea.vmem [#allocation1], 32
          %5247 = vst [vmem:[%s5246] ss:$4 sm:$0xff] %v5021
          %s5248 = scalar_lea.vmem [#allocation1], 33
          %5249 = vst [vmem:[%s5248] ss:$4 sm:$0xff] %v5033
          %s5250 = scalar_lea.vmem [#allocation1], 34
          %5251 = vst [vmem:[%s5250] ss:$4 sm:$0xff] %v5036
          %s5252 = scalar_lea.vmem [#allocation1], 35
          %5253 = vst [vmem:[%s5252] ss:$4 sm:$0xff] %v5039
          %v5254 = vld.sshfl [vmem:[#allocation1] sm:$0xff pattern:$0x73625140]
          %v5255 = vld.sshfl [vmem:[#allocation1 + $0x8] sm:$0xff pattern:$0x73625140]
          %v5256 = vld.sshfl [vmem:[#allocation1 + $0x20] sm:$0xff pattern:$0x73625140]
          %v5257 = vld.sshfl [vmem:[#allocation1 + $0x28] sm:$0xff pattern:$0x73625140]
          %5263 = vst [vmem:[#allocation1] ss:$4 sm:$0xff] %v5073
          %s5265 = scalar_lea.vmem [#allocation1], 1
          %5266 = vst [vmem:[%s5265] ss:$4 sm:$0xff] %v5086
          %s5268 = scalar_lea.vmem [#allocation1], 2
          %5269 = vst [vmem:[%s5268] ss:$4 sm:$0xff] %v5099
          %s5271 = scalar_lea.vmem [#allocation1], 3
          %5272 = vst [vmem:[%s5271] ss:$4 sm:$0xff] %v5112
          %s5273 = scalar_lea.vmem [#allocation1], 32
          %5274 = vst [vmem:[%s5273] ss:$4 sm:$0xff] %v5073
          %s5276 = scalar_lea.vmem [#allocation1], 33
          %5277 = vst [vmem:[%s5276] ss:$4 sm:$0xff] %v5125
          %s5279 = scalar_lea.vmem [#allocation1], 34
          %5280 = vst [vmem:[%s5279] ss:$4 sm:$0xff] %v5138
          %s5282 = scalar_lea.vmem [#allocation1], 35
          %5283 = vst [vmem:[%s5282] ss:$4 sm:$0xff] %v5151
          %v5284 = vld.sshfl [vmem:[#allocation1] sm:$0xff pattern:$0x73625140]
          %v5285 = vld.sshfl [vmem:[#allocation1 + $0x8] sm:$0xff pattern:$0x73625140]
          %v5286 = vld.sshfl [vmem:[#allocation1 + $0x20] sm:$0xff pattern:$0x73625140]
          %v5287 = vld.sshfl [vmem:[#allocation1 + $0x28] sm:$0xff pattern:$0x73625140]
          %5293 = vst [vmem:[#allocation1] ss:$4 sm:$0xff] %v5162
          %s5295 = scalar_lea.vmem [#allocation1], 1
          %5296 = vst [vmem:[%s5295] ss:$4 sm:$0xff] %v5166
          %s5298 = scalar_lea.vmem [#allocation1], 2
          %5299 = vst [vmem:[%s5298] ss:$4 sm:$0xff] %v5170
          %s5301 = scalar_lea.vmem [#allocation1], 3
          %5302 = vst [vmem:[%s5301] ss:$4 sm:$0xff] %v5174
          %s5303 = scalar_lea.vmem [#allocation1], 32
          %5304 = vst [vmem:[%s5303] ss:$4 sm:$0xff] %v5162
          %s5306 = scalar_lea.vmem [#allocation1], 33
          %5307 = vst [vmem:[%s5306] ss:$4 sm:$0xff] %v5178
          %s5309 = scalar_lea.vmem [#allocation1], 34
          %5310 = vst [vmem:[%s5309] ss:$4 sm:$0xff] %v5182
          %s5312 = scalar_lea.vmem [#allocation1], 35
          %5313 = vst [vmem:[%s5312] ss:$4 sm:$0xff] %v5186
          %v5314 = vld.sshfl [vmem:[#allocation1] sm:$0xff pattern:$0x73625140]
          %v5315 = vld.sshfl [vmem:[#allocation1 + $0x8] sm:$0xff pattern:$0x73625140]
          %v5316 = vld.sshfl [vmem:[#allocation1 + $0x20] sm:$0xff pattern:$0x73625140]
          %v5317 = vld.sshfl [vmem:[#allocation1 + $0x28] sm:$0xff pattern:$0x73625140]
          %5322 = vst [vmem:[#allocation1] ss:$4 sm:$0xff] %v5024
          %s5323 = scalar_lea.vmem [#allocation1], 1
          %5324 = vst [vmem:[%s5323] ss:$4 sm:$0xff] %v5027
          %s5325 = scalar_lea.vmem [#allocation1], 2
          %5326 = vst [vmem:[%s5325] ss:$4 sm:$0xff] %v5030
          %s5327 = scalar_lea.vmem [#allocation1], 3
          %5328 = vst [vmem:[%s5327] ss:$4 sm:$0xff] %v5193
          %s5329 = scalar_lea.vmem [#allocation1], 32
          %5330 = vst [vmem:[%s5329] ss:$4 sm:$0xff] %v5033
          %s5331 = scalar_lea.vmem [#allocation1], 33
          %5332 = vst [vmem:[%s5331] ss:$4 sm:$0xff] %v5036
          %s5333 = scalar_lea.vmem [#allocation1], 34
          %5334 = vst [vmem:[%s5333] ss:$4 sm:$0xff] %v5039
          %s5335 = scalar_lea.vmem [#allocation1], 35
          %5336 = vst [vmem:[%s5335] ss:$4 sm:$0xff] %v5196
          %v5337 = vld.sshfl [vmem:[#allocation1] sm:$0xff pattern:$0x73625140]
          %v5338 = vld.sshfl [vmem:[#allocation1 + $0x8] sm:$0xff pattern:$0x73625140]
          %v5339 = vld.sshfl [vmem:[#allocation1 + $0x20] sm:$0xff pattern:$0x73625140]
          %v5340 = vld.sshfl [vmem:[#allocation1 + $0x28] sm:$0xff pattern:$0x73625140]
          %5345 = vst [vmem:[#allocation1] ss:$4 sm:$0xff] %v5086
          %s5346 = scalar_lea.vmem [#allocation1], 1
          %5347 = vst [vmem:[%s5346] ss:$4 sm:$0xff] %v5099
          %s5348 = scalar_lea.vmem [#allocation1], 2
          %5349 = vst [vmem:[%s5348] ss:$4 sm:$0xff] %v5112
          %s5351 = scalar_lea.vmem [#allocation1], 3
          %5352 = vst [vmem:[%s5351] ss:$4 sm:$0xff] %v5215
          %s5353 = scalar_lea.vmem [#allocation1], 32
          %5354 = vst [vmem:[%s5353] ss:$4 sm:$0xff] %v5125
          %s5355 = scalar_lea.vmem [#allocation1], 33
          %5356 = vst [vmem:[%s5355] ss:$4 sm:$0xff] %v5138
          %s5357 = scalar_lea.vmem [#allocation1], 34
          %5358 = vst [vmem:[%s5357] ss:$4 sm:$0xff] %v5151
          %s5360 = scalar_lea.vmem [#allocation1], 35
          %5361 = vst [vmem:[%s5360] ss:$4 sm:$0xff] %v5228
          %v5362 = vld.sshfl [vmem:[#allocation1] sm:$0xff pattern:$0x73625140]
          %v5363 = vld.sshfl [vmem:[#allocation1 + $0x8] sm:$0xff pattern:$0x73625140]
          %v5364 = vld.sshfl [vmem:[#allocation1 + $0x20] sm:$0xff pattern:$0x73625140]
          %v5365 = vld.sshfl [vmem:[#allocation1 + $0x28] sm:$0xff pattern:$0x73625140]
          %5370 = vst [vmem:[#allocation1] ss:$4 sm:$0xff] %v5166
          %s5371 = scalar_lea.vmem [#allocation1], 1
          %5372 = vst [vmem:[%s5371] ss:$4 sm:$0xff] %v5170
          %s5373 = scalar_lea.vmem [#allocation1], 2
          %5374 = vst [vmem:[%s5373] ss:$4 sm:$0xff] %v5174
          %s5376 = scalar_lea.vmem [#allocation1], 3
          %5377 = vst [vmem:[%s5376] ss:$4 sm:$0xff] %v5234
          %s5378 = scalar_lea.vmem [#allocation1], 32
          %5379 = vst [vmem:[%s5378] ss:$4 sm:$0xff] %v5178
          %s5380 = scalar_lea.vmem [#allocation1], 33
          %5381 = vst [vmem:[%s5380] ss:$4 sm:$0xff] %v5182
          %s5382 = scalar_lea.vmem [#allocation1], 34
          %5383 = vst [vmem:[%s5382] ss:$4 sm:$0xff] %v5186
          %s5385 = scalar_lea.vmem [#allocation1], 35
          %5386 = vst [vmem:[%s5385] ss:$4 sm:$0xff] %v5238
          %v5387 = vld.sshfl [vmem:[#allocation1] sm:$0xff pattern:$0x73625140]
          %v5388 = vld.sshfl [vmem:[#allocation1 + $0x8] sm:$0xff pattern:$0x73625140]
          %v5389 = vld.sshfl [vmem:[#allocation1 + $0x20] sm:$0xff pattern:$0x73625140]
          %v5390 = vld.sshfl [vmem:[#allocation1 + $0x28] sm:$0xff pattern:$0x73625140]
          %5395 = vst [vmem:[#allocation1] ss:$4 sm:$0xff] %v5027
          %s5396 = scalar_lea.vmem [#allocation1], 1
          %5397 = vst [vmem:[%s5396] ss:$4 sm:$0xff] %v5030
          %s5398 = scalar_lea.vmem [#allocation1], 2
          %5399 = vst [vmem:[%s5398] ss:$4 sm:$0xff] %v5193
          %s5400 = scalar_lea.vmem [#allocation1], 3
          %5401 = vst [vmem:[%s5400] ss:$4 sm:$0xff] %v5021
          %s5402 = scalar_lea.vmem [#allocation1], 32
          %5403 = vst [vmem:[%s5402] ss:$4 sm:$0xff] %v5036
          %s5404 = scalar_lea.vmem [#allocation1], 33
          %5405 = vst [vmem:[%s5404] ss:$4 sm:$0xff] %v5039
          %s5406 = scalar_lea.vmem [#allocation1], 34
          %5407 = vst [vmem:[%s5406] ss:$4 sm:$0xff] %v5196
          %s5408 = scalar_lea.vmem [#allocation1], 35
          %5409 = vst [vmem:[%s5408] ss:$4 sm:$0xff] %v5021
          %v5410 = vld.sshfl [vmem:[#allocation1] sm:$0xff pattern:$0x73625140]
          %v5411 = vld.sshfl [vmem:[#allocation1 + $0x8] sm:$0xff pattern:$0x73625140]
          %v5412 = vld.sshfl [vmem:[#allocation1 + $0x20] sm:$0xff pattern:$0x73625140]
          %v5413 = vld.sshfl [vmem:[#allocation1 + $0x28] sm:$0xff pattern:$0x73625140]
          %5418 = vst [vmem:[#allocation1] ss:$4 sm:$0xff] %v5099
          %s5419 = scalar_lea.vmem [#allocation1], 1
          %5420 = vst [vmem:[%s5419] ss:$4 sm:$0xff] %v5112
          %s5421 = scalar_lea.vmem [#allocation1], 2
          %5422 = vst [vmem:[%s5421] ss:$4 sm:$0xff] %v5215
          %s5423 = scalar_lea.vmem [#allocation1], 3
          %5424 = vst [vmem:[%s5423] ss:$4 sm:$0xff] %v5073
          %s5425 = scalar_lea.vmem [#allocation1], 32
          %5426 = vst [vmem:[%s5425] ss:$4 sm:$0xff] %v5138
          %s5427 = scalar_lea.vmem [#allocation1], 33
          %5428 = vst [vmem:[%s5427] ss:$4 sm:$0xff] %v5151
          %s5429 = scalar_lea.vmem [#allocation1], 34
          %5430 = vst [vmem:[%s5429] ss:$4 sm:$0xff] %v5228
          %s5431 = scalar_lea.vmem [#allocation1], 35
          %5432 = vst [vmem:[%s5431] ss:$4 sm:$0xff] %v5073
          %v5433 = vld.sshfl [vmem:[#allocation1] sm:$0xff pattern:$0x73625140]
          %v5434 = vld.sshfl [vmem:[#allocation1 + $0x8] sm:$0xff pattern:$0x73625140]
          %v5435 = vld.sshfl [vmem:[#allocation1 + $0x20] sm:$0xff pattern:$0x73625140]
          %v5436 = vld.sshfl [vmem:[#allocation1 + $0x28] sm:$0xff pattern:$0x73625140]
          %5441 = vst [vmem:[#allocation1] ss:$4 sm:$0xff] %v5170
          %s5442 = scalar_lea.vmem [#allocation1], 1
          %5443 = vst [vmem:[%s5442] ss:$4 sm:$0xff] %v5174
          %s5444 = scalar_lea.vmem [#allocation1], 2
          %5445 = vst [vmem:[%s5444] ss:$4 sm:$0xff] %v5234
          %s5446 = scalar_lea.vmem [#allocation1], 3
          %5447 = vst [vmem:[%s5446] ss:$4 sm:$0xff] %v5162
          %s5448 = scalar_lea.vmem [#allocation1], 32
          %5449 = vst [vmem:[%s5448] ss:$4 sm:$0xff] %v5182
          %s5450 = scalar_lea.vmem [#allocation1], 33
          %5451 = vst [vmem:[%s5450] ss:$4 sm:$0xff] %v5186
          %s5452 = scalar_lea.vmem [#allocation1], 34
          %5453 = vst [vmem:[%s5452] ss:$4 sm:$0xff] %v5238
          %s5454 = scalar_lea.vmem [#allocation1], 35
          %5455 = vst [vmem:[%s5454] ss:$4 sm:$0xff] %v5162
          %v5456 = vld.sshfl [vmem:[#allocation1] sm:$0xff pattern:$0x73625140]
          %v5457 = vld.sshfl [vmem:[#allocation1 + $0x8] sm:$0xff pattern:$0x73625140]
          %v5458 = vld.sshfl [vmem:[#allocation1 + $0x20] sm:$0xff pattern:$0x73625140]
          %v5459 = vld.sshfl [vmem:[#allocation1 + $0x28] sm:$0xff pattern:$0x73625140]
          %v5464 = vld [vmem:[#allocation12] sm:$0xf]
          %v5465 = vld [vmem:[#allocation12 + $0x4] sm:$0xf]
          %v5466 = vld [vmem:[#allocation12 + $0x8] sm:$0xf]
          %v5467 = vld [vmem:[#allocation12 + $0xc] sm:$0xf]
          %v5468 = vld [vmem:[#allocation12 + $0x10] sm:$0xf]
          %v5469 = vld [vmem:[#allocation12 + $0x14] sm:$0xf]
          %v5470 = vld [vmem:[#allocation12 + $0x18] sm:$0xf]
          %v5471 = vld [vmem:[#allocation12 + $0x1c] sm:$0xf]
          %v5472 = vld [vmem:[#allocation12 + $0x20] sm:$0xf]
          %v5473 = vld [vmem:[#allocation12 + $0x24] sm:$0xf]
          %v5474 = vld [vmem:[#allocation12 + $0x28] sm:$0xf]
          %v5475 = vld [vmem:[#allocation12 + $0x2c] sm:$0xf]
          %v5476 = vld [vmem:[#allocation12 + $0x30] sm:$0xf]
          %v5477 = vld [vmem:[#allocation12 + $0x34] sm:$0xf]
          %v5478 = vld [vmem:[#allocation12 + $0x38] sm:$0xf]
          %v5479 = vld [vmem:[#allocation12 + $0x3c] sm:$0xf]
          %v5480 = vld [vmem:[#allocation12 + $0x40] sm:$0xf]
          %v5481 = vld [vmem:[#allocation12 + $0x44] sm:$0xf]
          %v5482 = vld [vmem:[#allocation12 + $0x48] sm:$0xf]
          %v5483 = vld [vmem:[#allocation12 + $0x4c] sm:$0xf]
          %v5484 = vld [vmem:[#allocation12 + $0x50] sm:$0xf]
          %v5485 = vld [vmem:[#allocation12 + $0x54] sm:$0xf]
          %v5486 = vld [vmem:[#allocation12 + $0x58] sm:$0xf]
          %v5487 = vld [vmem:[#allocation12 + $0x5c] sm:$0xf]
          %v5488 = vld [vmem:[#allocation12 + $0x60] sm:$0xf]
          %v5489 = vld [vmem:[#allocation12 + $0x64] sm:$0xf]
          %v5490 = vld [vmem:[#allocation12 + $0x68] sm:$0xf]
          %v5491 = vld [vmem:[#allocation12 + $0x6c] sm:$0xf]
          %v5492 = vld [vmem:[#allocation12 + $0x70] sm:$0xf]
          %v5493 = vld [vmem:[#allocation12 + $0x74] sm:$0xf]
          %v5494 = vld [vmem:[#allocation12 + $0x78] sm:$0xf]
          %v5495 = vld [vmem:[#allocation12 + $0x7c] sm:$0xf]
          %v5496 = vld [vmem:[#allocation12 + $0x80] sm:$0xf]
          %v5497 = vld [vmem:[#allocation12 + $0x84] sm:$0xf]
          %v5498 = vld [vmem:[#allocation12 + $0x88] sm:$0xf]
          %v5499 = vld [vmem:[#allocation12 + $0x8c] sm:$0xf]
          %v5500 = vld [vmem:[#allocation12 + $0x90] sm:$0xf]
          %v5501 = vld [vmem:[#allocation12 + $0x94] sm:$0xf]
          %v5502 = vld [vmem:[#allocation12 + $0x98] sm:$0xf]
          %v5503 = vld [vmem:[#allocation12 + $0x9c] sm:$0xf]
          %v5504 = vld [vmem:[#allocation12 + $0xa0] sm:$0xf]
          %v5505 = vld [vmem:[#allocation12 + $0xa4] sm:$0xf]
          %v5506 = vld [vmem:[#allocation12 + $0xa8] sm:$0xf]
          %v5507 = vld [vmem:[#allocation12 + $0xac] sm:$0xf]
          %v5508 = vld [vmem:[#allocation12 + $0xb0] sm:$0xf]
          %v5509 = vld [vmem:[#allocation12 + $0xb4] sm:$0xf]
          %v5510 = vld [vmem:[#allocation12 + $0xb8] sm:$0xf]
          %v5511 = vld [vmem:[#allocation12 + $0xbc] sm:$0xf]
          %v5512 = vld [vmem:[#allocation12 + $0xc0] sm:$0xf]
          %v5513 = vld [vmem:[#allocation12 + $0xc4] sm:$0xf]
          %v5514 = vld [vmem:[#allocation12 + $0xc8] sm:$0xf]
          %v5515 = vld [vmem:[#allocation12 + $0xcc] sm:$0xf]
          %v5516 = vld [vmem:[#allocation12 + $0xd0] sm:$0xf]
          %v5517 = vld [vmem:[#allocation12 + $0xd4] sm:$0xf]
          %v5518 = vld [vmem:[#allocation12 + $0xd8] sm:$0xf]
          %v5519 = vld [vmem:[#allocation12 + $0xdc] sm:$0xf]
          %v5520 = vld [vmem:[#allocation12 + $0xe0] sm:$0xf]
          %v5521 = vld [vmem:[#allocation12 + $0xe4] sm:$0xf]
          %v5522 = vld [vmem:[#allocation12 + $0xe8] sm:$0xf]
          %v5523 = vld [vmem:[#allocation12 + $0xec] sm:$0xf]
          %v5524 = vld [vmem:[#allocation12 + $0xf0] sm:$0xf]
          %v5525 = vld [vmem:[#allocation12 + $0xf4] sm:$0xf]
          %v5526 = vld [vmem:[#allocation12 + $0xf8] sm:$0xf]
          %v5527 = vld [vmem:[#allocation12 + $0xfc] sm:$0xf]
          %v5528 = vld [vmem:[#allocation12 + $0x100] sm:$0xf]
          %v5529 = vld [vmem:[#allocation12 + $0x104] sm:$0xf]
          %v5530 = vld [vmem:[#allocation12 + $0x108] sm:$0xf]
          %v5531 = vld [vmem:[#allocation12 + $0x10c] sm:$0xf]
          %v5532 = vld [vmem:[#allocation12 + $0x110] sm:$0xf]
          %v5533 = vld [vmem:[#allocation12 + $0x114] sm:$0xf]
          %v5534 = vld [vmem:[#allocation12 + $0x118] sm:$0xf]
          %v5535 = vld [vmem:[#allocation12 + $0x11c] sm:$0xf]
          %v5536 = vld [vmem:[#allocation12 + $0x120] sm:$0xf]
          %v5537 = vld [vmem:[#allocation12 + $0x124] sm:$0xf]
          %v5538 = vld [vmem:[#allocation12 + $0x128] sm:$0xf]
          %v5539 = vld [vmem:[#allocation12 + $0x12c] sm:$0xf]
          %v5540 = vld [vmem:[#allocation12 + $0x130] sm:$0xf]
          %v5541 = vld [vmem:[#allocation12 + $0x134] sm:$0xf]
          %v5542 = vld [vmem:[#allocation12 + $0x138] sm:$0xf]
          %v5543 = vld [vmem:[#allocation12 + $0x13c] sm:$0xf]
          %v5544 = vld [vmem:[#allocation12 + $0x140] sm:$0xf]
          %v5545 = vld [vmem:[#allocation12 + $0x144] sm:$0xf]
          %v5546 = vld [vmem:[#allocation12 + $0x148] sm:$0xf]
          %v5547 = vld [vmem:[#allocation12 + $0x14c] sm:$0xf]
          %v5548 = vld [vmem:[#allocation12 + $0x150] sm:$0xf]
          %v5549 = vld [vmem:[#allocation12 + $0x154] sm:$0xf]
          %v5550 = vld [vmem:[#allocation12 + $0x158] sm:$0xf]
          %v5551 = vld [vmem:[#allocation12 + $0x15c] sm:$0xf]
          %v5552 = vld [vmem:[#allocation12 + $0x160] sm:$0xf]
          %v5553 = vld [vmem:[#allocation12 + $0x164] sm:$0xf]
          %v5554 = vld [vmem:[#allocation12 + $0x168] sm:$0xf]
          %v5555 = vld [vmem:[#allocation12 + $0x16c] sm:$0xf]
          %v5556 = vld [vmem:[#allocation12 + $0x170] sm:$0xf]
          %v5557 = vld [vmem:[#allocation12 + $0x174] sm:$0xf]
          %v5558 = vld [vmem:[#allocation12 + $0x178] sm:$0xf]
          %v5559 = vld [vmem:[#allocation12 + $0x17c] sm:$0xf]
          %v5560 = vld [vmem:[#allocation12 + $0x180] sm:$0xf]
          %v5561 = vld [vmem:[#allocation12 + $0x184] sm:$0xf]
          %v5562 = vld [vmem:[#allocation12 + $0x188] sm:$0xf]
          %v5563 = vld [vmem:[#allocation12 + $0x18c] sm:$0xf]
          %v5564 = vld [vmem:[#allocation12 + $0x190] sm:$0xf]
          %v5565 = vld [vmem:[#allocation12 + $0x194] sm:$0xf]
          %v5566 = vld [vmem:[#allocation12 + $0x198] sm:$0xf]
          %v5567 = vld [vmem:[#allocation12 + $0x19c] sm:$0xf]
          %v5568 = vld [vmem:[#allocation12 + $0x1a0] sm:$0xf]
          %v5569 = vld [vmem:[#allocation12 + $0x1a4] sm:$0xf]
          %v5570 = vld [vmem:[#allocation12 + $0x1a8] sm:$0xf]
          %v5571 = vld [vmem:[#allocation12 + $0x1ac] sm:$0xf]
          %v5572 = vld [vmem:[#allocation12 + $0x1b0] sm:$0xf]
          %v5573 = vld [vmem:[#allocation12 + $0x1b4] sm:$0xf]
          %v5574 = vld [vmem:[#allocation12 + $0x1b8] sm:$0xf]
          %v5575 = vld [vmem:[#allocation12 + $0x1bc] sm:$0xf]
          %v5576 = vld [vmem:[#allocation12 + $0x1c0] sm:$0xf]
          %v5577 = vld [vmem:[#allocation12 + $0x1c4] sm:$0xf]
          %v5578 = vld [vmem:[#allocation12 + $0x1c8] sm:$0xf]
          %v5579 = vld [vmem:[#allocation12 + $0x1cc] sm:$0xf]
          %v5580 = vld [vmem:[#allocation12 + $0x1d0] sm:$0xf]
          %v5581 = vld [vmem:[#allocation12 + $0x1d4] sm:$0xf]
          %v5582 = vld [vmem:[#allocation12 + $0x1d8] sm:$0xf]
          %v5583 = vld [vmem:[#allocation12 + $0x1dc] sm:$0xf]
          %v5584 = vld [vmem:[#allocation12 + $0x1e0] sm:$0xf]
          %v5585 = vld [vmem:[#allocation12 + $0x1e4] sm:$0xf]
          %v5586 = vld [vmem:[#allocation12 + $0x1e8] sm:$0xf]
          %v5587 = vld [vmem:[#allocation12 + $0x1ec] sm:$0xf]
          %v5588 = vld [vmem:[#allocation12 + $0x1f0] sm:$0xf]
          %v5589 = vld [vmem:[#allocation12 + $0x1f4] sm:$0xf]
          %v5590 = vld [vmem:[#allocation12 + $0x1f8] sm:$0xf]
          %v5591 = vld [vmem:[#allocation12 + $0x1fc] sm:$0xf]
          %v5592 = vld [vmem:[#allocation12 + $0x200] sm:$0xf]
          %v5593 = vld [vmem:[#allocation12 + $0x204] sm:$0xf]
          %v5594 = vld [vmem:[#allocation12 + $0x208] sm:$0xf]
          %v5595 = vld [vmem:[#allocation12 + $0x20c] sm:$0xf]
          %v5596 = vld [vmem:[#allocation12 + $0x210] sm:$0xf]
          %v5597 = vld [vmem:[#allocation12 + $0x214] sm:$0xf]
          %v5598 = vld [vmem:[#allocation12 + $0x218] sm:$0xf]
          %v5599 = vld [vmem:[#allocation12 + $0x21c] sm:$0xf]
          %v5600 = vld [vmem:[#allocation12 + $0x220] sm:$0xf]
          %v5601 = vld [vmem:[#allocation12 + $0x224] sm:$0xf]
          %v5602 = vld [vmem:[#allocation12 + $0x228] sm:$0xf]
          %v5603 = vld [vmem:[#allocation12 + $0x22c] sm:$0xf]
          %v5604 = vld [vmem:[#allocation12 + $0x230] sm:$0xf]
          %v5605 = vld [vmem:[#allocation12 + $0x234] sm:$0xf]
          %v5606 = vld [vmem:[#allocation12 + $0x238] sm:$0xf]
          %v5607 = vld [vmem:[#allocation12 + $0x23c] sm:$0xf]
          %v5608 = vld [vmem:[#allocation12 + $0x240] sm:$0xf]
          %v5609 = vld [vmem:[#allocation12 + $0x244] sm:$0xf]
          %v5610 = vld [vmem:[#allocation12 + $0x248] sm:$0xf]
          %v5611 = vld [vmem:[#allocation12 + $0x24c] sm:$0xf]
          %v5612 = vld [vmem:[#allocation12 + $0x250] sm:$0xf]
          %v5613 = vld [vmem:[#allocation12 + $0x254] sm:$0xf]
          %v5614 = vld [vmem:[#allocation12 + $0x258] sm:$0xf]
          %v5615 = vld [vmem:[#allocation12 + $0x25c] sm:$0xf]
          %v5616 = vld [vmem:[#allocation12 + $0x260] sm:$0xf]
          %v5617 = vld [vmem:[#allocation12 + $0x264] sm:$0xf]
          %v5618 = vld [vmem:[#allocation12 + $0x268] sm:$0xf]
          %v5619 = vld [vmem:[#allocation12 + $0x26c] sm:$0xf]
          %v5620 = vld [vmem:[#allocation12 + $0x270] sm:$0xf]
          %v5621 = vld [vmem:[#allocation12 + $0x274] sm:$0xf]
          %v5622 = vld [vmem:[#allocation12 + $0x278] sm:$0xf]
          %v5623 = vld [vmem:[#allocation12 + $0x27c] sm:$0xf]
          %v5624 = vld [vmem:[#allocation12 + $0x280] sm:$0xf]
          %v5625 = vld [vmem:[#allocation12 + $0x284] sm:$0xf]
          %v5626 = vld [vmem:[#allocation12 + $0x288] sm:$0xf]
          %v5627 = vld [vmem:[#allocation12 + $0x28c] sm:$0xf]
          %v5628 = vld [vmem:[#allocation12 + $0x290] sm:$0xf]
          %v5629 = vld [vmem:[#allocation12 + $0x294] sm:$0xf]
          %v5630 = vld [vmem:[#allocation12 + $0x298] sm:$0xf]
          %v5631 = vld [vmem:[#allocation12 + $0x29c] sm:$0xf]
          %v5632 = vld [vmem:[#allocation12 + $0x2a0] sm:$0xf]
          %v5633 = vld [vmem:[#allocation12 + $0x2a4] sm:$0xf]
          %v5634 = vld [vmem:[#allocation12 + $0x2a8] sm:$0xf]
          %v5635 = vld [vmem:[#allocation12 + $0x2ac] sm:$0xf]
          %v5636 = vld [vmem:[#allocation12 + $0x2b0] sm:$0xf]
          %v5637 = vld [vmem:[#allocation12 + $0x2b4] sm:$0xf]
          %v5638 = vld [vmem:[#allocation12 + $0x2b8] sm:$0xf]
          %v5639 = vld [vmem:[#allocation12 + $0x2bc] sm:$0xf]
          %v5640 = vld [vmem:[#allocation12 + $0x2c0] sm:$0xf]
          %v5641 = vld [vmem:[#allocation12 + $0x2c4] sm:$0xf]
          %v5642 = vld [vmem:[#allocation12 + $0x2c8] sm:$0xf]
          %v5643 = vld [vmem:[#allocation12 + $0x2cc] sm:$0xf]
          %v5644 = vld [vmem:[#allocation12 + $0x2d0] sm:$0xf]
          %v5645 = vld [vmem:[#allocation12 + $0x2d4] sm:$0xf]
          %v5646 = vld [vmem:[#allocation12 + $0x2d8] sm:$0xf]
          %v5647 = vld [vmem:[#allocation12 + $0x2dc] sm:$0xf]
          %v5648 = vld [vmem:[#allocation12 + $0x2e0] sm:$0xf]
          %v5649 = vld [vmem:[#allocation12 + $0x2e4] sm:$0xf]
          %v5650 = vld [vmem:[#allocation12 + $0x2e8] sm:$0xf]
          %v5651 = vld [vmem:[#allocation12 + $0x2ec] sm:$0xf]
          %v5652 = vld [vmem:[#allocation12 + $0x2f0] sm:$0xf]
          %v5653 = vld [vmem:[#allocation12 + $0x2f4] sm:$0xf]
          %v5654 = vld [vmem:[#allocation12 + $0x2f8] sm:$0xf]
          %v5655 = vld [vmem:[#allocation12 + $0x2fc] sm:$0xf]
          %v5656 = vld [vmem:[#allocation12 + $0x300] sm:$0xf]
          %v5657 = vld [vmem:[#allocation12 + $0x304] sm:$0xf]
          %v5658 = vld [vmem:[#allocation12 + $0x308] sm:$0xf]
          %v5659 = vld [vmem:[#allocation12 + $0x30c] sm:$0xf]
          %v5660 = vld [vmem:[#allocation12 + $0x310] sm:$0xf]
          %v5661 = vld [vmem:[#allocation12 + $0x314] sm:$0xf]
          %v5662 = vld [vmem:[#allocation12 + $0x318] sm:$0xf]
          %v5663 = vld [vmem:[#allocation12 + $0x31c] sm:$0xf]
          %v5664 = vld [vmem:[#allocation12 + $0x320] sm:$0xf]
          %v5665 = vld [vmem:[#allocation12 + $0x324] sm:$0xf]
          %v5666 = vld [vmem:[#allocation12 + $0x328] sm:$0xf]
          %v5667 = vld [vmem:[#allocation12 + $0x32c] sm:$0xf]
          %v5668 = vld [vmem:[#allocation12 + $0x330] sm:$0xf]
          %v5669 = vld [vmem:[#allocation12 + $0x334] sm:$0xf]
          %v5670 = vld [vmem:[#allocation12 + $0x338] sm:$0xf]
          %v5671 = vld [vmem:[#allocation12 + $0x33c] sm:$0xf]
          %v5672 = vld [vmem:[#allocation12 + $0x340] sm:$0xf]
          %v5673 = vld [vmem:[#allocation12 + $0x344] sm:$0xf]
          %v5674 = vld [vmem:[#allocation12 + $0x348] sm:$0xf]
          %v5675 = vld [vmem:[#allocation12 + $0x34c] sm:$0xf]
          %v5676 = vld [vmem:[#allocation12 + $0x350] sm:$0xf]
          %v5677 = vld [vmem:[#allocation12 + $0x354] sm:$0xf]
          %v5678 = vld [vmem:[#allocation12 + $0x358] sm:$0xf]
          %v5679 = vld [vmem:[#allocation12 + $0x35c] sm:$0xf]
          %v5680 = vld [vmem:[#allocation12 + $0x360] sm:$0xf]
          %v5681 = vld [vmem:[#allocation12 + $0x364] sm:$0xf]
          %v5682 = vld [vmem:[#allocation12 + $0x368] sm:$0xf]
          %v5683 = vld [vmem:[#allocation12 + $0x36c] sm:$0xf]
          %v5684 = vld [vmem:[#allocation12 + $0x370] sm:$0xf]
          %v5685 = vld [vmem:[#allocation12 + $0x374] sm:$0xf]
          %v5686 = vld [vmem:[#allocation12 + $0x378] sm:$0xf]
          %v5687 = vld [vmem:[#allocation12 + $0x37c] sm:$0xf]
          %v5688 = vld [vmem:[#allocation12 + $0x380] sm:$0xf]
          %v5689 = vld [vmem:[#allocation12 + $0x384] sm:$0xf]
          %v5690 = vld [vmem:[#allocation12 + $0x388] sm:$0xf]
          %v5691 = vld [vmem:[#allocation12 + $0x38c] sm:$0xf]
          %v5692 = vld [vmem:[#allocation12 + $0x390] sm:$0xf]
          %v5693 = vld [vmem:[#allocation12 + $0x394] sm:$0xf]
          %v5694 = vld [vmem:[#allocation12 + $0x398] sm:$0xf]
          %v5695 = vld [vmem:[#allocation12 + $0x39c] sm:$0xf]
          %v5696 = vld [vmem:[#allocation12 + $0x3a0] sm:$0xf]
          %v5697 = vld [vmem:[#allocation12 + $0x3a4] sm:$0xf]
          %v5698 = vld [vmem:[#allocation12 + $0x3a8] sm:$0xf]
          %v5699 = vld [vmem:[#allocation12 + $0x3ac] sm:$0xf]
          %v5700 = vld [vmem:[#allocation12 + $0x3b0] sm:$0xf]
          %v5701 = vld [vmem:[#allocation12 + $0x3b4] sm:$0xf]
          %v5702 = vld [vmem:[#allocation12 + $0x3b8] sm:$0xf]
          %v5703 = vld [vmem:[#allocation12 + $0x3bc] sm:$0xf]
          %v5704 = vld [vmem:[#allocation12 + $0x3c0] sm:$0xf]
          %v5705 = vld [vmem:[#allocation12 + $0x3c4] sm:$0xf]
          %v5706 = vld [vmem:[#allocation12 + $0x3c8] sm:$0xf]
          %v5707 = vld [vmem:[#allocation12 + $0x3cc] sm:$0xf]
          %v5708 = vld [vmem:[#allocation12 + $0x3d0] sm:$0xf]
          %v5709 = vld [vmem:[#allocation12 + $0x3d4] sm:$0xf]
          %v5710 = vld [vmem:[#allocation12 + $0x3d8] sm:$0xf]
          %v5711 = vld [vmem:[#allocation12 + $0x3dc] sm:$0xf]
          %v5712 = vld [vmem:[#allocation12 + $0x3e0] sm:$0xf]
          %v5713 = vld [vmem:[#allocation12 + $0x3e4] sm:$0xf]
          %v5714 = vld [vmem:[#allocation12 + $0x3e8] sm:$0xf]
          %v5715 = vld [vmem:[#allocation12 + $0x3ec] sm:$0xf]
          %v5716 = vld [vmem:[#allocation12 + $0x3f0] sm:$0xf]
          %v5717 = vld [vmem:[#allocation12 + $0x3f4] sm:$0xf]
          %v5718 = vld [vmem:[#allocation12 + $0x3f8] sm:$0xf]
          %v5719 = vld [vmem:[#allocation12 + $0x3fc] sm:$0xf]
          %v5720 = vld [vmem:[#allocation12 + $0x400] sm:$0xf]
          %v5721 = vld [vmem:[#allocation12 + $0x404] sm:$0xf]
          %v5722 = vld [vmem:[#allocation12 + $0x408] sm:$0xf]
          %v5723 = vld [vmem:[#allocation12 + $0x40c] sm:$0xf]
          %v5724 = vld [vmem:[#allocation12 + $0x410] sm:$0xf]
          %v5725 = vld [vmem:[#allocation12 + $0x414] sm:$0xf]
          %v5726 = vld [vmem:[#allocation12 + $0x418] sm:$0xf]
          %v5727 = vld [vmem:[#allocation12 + $0x41c] sm:$0xf]
          %v5728 = vld [vmem:[#allocation12 + $0x420] sm:$0xf]
          %v5729 = vld [vmem:[#allocation12 + $0x424] sm:$0xf]
          %v5730 = vld [vmem:[#allocation12 + $0x428] sm:$0xf]
          %v5731 = vld [vmem:[#allocation12 + $0x42c] sm:$0xf]
          %v5732 = vld [vmem:[#allocation12 + $0x430] sm:$0xf]
          %v5733 = vld [vmem:[#allocation12 + $0x434] sm:$0xf]
          %v5734 = vld [vmem:[#allocation12 + $0x438] sm:$0xf]
          %v5735 = vld [vmem:[#allocation12 + $0x43c] sm:$0xf]
          %v5736 = vld [vmem:[#allocation12 + $0x440] sm:$0xf]
          %v5737 = vld [vmem:[#allocation12 + $0x444] sm:$0xf]
          %v5738 = vld [vmem:[#allocation12 + $0x448] sm:$0xf]
          %v5739 = vld [vmem:[#allocation12 + $0x44c] sm:$0xf]
          %v5740 = vld [vmem:[#allocation12 + $0x450] sm:$0xf]
          %v5741 = vld [vmem:[#allocation12 + $0x454] sm:$0xf]
          %v5742 = vld [vmem:[#allocation12 + $0x458] sm:$0xf]
          %v5743 = vld [vmem:[#allocation12 + $0x45c] sm:$0xf]
          %v5744 = vld [vmem:[#allocation12 + $0x460] sm:$0xf]
          %v5745 = vld [vmem:[#allocation12 + $0x464] sm:$0xf]
          %v5746 = vld [vmem:[#allocation12 + $0x468] sm:$0xf]
          %v5747 = vld [vmem:[#allocation12 + $0x46c] sm:$0xf]
          %v5748 = vld [vmem:[#allocation12 + $0x470] sm:$0xf]
          %v5749 = vld [vmem:[#allocation12 + $0x474] sm:$0xf]
          %v5750 = vld [vmem:[#allocation12 + $0x478] sm:$0xf]
          %v5751 = vld [vmem:[#allocation12 + $0x47c] sm:$0xf]
          %v5752 = vld [vmem:[#allocation13] sm:$0x1]
          %v5754 = vperm.slane %v5752, 0
          %v6044 = vunpack.c.l.b16 %v5464
          %v6045 = vunpack.c.l.b16 %v5465
          %v6046 = vunpack.c.l.b16 %v5466
          %v6047 = vunpack.c.l.b16 %v5467
          %v6048 = vunpack.c.l.b16 %v5468
          %v6049 = vunpack.c.l.b16 %v5469
          %v6050 = vunpack.c.l.b16 %v5470
          %v6051 = vunpack.c.l.b16 %v5471
          %v6052 = vunpack.c.l.b16 %v5472
          %v6053 = vunpack.c.l.b16 %v5473
          %v6054 = vunpack.c.l.b16 %v5474
          %v6055 = vunpack.c.l.b16 %v5475
          %v6056 = vunpack.c.l.b16 %v5476
          %v6057 = vunpack.c.l.b16 %v5477
          %v6058 = vunpack.c.l.b16 %v5478
          %v6059 = vunpack.c.l.b16 %v5479
          %v6060 = vunpack.c.l.b16 %v5480
          %v6061 = vunpack.c.l.b16 %v5481
          %v6062 = vunpack.c.l.b16 %v5482
          %v6063 = vunpack.c.l.b16 %v5483
          %v6064 = vunpack.c.l.b16 %v5484
          %v6065 = vunpack.c.l.b16 %v5485
          %v6066 = vunpack.c.l.b16 %v5486
          %v6067 = vunpack.c.l.b16 %v5487
          %v6068 = vunpack.c.l.b16 %v5488
          %v6069 = vunpack.c.l.b16 %v5489
          %v6070 = vunpack.c.l.b16 %v5490
          %v6071 = vunpack.c.l.b16 %v5491
          %v6072 = vunpack.c.l.b16 %v5492
          %v6073 = vunpack.c.l.b16 %v5493
          %v6074 = vunpack.c.l.b16 %v5494
          %v6075 = vunpack.c.l.b16 %v5495
          %v6076 = vunpack.c.l.b16 %v5496
          %v6077 = vunpack.c.l.b16 %v5497
          %v6078 = vunpack.c.l.b16 %v5498
          %v6079 = vunpack.c.l.b16 %v5499
          %v6080 = vunpack.c.l.b16 %v5500
          %v6081 = vunpack.c.l.b16 %v5501
          %v6082 = vunpack.c.l.b16 %v5502
          %v6083 = vunpack.c.l.b16 %v5503
          %v6084 = vunpack.c.l.b16 %v5504
          %v6085 = vunpack.c.l.b16 %v5505
          %v6086 = vunpack.c.l.b16 %v5506
          %v6087 = vunpack.c.l.b16 %v5507
          %v6088 = vunpack.c.l.b16 %v5508
          %v6089 = vunpack.c.l.b16 %v5509
          %v6090 = vunpack.c.l.b16 %v5510
          %v6091 = vunpack.c.l.b16 %v5511
          %v6092 = vunpack.c.l.b16 %v5512
          %v6093 = vunpack.c.l.b16 %v5513
          %v6094 = vunpack.c.l.b16 %v5514
          %v6095 = vunpack.c.l.b16 %v5515
          %v6096 = vunpack.c.l.b16 %v5516
          %v6097 = vunpack.c.l.b16 %v5517
          %v6098 = vunpack.c.l.b16 %v5518
          %v6099 = vunpack.c.l.b16 %v5519
          %v6100 = vunpack.c.l.b16 %v5520
          %v6101 = vunpack.c.l.b16 %v5521
          %v6102 = vunpack.c.l.b16 %v5522
          %v6103 = vunpack.c.l.b16 %v5523
          %v6104 = vunpack.c.l.b16 %v5524
          %v6105 = vunpack.c.l.b16 %v5525
          %v6106 = vunpack.c.l.b16 %v5526
          %v6107 = vunpack.c.l.b16 %v5527
          %v6108 = vunpack.c.l.b16 %v5528
          %v6109 = vunpack.c.l.b16 %v5529
          %v6110 = vunpack.c.l.b16 %v5530
          %v6111 = vunpack.c.l.b16 %v5531
          %v6112 = vunpack.c.l.b16 %v5532
          %v6113 = vunpack.c.l.b16 %v5533
          %v6114 = vunpack.c.l.b16 %v5534
          %v6115 = vunpack.c.l.b16 %v5535
          %v6116 = vunpack.c.l.b16 %v5536
          %v6117 = vunpack.c.l.b16 %v5537
          %v6118 = vunpack.c.l.b16 %v5538
          %v6119 = vunpack.c.l.b16 %v5539
          %v6120 = vunpack.c.l.b16 %v5540
          %v6121 = vunpack.c.l.b16 %v5541
          %v6122 = vunpack.c.l.b16 %v5542
          %v6123 = vunpack.c.l.b16 %v5543
          %v6124 = vunpack.c.l.b16 %v5544
          %v6125 = vunpack.c.l.b16 %v5545
          %v6126 = vunpack.c.l.b16 %v5546
          %v6127 = vunpack.c.l.b16 %v5547
          %v6128 = vunpack.c.l.b16 %v5548
          %v6129 = vunpack.c.l.b16 %v5549
          %v6130 = vunpack.c.l.b16 %v5550
          %v6131 = vunpack.c.l.b16 %v5551
          %v6132 = vunpack.c.l.b16 %v5552
          %v6133 = vunpack.c.l.b16 %v5553
          %v6134 = vunpack.c.l.b16 %v5554
          %v6135 = vunpack.c.l.b16 %v5555
          %v6136 = vunpack.c.l.b16 %v5556
          %v6137 = vunpack.c.l.b16 %v5557
          %v6138 = vunpack.c.l.b16 %v5558
          %v6139 = vunpack.c.l.b16 %v5559
          %v6140 = vunpack.c.l.b16 %v5560
          %v6141 = vunpack.c.l.b16 %v5561
          %v6142 = vunpack.c.l.b16 %v5562
          %v6143 = vunpack.c.l.b16 %v5563
          %v6144 = vunpack.c.l.b16 %v5564
          %v6145 = vunpack.c.l.b16 %v5565
          %v6146 = vunpack.c.l.b16 %v5566
          %v6147 = vunpack.c.l.b16 %v5567
          %v6148 = vunpack.c.l.b16 %v5568
          %v6149 = vunpack.c.l.b16 %v5569
          %v6150 = vunpack.c.l.b16 %v5570
          %v6151 = vunpack.c.l.b16 %v5571
          %v6152 = vunpack.c.l.b16 %v5572
          %v6153 = vunpack.c.l.b16 %v5573
          %v6154 = vunpack.c.l.b16 %v5574
          %v6155 = vunpack.c.l.b16 %v5575
          %v6156 = vunpack.c.l.b16 %v5576
          %v6157 = vunpack.c.l.b16 %v5577
          %v6158 = vunpack.c.l.b16 %v5578
          %v6159 = vunpack.c.l.b16 %v5579
          %v6160 = vunpack.c.l.b16 %v5580
          %v6161 = vunpack.c.l.b16 %v5581
          %v6162 = vunpack.c.l.b16 %v5582
          %v6163 = vunpack.c.l.b16 %v5583
          %v6164 = vunpack.c.l.b16 %v5584
          %v6165 = vunpack.c.l.b16 %v5585
          %v6166 = vunpack.c.l.b16 %v5586
          %v6167 = vunpack.c.l.b16 %v5587
          %v6168 = vunpack.c.l.b16 %v5588
          %v6169 = vunpack.c.l.b16 %v5589
          %v6170 = vunpack.c.l.b16 %v5590
          %v6171 = vunpack.c.l.b16 %v5591
          %v6172 = vunpack.c.l.b16 %v5592
          %v6173 = vunpack.c.l.b16 %v5593
          %v6174 = vunpack.c.l.b16 %v5594
          %v6175 = vunpack.c.l.b16 %v5595
          %v6176 = vunpack.c.l.b16 %v5596
          %v6177 = vunpack.c.l.b16 %v5597
          %v6178 = vunpack.c.l.b16 %v5598
          %v6179 = vunpack.c.l.b16 %v5599
          %v6180 = vunpack.c.l.b16 %v5600
          %v6181 = vunpack.c.l.b16 %v5601
          %v6182 = vunpack.c.l.b16 %v5602
          %v6183 = vunpack.c.l.b16 %v5603
          %v6184 = vunpack.c.l.b16 %v5604
          %v6185 = vunpack.c.l.b16 %v5605
          %v6186 = vunpack.c.l.b16 %v5606
          %v6187 = vunpack.c.l.b16 %v5607
          %v6188 = vunpack.c.l.b16 %v5608
          %v6189 = vunpack.c.l.b16 %v5609
          %v6190 = vunpack.c.l.b16 %v5610
          %v6191 = vunpack.c.l.b16 %v5611
          %v6192 = vunpack.c.l.b16 %v5612
          %v6193 = vunpack.c.l.b16 %v5613
          %v6194 = vunpack.c.l.b16 %v5614
          %v6195 = vunpack.c.l.b16 %v5615
          %v6196 = vunpack.c.l.b16 %v5616
          %v6197 = vunpack.c.l.b16 %v5617
          %v6198 = vunpack.c.l.b16 %v5618
          %v6199 = vunpack.c.l.b16 %v5619
          %v6200 = vunpack.c.l.b16 %v5620
          %v6201 = vunpack.c.l.b16 %v5621
          %v6202 = vunpack.c.l.b16 %v5622
          %v6203 = vunpack.c.l.b16 %v5623
          %v6204 = vunpack.c.l.b16 %v5624
          %v6205 = vunpack.c.l.b16 %v5625
          %v6206 = vunpack.c.l.b16 %v5626
          %v6207 = vunpack.c.l.b16 %v5627
          %v6208 = vunpack.c.l.b16 %v5628
          %v6209 = vunpack.c.l.b16 %v5629
          %v6210 = vunpack.c.l.b16 %v5630
          %v6211 = vunpack.c.l.b16 %v5631
          %v6212 = vunpack.c.l.b16 %v5632
          %v6213 = vunpack.c.l.b16 %v5633
          %v6214 = vunpack.c.l.b16 %v5634
          %v6215 = vunpack.c.l.b16 %v5635
          %v6216 = vunpack.c.l.b16 %v5636
          %v6217 = vunpack.c.l.b16 %v5637
          %v6218 = vunpack.c.l.b16 %v5638
          %v6219 = vunpack.c.l.b16 %v5639
          %v6220 = vunpack.c.l.b16 %v5640
          %v6221 = vunpack.c.l.b16 %v5641
          %v6222 = vunpack.c.l.b16 %v5642
          %v6223 = vunpack.c.l.b16 %v5643
          %v6224 = vunpack.c.l.b16 %v5644
          %v6225 = vunpack.c.l.b16 %v5645
          %v6226 = vunpack.c.l.b16 %v5646
          %v6227 = vunpack.c.l.b16 %v5647
          %v6228 = vunpack.c.l.b16 %v5648
          %v6229 = vunpack.c.l.b16 %v5649
          %v6230 = vunpack.c.l.b16 %v5650
          %v6231 = vunpack.c.l.b16 %v5651
          %v6232 = vunpack.c.l.b16 %v5652
          %v6233 = vunpack.c.l.b16 %v5653
          %v6234 = vunpack.c.l.b16 %v5654
          %v6235 = vunpack.c.l.b16 %v5655
          %v6236 = vunpack.c.l.b16 %v5656
          %v6237 = vunpack.c.l.b16 %v5657
          %v6238 = vunpack.c.l.b16 %v5658
          %v6239 = vunpack.c.l.b16 %v5659
          %v6240 = vunpack.c.l.b16 %v5660
          %v6241 = vunpack.c.l.b16 %v5661
          %v6242 = vunpack.c.l.b16 %v5662
          %v6243 = vunpack.c.l.b16 %v5663
          %v6244 = vunpack.c.l.b16 %v5664
          %v6245 = vunpack.c.l.b16 %v5665
          %v6246 = vunpack.c.l.b16 %v5666
          %v6247 = vunpack.c.l.b16 %v5667
          %v6248 = vunpack.c.l.b16 %v5668
          %v6249 = vunpack.c.l.b16 %v5669
          %v6250 = vunpack.c.l.b16 %v5670
          %v6251 = vunpack.c.l.b16 %v5671
          %v6252 = vunpack.c.l.b16 %v5672
          %v6253 = vunpack.c.l.b16 %v5673
          %v6254 = vunpack.c.l.b16 %v5674
          %v6255 = vunpack.c.l.b16 %v5675
          %v6256 = vunpack.c.l.b16 %v5676
          %v6257 = vunpack.c.l.b16 %v5677
          %v6258 = vunpack.c.l.b16 %v5678
          %v6259 = vunpack.c.l.b16 %v5679
          %v6260 = vunpack.c.l.b16 %v5680
          %v6261 = vunpack.c.l.b16 %v5681
          %v6262 = vunpack.c.l.b16 %v5682
          %v6263 = vunpack.c.l.b16 %v5683
          %v6264 = vunpack.c.l.b16 %v5684
          %v6265 = vunpack.c.l.b16 %v5685
          %v6266 = vunpack.c.l.b16 %v5686
          %v6267 = vunpack.c.l.b16 %v5687
          %v6268 = vunpack.c.l.b16 %v5688
          %v6269 = vunpack.c.l.b16 %v5689
          %v6270 = vunpack.c.l.b16 %v5690
          %v6271 = vunpack.c.l.b16 %v5691
          %v6272 = vunpack.c.l.b16 %v5692
          %v6273 = vunpack.c.l.b16 %v5693
          %v6274 = vunpack.c.l.b16 %v5694
          %v6275 = vunpack.c.l.b16 %v5695
          %v6276 = vunpack.c.l.b16 %v5696
          %v6277 = vunpack.c.l.b16 %v5697
          %v6278 = vunpack.c.l.b16 %v5698
          %v6279 = vunpack.c.l.b16 %v5699
          %v6280 = vunpack.c.l.b16 %v5700
          %v6281 = vunpack.c.l.b16 %v5701
          %v6282 = vunpack.c.l.b16 %v5702
          %v6283 = vunpack.c.l.b16 %v5703
          %v6284 = vunpack.c.l.b16 %v5704
          %v6285 = vunpack.c.l.b16 %v5705
          %v6286 = vunpack.c.l.b16 %v5706
          %v6287 = vunpack.c.l.b16 %v5707
          %v6288 = vunpack.c.l.b16 %v5708
          %v6289 = vunpack.c.l.b16 %v5709
          %v6290 = vunpack.c.l.b16 %v5710
          %v6291 = vunpack.c.l.b16 %v5711
          %v6292 = vunpack.c.l.b16 %v5712
          %v6293 = vunpack.c.l.b16 %v5713
          %v6294 = vunpack.c.l.b16 %v5714
          %v6295 = vunpack.c.l.b16 %v5715
          %v6296 = vunpack.c.l.b16 %v5716
          %v6297 = vunpack.c.l.b16 %v5717
          %v6298 = vunpack.c.l.b16 %v5718
          %v6299 = vunpack.c.l.b16 %v5719
          %v6300 = vunpack.c.l.b16 %v5720
          %v6301 = vunpack.c.l.b16 %v5721
          %v6302 = vunpack.c.l.b16 %v5722
          %v6303 = vunpack.c.l.b16 %v5723
          %v6304 = vunpack.c.l.b16 %v5724
          %v6305 = vunpack.c.l.b16 %v5725
          %v6306 = vunpack.c.l.b16 %v5726
          %v6307 = vunpack.c.l.b16 %v5727
          %v6308 = vunpack.c.l.b16 %v5728
          %v6309 = vunpack.c.l.b16 %v5729
          %v6310 = vunpack.c.l.b16 %v5730
          %v6311 = vunpack.c.l.b16 %v5731
          %v6312 = vunpack.c.l.b16 %v5732
          %v6313 = vunpack.c.l.b16 %v5733
          %v6314 = vunpack.c.l.b16 %v5734
          %v6315 = vunpack.c.l.b16 %v5735
          %v6316 = vunpack.c.l.b16 %v5736
          %v6317 = vunpack.c.l.b16 %v5737
          %v6318 = vunpack.c.l.b16 %v5738
          %v6319 = vunpack.c.l.b16 %v5739
          %v6320 = vunpack.c.l.b16 %v5740
          %v6321 = vunpack.c.l.b16 %v5741
          %v6322 = vunpack.c.l.b16 %v5742
          %v6323 = vunpack.c.l.b16 %v5743
          %v6324 = vunpack.c.l.b16 %v5744
          %v6325 = vunpack.c.l.b16 %v5745
          %v6326 = vunpack.c.l.b16 %v5746
          %v6327 = vunpack.c.l.b16 %v5747
          %v6328 = vunpack.c.l.b16 %v5748
          %v6329 = vunpack.c.l.b16 %v5749
          %v6330 = vunpack.c.l.b16 %v5750
          %v6331 = vunpack.c.l.b16 %v5751
          %v6332 = vpack.c.b16 %v6045, %v6044
          %v6333 = vpack.c.b16 %v6047, %v6046
          %v6334 = vpack.c.b16 %v6049, %v6048
          %v6335 = vpack.c.b16 %v6051, %v6050
          %v6336 = vpack.c.b16 %v6053, %v6052
          %v6337 = vpack.c.b16 %v6055, %v6054
          %v6338 = vpack.c.b16 %v6057, %v6056
          %v6339 = vpack.c.b16 %v6059, %v6058
          %v6340 = vpack.c.b16 %v6061, %v6060
          %v6341 = vpack.c.b16 %v6063, %v6062
          %v6342 = vpack.c.b16 %v6065, %v6064
          %v6343 = vpack.c.b16 %v6067, %v6066
          %v6344 = vpack.c.b16 %v6069, %v6068
          %v6345 = vpack.c.b16 %v6071, %v6070
          %v6346 = vpack.c.b16 %v6073, %v6072
          %v6347 = vpack.c.b16 %v6075, %v6074
          %v6348 = vpack.c.b16 %v6077, %v6076
          %v6349 = vpack.c.b16 %v6079, %v6078
          %v6350 = vpack.c.b16 %v6081, %v6080
          %v6351 = vpack.c.b16 %v6083, %v6082
          %v6352 = vpack.c.b16 %v6085, %v6084
          %v6353 = vpack.c.b16 %v6087, %v6086
          %v6354 = vpack.c.b16 %v6089, %v6088
          %v6355 = vpack.c.b16 %v6091, %v6090
          %v6356 = vpack.c.b16 %v6093, %v6092
          %v6357 = vpack.c.b16 %v6095, %v6094
          %v6358 = vpack.c.b16 %v6097, %v6096
          %v6359 = vpack.c.b16 %v6099, %v6098
          %v6360 = vpack.c.b16 %v6101, %v6100
          %v6361 = vpack.c.b16 %v6103, %v6102
          %v6362 = vpack.c.b16 %v6105, %v6104
          %v6363 = vpack.c.b16 %v6107, %v6106
          %v6364 = vpack.c.b16 %v6109, %v6108
          %v6365 = vpack.c.b16 %v6111, %v6110
          %v6366 = vpack.c.b16 %v6113, %v6112
          %v6367 = vpack.c.b16 %v6115, %v6114
          %v6368 = vpack.c.b16 %v6117, %v6116
          %v6369 = vpack.c.b16 %v6119, %v6118
          %v6370 = vpack.c.b16 %v6121, %v6120
          %v6371 = vpack.c.b16 %v6123, %v6122
          %v6372 = vpack.c.b16 %v6125, %v6124
          %v6373 = vpack.c.b16 %v6127, %v6126
          %v6374 = vpack.c.b16 %v6129, %v6128
          %v6375 = vpack.c.b16 %v6131, %v6130
          %v6376 = vpack.c.b16 %v6133, %v6132
          %v6377 = vpack.c.b16 %v6135, %v6134
          %v6378 = vpack.c.b16 %v6137, %v6136
          %v6379 = vpack.c.b16 %v6139, %v6138
          %v6380 = vpack.c.b16 %v6141, %v6140
          %v6381 = vpack.c.b16 %v6143, %v6142
          %v6382 = vpack.c.b16 %v6145, %v6144
          %v6383 = vpack.c.b16 %v6147, %v6146
          %v6384 = vpack.c.b16 %v6149, %v6148
          %v6385 = vpack.c.b16 %v6151, %v6150
          %v6386 = vpack.c.b16 %v6153, %v6152
          %v6387 = vpack.c.b16 %v6155, %v6154
          %v6388 = vpack.c.b16 %v6157, %v6156
          %v6389 = vpack.c.b16 %v6159, %v6158
          %v6390 = vpack.c.b16 %v6161, %v6160
          %v6391 = vpack.c.b16 %v6163, %v6162
          %v6392 = vpack.c.b16 %v6165, %v6164
          %v6393 = vpack.c.b16 %v6167, %v6166
          %v6394 = vpack.c.b16 %v6169, %v6168
          %v6395 = vpack.c.b16 %v6171, %v6170
          %v6396 = vpack.c.b16 %v6173, %v6172
          %v6397 = vpack.c.b16 %v6175, %v6174
          %v6398 = vpack.c.b16 %v6177, %v6176
          %v6399 = vpack.c.b16 %v6179, %v6178
          %v6400 = vpack.c.b16 %v6181, %v6180
          %v6401 = vpack.c.b16 %v6183, %v6182
          %v6402 = vpack.c.b16 %v6185, %v6184
          %v6403 = vpack.c.b16 %v6187, %v6186
          %v6404 = vpack.c.b16 %v6189, %v6188
          %v6405 = vpack.c.b16 %v6191, %v6190
          %v6406 = vpack.c.b16 %v6193, %v6192
          %v6407 = vpack.c.b16 %v6195, %v6194
          %v6408 = vpack.c.b16 %v6197, %v6196
          %v6409 = vpack.c.b16 %v6199, %v6198
          %v6410 = vpack.c.b16 %v6201, %v6200
          %v6411 = vpack.c.b16 %v6203, %v6202
          %v6412 = vpack.c.b16 %v6205, %v6204
          %v6413 = vpack.c.b16 %v6207, %v6206
          %v6414 = vpack.c.b16 %v6209, %v6208
          %v6415 = vpack.c.b16 %v6211, %v6210
          %v6416 = vpack.c.b16 %v6213, %v6212
          %v6417 = vpack.c.b16 %v6215, %v6214
          %v6418 = vpack.c.b16 %v6217, %v6216
          %v6419 = vpack.c.b16 %v6219, %v6218
          %v6420 = vpack.c.b16 %v6221, %v6220
          %v6421 = vpack.c.b16 %v6223, %v6222
          %v6422 = vpack.c.b16 %v6225, %v6224
          %v6423 = vpack.c.b16 %v6227, %v6226
          %v6424 = vpack.c.b16 %v6229, %v6228
          %v6425 = vpack.c.b16 %v6231, %v6230
          %v6426 = vpack.c.b16 %v6233, %v6232
          %v6427 = vpack.c.b16 %v6235, %v6234
          %v6428 = vpack.c.b16 %v6237, %v6236
          %v6429 = vpack.c.b16 %v6239, %v6238
          %v6430 = vpack.c.b16 %v6241, %v6240
          %v6431 = vpack.c.b16 %v6243, %v6242
          %v6432 = vpack.c.b16 %v6245, %v6244
          %v6433 = vpack.c.b16 %v6247, %v6246
          %v6434 = vpack.c.b16 %v6249, %v6248
          %v6435 = vpack.c.b16 %v6251, %v6250
          %v6436 = vpack.c.b16 %v6253, %v6252
          %v6437 = vpack.c.b16 %v6255, %v6254
          %v6438 = vpack.c.b16 %v6257, %v6256
          %v6439 = vpack.c.b16 %v6259, %v6258
          %v6440 = vpack.c.b16 %v6261, %v6260
          %v6441 = vpack.c.b16 %v6263, %v6262
          %v6442 = vpack.c.b16 %v6265, %v6264
          %v6443 = vpack.c.b16 %v6267, %v6266
          %v6444 = vpack.c.b16 %v6269, %v6268
          %v6445 = vpack.c.b16 %v6271, %v6270
          %v6446 = vpack.c.b16 %v6273, %v6272
          %v6447 = vpack.c.b16 %v6275, %v6274
          %v6448 = vpack.c.b16 %v6277, %v6276
          %v6449 = vpack.c.b16 %v6279, %v6278
          %v6450 = vpack.c.b16 %v6281, %v6280
          %v6451 = vpack.c.b16 %v6283, %v6282
          %v6452 = vpack.c.b16 %v6285, %v6284
          %v6453 = vpack.c.b16 %v6287, %v6286
          %v6454 = vpack.c.b16 %v6289, %v6288
          %v6455 = vpack.c.b16 %v6291, %v6290
          %v6456 = vpack.c.b16 %v6293, %v6292
          %v6457 = vpack.c.b16 %v6295, %v6294
          %v6458 = vpack.c.b16 %v6297, %v6296
          %v6459 = vpack.c.b16 %v6299, %v6298
          %v6460 = vpack.c.b16 %v6301, %v6300
          %v6461 = vpack.c.b16 %v6303, %v6302
          %v6462 = vpack.c.b16 %v6305, %v6304
          %v6463 = vpack.c.b16 %v6307, %v6306
          %v6464 = vpack.c.b16 %v6309, %v6308
          %v6465 = vpack.c.b16 %v6311, %v6310
          %v6466 = vpack.c.b16 %v6313, %v6312
          %v6467 = vpack.c.b16 %v6315, %v6314
          %v6468 = vpack.c.b16 %v6317, %v6316
          %v6469 = vpack.c.b16 %v6319, %v6318
          %v6470 = vpack.c.b16 %v6321, %v6320
          %v6471 = vpack.c.b16 %v6323, %v6322
          %v6472 = vpack.c.b16 %v6325, %v6324
          %v6473 = vpack.c.b16 %v6327, %v6326
          %v6474 = vpack.c.b16 %v6329, %v6328
          %v6475 = vpack.c.b16 %v6331, %v6330
          %6620 = vmatpush.bf16.msra.mxu0 %v6339
          %6621 = vmatpush.bf16.msra.mxu0 %v6338
          %6622 = vmatpush.bf16.msra.mxu0 %v6337
          %6623 = vmatpush.bf16.msra.mxu0 %v6336
          %6624 = vmatpush.bf16.msra.mxu0 %v6335
          %6625 = vmatpush.bf16.msra.mxu0 %v6334
          %6626 = vmatpush.bf16.msra.mxu0 %v6333
          %6627 = vmatpush.bf16.msra.mxu0 %v6332
          %6628 = vmatmul.bf16.gmra.mxu0 %v5254
          %v6629 = vpop.f32.mrf.mxu0
          %v6630 = vadd.f32 %v5754, %v6629
          %v6631 = vpop.f32.mrf.mxu0
          %v6632 = vadd.f32 %v5754, %v6631
          %6633 = vmatmul.bf16.gmra.mxu0 %v5256
          %v6634 = vpop.f32.mrf.mxu0
          %v6635 = vadd.f32 %v5754, %v6634
          %v6636 = vpop.f32.mrf.mxu0
          %v6637 = vadd.f32 %v5754, %v6636
          %6638 = vdwg.mxu0
          %6639 = vmatpush.bf16.msra.mxu0 %v6347
          %6640 = vmatpush.bf16.msra.mxu0 %v6346
          %6641 = vmatpush.bf16.msra.mxu0 %v6345
          %6642 = vmatpush.bf16.msra.mxu0 %v6344
          %6643 = vmatpush.bf16.msra.mxu0 %v6343
          %6644 = vmatpush.bf16.msra.mxu0 %v6342
          %6645 = vmatpush.bf16.msra.mxu0 %v6341
          %6646 = vmatpush.bf16.msra.mxu0 %v6340
          %6647 = vmatmul.bf16.gmra.mxu0 %v5255
          %v6648 = vpop.f32.mrf.mxu0
          %v6649 = vadd.f32 %v6630, %v6648
          %v6650 = vpop.f32.mrf.mxu0
          %v6651 = vadd.f32 %v6632, %v6650
          %6652 = vmatmul.bf16.gmra.mxu0 %v5257
          %v6653 = vpop.f32.mrf.mxu0
          %v6654 = vadd.f32 %v6635, %v6653
          %v6655 = vpop.f32.mrf.mxu0
          %v6656 = vadd.f32 %v6637, %v6655
          %6657 = vdwg.mxu0
          %6658 = vmatpush.bf16.msra.mxu0 %v6355
          %6659 = vmatpush.bf16.msra.mxu0 %v6354
          %6660 = vmatpush.bf16.msra.mxu0 %v6353
          %6661 = vmatpush.bf16.msra.mxu0 %v6352
          %6662 = vmatpush.bf16.msra.mxu0 %v6351
          %6663 = vmatpush.bf16.msra.mxu0 %v6350
          %6664 = vmatpush.bf16.msra.mxu0 %v6349
          %6665 = vmatpush.bf16.msra.mxu0 %v6348
          %6666 = vmatmul.bf16.gmra.mxu0 %v5284
          %v6667 = vpop.f32.mrf.mxu0
          %v6668 = vadd.f32 %v6649, %v6667
          %v6669 = vpop.f32.mrf.mxu0
          %v6670 = vadd.f32 %v6651, %v6669
          %6671 = vmatmul.bf16.gmra.mxu0 %v5286
          %v6672 = vpop.f32.mrf.mxu0
          %v6673 = vadd.f32 %v6654, %v6672
          %v6674 = vpop.f32.mrf.mxu0
          %v6675 = vadd.f32 %v6656, %v6674
          %6676 = vdwg.mxu0
          %6677 = vmatpush.bf16.msra.mxu0 %v6363
          %6678 = vmatpush.bf16.msra.mxu0 %v6362
          %6679 = vmatpush.bf16.msra.mxu0 %v6361
          %6680 = vmatpush.bf16.msra.mxu0 %v6360
          %6681 = vmatpush.bf16.msra.mxu0 %v6359
          %6682 = vmatpush.bf16.msra.mxu0 %v6358
          %6683 = vmatpush.bf16.msra.mxu0 %v6357
          %6684 = vmatpush.bf16.msra.mxu0 %v6356
          %6685 = vmatmul.bf16.gmra.mxu0 %v5285
          %v6686 = vpop.f32.mrf.mxu0
          %v6687 = vadd.f32 %v6668, %v6686
          %v6688 = vpop.f32.mrf.mxu0
          %v6689 = vadd.f32 %v6670, %v6688
          %6690 = vmatmul.bf16.gmra.mxu0 %v5287
          %v6691 = vpop.f32.mrf.mxu0
          %v6692 = vadd.f32 %v6673, %v6691
          %v6693 = vpop.f32.mrf.mxu0
          %v6694 = vadd.f32 %v6675, %v6693
          %6695 = vdwg.mxu0
          %6696 = vmatpush.bf16.msra.mxu0 %v6371
          %6697 = vmatpush.bf16.msra.mxu0 %v6370
          %6698 = vmatpush.bf16.msra.mxu0 %v6369
          %6699 = vmatpush.bf16.msra.mxu0 %v6368
          %6700 = vmatpush.bf16.msra.mxu0 %v6367
          %6701 = vmatpush.bf16.msra.mxu0 %v6366
          %6702 = vmatpush.bf16.msra.mxu0 %v6365
          %6703 = vmatpush.bf16.msra.mxu0 %v6364
          %6704 = vmatmul.bf16.gmra.mxu0 %v5314
          %v6705 = vpop.f32.mrf.mxu0
          %v6706 = vadd.f32 %v6687, %v6705
          %v6707 = vpop.f32.mrf.mxu0
          %v6708 = vadd.f32 %v6689, %v6707
          %6709 = vmatmul.bf16.gmra.mxu0 %v5316
          %v6710 = vpop.f32.mrf.mxu0
          %v6711 = vadd.f32 %v6692, %v6710
          %v6712 = vpop.f32.mrf.mxu0
          %v6713 = vadd.f32 %v6694, %v6712
          %6714 = vdwg.mxu0
          %6715 = vmatpush.bf16.msra.mxu0 %v6379
          %6716 = vmatpush.bf16.msra.mxu0 %v6378
          %6717 = vmatpush.bf16.msra.mxu0 %v6377
          %6718 = vmatpush.bf16.msra.mxu0 %v6376
          %6719 = vmatpush.bf16.msra.mxu0 %v6375
          %6720 = vmatpush.bf16.msra.mxu0 %v6374
          %6721 = vmatpush.bf16.msra.mxu0 %v6373
          %6722 = vmatpush.bf16.msra.mxu0 %v6372
          %6723 = vmatmul.bf16.gmra.mxu0 %v5315
          %v6724 = vpop.f32.mrf.mxu0
          %v6725 = vadd.f32 %v6706, %v6724
          %v6726 = vpop.f32.mrf.mxu0
          %v6727 = vadd.f32 %v6708, %v6726
          %6728 = vmatmul.bf16.gmra.mxu0 %v5317
          %v6729 = vpop.f32.mrf.mxu0
          %v6730 = vadd.f32 %v6711, %v6729
          %v6731 = vpop.f32.mrf.mxu0
          %v6732 = vadd.f32 %v6713, %v6731
          %6733 = vdwg.mxu0
          %6734 = vmatpush.bf16.msra.mxu0 %v6387
          %6735 = vmatpush.bf16.msra.mxu0 %v6386
          %6736 = vmatpush.bf16.msra.mxu0 %v6385
          %6737 = vmatpush.bf16.msra.mxu0 %v6384
          %6738 = vmatpush.bf16.msra.mxu0 %v6383
          %6739 = vmatpush.bf16.msra.mxu0 %v6382
          %6740 = vmatpush.bf16.msra.mxu0 %v6381
          %6741 = vmatpush.bf16.msra.mxu0 %v6380
          %6742 = vmatmul.bf16.gmra.mxu0 %v5337
          %v6743 = vpop.f32.mrf.mxu0
          %v6744 = vadd.f32 %v6725, %v6743
          %v6745 = vpop.f32.mrf.mxu0
          %v6746 = vadd.f32 %v6727, %v6745
          %6747 = vmatmul.bf16.gmra.mxu0 %v5339
          %v6748 = vpop.f32.mrf.mxu0
          %v6749 = vadd.f32 %v6730, %v6748
          %v6750 = vpop.f32.mrf.mxu0
          %v6751 = vadd.f32 %v6732, %v6750
          %6752 = vdwg.mxu0
          %6753 = vmatpush.bf16.msra.mxu0 %v6395
          %6754 = vmatpush.bf16.msra.mxu0 %v6394
          %6755 = vmatpush.bf16.msra.mxu0 %v6393
          %6756 = vmatpush.bf16.msra.mxu0 %v6392
          %6757 = vmatpush.bf16.msra.mxu0 %v6391
          %6758 = vmatpush.bf16.msra.mxu0 %v6390
          %6759 = vmatpush.bf16.msra.mxu0 %v6389
          %6760 = vmatpush.bf16.msra.mxu0 %v6388
          %6761 = vmatmul.bf16.gmra.mxu0 %v5338
          %v6762 = vpop.f32.mrf.mxu0
          %v6763 = vadd.f32 %v6744, %v6762
          %v6764 = vpop.f32.mrf.mxu0
          %v6765 = vadd.f32 %v6746, %v6764
          %6766 = vmatmul.bf16.gmra.mxu0 %v5340
          %v6767 = vpop.f32.mrf.mxu0
          %v6768 = vadd.f32 %v6749, %v6767
          %v6769 = vpop.f32.mrf.mxu0
          %v6770 = vadd.f32 %v6751, %v6769
          %6771 = vdwg.mxu0
          %6772 = vmatpush.bf16.msra.mxu0 %v6403
          %6773 = vmatpush.bf16.msra.mxu0 %v6402
          %6774 = vmatpush.bf16.msra.mxu0 %v6401
          %6775 = vmatpush.bf16.msra.mxu0 %v6400
          %6776 = vmatpush.bf16.msra.mxu0 %v6399
          %6777 = vmatpush.bf16.msra.mxu0 %v6398
          %6778 = vmatpush.bf16.msra.mxu0 %v6397
          %6779 = vmatpush.bf16.msra.mxu0 %v6396
          %6780 = vmatmul.bf16.gmra.mxu0 %v5362
          %v6781 = vpop.f32.mrf.mxu0
          %v6782 = vadd.f32 %v6763, %v6781
          %v6783 = vpop.f32.mrf.mxu0
          %v6784 = vadd.f32 %v6765, %v6783
          %6785 = vmatmul.bf16.gmra.mxu0 %v5364
          %v6786 = vpop.f32.mrf.mxu0
          %v6787 = vadd.f32 %v6768, %v6786
          %v6788 = vpop.f32.mrf.mxu0
          %v6789 = vadd.f32 %v6770, %v6788
          %6790 = vdwg.mxu0
          %6791 = vmatpush.bf16.msra.mxu0 %v6411
          %6792 = vmatpush.bf16.msra.mxu0 %v6410
          %6793 = vmatpush.bf16.msra.mxu0 %v6409
          %6794 = vmatpush.bf16.msra.mxu0 %v6408
          %6795 = vmatpush.bf16.msra.mxu0 %v6407
          %6796 = vmatpush.bf16.msra.mxu0 %v6406
          %6797 = vmatpush.bf16.msra.mxu0 %v6405
          %6798 = vmatpush.bf16.msra.mxu0 %v6404
          %6799 = vmatmul.bf16.gmra.mxu0 %v5363
          %v6800 = vpop.f32.mrf.mxu0
          %v6801 = vadd.f32 %v6782, %v6800
          %v6802 = vpop.f32.mrf.mxu0
          %v6803 = vadd.f32 %v6784, %v6802
          %6804 = vmatmul.bf16.gmra.mxu0 %v5365
          %v6805 = vpop.f32.mrf.mxu0
          %v6806 = vadd.f32 %v6787, %v6805
          %v6807 = vpop.f32.mrf.mxu0
          %v6808 = vadd.f32 %v6789, %v6807
          %6809 = vdwg.mxu0
          %6810 = vmatpush.bf16.msra.mxu0 %v6419
          %6811 = vmatpush.bf16.msra.mxu0 %v6418
          %6812 = vmatpush.bf16.msra.mxu0 %v6417
          %6813 = vmatpush.bf16.msra.mxu0 %v6416
          %6814 = vmatpush.bf16.msra.mxu0 %v6415
          %6815 = vmatpush.bf16.msra.mxu0 %v6414
          %6816 = vmatpush.bf16.msra.mxu0 %v6413
          %6817 = vmatpush.bf16.msra.mxu0 %v6412
          %6818 = vmatmul.bf16.gmra.mxu0 %v5387
          %v6819 = vpop.f32.mrf.mxu0
          %v6820 = vadd.f32 %v6801, %v6819
          %v6821 = vpop.f32.mrf.mxu0
          %v6822 = vadd.f32 %v6803, %v6821
          %6823 = vmatmul.bf16.gmra.mxu0 %v5389
          %v6824 = vpop.f32.mrf.mxu0
          %v6825 = vadd.f32 %v6806, %v6824
          %v6826 = vpop.f32.mrf.mxu0
          %v6827 = vadd.f32 %v6808, %v6826
          %6828 = vdwg.mxu0
          %6829 = vmatpush.bf16.msra.mxu0 %v6427
          %6830 = vmatpush.bf16.msra.mxu0 %v6426
          %6831 = vmatpush.bf16.msra.mxu0 %v6425
          %6832 = vmatpush.bf16.msra.mxu0 %v6424
          %6833 = vmatpush.bf16.msra.mxu0 %v6423
          %6834 = vmatpush.bf16.msra.mxu0 %v6422
          %6835 = vmatpush.bf16.msra.mxu0 %v6421
          %6836 = vmatpush.bf16.msra.mxu0 %v6420
          %6837 = vmatmul.bf16.gmra.mxu0 %v5388
          %v6838 = vpop.f32.mrf.mxu0
          %v6839 = vadd.f32 %v6820, %v6838
          %v6840 = vpop.f32.mrf.mxu0
          %v6841 = vadd.f32 %v6822, %v6840
          %6842 = vmatmul.bf16.gmra.mxu0 %v5390
          %v6843 = vpop.f32.mrf.mxu0
          %v6844 = vadd.f32 %v6825, %v6843
          %v6845 = vpop.f32.mrf.mxu0
          %v6846 = vadd.f32 %v6827, %v6845
          %6847 = vdwg.mxu0
          %6848 = vmatpush.bf16.msra.mxu0 %v6435
          %6849 = vmatpush.bf16.msra.mxu0 %v6434
          %6850 = vmatpush.bf16.msra.mxu0 %v6433
          %6851 = vmatpush.bf16.msra.mxu0 %v6432
          %6852 = vmatpush.bf16.msra.mxu0 %v6431
          %6853 = vmatpush.bf16.msra.mxu0 %v6430
          %6854 = vmatpush.bf16.msra.mxu0 %v6429
          %6855 = vmatpush.bf16.msra.mxu0 %v6428
          %6856 = vmatmul.bf16.gmra.mxu0 %v5410
          %v6857 = vpop.f32.mrf.mxu0
          %v6858 = vadd.f32 %v6839, %v6857
          %v6859 = vpop.f32.mrf.mxu0
          %v6860 = vadd.f32 %v6841, %v6859
          %6861 = vmatmul.bf16.gmra.mxu0 %v5412
          %v6862 = vpop.f32.mrf.mxu0
          %v6863 = vadd.f32 %v6844, %v6862
          %v6864 = vpop.f32.mrf.mxu0
          %v6865 = vadd.f32 %v6846, %v6864
          %6866 = vdwg.mxu0
          %6867 = vmatpush.bf16.msra.mxu0 %v6443
          %6868 = vmatpush.bf16.msra.mxu0 %v6442
          %6869 = vmatpush.bf16.msra.mxu0 %v6441
          %6870 = vmatpush.bf16.msra.mxu0 %v6440
          %6871 = vmatpush.bf16.msra.mxu0 %v6439
          %6872 = vmatpush.bf16.msra.mxu0 %v6438
          %6873 = vmatpush.bf16.msra.mxu0 %v6437
          %6874 = vmatpush.bf16.msra.mxu0 %v6436
          %6875 = vmatmul.bf16.gmra.mxu0 %v5411
          %v6876 = vpop.f32.mrf.mxu0
          %v6877 = vadd.f32 %v6858, %v6876
          %v6878 = vpop.f32.mrf.mxu0
          %v6879 = vadd.f32 %v6860, %v6878
          %6880 = vmatmul.bf16.gmra.mxu0 %v5413
          %v6881 = vpop.f32.mrf.mxu0
          %v6882 = vadd.f32 %v6863, %v6881
          %v6883 = vpop.f32.mrf.mxu0
          %v6884 = vadd.f32 %v6865, %v6883
          %6885 = vdwg.mxu0
          %6886 = vmatpush.bf16.msra.mxu0 %v6451
          %6887 = vmatpush.bf16.msra.mxu0 %v6450
          %6888 = vmatpush.bf16.msra.mxu0 %v6449
          %6889 = vmatpush.bf16.msra.mxu0 %v6448
          %6890 = vmatpush.bf16.msra.mxu0 %v6447
          %6891 = vmatpush.bf16.msra.mxu0 %v6446
          %6892 = vmatpush.bf16.msra.mxu0 %v6445
          %6893 = vmatpush.bf16.msra.mxu0 %v6444
          %6894 = vmatmul.bf16.gmra.mxu0 %v5433
          %v6895 = vpop.f32.mrf.mxu0
          %v6896 = vadd.f32 %v6877, %v6895
          %v6897 = vpop.f32.mrf.mxu0
          %v6898 = vadd.f32 %v6879, %v6897
          %6899 = vmatmul.bf16.gmra.mxu0 %v5435
          %v6900 = vpop.f32.mrf.mxu0
          %v6901 = vadd.f32 %v6882, %v6900
          %v6902 = vpop.f32.mrf.mxu0
          %v6903 = vadd.f32 %v6884, %v6902
          %6904 = vdwg.mxu0
          %6905 = vmatpush.bf16.msra.mxu0 %v6459
          %6906 = vmatpush.bf16.msra.mxu0 %v6458
          %6907 = vmatpush.bf16.msra.mxu0 %v6457
          %6908 = vmatpush.bf16.msra.mxu0 %v6456
          %6909 = vmatpush.bf16.msra.mxu0 %v6455
          %6910 = vmatpush.bf16.msra.mxu0 %v6454
          %6911 = vmatpush.bf16.msra.mxu0 %v6453
          %6912 = vmatpush.bf16.msra.mxu0 %v6452
          %6913 = vmatmul.bf16.gmra.mxu0 %v5434
          %v6914 = vpop.f32.mrf.mxu0
          %v6915 = vadd.f32 %v6896, %v6914
          %v6916 = vpop.f32.mrf.mxu0
          %v6917 = vadd.f32 %v6898, %v6916
          %6918 = vmatmul.bf16.gmra.mxu0 %v5436
          %v6919 = vpop.f32.mrf.mxu0
          %v6920 = vadd.f32 %v6901, %v6919
          %v6921 = vpop.f32.mrf.mxu0
          %v6922 = vadd.f32 %v6903, %v6921
          %6923 = vdwg.mxu0
          %6924 = vmatpush.bf16.msra.mxu0 %v6467
          %6925 = vmatpush.bf16.msra.mxu0 %v6466
          %6926 = vmatpush.bf16.msra.mxu0 %v6465
          %6927 = vmatpush.bf16.msra.mxu0 %v6464
          %6928 = vmatpush.bf16.msra.mxu0 %v6463
          %6929 = vmatpush.bf16.msra.mxu0 %v6462
          %6930 = vmatpush.bf16.msra.mxu0 %v6461
          %6931 = vmatpush.bf16.msra.mxu0 %v6460
          %6932 = vmatmul.bf16.gmra.mxu0 %v5456
          %v6933 = vpop.f32.mrf.mxu0
          %v6934 = vadd.f32 %v6915, %v6933
          %v6935 = vpop.f32.mrf.mxu0
          %v6936 = vadd.f32 %v6917, %v6935
          %6937 = vmatmul.bf16.gmra.mxu0 %v5458
          %v6938 = vpop.f32.mrf.mxu0
          %v6939 = vadd.f32 %v6920, %v6938
          %v6940 = vpop.f32.mrf.mxu0
          %v6941 = vadd.f32 %v6922, %v6940
          %6942 = vdwg.mxu0
          %6943 = vmatpush.bf16.msra.mxu0 %v6475
          %6944 = vmatpush.bf16.msra.mxu0 %v6474
          %6945 = vmatpush.bf16.msra.mxu0 %v6473
          %6946 = vmatpush.bf16.msra.mxu0 %v6472
          %6947 = vmatpush.bf16.msra.mxu0 %v6471
          %6948 = vmatpush.bf16.msra.mxu0 %v6470
          %6949 = vmatpush.bf16.msra.mxu0 %v6469
          %6950 = vmatpush.bf16.msra.mxu0 %v6468
          %6951 = vmatmul.bf16.gmra.mxu0 %v5457
          %v6952 = vpop.f32.mrf.mxu0
          %v6953 = vadd.f32 %v6934, %v6952
          %v6954 = vpop.f32.mrf.mxu0
          %v6955 = vadd.f32 %v6936, %v6954
          %6956 = vmatmul.bf16.gmra.mxu0 %v5459
          %v6957 = vpop.f32.mrf.mxu0
          %v6958 = vadd.f32 %v6939, %v6957
          %v6959 = vpop.f32.mrf.mxu0
          %v6960 = vadd.f32 %v6941, %v6959
          %6961 = vdwg.mxu0
          %v6962 = vadd.f32 %v6953, %v6955
          %v6963 = vadd.f32 %v6962, %v6958
          %v6964 = vadd.f32 %v6963, %v6960
          %v6965 = vrot.slane %v6964, 4
          %v6966 = vadd.f32 %v6964, %v6965
          %v6967 = vrot.slane %v6966, 2
          %v6968 = vadd.f32 %v6966, %v6967
          %v6969 = vrot.slane %v6968, 1
          %v6970 = vadd.f32 %v6968, %v6969
          %v6971 = vmul.f32 %v6970, %v4677
          %v6972 = vsub.f32 %v6953, %v6971
          %v6973 = vsub.f32 %v6955, %v6971
          %v6974 = vsub.f32 %v6958, %v6971
          %v6975 = vsub.f32 %v6960, %v6971
          %v6976 = vmul.f32 %v6972, %v6972
          %v6977 = vmul.f32 %v6973, %v6973
          %v6978 = vmul.f32 %v6974, %v6974
          %v6979 = vmul.f32 %v6975, %v6975
          %v6980 = vadd.f32 %v6976, %v6977
          %v6981 = vadd.f32 %v6980, %v6978
          %v6982 = vadd.f32 %v6981, %v6979
          %v6983 = vrot.slane %v6982, 4
          %v6984 = vadd.f32 %v6982, %v6983
          %v6985 = vrot.slane %v6984, 2
          %v6986 = vadd.f32 %v6984, %v6985
          %v6987 = vrot.slane %v6986, 1
          %v6988 = vadd.f32 %v6986, %v6987
          %v6989 = vmul.f32 %v6988, %v4677
          %v6990 = vld [vmem:[#allocation15] sm:$0x1]
          %v6991 = vadd.f32 %v6989, 1e-05
          %v6992 = vrsqrt.pop %v6991
          %v6993 = vmul.f32 %v6992, %v6991
          %v6994 = vmul.f32 %v6993, %v6992
          %v6995 = vmul.f32 0.5, %v6994
          %v6996 = vsub.f32 1.5, %v6995
          %v6997 = vmul.f32 %v6992, %v6996
          %vm6998 = vweird.f32 %v6991
          %vm6999 = vweird.f32 %v6992
          %vm7000 = vmor %vm6998, %vm6999
          %v7001 = vsel %vm7000, %v6992, %v6997
          %v7002 = vmul.f32 %v6990, %v7001
          %v7004 = vperm.slane %v7002, 0
          %v7006 = vmul.f32 %v6972, %v7004
          %v7007 = vmul.f32 %v6973, %v7004
          %v7008 = vmul.f32 %v6974, %v7004
          %v7009 = vmul.f32 %v6975, %v7004
          %v7010 = vld [vmem:[#allocation16] sm:$0x1]
          %v7012 = vperm.slane %v7010, 0
          %v7014 = vadd.f32 %v7006, %v7012
          %v7015 = vadd.f32 %v7007, %v7012
          %v7016 = vadd.f32 %v7008, %v7012
          %v7017 = vadd.f32 %v7009, %v7012
          %v7018 = vmax.f32 %v7014, 0.0
          %v7019 = vmax.f32 %v7015, 0.0
          %v7020 = vmax.f32 %v7016, 0.0
          %v7021 = vmax.f32 %v7017, 0.0
          %v7022 = vpack.c.bf16 %v7018, %v7018
          %v7023 = vpack.c.bf16 %v7019, %v7019
          %v7024 = vpack.c.bf16 %v7020, %v7020
          %v7025 = vpack.c.bf16 %v7021, %v7021
          %v7030 = vunpack.c.l.b16 %v7022
          %v7031 = vunpack.c.l.b16 %v7023
          %v7032 = vunpack.c.l.b16 %v7024
          %v7033 = vunpack.c.l.b16 %v7025
          %v7034 = vpack.c.b16 %v7031, %v7030
          %v7035 = vpack.c.b16 %v7033, %v7032
          %v7036 = vunpack.i.l.s16 %v7034
          %v7037 = vunpack.i.h.s16 %v7034
          %v7038 = vpack.c.b16 %v7037, %v7036
          %v7039 = vunpack.i.l.s16 %v7038
          %v7040 = vunpack.i.h.s16 %v7038
          %v7041 = vpack.c.b16 %v7040, %v7039
          %v7042 = vunpack.i.l.s16 %v7035
          %v7043 = vunpack.i.h.s16 %v7035
          %v7044 = vpack.c.b16 %v7043, %v7042
          %v7045 = vunpack.i.l.s16 %v7044
          %v7046 = vunpack.i.h.s16 %v7044
          %v7047 = vpack.c.b16 %v7046, %v7045
          %v7048 = vld [vmem:[#allocation18] sm:$0xf]
          %v7049 = vld [vmem:[#allocation18 + $0x4] sm:$0xf]
          %v7050 = vld [vmem:[#allocation18 + $0x8] sm:$0xf]
          %v7051 = vld [vmem:[#allocation18 + $0xc] sm:$0xf]
          %v7052 = vld [vmem:[#allocation18 + $0x10] sm:$0xf]
          %v7053 = vld [vmem:[#allocation18 + $0x14] sm:$0xf]
          %v7054 = vld [vmem:[#allocation18 + $0x18] sm:$0xf]
          %v7055 = vld [vmem:[#allocation18 + $0x1c] sm:$0xf]
          %v7056 = vld [vmem:[#allocation18 + $0x20] sm:$0xf]
          %v7057 = vld [vmem:[#allocation18 + $0x24] sm:$0xf]
          %v7058 = vld [vmem:[#allocation18 + $0x28] sm:$0xf]
          %v7059 = vld [vmem:[#allocation18 + $0x2c] sm:$0xf]
          %v7060 = vld [vmem:[#allocation18 + $0x30] sm:$0xf]
          %v7061 = vld [vmem:[#allocation18 + $0x34] sm:$0xf]
          %v7062 = vld [vmem:[#allocation18 + $0x38] sm:$0xf]
          %v7063 = vld [vmem:[#allocation18 + $0x3c] sm:$0xf]
          %v7064 = vld [vmem:[#allocation18 + $0x40] sm:$0xf]
          %v7065 = vld [vmem:[#allocation18 + $0x44] sm:$0xf]
          %v7066 = vld [vmem:[#allocation18 + $0x48] sm:$0xf]
          %v7067 = vld [vmem:[#allocation18 + $0x4c] sm:$0xf]
          %v7068 = vld [vmem:[#allocation18 + $0x50] sm:$0xf]
          %v7069 = vld [vmem:[#allocation18 + $0x54] sm:$0xf]
          %v7070 = vld [vmem:[#allocation18 + $0x58] sm:$0xf]
          %v7071 = vld [vmem:[#allocation18 + $0x5c] sm:$0xf]
          %v7072 = vld [vmem:[#allocation18 + $0x60] sm:$0xf]
          %v7073 = vld [vmem:[#allocation18 + $0x64] sm:$0xf]
          %v7074 = vld [vmem:[#allocation18 + $0x68] sm:$0xf]
          %v7075 = vld [vmem:[#allocation18 + $0x6c] sm:$0xf]
          %v7076 = vld [vmem:[#allocation18 + $0x70] sm:$0xf]
          %v7077 = vld [vmem:[#allocation18 + $0x74] sm:$0xf]
          %v7078 = vld [vmem:[#allocation18 + $0x78] sm:$0xf]
          %v7079 = vld [vmem:[#allocation18 + $0x7c] sm:$0xf]
          %v7080 = vld [vmem:[#allocation18 + $0x80] sm:$0xf]
          %v7081 = vld [vmem:[#allocation18 + $0x84] sm:$0xf]
          %v7082 = vld [vmem:[#allocation18 + $0x88] sm:$0xf]
          %v7083 = vld [vmem:[#allocation18 + $0x8c] sm:$0xf]
          %v7084 = vld [vmem:[#allocation18 + $0x90] sm:$0xf]
          %v7085 = vld [vmem:[#allocation18 + $0x94] sm:$0xf]
          %v7086 = vld [vmem:[#allocation18 + $0x98] sm:$0xf]
          %v7087 = vld [vmem:[#allocation18 + $0x9c] sm:$0xf]
          %v7088 = vld [vmem:[#allocation18 + $0xa0] sm:$0xf]
          %v7089 = vld [vmem:[#allocation18 + $0xa4] sm:$0xf]
          %v7090 = vld [vmem:[#allocation18 + $0xa8] sm:$0xf]
          %v7091 = vld [vmem:[#allocation18 + $0xac] sm:$0xf]
          %v7092 = vld [vmem:[#allocation18 + $0xb0] sm:$0xf]
          %v7093 = vld [vmem:[#allocation18 + $0xb4] sm:$0xf]
          %v7094 = vld [vmem:[#allocation18 + $0xb8] sm:$0xf]
          %v7095 = vld [vmem:[#allocation18 + $0xbc] sm:$0xf]
          %v7096 = vld [vmem:[#allocation18 + $0xc0] sm:$0xf]
          %v7097 = vld [vmem:[#allocation18 + $0xc4] sm:$0xf]
          %v7098 = vld [vmem:[#allocation18 + $0xc8] sm:$0xf]
          %v7099 = vld [vmem:[#allocation18 + $0xcc] sm:$0xf]
          %v7100 = vld [vmem:[#allocation18 + $0xd0] sm:$0xf]
          %v7101 = vld [vmem:[#allocation18 + $0xd4] sm:$0xf]
          %v7102 = vld [vmem:[#allocation18 + $0xd8] sm:$0xf]
          %v7103 = vld [vmem:[#allocation18 + $0xdc] sm:$0xf]
          %v7104 = vld [vmem:[#allocation18 + $0xe0] sm:$0xf]
          %v7105 = vld [vmem:[#allocation18 + $0xe4] sm:$0xf]
          %v7106 = vld [vmem:[#allocation18 + $0xe8] sm:$0xf]
          %v7107 = vld [vmem:[#allocation18 + $0xec] sm:$0xf]
          %v7108 = vld [vmem:[#allocation18 + $0xf0] sm:$0xf]
          %v7109 = vld [vmem:[#allocation18 + $0xf4] sm:$0xf]
          %v7110 = vld [vmem:[#allocation18 + $0xf8] sm:$0xf]
          %v7111 = vld [vmem:[#allocation18 + $0xfc] sm:$0xf]
          %s7112 = sld [smem:[#allocation3]]
          %v7113 = vstv %s7112
          %7115 = vst [vmem:[#allocation1] ss:$4 sm:$0xff] %v7041
          %s7117 = scalar_lea.vmem [#allocation1], 1
          %7118 = vst [vmem:[%s7117] ss:$4 sm:$0xff] %v7047
          %v7119 = vld.sshfl [vmem:[#allocation1] sm:$0xff pattern:$0x73625140]
          %v7120 = vld.sshfl [vmem:[#allocation1 + $0x8] sm:$0xff pattern:$0x73625140]
          %v7121 = vld.sshfl [vmem:[#allocation1 + $0x10] sm:$0xff pattern:$0x73625140]
          %v7122 = vld.sshfl [vmem:[#allocation1 + $0x18] sm:$0xff pattern:$0x73625140]
          %v7191 = vunpack.c.l.b16 %v7048
          %v7192 = vunpack.c.l.b16 %v7049
          %v7193 = vunpack.c.l.b16 %v7050
          %v7194 = vunpack.c.l.b16 %v7051
          %v7195 = vunpack.c.l.b16 %v7052
          %v7196 = vunpack.c.l.b16 %v7053
          %v7197 = vunpack.c.l.b16 %v7054
          %v7198 = vunpack.c.l.b16 %v7055
          %v7199 = vunpack.c.l.b16 %v7056
          %v7200 = vunpack.c.l.b16 %v7057
          %v7201 = vunpack.c.l.b16 %v7058
          %v7202 = vunpack.c.l.b16 %v7059
          %v7203 = vunpack.c.l.b16 %v7060
          %v7204 = vunpack.c.l.b16 %v7061
          %v7205 = vunpack.c.l.b16 %v7062
          %v7206 = vunpack.c.l.b16 %v7063
          %v7207 = vunpack.c.l.b16 %v7064
          %v7208 = vunpack.c.l.b16 %v7065
          %v7209 = vunpack.c.l.b16 %v7066
          %v7210 = vunpack.c.l.b16 %v7067
          %v7211 = vunpack.c.l.b16 %v7068
          %v7212 = vunpack.c.l.b16 %v7069
          %v7213 = vunpack.c.l.b16 %v7070
          %v7214 = vunpack.c.l.b16 %v7071
          %v7215 = vunpack.c.l.b16 %v7072
          %v7216 = vunpack.c.l.b16 %v7073
          %v7217 = vunpack.c.l.b16 %v7074
          %v7218 = vunpack.c.l.b16 %v7075
          %v7219 = vunpack.c.l.b16 %v7076
          %v7220 = vunpack.c.l.b16 %v7077
          %v7221 = vunpack.c.l.b16 %v7078
          %v7222 = vunpack.c.l.b16 %v7079
          %v7223 = vunpack.c.l.b16 %v7080
          %v7224 = vunpack.c.l.b16 %v7081
          %v7225 = vunpack.c.l.b16 %v7082
          %v7226 = vunpack.c.l.b16 %v7083
          %v7227 = vunpack.c.l.b16 %v7084
          %v7228 = vunpack.c.l.b16 %v7085
          %v7229 = vunpack.c.l.b16 %v7086
          %v7230 = vunpack.c.l.b16 %v7087
          %v7231 = vunpack.c.l.b16 %v7088
          %v7232 = vunpack.c.l.b16 %v7089
          %v7233 = vunpack.c.l.b16 %v7090
          %v7234 = vunpack.c.l.b16 %v7091
          %v7235 = vunpack.c.l.b16 %v7092
          %v7236 = vunpack.c.l.b16 %v7093
          %v7237 = vunpack.c.l.b16 %v7094
          %v7238 = vunpack.c.l.b16 %v7095
          %v7239 = vunpack.c.l.b16 %v7096
          %v7240 = vunpack.c.l.b16 %v7097
          %v7241 = vunpack.c.l.b16 %v7098
          %v7242 = vunpack.c.l.b16 %v7099
          %v7243 = vunpack.c.l.b16 %v7100
          %v7244 = vunpack.c.l.b16 %v7101
          %v7245 = vunpack.c.l.b16 %v7102
          %v7246 = vunpack.c.l.b16 %v7103
          %v7247 = vunpack.c.l.b16 %v7104
          %v7248 = vunpack.c.l.b16 %v7105
          %v7249 = vunpack.c.l.b16 %v7106
          %v7250 = vunpack.c.l.b16 %v7107
          %v7251 = vunpack.c.l.b16 %v7108
          %v7252 = vunpack.c.l.b16 %v7109
          %v7253 = vunpack.c.l.b16 %v7110
          %v7254 = vunpack.c.l.b16 %v7111
          %v7255 = vpack.c.b16 %v7192, %v7191
          %v7256 = vpack.c.b16 %v7194, %v7193
          %v7257 = vpack.c.b16 %v7196, %v7195
          %v7258 = vpack.c.b16 %v7198, %v7197
          %v7259 = vpack.c.b16 %v7200, %v7199
          %v7260 = vpack.c.b16 %v7202, %v7201
          %v7261 = vpack.c.b16 %v7204, %v7203
          %v7262 = vpack.c.b16 %v7206, %v7205
          %v7263 = vpack.c.b16 %v7208, %v7207
          %v7264 = vpack.c.b16 %v7210, %v7209
          %v7265 = vpack.c.b16 %v7212, %v7211
          %v7266 = vpack.c.b16 %v7214, %v7213
          %v7267 = vpack.c.b16 %v7216, %v7215
          %v7268 = vpack.c.b16 %v7218, %v7217
          %v7269 = vpack.c.b16 %v7220, %v7219
          %v7270 = vpack.c.b16 %v7222, %v7221
          %v7271 = vpack.c.b16 %v7224, %v7223
          %v7272 = vpack.c.b16 %v7226, %v7225
          %v7273 = vpack.c.b16 %v7228, %v7227
          %v7274 = vpack.c.b16 %v7230, %v7229
          %v7275 = vpack.c.b16 %v7232, %v7231
          %v7276 = vpack.c.b16 %v7234, %v7233
          %v7277 = vpack.c.b16 %v7236, %v7235
          %v7278 = vpack.c.b16 %v7238, %v7237
          %v7279 = vpack.c.b16 %v7240, %v7239
          %v7280 = vpack.c.b16 %v7242, %v7241
          %v7281 = vpack.c.b16 %v7244, %v7243
          %v7282 = vpack.c.b16 %v7246, %v7245
          %v7283 = vpack.c.b16 %v7248, %v7247
          %v7284 = vpack.c.b16 %v7250, %v7249
          %v7285 = vpack.c.b16 %v7252, %v7251
          %v7286 = vpack.c.b16 %v7254, %v7253
          %7319 = vmatpush.bf16.msra.mxu0 %v7262
          %7320 = vmatpush.bf16.msra.mxu0 %v7261
          %7321 = vmatpush.bf16.msra.mxu0 %v7260
          %7322 = vmatpush.bf16.msra.mxu0 %v7259
          %7323 = vmatpush.bf16.msra.mxu0 %v7258
          %7324 = vmatpush.bf16.msra.mxu0 %v7257
          %7325 = vmatpush.bf16.msra.mxu0 %v7256
          %7326 = vmatpush.bf16.msra.mxu0 %v7255
          %7327 = vmatmul.bf16.gmra.mxu0 %v7119
          %v7328 = vpop.f32.mrf.mxu0
          %v7329 = vadd.f32 %v7113, %v7328
          %v7330 = vpop.f32.mrf.mxu0
          %7331 = vdwg.mxu0
          %7332 = vmatpush.bf16.msra.mxu0 %v7270
          %7333 = vmatpush.bf16.msra.mxu0 %v7269
          %7334 = vmatpush.bf16.msra.mxu0 %v7268
          %7335 = vmatpush.bf16.msra.mxu0 %v7267
          %7336 = vmatpush.bf16.msra.mxu0 %v7266
          %7337 = vmatpush.bf16.msra.mxu0 %v7265
          %7338 = vmatpush.bf16.msra.mxu0 %v7264
          %7339 = vmatpush.bf16.msra.mxu0 %v7263
          %7340 = vmatmul.bf16.gmra.mxu0 %v7120
          %v7341 = vpop.f32.mrf.mxu0
          %v7342 = vadd.f32 %v7329, %v7341
          %v7343 = vpop.f32.mrf.mxu0
          %7344 = vdwg.mxu0
          %7345 = vmatpush.bf16.msra.mxu0 %v7278
          %7346 = vmatpush.bf16.msra.mxu0 %v7277
          %7347 = vmatpush.bf16.msra.mxu0 %v7276
          %7348 = vmatpush.bf16.msra.mxu0 %v7275
          %7349 = vmatpush.bf16.msra.mxu0 %v7274
          %7350 = vmatpush.bf16.msra.mxu0 %v7273
          %7351 = vmatpush.bf16.msra.mxu0 %v7272
          %7352 = vmatpush.bf16.msra.mxu0 %v7271
          %7353 = vmatmul.bf16.gmra.mxu0 %v7121
          %v7354 = vpop.f32.mrf.mxu0
          %v7355 = vadd.f32 %v7342, %v7354
          %v7356 = vpop.f32.mrf.mxu0
          %7357 = vdwg.mxu0
          %7358 = vmatpush.bf16.msra.mxu0 %v7286
          %7359 = vmatpush.bf16.msra.mxu0 %v7285
          %7360 = vmatpush.bf16.msra.mxu0 %v7284
          %7361 = vmatpush.bf16.msra.mxu0 %v7283
          %7362 = vmatpush.bf16.msra.mxu0 %v7282
          %7363 = vmatpush.bf16.msra.mxu0 %v7281
          %7364 = vmatpush.bf16.msra.mxu0 %v7280
          %7365 = vmatpush.bf16.msra.mxu0 %v7279
          %7366 = vmatmul.bf16.gmra.mxu0 %v7122
          %v7367 = vpop.f32.mrf.mxu0
          %v7368 = vadd.f32 %v7355, %v7367
          %v7369 = vpop.f32.mrf.mxu0
          %7370 = vdwg.mxu0
          %v7371 = vld [vmem:[%s11] sm:$0xf]
          %v7372 = vld [vmem:[%s11 + $0x4] sm:$0xf]
          %v7373 = vld [vmem:[%s11 + $0x8] sm:$0xf]
          %v7374 = vld [vmem:[%s11 + $0xc] sm:$0xf]
          %v7375 = vld [vmem:[%s11 + $0x10] sm:$0xf]
          %v7376 = vld [vmem:[%s11 + $0x14] sm:$0xf]
          %v7377 = vld [vmem:[%s11 + $0x18] sm:$0xf]
          %v7378 = vld [vmem:[%s11 + $0x1c] sm:$0xf]
          %v7379 = vld [vmem:[%s11 + $0x20] sm:$0xf]
          %v7380 = vld [vmem:[%s11 + $0x24] sm:$0xf]
          %v7381 = vld [vmem:[%s11 + $0x28] sm:$0xf]
          %v7382 = vld [vmem:[%s11 + $0x2c] sm:$0xf]
          %v7383 = vld [vmem:[%s11 + $0x30] sm:$0xf]
          %v7384 = vld [vmem:[%s11 + $0x34] sm:$0xf]
          %v7385 = vld [vmem:[%s11 + $0x38] sm:$0xf]
          %v7386 = vld [vmem:[%s11 + $0x3c] sm:$0xf]
          %v7387 = vld [vmem:[%s11 + $0x40] sm:$0xf]
          %v7388 = vld [vmem:[%s11 + $0x44] sm:$0xf]
          %v7389 = vld [vmem:[%s11 + $0x48] sm:$0xf]
          %v7390 = vld [vmem:[%s11 + $0x4c] sm:$0xf]
          %v7391 = vld [vmem:[%s11 + $0x50] sm:$0xf]
          %v7392 = vld [vmem:[%s11 + $0x54] sm:$0xf]
          %v7393 = vld [vmem:[%s11 + $0x58] sm:$0xf]
          %v7394 = vld [vmem:[%s11 + $0x5c] sm:$0xf]
          %v7395 = vld [vmem:[%s11 + $0x60] sm:$0xf]
          %v7396 = vld [vmem:[%s11 + $0x64] sm:$0xf]
          %v7397 = vld [vmem:[%s11 + $0x68] sm:$0xf]
          %v7398 = vld [vmem:[%s11 + $0x6c] sm:$0xf]
          %v7399 = vld [vmem:[%s11 + $0x70] sm:$0xf]
          %v7400 = vld [vmem:[%s11 + $0x74] sm:$0xf]
          %v7401 = vld [vmem:[%s11 + $0x78] sm:$0xf]
          %v7402 = vld [vmem:[%s11 + $0x7c] sm:$0xf]
          %v7403 = vpack.c.bf16 %v7368, %v7368
          %v7436 = vunpack.c.l.b16 %v7371
          %v7437 = vunpack.c.l.b16 %v7372
          %v7438 = vunpack.c.l.b16 %v7373
          %v7439 = vunpack.c.l.b16 %v7374
          %v7440 = vunpack.c.l.b16 %v7375
          %v7441 = vunpack.c.l.b16 %v7376
          %v7442 = vunpack.c.l.b16 %v7377
          %v7443 = vunpack.c.l.b16 %v7378
          %v7444 = vunpack.c.l.b16 %v7379
          %v7445 = vunpack.c.l.b16 %v7380
          %v7446 = vunpack.c.l.b16 %v7381
          %v7447 = vunpack.c.l.b16 %v7382
          %v7448 = vunpack.c.l.b16 %v7383
          %v7449 = vunpack.c.l.b16 %v7384
          %v7450 = vunpack.c.l.b16 %v7385
          %v7451 = vunpack.c.l.b16 %v7386
          %v7452 = vunpack.c.l.b16 %v7387
          %v7453 = vunpack.c.l.b16 %v7388
          %v7454 = vunpack.c.l.b16 %v7389
          %v7455 = vunpack.c.l.b16 %v7390
          %v7456 = vunpack.c.l.b16 %v7391
          %v7457 = vunpack.c.l.b16 %v7392
          %v7458 = vunpack.c.l.b16 %v7393
          %v7459 = vunpack.c.l.b16 %v7394
          %v7460 = vunpack.c.l.b16 %v7395
          %v7461 = vunpack.c.l.b16 %v7396
          %v7462 = vunpack.c.l.b16 %v7397
          %v7463 = vunpack.c.l.b16 %v7398
          %v7464 = vunpack.c.l.b16 %v7399
          %v7465 = vunpack.c.l.b16 %v7400
          %v7466 = vunpack.c.l.b16 %v7401
          %v7467 = vunpack.c.l.b16 %v7402
          %v7468 = vpack.c.b16 %v7437, %v7436
          %v7469 = vpack.c.b16 %v7439, %v7438
          %v7470 = vpack.c.b16 %v7441, %v7440
          %v7471 = vpack.c.b16 %v7443, %v7442
          %v7472 = vpack.c.b16 %v7445, %v7444
          %v7473 = vpack.c.b16 %v7447, %v7446
          %v7474 = vpack.c.b16 %v7449, %v7448
          %v7475 = vpack.c.b16 %v7451, %v7450
          %v7476 = vpack.c.b16 %v7453, %v7452
          %v7477 = vpack.c.b16 %v7455, %v7454
          %v7478 = vpack.c.b16 %v7457, %v7456
          %v7479 = vpack.c.b16 %v7459, %v7458
          %v7480 = vpack.c.b16 %v7461, %v7460
          %v7481 = vpack.c.b16 %v7463, %v7462
          %v7482 = vpack.c.b16 %v7465, %v7464
          %v7483 = vpack.c.b16 %v7467, %v7466
          %vm7484 = vcmask 64512
          %v7486 = vsel %vm7484, %v7468, 0
          %v7489 = vsel %vm7484, %v7469, 0
          %v7492 = vsel %vm7484, %v7470, 0
          %v7495 = vsel %vm7484, %v7471, 0
          %v7498 = vsel %vm7484, %v7472, 0
          %v7501 = vsel %vm7484, %v7473, 0
          %v7504 = vsel %vm7484, %v7474, 0
          %v7507 = vsel %vm7484, %v7475, 0
          %v7510 = vsel %vm7484, %v7476, 0
          %v7513 = vsel %vm7484, %v7477, 0
          %v7516 = vsel %vm7484, %v7478, 0
          %v7519 = vsel %vm7484, %v7479, 0
          %v7522 = vsel %vm7484, %v7480, 0
          %v7525 = vsel %vm7484, %v7481, 0
          %v7528 = vsel %vm7484, %v7482, 0
          %v7531 = vsel %vm7484, %v7483, 0
          %v7534 = vsel %vm698, %v7403, 0
          %7536 = vmatpush.bf16.msra.mxu0 0
          %7537 = vmatpush.bf16.msra.mxu0 0
          %7538 = vmatpush.bf16.msra.mxu0 0
          %7539 = vmatpush.bf16.msra.mxu0 0
          %7540 = vmatpush.bf16.msra.mxu0 0
          %7541 = vmatpush.bf16.msra.mxu0 0
          %7542 = vmatpush.bf16.msra.mxu0 0
          %7543 = vmatpush.bf16.msra.mxu0 %v7534
          %7544 = vmatmul.bf16.gmra.mxu0 %v7486
          %v7545 = vpop.f32.mrf.mxu0
          %v7546 = vadd.f32 0.0, %v7545
          %v7547 = vpop.f32.mrf.mxu0
          %v7548 = vadd.f32 0.0, %v7547
          %7549 = vmatmul.bf16.gmra.mxu0 %v7489
          %v7550 = vpop.f32.mrf.mxu0
          %v7551 = vadd.f32 0.0, %v7550
          %v7552 = vpop.f32.mrf.mxu0
          %v7553 = vadd.f32 0.0, %v7552
          %7554 = vmatmul.bf16.gmra.mxu0 %v7492
          %v7555 = vpop.f32.mrf.mxu0
          %v7556 = vadd.f32 0.0, %v7555
          %v7557 = vpop.f32.mrf.mxu0
          %v7558 = vadd.f32 0.0, %v7557
          %7559 = vmatmul.bf16.gmra.mxu0 %v7495
          %v7560 = vpop.f32.mrf.mxu0
          %v7561 = vadd.f32 0.0, %v7560
          %v7562 = vpop.f32.mrf.mxu0
          %v7563 = vadd.f32 0.0, %v7562
          %7564 = vmatmul.bf16.gmra.mxu0 %v7498
          %v7565 = vpop.f32.mrf.mxu0
          %v7566 = vadd.f32 0.0, %v7565
          %v7567 = vpop.f32.mrf.mxu0
          %v7568 = vadd.f32 0.0, %v7567
          %7569 = vmatmul.bf16.gmra.mxu0 %v7501
          %v7570 = vpop.f32.mrf.mxu0
          %v7571 = vadd.f32 0.0, %v7570
          %v7572 = vpop.f32.mrf.mxu0
          %v7573 = vadd.f32 0.0, %v7572
          %7574 = vmatmul.bf16.gmra.mxu0 %v7504
          %v7575 = vpop.f32.mrf.mxu0
          %v7576 = vadd.f32 0.0, %v7575
          %v7577 = vpop.f32.mrf.mxu0
          %v7578 = vadd.f32 0.0, %v7577
          %7579 = vmatmul.bf16.gmra.mxu0 %v7507
          %v7580 = vpop.f32.mrf.mxu0
          %v7581 = vadd.f32 0.0, %v7580
          %v7582 = vpop.f32.mrf.mxu0
          %v7583 = vadd.f32 0.0, %v7582
          %7584 = vmatmul.bf16.gmra.mxu0 %v7510
          %v7585 = vpop.f32.mrf.mxu0
          %v7586 = vadd.f32 0.0, %v7585
          %v7587 = vpop.f32.mrf.mxu0
          %v7588 = vadd.f32 0.0, %v7587
          %7589 = vmatmul.bf16.gmra.mxu0 %v7513
          %v7590 = vpop.f32.mrf.mxu0
          %v7591 = vadd.f32 0.0, %v7590
          %v7592 = vpop.f32.mrf.mxu0
          %v7593 = vadd.f32 0.0, %v7592
          %7594 = vmatmul.bf16.gmra.mxu0 %v7516
          %v7595 = vpop.f32.mrf.mxu0
          %v7596 = vadd.f32 0.0, %v7595
          %v7597 = vpop.f32.mrf.mxu0
          %v7598 = vadd.f32 0.0, %v7597
          %7599 = vmatmul.bf16.gmra.mxu0 %v7519
          %v7600 = vpop.f32.mrf.mxu0
          %v7601 = vadd.f32 0.0, %v7600
          %v7602 = vpop.f32.mrf.mxu0
          %v7603 = vadd.f32 0.0, %v7602
          %7604 = vmatmul.bf16.gmra.mxu0 %v7522
          %v7605 = vpop.f32.mrf.mxu0
          %v7606 = vadd.f32 0.0, %v7605
          %v7607 = vpop.f32.mrf.mxu0
          %v7608 = vadd.f32 0.0, %v7607
          %7609 = vmatmul.bf16.gmra.mxu0 %v7525
          %v7610 = vpop.f32.mrf.mxu0
          %v7611 = vadd.f32 0.0, %v7610
          %v7612 = vpop.f32.mrf.mxu0
          %v7613 = vadd.f32 0.0, %v7612
          %7614 = vmatmul.bf16.gmra.mxu0 %v7528
          %v7615 = vpop.f32.mrf.mxu0
          %v7616 = vadd.f32 0.0, %v7615
          %v7617 = vpop.f32.mrf.mxu0
          %v7618 = vadd.f32 0.0, %v7617
          %7619 = vmatmul.bf16.gmra.mxu0 %v7531
          %v7620 = vpop.f32.mrf.mxu0
          %v7621 = vadd.f32 0.0, %v7620
          %v7622 = vpop.f32.mrf.mxu0
          %v7623 = vadd.f32 0.0, %v7622
          %7624 = vdwg.mxu0
          %v7625 = vxor.u32 %v7546, 2147483648
          %v7626 = vxor.u32 %v7548, 2147483648
          %v7627 = vxor.u32 %v7551, 2147483648
          %v7628 = vxor.u32 %v7553, 2147483648
          %v7629 = vxor.u32 %v7556, 2147483648
          %v7630 = vxor.u32 %v7558, 2147483648
          %v7631 = vxor.u32 %v7561, 2147483648
          %v7632 = vxor.u32 %v7563, 2147483648
          %v7633 = vxor.u32 %v7566, 2147483648
          %v7634 = vxor.u32 %v7568, 2147483648
          %v7635 = vxor.u32 %v7571, 2147483648
          %v7636 = vxor.u32 %v7573, 2147483648
          %v7637 = vxor.u32 %v7576, 2147483648
          %v7638 = vxor.u32 %v7578, 2147483648
          %v7639 = vxor.u32 %v7581, 2147483648
          %v7640 = vxor.u32 %v7583, 2147483648
          %v7641 = vxor.u32 %v7586, 2147483648
          %v7642 = vxor.u32 %v7588, 2147483648
          %v7643 = vxor.u32 %v7591, 2147483648
          %v7644 = vxor.u32 %v7593, 2147483648
          %v7645 = vxor.u32 %v7596, 2147483648
          %v7646 = vxor.u32 %v7598, 2147483648
          %v7647 = vxor.u32 %v7601, 2147483648
          %v7648 = vxor.u32 %v7603, 2147483648
          %v7649 = vxor.u32 %v7606, 2147483648
          %v7650 = vxor.u32 %v7608, 2147483648
          %v7651 = vxor.u32 %v7611, 2147483648
          %v7652 = vxor.u32 %v7613, 2147483648
          %v7653 = vxor.u32 %v7616, 2147483648
          %v7654 = vxor.u32 %v7618, 2147483648
          %v7655 = vxor.u32 %v7621, 2147483648
          %v7656 = vxor.u32 %v7623, 2147483648
          %v7657 = vmul.f32 %v7625, 1.442695
          %v7658 = vpow.pop %v7657
          %v7659 = vmul.f32 %v7626, 1.442695
          %v7660 = vpow.pop %v7659
          %v7661 = vmul.f32 %v7627, 1.442695
          %v7662 = vpow.pop %v7661
          %v7663 = vmul.f32 %v7628, 1.442695
          %v7664 = vpow.pop %v7663
          %v7665 = vmul.f32 %v7629, 1.442695
          %v7666 = vpow.pop %v7665
          %v7667 = vmul.f32 %v7630, 1.442695
          %v7668 = vpow.pop %v7667
          %v7669 = vmul.f32 %v7631, 1.442695
          %v7670 = vpow.pop %v7669
          %v7671 = vmul.f32 %v7632, 1.442695
          %v7672 = vpow.pop %v7671
          %v7673 = vmul.f32 %v7633, 1.442695
          %v7674 = vpow.pop %v7673
          %v7675 = vmul.f32 %v7634, 1.442695
          %v7676 = vpow.pop %v7675
          %v7677 = vmul.f32 %v7635, 1.442695
          %v7678 = vpow.pop %v7677
          %v7679 = vmul.f32 %v7636, 1.442695
          %v7680 = vpow.pop %v7679
          %v7681 = vmul.f32 %v7637, 1.442695
          %v7682 = vpow.pop %v7681
          %v7683 = vmul.f32 %v7638, 1.442695
          %v7684 = vpow.pop %v7683
          %v7685 = vmul.f32 %v7639, 1.442695
          %v7686 = vpow.pop %v7685
          %v7687 = vmul.f32 %v7640, 1.442695
          %v7688 = vpow.pop %v7687
          %v7689 = vmul.f32 %v7641, 1.442695
          %v7690 = vpow.pop %v7689
          %v7691 = vmul.f32 %v7642, 1.442695
          %v7692 = vpow.pop %v7691
          %v7693 = vmul.f32 %v7643, 1.442695
          %v7694 = vpow.pop %v7693
          %v7695 = vmul.f32 %v7644, 1.442695
          %v7696 = vpow.pop %v7695
          %v7697 = vmul.f32 %v7645, 1.442695
          %v7698 = vpow.pop %v7697
          %v7699 = vmul.f32 %v7646, 1.442695
          %v7700 = vpow.pop %v7699
          %v7701 = vmul.f32 %v7647, 1.442695
          %v7702 = vpow.pop %v7701
          %v7703 = vmul.f32 %v7648, 1.442695
          %v7704 = vpow.pop %v7703
          %v7705 = vmul.f32 %v7649, 1.442695
          %v7706 = vpow.pop %v7705
          %v7707 = vmul.f32 %v7650, 1.442695
          %v7708 = vpow.pop %v7707
          %v7709 = vmul.f32 %v7651, 1.442695
          %v7710 = vpow.pop %v7709
          %v7711 = vmul.f32 %v7652, 1.442695
          %v7712 = vpow.pop %v7711
          %v7713 = vmul.f32 %v7653, 1.442695
          %v7714 = vpow.pop %v7713
          %v7715 = vmul.f32 %v7654, 1.442695
          %v7716 = vpow.pop %v7715
          %v7717 = vmul.f32 %v7655, 1.442695
          %v7718 = vpow.pop %v7717
          %v7719 = vmul.f32 %v7656, 1.442695
          %v7720 = vpow.pop %v7719
          %v7721 = vadd.f32 %v7658, 1.0
          %v7722 = vadd.f32 %v7660, 1.0
          %v7723 = vadd.f32 %v7662, 1.0
          %v7724 = vadd.f32 %v7664, 1.0
          %v7725 = vadd.f32 %v7666, 1.0
          %v7726 = vadd.f32 %v7668, 1.0
          %v7727 = vadd.f32 %v7670, 1.0
          %v7728 = vadd.f32 %v7672, 1.0
          %v7729 = vadd.f32 %v7674, 1.0
          %v7730 = vadd.f32 %v7676, 1.0
          %v7731 = vadd.f32 %v7678, 1.0
          %v7732 = vadd.f32 %v7680, 1.0
          %v7733 = vadd.f32 %v7682, 1.0
          %v7734 = vadd.f32 %v7684, 1.0
          %v7735 = vadd.f32 %v7686, 1.0
          %v7736 = vadd.f32 %v7688, 1.0
          %v7737 = vadd.f32 %v7690, 1.0
          %v7738 = vadd.f32 %v7692, 1.0
          %v7739 = vadd.f32 %v7694, 1.0
          %v7740 = vadd.f32 %v7696, 1.0
          %v7741 = vadd.f32 %v7698, 1.0
          %v7742 = vadd.f32 %v7700, 1.0
          %v7743 = vadd.f32 %v7702, 1.0
          %v7744 = vadd.f32 %v7704, 1.0
          %v7745 = vadd.f32 %v7706, 1.0
          %v7746 = vadd.f32 %v7708, 1.0
          %v7747 = vadd.f32 %v7710, 1.0
          %v7748 = vadd.f32 %v7712, 1.0
          %v7749 = vadd.f32 %v7714, 1.0
          %v7750 = vadd.f32 %v7716, 1.0
          %v7751 = vadd.f32 %v7718, 1.0
          %v7752 = vadd.f32 %v7720, 1.0
          %v7753 = vrcp.pop %v7721
          %v7754 = vmul.f32 %v7721, %v7753
          %v7755 = vsub.f32 1.0, %v7754
          %v7756 = vmul.f32 %v7753, %v7755
          %v7757 = vadd.f32 %v7753, %v7756
          %vm7758 = vweird.f32 %v7721
          %vm7759 = vweird.f32 %v7753
          %vm7760 = vmor %vm7758, %vm7759
          %v7761 = vsel %vm7760, %v7753, %v7757
          %v7762 = vand.u32 2147483647, %v7721
          %vm7763 = vcmp.eq.f32.partialorder %v7762, 8.507059e+37
          %v7764 = vand.u32 %v7721, 2147483648
          %v7765 = vor.u32 1.1754944e-38, %v7764
          %v7766 = vsel %vm7763, %v7765, %v7761
          %v7767 = vmul.f32 1.0, %v7766
          %v7768 = vrcp.pop %v7722
          %v7769 = vmul.f32 %v7722, %v7768
          %v7770 = vsub.f32 1.0, %v7769
          %v7771 = vmul.f32 %v7768, %v7770
          %v7772 = vadd.f32 %v7768, %v7771
          %vm7773 = vweird.f32 %v7722
          %vm7774 = vweird.f32 %v7768
          %vm7775 = vmor %vm7773, %vm7774
          %v7776 = vsel %vm7775, %v7768, %v7772
          %v7777 = vand.u32 2147483647, %v7722
          %vm7778 = vcmp.eq.f32.partialorder %v7777, 8.507059e+37
          %v7779 = vand.u32 %v7722, 2147483648
          %v7780 = vor.u32 1.1754944e-38, %v7779
          %v7781 = vsel %vm7778, %v7780, %v7776
          %v7782 = vmul.f32 1.0, %v7781
          %v7783 = vrcp.pop %v7723
          %v7784 = vmul.f32 %v7723, %v7783
          %v7785 = vsub.f32 1.0, %v7784
          %v7786 = vmul.f32 %v7783, %v7785
          %v7787 = vadd.f32 %v7783, %v7786
          %vm7788 = vweird.f32 %v7723
          %vm7789 = vweird.f32 %v7783
          %vm7790 = vmor %vm7788, %vm7789
          %v7791 = vsel %vm7790, %v7783, %v7787
          %v7792 = vand.u32 2147483647, %v7723
          %vm7793 = vcmp.eq.f32.partialorder %v7792, 8.507059e+37
          %v7794 = vand.u32 %v7723, 2147483648
          %v7795 = vor.u32 1.1754944e-38, %v7794
          %v7796 = vsel %vm7793, %v7795, %v7791
          %v7797 = vmul.f32 1.0, %v7796
          %v7798 = vrcp.pop %v7724
          %v7799 = vmul.f32 %v7724, %v7798
          %v7800 = vsub.f32 1.0, %v7799
          %v7801 = vmul.f32 %v7798, %v7800
          %v7802 = vadd.f32 %v7798, %v7801
          %vm7803 = vweird.f32 %v7724
          %vm7804 = vweird.f32 %v7798
          %vm7805 = vmor %vm7803, %vm7804
          %v7806 = vsel %vm7805, %v7798, %v7802
          %v7807 = vand.u32 2147483647, %v7724
          %vm7808 = vcmp.eq.f32.partialorder %v7807, 8.507059e+37
          %v7809 = vand.u32 %v7724, 2147483648
          %v7810 = vor.u32 1.1754944e-38, %v7809
          %v7811 = vsel %vm7808, %v7810, %v7806
          %v7812 = vmul.f32 1.0, %v7811
          %v7813 = vrcp.pop %v7725
          %v7814 = vmul.f32 %v7725, %v7813
          %v7815 = vsub.f32 1.0, %v7814
          %v7816 = vmul.f32 %v7813, %v7815
          %v7817 = vadd.f32 %v7813, %v7816
          %vm7818 = vweird.f32 %v7725
          %vm7819 = vweird.f32 %v7813
          %vm7820 = vmor %vm7818, %vm7819
          %v7821 = vsel %vm7820, %v7813, %v7817
          %v7822 = vand.u32 2147483647, %v7725
          %vm7823 = vcmp.eq.f32.partialorder %v7822, 8.507059e+37
          %v7824 = vand.u32 %v7725, 2147483648
          %v7825 = vor.u32 1.1754944e-38, %v7824
          %v7826 = vsel %vm7823, %v7825, %v7821
          %v7827 = vmul.f32 1.0, %v7826
          %v7828 = vrcp.pop %v7726
          %v7829 = vmul.f32 %v7726, %v7828
          %v7830 = vsub.f32 1.0, %v7829
          %v7831 = vmul.f32 %v7828, %v7830
          %v7832 = vadd.f32 %v7828, %v7831
          %vm7833 = vweird.f32 %v7726
          %vm7834 = vweird.f32 %v7828
          %vm7835 = vmor %vm7833, %vm7834
          %v7836 = vsel %vm7835, %v7828, %v7832
          %v7837 = vand.u32 2147483647, %v7726
          %vm7838 = vcmp.eq.f32.partialorder %v7837, 8.507059e+37
          %v7839 = vand.u32 %v7726, 2147483648
          %v7840 = vor.u32 1.1754944e-38, %v7839
          %v7841 = vsel %vm7838, %v7840, %v7836
          %v7842 = vmul.f32 1.0, %v7841
          %v7843 = vrcp.pop %v7727
          %v7844 = vmul.f32 %v7727, %v7843
          %v7845 = vsub.f32 1.0, %v7844
          %v7846 = vmul.f32 %v7843, %v7845
          %v7847 = vadd.f32 %v7843, %v7846
          %vm7848 = vweird.f32 %v7727
          %vm7849 = vweird.f32 %v7843
          %vm7850 = vmor %vm7848, %vm7849
          %v7851 = vsel %vm7850, %v7843, %v7847
          %v7852 = vand.u32 2147483647, %v7727
          %vm7853 = vcmp.eq.f32.partialorder %v7852, 8.507059e+37
          %v7854 = vand.u32 %v7727, 2147483648
          %v7855 = vor.u32 1.1754944e-38, %v7854
          %v7856 = vsel %vm7853, %v7855, %v7851
          %v7857 = vmul.f32 1.0, %v7856
          %v7858 = vrcp.pop %v7728
          %v7859 = vmul.f32 %v7728, %v7858
          %v7860 = vsub.f32 1.0, %v7859
          %v7861 = vmul.f32 %v7858, %v7860
          %v7862 = vadd.f32 %v7858, %v7861
          %vm7863 = vweird.f32 %v7728
          %vm7864 = vweird.f32 %v7858
          %vm7865 = vmor %vm7863, %vm7864
          %v7866 = vsel %vm7865, %v7858, %v7862
          %v7867 = vand.u32 2147483647, %v7728
          %vm7868 = vcmp.eq.f32.partialorder %v7867, 8.507059e+37
          %v7869 = vand.u32 %v7728, 2147483648
          %v7870 = vor.u32 1.1754944e-38, %v7869
          %v7871 = vsel %vm7868, %v7870, %v7866
          %v7872 = vmul.f32 1.0, %v7871
          %v7873 = vrcp.pop %v7729
          %v7874 = vmul.f32 %v7729, %v7873
          %v7875 = vsub.f32 1.0, %v7874
          %v7876 = vmul.f32 %v7873, %v7875
          %v7877 = vadd.f32 %v7873, %v7876
          %vm7878 = vweird.f32 %v7729
          %vm7879 = vweird.f32 %v7873
          %vm7880 = vmor %vm7878, %vm7879
          %v7881 = vsel %vm7880, %v7873, %v7877
          %v7882 = vand.u32 2147483647, %v7729
          %vm7883 = vcmp.eq.f32.partialorder %v7882, 8.507059e+37
          %v7884 = vand.u32 %v7729, 2147483648
          %v7885 = vor.u32 1.1754944e-38, %v7884
          %v7886 = vsel %vm7883, %v7885, %v7881
          %v7887 = vmul.f32 1.0, %v7886
          %v7888 = vrcp.pop %v7730
          %v7889 = vmul.f32 %v7730, %v7888
          %v7890 = vsub.f32 1.0, %v7889
          %v7891 = vmul.f32 %v7888, %v7890
          %v7892 = vadd.f32 %v7888, %v7891
          %vm7893 = vweird.f32 %v7730
          %vm7894 = vweird.f32 %v7888
          %vm7895 = vmor %vm7893, %vm7894
          %v7896 = vsel %vm7895, %v7888, %v7892
          %v7897 = vand.u32 2147483647, %v7730
          %vm7898 = vcmp.eq.f32.partialorder %v7897, 8.507059e+37
          %v7899 = vand.u32 %v7730, 2147483648
          %v7900 = vor.u32 1.1754944e-38, %v7899
          %v7901 = vsel %vm7898, %v7900, %v7896
          %v7902 = vmul.f32 1.0, %v7901
          %v7903 = vrcp.pop %v7731
          %v7904 = vmul.f32 %v7731, %v7903
          %v7905 = vsub.f32 1.0, %v7904
          %v7906 = vmul.f32 %v7903, %v7905
          %v7907 = vadd.f32 %v7903, %v7906
          %vm7908 = vweird.f32 %v7731
          %vm7909 = vweird.f32 %v7903
          %vm7910 = vmor %vm7908, %vm7909
          %v7911 = vsel %vm7910, %v7903, %v7907
          %v7912 = vand.u32 2147483647, %v7731
          %vm7913 = vcmp.eq.f32.partialorder %v7912, 8.507059e+37
          %v7914 = vand.u32 %v7731, 2147483648
          %v7915 = vor.u32 1.1754944e-38, %v7914
          %v7916 = vsel %vm7913, %v7915, %v7911
          %v7917 = vmul.f32 1.0, %v7916
          %v7918 = vrcp.pop %v7732
          %v7919 = vmul.f32 %v7732, %v7918
          %v7920 = vsub.f32 1.0, %v7919
          %v7921 = vmul.f32 %v7918, %v7920
          %v7922 = vadd.f32 %v7918, %v7921
          %vm7923 = vweird.f32 %v7732
          %vm7924 = vweird.f32 %v7918
          %vm7925 = vmor %vm7923, %vm7924
          %v7926 = vsel %vm7925, %v7918, %v7922
          %v7927 = vand.u32 2147483647, %v7732
          %vm7928 = vcmp.eq.f32.partialorder %v7927, 8.507059e+37
          %v7929 = vand.u32 %v7732, 2147483648
          %v7930 = vor.u32 1.1754944e-38, %v7929
          %v7931 = vsel %vm7928, %v7930, %v7926
          %v7932 = vmul.f32 1.0, %v7931
          %v7933 = vrcp.pop %v7733
          %v7934 = vmul.f32 %v7733, %v7933
          %v7935 = vsub.f32 1.0, %v7934
          %v7936 = vmul.f32 %v7933, %v7935
          %v7937 = vadd.f32 %v7933, %v7936
          %vm7938 = vweird.f32 %v7733
          %vm7939 = vweird.f32 %v7933
          %vm7940 = vmor %vm7938, %vm7939
          %v7941 = vsel %vm7940, %v7933, %v7937
          %v7942 = vand.u32 2147483647, %v7733
          %vm7943 = vcmp.eq.f32.partialorder %v7942, 8.507059e+37
          %v7944 = vand.u32 %v7733, 2147483648
          %v7945 = vor.u32 1.1754944e-38, %v7944
          %v7946 = vsel %vm7943, %v7945, %v7941
          %v7947 = vmul.f32 1.0, %v7946
          %v7948 = vrcp.pop %v7734
          %v7949 = vmul.f32 %v7734, %v7948
          %v7950 = vsub.f32 1.0, %v7949
          %v7951 = vmul.f32 %v7948, %v7950
          %v7952 = vadd.f32 %v7948, %v7951
          %vm7953 = vweird.f32 %v7734
          %vm7954 = vweird.f32 %v7948
          %vm7955 = vmor %vm7953, %vm7954
          %v7956 = vsel %vm7955, %v7948, %v7952
          %v7957 = vand.u32 2147483647, %v7734
          %vm7958 = vcmp.eq.f32.partialorder %v7957, 8.507059e+37
          %v7959 = vand.u32 %v7734, 2147483648
          %v7960 = vor.u32 1.1754944e-38, %v7959
          %v7961 = vsel %vm7958, %v7960, %v7956
          %v7962 = vmul.f32 1.0, %v7961
          %v7963 = vrcp.pop %v7735
          %v7964 = vmul.f32 %v7735, %v7963
          %v7965 = vsub.f32 1.0, %v7964
          %v7966 = vmul.f32 %v7963, %v7965
          %v7967 = vadd.f32 %v7963, %v7966
          %vm7968 = vweird.f32 %v7735
          %vm7969 = vweird.f32 %v7963
          %vm7970 = vmor %vm7968, %vm7969
          %v7971 = vsel %vm7970, %v7963, %v7967
          %v7972 = vand.u32 2147483647, %v7735
          %vm7973 = vcmp.eq.f32.partialorder %v7972, 8.507059e+37
          %v7974 = vand.u32 %v7735, 2147483648
          %v7975 = vor.u32 1.1754944e-38, %v7974
          %v7976 = vsel %vm7973, %v7975, %v7971
          %v7977 = vmul.f32 1.0, %v7976
          %v7978 = vrcp.pop %v7736
          %v7979 = vmul.f32 %v7736, %v7978
          %v7980 = vsub.f32 1.0, %v7979
          %v7981 = vmul.f32 %v7978, %v7980
          %v7982 = vadd.f32 %v7978, %v7981
          %vm7983 = vweird.f32 %v7736
          %vm7984 = vweird.f32 %v7978
          %vm7985 = vmor %vm7983, %vm7984
          %v7986 = vsel %vm7985, %v7978, %v7982
          %v7987 = vand.u32 2147483647, %v7736
          %vm7988 = vcmp.eq.f32.partialorder %v7987, 8.507059e+37
          %v7989 = vand.u32 %v7736, 2147483648
          %v7990 = vor.u32 1.1754944e-38, %v7989
          %v7991 = vsel %vm7988, %v7990, %v7986
          %v7992 = vmul.f32 1.0, %v7991
          %v7993 = vrcp.pop %v7737
          %v7994 = vmul.f32 %v7737, %v7993
          %v7995 = vsub.f32 1.0, %v7994
          %v7996 = vmul.f32 %v7993, %v7995
          %v7997 = vadd.f32 %v7993, %v7996
          %vm7998 = vweird.f32 %v7737
          %vm7999 = vweird.f32 %v7993
          %vm8000 = vmor %vm7998, %vm7999
          %v8001 = vsel %vm8000, %v7993, %v7997
          %v8002 = vand.u32 2147483647, %v7737
          %vm8003 = vcmp.eq.f32.partialorder %v8002, 8.507059e+37
          %v8004 = vand.u32 %v7737, 2147483648
          %v8005 = vor.u32 1.1754944e-38, %v8004
          %v8006 = vsel %vm8003, %v8005, %v8001
          %v8007 = vmul.f32 1.0, %v8006
          %v8008 = vrcp.pop %v7738
          %v8009 = vmul.f32 %v7738, %v8008
          %v8010 = vsub.f32 1.0, %v8009
          %v8011 = vmul.f32 %v8008, %v8010
          %v8012 = vadd.f32 %v8008, %v8011
          %vm8013 = vweird.f32 %v7738
          %vm8014 = vweird.f32 %v8008
          %vm8015 = vmor %vm8013, %vm8014
          %v8016 = vsel %vm8015, %v8008, %v8012
          %v8017 = vand.u32 2147483647, %v7738
          %vm8018 = vcmp.eq.f32.partialorder %v8017, 8.507059e+37
          %v8019 = vand.u32 %v7738, 2147483648
          %v8020 = vor.u32 1.1754944e-38, %v8019
          %v8021 = vsel %vm8018, %v8020, %v8016
          %v8022 = vmul.f32 1.0, %v8021
          %v8023 = vrcp.pop %v7739
          %v8024 = vmul.f32 %v7739, %v8023
          %v8025 = vsub.f32 1.0, %v8024
          %v8026 = vmul.f32 %v8023, %v8025
          %v8027 = vadd.f32 %v8023, %v8026
          %vm8028 = vweird.f32 %v7739
          %vm8029 = vweird.f32 %v8023
          %vm8030 = vmor %vm8028, %vm8029
          %v8031 = vsel %vm8030, %v8023, %v8027
          %v8032 = vand.u32 2147483647, %v7739
          %vm8033 = vcmp.eq.f32.partialorder %v8032, 8.507059e+37
          %v8034 = vand.u32 %v7739, 2147483648
          %v8035 = vor.u32 1.1754944e-38, %v8034
          %v8036 = vsel %vm8033, %v8035, %v8031
          %v8037 = vmul.f32 1.0, %v8036
          %v8038 = vrcp.pop %v7740
          %v8039 = vmul.f32 %v7740, %v8038
          %v8040 = vsub.f32 1.0, %v8039
          %v8041 = vmul.f32 %v8038, %v8040
          %v8042 = vadd.f32 %v8038, %v8041
          %vm8043 = vweird.f32 %v7740
          %vm8044 = vweird.f32 %v8038
          %vm8045 = vmor %vm8043, %vm8044
          %v8046 = vsel %vm8045, %v8038, %v8042
          %v8047 = vand.u32 2147483647, %v7740
          %vm8048 = vcmp.eq.f32.partialorder %v8047, 8.507059e+37
          %v8049 = vand.u32 %v7740, 2147483648
          %v8050 = vor.u32 1.1754944e-38, %v8049
          %v8051 = vsel %vm8048, %v8050, %v8046
          %v8052 = vmul.f32 1.0, %v8051
          %v8053 = vrcp.pop %v7741
          %v8054 = vmul.f32 %v7741, %v8053
          %v8055 = vsub.f32 1.0, %v8054
          %v8056 = vmul.f32 %v8053, %v8055
          %v8057 = vadd.f32 %v8053, %v8056
          %vm8058 = vweird.f32 %v7741
          %vm8059 = vweird.f32 %v8053
          %vm8060 = vmor %vm8058, %vm8059
          %v8061 = vsel %vm8060, %v8053, %v8057
          %v8062 = vand.u32 2147483647, %v7741
          %vm8063 = vcmp.eq.f32.partialorder %v8062, 8.507059e+37
          %v8064 = vand.u32 %v7741, 2147483648
          %v8065 = vor.u32 1.1754944e-38, %v8064
          %v8066 = vsel %vm8063, %v8065, %v8061
          %v8067 = vmul.f32 1.0, %v8066
          %v8068 = vrcp.pop %v7742
          %v8069 = vmul.f32 %v7742, %v8068
          %v8070 = vsub.f32 1.0, %v8069
          %v8071 = vmul.f32 %v8068, %v8070
          %v8072 = vadd.f32 %v8068, %v8071
          %vm8073 = vweird.f32 %v7742
          %vm8074 = vweird.f32 %v8068
          %vm8075 = vmor %vm8073, %vm8074
          %v8076 = vsel %vm8075, %v8068, %v8072
          %v8077 = vand.u32 2147483647, %v7742
          %vm8078 = vcmp.eq.f32.partialorder %v8077, 8.507059e+37
          %v8079 = vand.u32 %v7742, 2147483648
          %v8080 = vor.u32 1.1754944e-38, %v8079
          %v8081 = vsel %vm8078, %v8080, %v8076
          %v8082 = vmul.f32 1.0, %v8081
          %v8083 = vrcp.pop %v7743
          %v8084 = vmul.f32 %v7743, %v8083
          %v8085 = vsub.f32 1.0, %v8084
          %v8086 = vmul.f32 %v8083, %v8085
          %v8087 = vadd.f32 %v8083, %v8086
          %vm8088 = vweird.f32 %v7743
          %vm8089 = vweird.f32 %v8083
          %vm8090 = vmor %vm8088, %vm8089
          %v8091 = vsel %vm8090, %v8083, %v8087
          %v8092 = vand.u32 2147483647, %v7743
          %vm8093 = vcmp.eq.f32.partialorder %v8092, 8.507059e+37
          %v8094 = vand.u32 %v7743, 2147483648
          %v8095 = vor.u32 1.1754944e-38, %v8094
          %v8096 = vsel %vm8093, %v8095, %v8091
          %v8097 = vmul.f32 1.0, %v8096
          %v8098 = vrcp.pop %v7744
          %v8099 = vmul.f32 %v7744, %v8098
          %v8100 = vsub.f32 1.0, %v8099
          %v8101 = vmul.f32 %v8098, %v8100
          %v8102 = vadd.f32 %v8098, %v8101
          %vm8103 = vweird.f32 %v7744
          %vm8104 = vweird.f32 %v8098
          %vm8105 = vmor %vm8103, %vm8104
          %v8106 = vsel %vm8105, %v8098, %v8102
          %v8107 = vand.u32 2147483647, %v7744
          %vm8108 = vcmp.eq.f32.partialorder %v8107, 8.507059e+37
          %v8109 = vand.u32 %v7744, 2147483648
          %v8110 = vor.u32 1.1754944e-38, %v8109
          %v8111 = vsel %vm8108, %v8110, %v8106
          %v8112 = vmul.f32 1.0, %v8111
          %v8113 = vrcp.pop %v7745
          %v8114 = vmul.f32 %v7745, %v8113
          %v8115 = vsub.f32 1.0, %v8114
          %v8116 = vmul.f32 %v8113, %v8115
          %v8117 = vadd.f32 %v8113, %v8116
          %vm8118 = vweird.f32 %v7745
          %vm8119 = vweird.f32 %v8113
          %vm8120 = vmor %vm8118, %vm8119
          %v8121 = vsel %vm8120, %v8113, %v8117
          %v8122 = vand.u32 2147483647, %v7745
          %vm8123 = vcmp.eq.f32.partialorder %v8122, 8.507059e+37
          %v8124 = vand.u32 %v7745, 2147483648
          %v8125 = vor.u32 1.1754944e-38, %v8124
          %v8126 = vsel %vm8123, %v8125, %v8121
          %v8127 = vmul.f32 1.0, %v8126
          %v8128 = vrcp.pop %v7746
          %v8129 = vmul.f32 %v7746, %v8128
          %v8130 = vsub.f32 1.0, %v8129
          %v8131 = vmul.f32 %v8128, %v8130
          %v8132 = vadd.f32 %v8128, %v8131
          %vm8133 = vweird.f32 %v7746
          %vm8134 = vweird.f32 %v8128
          %vm8135 = vmor %vm8133, %vm8134
          %v8136 = vsel %vm8135, %v8128, %v8132
          %v8137 = vand.u32 2147483647, %v7746
          %vm8138 = vcmp.eq.f32.partialorder %v8137, 8.507059e+37
          %v8139 = vand.u32 %v7746, 2147483648
          %v8140 = vor.u32 1.1754944e-38, %v8139
          %v8141 = vsel %vm8138, %v8140, %v8136
          %v8142 = vmul.f32 1.0, %v8141
          %v8143 = vrcp.pop %v7747
          %v8144 = vmul.f32 %v7747, %v8143
          %v8145 = vsub.f32 1.0, %v8144
          %v8146 = vmul.f32 %v8143, %v8145
          %v8147 = vadd.f32 %v8143, %v8146
          %vm8148 = vweird.f32 %v7747
          %vm8149 = vweird.f32 %v8143
          %vm8150 = vmor %vm8148, %vm8149
          %v8151 = vsel %vm8150, %v8143, %v8147
          %v8152 = vand.u32 2147483647, %v7747
          %vm8153 = vcmp.eq.f32.partialorder %v8152, 8.507059e+37
          %v8154 = vand.u32 %v7747, 2147483648
          %v8155 = vor.u32 1.1754944e-38, %v8154
          %v8156 = vsel %vm8153, %v8155, %v8151
          %v8157 = vmul.f32 1.0, %v8156
          %v8158 = vrcp.pop %v7748
          %v8159 = vmul.f32 %v7748, %v8158
          %v8160 = vsub.f32 1.0, %v8159
          %v8161 = vmul.f32 %v8158, %v8160
          %v8162 = vadd.f32 %v8158, %v8161
          %vm8163 = vweird.f32 %v7748
          %vm8164 = vweird.f32 %v8158
          %vm8165 = vmor %vm8163, %vm8164
          %v8166 = vsel %vm8165, %v8158, %v8162
          %v8167 = vand.u32 2147483647, %v7748
          %vm8168 = vcmp.eq.f32.partialorder %v8167, 8.507059e+37
          %v8169 = vand.u32 %v7748, 2147483648
          %v8170 = vor.u32 1.1754944e-38, %v8169
          %v8171 = vsel %vm8168, %v8170, %v8166
          %v8172 = vmul.f32 1.0, %v8171
          %v8173 = vrcp.pop %v7749
          %v8174 = vmul.f32 %v7749, %v8173
          %v8175 = vsub.f32 1.0, %v8174
          %v8176 = vmul.f32 %v8173, %v8175
          %v8177 = vadd.f32 %v8173, %v8176
          %vm8178 = vweird.f32 %v7749
          %vm8179 = vweird.f32 %v8173
          %vm8180 = vmor %vm8178, %vm8179
          %v8181 = vsel %vm8180, %v8173, %v8177
          %v8182 = vand.u32 2147483647, %v7749
          %vm8183 = vcmp.eq.f32.partialorder %v8182, 8.507059e+37
          %v8184 = vand.u32 %v7749, 2147483648
          %v8185 = vor.u32 1.1754944e-38, %v8184
          %v8186 = vsel %vm8183, %v8185, %v8181
          %v8187 = vmul.f32 1.0, %v8186
          %v8188 = vrcp.pop %v7750
          %v8189 = vmul.f32 %v7750, %v8188
          %v8190 = vsub.f32 1.0, %v8189
          %v8191 = vmul.f32 %v8188, %v8190
          %v8192 = vadd.f32 %v8188, %v8191
          %vm8193 = vweird.f32 %v7750
          %vm8194 = vweird.f32 %v8188
          %vm8195 = vmor %vm8193, %vm8194
          %v8196 = vsel %vm8195, %v8188, %v8192
          %v8197 = vand.u32 2147483647, %v7750
          %vm8198 = vcmp.eq.f32.partialorder %v8197, 8.507059e+37
          %v8199 = vand.u32 %v7750, 2147483648
          %v8200 = vor.u32 1.1754944e-38, %v8199
          %v8201 = vsel %vm8198, %v8200, %v8196
          %v8202 = vmul.f32 1.0, %v8201
          %v8203 = vrcp.pop %v7751
          %v8204 = vmul.f32 %v7751, %v8203
          %v8205 = vsub.f32 1.0, %v8204
          %v8206 = vmul.f32 %v8203, %v8205
          %v8207 = vadd.f32 %v8203, %v8206
          %vm8208 = vweird.f32 %v7751
          %vm8209 = vweird.f32 %v8203
          %vm8210 = vmor %vm8208, %vm8209
          %v8211 = vsel %vm8210, %v8203, %v8207
          %v8212 = vand.u32 2147483647, %v7751
          %vm8213 = vcmp.eq.f32.partialorder %v8212, 8.507059e+37
          %v8214 = vand.u32 %v7751, 2147483648
          %v8215 = vor.u32 1.1754944e-38, %v8214
          %v8216 = vsel %vm8213, %v8215, %v8211
          %v8217 = vmul.f32 1.0, %v8216
          %v8218 = vrcp.pop %v7752
          %v8219 = vmul.f32 %v7752, %v8218
          %v8220 = vsub.f32 1.0, %v8219
          %v8221 = vmul.f32 %v8218, %v8220
          %v8222 = vadd.f32 %v8218, %v8221
          %vm8223 = vweird.f32 %v7752
          %vm8224 = vweird.f32 %v8218
          %vm8225 = vmor %vm8223, %vm8224
          %v8226 = vsel %vm8225, %v8218, %v8222
          %v8227 = vand.u32 2147483647, %v7752
          %vm8228 = vcmp.eq.f32.partialorder %v8227, 8.507059e+37
          %v8229 = vand.u32 %v7752, 2147483648
          %v8230 = vor.u32 1.1754944e-38, %v8229
          %v8231 = vsel %vm8228, %v8230, %v8226
          %v8232 = vmul.f32 1.0, %v8231
          %8233 = vst [vmem:[#allocation19] sm:$0xff] %v7767
          %8234 = vst [vmem:[#allocation19 + $0x8] sm:$0xff] %v7782
          %8235 = vst [vmem:[#allocation19 + $0x10] sm:$0xff] %v7797
          %8236 = vst [vmem:[#allocation19 + $0x18] sm:$0xff] %v7812
          %8237 = vst [vmem:[#allocation19 + $0x20] sm:$0xff] %v7827
          %8238 = vst [vmem:[#allocation19 + $0x28] sm:$0xff] %v7842
          %8239 = vst [vmem:[#allocation19 + $0x30] sm:$0xff] %v7857
          %8240 = vst [vmem:[#allocation19 + $0x38] sm:$0xff] %v7872
          %8241 = vst [vmem:[#allocation19 + $0x40] sm:$0xff] %v7887
          %8242 = vst [vmem:[#allocation19 + $0x48] sm:$0xff] %v7902
          %8243 = vst [vmem:[#allocation19 + $0x50] sm:$0xff] %v7917
          %8244 = vst [vmem:[#allocation19 + $0x58] sm:$0xff] %v7932
          %8245 = vst [vmem:[#allocation19 + $0x60] sm:$0xff] %v7947
          %8246 = vst [vmem:[#allocation19 + $0x68] sm:$0xff] %v7962
          %8247 = vst [vmem:[#allocation19 + $0x70] sm:$0xff] %v7977
          %8248 = vst [vmem:[#allocation19 + $0x78] sm:$0xff] %v7992
          %8249 = vst [vmem:[#allocation19 + $0x80] sm:$0xff] %v8007
          %8250 = vst [vmem:[#allocation19 + $0x88] sm:$0xff] %v8022
          %8251 = vst [vmem:[#allocation19 + $0x90] sm:$0xff] %v8037
          %8252 = vst [vmem:[#allocation19 + $0x98] sm:$0xff] %v8052
          %8253 = vst [vmem:[#allocation19 + $0xa0] sm:$0xff] %v8067
          %8254 = vst [vmem:[#allocation19 + $0xa8] sm:$0xff] %v8082
          %8255 = vst [vmem:[#allocation19 + $0xb0] sm:$0xff] %v8097
          %8256 = vst [vmem:[#allocation19 + $0xb8] sm:$0xff] %v8112
          %8257 = vst [vmem:[#allocation19 + $0xc0] sm:$0xff] %v8127
          %8258 = vst [vmem:[#allocation19 + $0xc8] sm:$0xff] %v8142
          %8259 = vst [vmem:[#allocation19 + $0xd0] sm:$0xff] %v8157
          %8260 = vst [vmem:[#allocation19 + $0xd8] sm:$0xff] %v8172
          %8261 = vst [vmem:[#allocation19 + $0xe0] sm:$0xff] %v8187
          %8262 = vst [vmem:[#allocation19 + $0xe8] sm:$0xff] %v8202
          %8263 = vst [vmem:[#allocation19 + $0xf0] sm:$0xff] %v8217
          %8264 = vst [vmem:[#allocation19 + $0xf8] sm:$0xff] %v8232
        $region112: #{relation_network_forward.1} parent=67 // pred_fallthru
          _
        // Predicated region
        $region113: #{relation_network_forward.1} parent=67 // pred_check
          %p8265 = pneg %p307
        $region114: #{relation_network_forward.1} parent=67 // pred_check_branch
          %8267 = sbr.rel (%p8265) target = $region116
        $region115: #{relation_network_forward.1} parent=67 // pred_region
          %8269 = vsyncadd [#allocation6], 0
          %s8270 = sshll.u32 [#allocation19], 4
          %s8271 = int_to_ptr.vmem [resolvable:$true] %s8270
          %s8272 = sshll.u32 %s12, 4
          %s8273 = int_to_ptr.hbm [resolvable:$true] %s8272
          %8278 = dma.vmem_to_hbm [thread:$0]  %s8271, 4096, %s8273, [#allocation6], 128, 128, 8
        $region116: #{relation_network_forward.1} parent=67 // pred_fallthru
          _
        // Predicated region
        $region117: #{relation_network_forward.1} parent=67 // pred_check
          %p8279 = pneg %p307
        $region118: #{relation_network_forward.1} parent=67 // pred_check_branch
          %8281 = sbr.rel (%p8279) target = $region120
        $region119: #{relation_network_forward.1} parent=67 // pred_region
          %8283 = dma.done [#allocation6], 4096
        $region120: #{relation_network_forward.1} parent=67 // pred_fallthru
          _
      $region68: #{relation_network_forward.1} parent=5 // pred_fallthru
        _
      %p8284 = scmp.le.s32.totalorder 2, %s27
      // Predicated region
      $region121: #{relation_network_forward.1} parent=5 // pred_check
        %p8285 = pneg %p8284
      $region122: #{relation_network_forward.1} parent=5 // pred_check_branch
        %8287 = sbr.rel (%p8285) target = $region124
      $region123: #{relation_network_forward.1} parent=5 // pred_region
        %s8288 = ssub.s32 %s27, 2
      $region124: #{relation_network_forward.1} parent=5 // pred_fallthru
        _
    $region6: #{relation_network_forward.1} parent=1 // loop_footer
      %s31 = sadd.s32 1, %s27
    $region7: #{relation_network_forward.1} parent=1 // loop_footer_branch
      %26 = sbr.rel target = $region3
    $region8: #{relation_network_forward.1} parent=1 // loop_exit
      _
    %8289 = vsyncpa [#allocation5], 1
    %s8290 = scalar_lea.sflag [#allocation5], 1
    %8291 = vsyncpa %s8290, 1
    %8292 = vsyncpa [#allocation8], 1
    %8293 = vsyncpa [#allocation11], 1
    %8294 = vsyncpa [#allocation14], 1
    %8295 = vsyncpa [#allocation17], 1
    %8296 = vsyncpa [#allocation6], 1
    %s8297 = scalar_lea.sflag [#allocation6], 1
    %8298 = vsyncpa %s8297, 1

</llo_original>
